<compile_context>
chip_gen: v7x
topology: tpu7x:2x2x1
jax: 0.10.0
libtpu: 0.0.40
codegen_flags: <defaults>
</compile_context>

<pallas_src>
import functools

import jax
import jax.numpy as jnp
from jax import lax
from jax.experimental import pallas as pl
from jax.experimental.pallas import tpu as pltpu


# ----------------------------------------------------------------------------
# Conv-as-GEMM kernel (transposed):  out = relu(W @ P + b) * scale + shift
#   W: (Cout, K) bf16, P: (K, B*OH*OW) bf16, bst: (Cout, 8) f32 packed as
#   [bias, scale, shift, 0...].  Output (Cout, B*OH*OW) bf16 (lane-dense).
# ----------------------------------------------------------------------------
def _conv_kernel(w_ref, p_ref, bst_ref, o_ref):
    y = jnp.dot(w_ref[...], p_ref[...], preferred_element_type=jnp.float32)
    bst = bst_ref[...]
    b = bst[:, 0:1]
    s = bst[:, 1:2]
    t = bst[:, 2:3]
    o_ref[...] = (jnp.maximum(y + b, 0.0) * s + t).astype(o_ref.dtype)


def conv_gemm(w, pT, bst):
    """w:(M,K) bf16 pre-padded; pT:(K,N) bf16; bst:(M,8) f32 -> (M,N) bf16."""
    M, K = w.shape
    K2, N = pT.shape
    assert K == K2
    return pl.pallas_call(
        _conv_kernel,
        out_shape=jax.ShapeDtypeStruct((M, N), jnp.bfloat16),
        grid_spec=pltpu.PrefetchScalarGridSpec(
            num_scalar_prefetch=0,
            grid=(1,),
            in_specs=[
                pl.BlockSpec((M, K), lambda i: (0, 0)),
                pl.BlockSpec((K, N), lambda i: (0, 0)),
                pl.BlockSpec((M, 8), lambda i: (0, 0)),
            ],
            out_specs=pl.BlockSpec((M, N), lambda i: (0, 0)),
        ),
        compiler_params=pltpu.CompilerParams(
            dimension_semantics=("arbitrary",)),
    )(w, pT, bst)


# ----------------------------------------------------------------------------
# MLP stage 1: fc1 (K-tiled, f32 accumulation) fused with the matching
# partial-fc2 matmul.  Grid = (n1_split, K//tk); the N1 axis is "parallel"
# so on v7x each TensorCore streams half of the fc1 weights.
# ----------------------------------------------------------------------------
def _fc1_kernel(x_ref, w1_ref, b1_ref, w2_ref, o_ref, acc_ref):
    k = pl.program_id(1)

    @pl.when(k == 0)
    def _():
        acc_ref[...] = jnp.zeros_like(acc_ref)

    acc_ref[...] += jnp.dot(x_ref[...], w1_ref[...],
                            preferred_element_type=jnp.float32)

    @pl.when(k == pl.num_programs(1) - 1)
    def _():
        h1 = jnp.maximum(acc_ref[...] + b1_ref[...], 0.0)
        # Partial fc2: this split's slice of h1 against the matching w2 rows.
        o_ref[...] = jnp.dot(h1.astype(w2_ref.dtype), w2_ref[...],
                             preferred_element_type=jnp.float32)


def fc1_fc2_partial(x, w1, b1, w2, *, n1_split=2, tk=2048):
    """x:(M,K) bf16; w1:(K,N1) bf16; b1:(1,N1) f32; w2:(N1,N2) bf16.
    Returns (M, n1_split*N2) f32 of per-split partial fc2 pre-activations."""
    M, K = x.shape
    N1 = w1.shape[1]
    N2 = w2.shape[1]
    assert K % tk == 0, "flatten size (4096) must be a multiple of tk"
    assert N1 % n1_split == 0
    n1b = N1 // n1_split
    return pl.pallas_call(
        _fc1_kernel,
        out_shape=jax.ShapeDtypeStruct((M, n1_split * N2), jnp.float32),
        grid_spec=pltpu.PrefetchScalarGridSpec(
            num_scalar_prefetch=0,
            grid=(n1_split, K // tk),
            in_specs=[
                pl.BlockSpec((M, tk), lambda j, k: (0, k)),
                pl.BlockSpec((tk, n1b), lambda j, k: (k, j)),
                pl.BlockSpec((1, n1b), lambda j, k: (0, j)),
                pl.BlockSpec((n1b, N2), lambda j, k: (j, 0)),
            ],
            out_specs=pl.BlockSpec((M, N2), lambda j, k: (0, j)),
            scratch_shapes=[pltpu.VMEM((M, n1b), jnp.float32)],
        ),
        compiler_params=pltpu.CompilerParams(
            dimension_semantics=("parallel", "arbitrary")),
    )(x, w1, b1, w2)


# ----------------------------------------------------------------------------
# MLP stage 2 (tiny epilogue): combine the N1-split partials, bias + ReLU,
# then fc3 (+bias).  Single grid point, everything resident.
# ----------------------------------------------------------------------------
def _fc23_kernel(h_ref, b2_ref, w3_ref, b3_ref, o_ref, *, n1_split):
    n2 = b2_ref.shape[-1]
    h = h_ref[...]
    s = h[:, 0:n2]
    for j in range(1, n1_split):
        s = s + h[:, j * n2:(j + 1) * n2]
    h2 = jnp.maximum(s + b2_ref[...], 0.0)
    q = jnp.dot(h2.astype(w3_ref.dtype), w3_ref[...],
                preferred_element_type=jnp.float32) + b3_ref[...]
    o_ref[...] = q


def fc23_epilogue(hparts, b2, w3, b3, *, n1_split=2):
    M = hparts.shape[0]
    N2 = b2.shape[-1]
    N3 = w3.shape[-1]
    return pl.pallas_call(
        functools.partial(_fc23_kernel, n1_split=n1_split),
        out_shape=jax.ShapeDtypeStruct((M, N3), jnp.float32),
        grid_spec=pltpu.PrefetchScalarGridSpec(
            num_scalar_prefetch=0,
            grid=(1,),
            in_specs=[
                pl.BlockSpec((M, n1_split * N2), lambda i: (0, 0)),
                pl.BlockSpec((1, N2), lambda i: (0, 0)),
                pl.BlockSpec((N2, N3), lambda i: (0, 0)),
                pl.BlockSpec((1, N3), lambda i: (0, 0)),
            ],
            out_specs=pl.BlockSpec((M, N3), lambda i: (0, 0)),
        ),
        compiler_params=pltpu.CompilerParams(
            dimension_semantics=("arbitrary",)),
    )(hparts, b2, w3, b3)


# ----------------------------------------------------------------------------
# JAX glue: im2col via XLA's patch-extraction conv (no gather / 6-D transpose).
# Rows ordered (cin, kh, kw) == PyTorch weight flatten order; columns (b,oh,ow).
# ----------------------------------------------------------------------------
def _patches_T(x_nchw, k, stride, pad):
    B = x_nchw.shape[0]
    p = lax.conv_general_dilated_patches(
        x_nchw, filter_shape=(k, k), window_strides=(stride, stride),
        padding=((pad, pad), (pad, pad)),
        dimension_numbers=("NCHW", "OIHW", "NCHW"))      # (B, Cin*k*k, OH, OW)
    _, F, OH, OW = p.shape
    pT = p.reshape(B, F, OH * OW).transpose(1, 0, 2).reshape(F, B * OH * OW)
    return pT, OH, OW


# ----------------------------------------------------------------------------
# Deterministic parameter init (shapes from Agent.__init__'s q_net).
# ----------------------------------------------------------------------------
def init_params(key, n_actions=9):
    ks = jax.random.split(key, 12)

    def w_init(k, shape, s=0.05):
        return jax.random.normal(k, shape, jnp.float32) * s

    return {
        "conv1_w": w_init(ks[0], (32, 4, 10, 10)),
        "conv1_b": w_init(ks[1], (32,)),
        "bn_gamma": 1.0 + 0.1 * jax.random.normal(ks[2], (32,), jnp.float32),
        "bn_beta": 0.1 * jax.random.normal(ks[3], (32,), jnp.float32),
        "bn_mean": 0.1 * jax.random.normal(ks[4], (32,), jnp.float32),
        "bn_var": jnp.abs(jax.random.normal(ks[5], (32,), jnp.float32)) + 0.5,
        "conv2_w": w_init(ks[6], (64, 32, 4, 4)),
        "conv2_b": w_init(ks[7], (64,)),
        "fc1_w": w_init(ks[8], (4096, 1228), 0.02),
        "fc1_b": jnp.zeros((1228,), jnp.float32),
        "fc2_w": w_init(ks[9], (1228, 512), 0.02),
        "fc2_b": jnp.zeros((512,), jnp.float32),
        "fc3_w": w_init(ks[10], (512, n_actions), 0.02),
        "fc3_b": jnp.zeros((n_actions,), jnp.float32),
    }


# ----------------------------------------------------------------------------
# One-time weight prep (OUT of the hot path): fold eval-mode BN, flatten and
# K-pad conv weights, pack per-channel side inputs, pad FC dims to (8,128)
# tiles and cast every weight stream to bf16.
# ----------------------------------------------------------------------------
def prepare_params(params, eps=1e-5, n1_pad=1280, na_pad=128):
    f32, bf16 = jnp.float32, jnp.bfloat16
    bn_scale = params["bn_gamma"] / jnp.sqrt(params["bn_var"] + eps)
    bn_shift = params["bn_beta"] - params["bn_mean"] * bn_scale

    def pack_bst(b, s, t):                       # (Cout, 8) = [bias,scale,shift,0..]
        m = b.shape[0]
        out = jnp.zeros((m, 8), f32)
        return out.at[:, 0].set(b).at[:, 1].set(s).at[:, 2].set(t)

    c1w = params["conv1_w"].reshape(32, -1)                       # (32, 400)
    c1w = jnp.pad(c1w, ((0, 0), (0, 512 - c1w.shape[1])))         # K -> 512
    c2w = params["conv2_w"].reshape(64, -1)                       # (64, 512)

    n1 = params["fc1_b"].shape[0]          # 1228
    na = params["fc3_b"].shape[0]          # n_actions

    fc1_w = jnp.pad(params["fc1_w"], ((0, 0), (0, n1_pad - n1)))
    fc1_b = jnp.pad(params["fc1_b"], (0, n1_pad - n1)).reshape(1, n1_pad)
    fc2_w = jnp.pad(params["fc2_w"], ((0, n1_pad - n1), (0, 0)))
    fc2_b = params["fc2_b"].reshape(1, -1)
    fc3_w = jnp.pad(params["fc3_w"], ((0, 0), (0, na_pad - na)))
    fc3_b = jnp.pad(params["fc3_b"], (0, na_pad - na)).reshape(1, na_pad)

    return {
        "conv1_w": c1w.astype(bf16),
        "conv1_bst": pack_bst(params["conv1_b"], bn_scale, bn_shift),
        "conv2_w": c2w.astype(bf16),
        "conv2_bst": pack_bst(params["conv2_b"],
                              jnp.ones((64,), f32), jnp.zeros((64,), f32)),
        "fc1_w": fc1_w.astype(bf16),
        "fc1_b": fc1_b.astype(f32),
        "fc2_w": fc2_w.astype(bf16),
        "fc2_b": fc2_b.astype(f32),
        "fc3_w": fc3_w.astype(bf16),
        "fc3_b": fc3_b.astype(f32),
    }


# ----------------------------------------------------------------------------
# Forward pass == Agent.forward(x) == q_net(x)   (x is NCHW, (B, 4, 84, 84))
# ----------------------------------------------------------------------------
def agent_forward(pp, x, *, n_actions=9):
    B = x.shape[0]
    xb = x.astype(jnp.bfloat16)

    # --- Conv1 + ReLU + BatchNorm(eval) — transposed GEMM, out (32, B*256) ---
    p1, oh1, ow1 = _patches_T(xb, k=10, stride=5, pad=1)          # (400, B*256)
    p1 = jnp.pad(p1, ((0, 512 - p1.shape[0]), (0, 0)))            # K pad -> 512
    y1 = conv_gemm(pp["conv1_w"], p1, pp["conv1_bst"])            # (32, B*256) bf16

    # --- Conv2 + ReLU — transposed GEMM, out (64, B*64) ---
    y1_nchw = y1.reshape(32, B, oh1, ow1).transpose(1, 0, 2, 3)   # (B,32,16,16)
    p2, oh2, ow2 = _patches_T(y1_nchw, k=4, stride=2, pad=1)      # (512, B*64)
    y2 = conv_gemm(pp["conv2_w"], p2, pp["conv2_bst"])            # (64, B*64) bf16

    # --- Flatten in NCHW (C,H,W) order, pad batch rows to a multiple of 8 ---
    flat = y2.reshape(64, B, oh2 * ow2).transpose(1, 0, 2).reshape(B, -1)
    m_pad = max(8, ((B + 7) // 8) * 8)
    flat = jnp.pad(flat, ((0, m_pad - B), (0, 0)))                # (m_pad, 4096) bf16

    # --- fc1 (N1 split on a "parallel" axis -> both TCs on v7x) + partial fc2,
    #     then a tiny epilogue call: combine halves, bias+ReLU, fc3. ---
    hparts = fc1_fc2_partial(flat, pp["fc1_w"], pp["fc1_b"], pp["fc2_w"],
                             n1_split=2, tk=2048)                 # (m_pad, 1024) f32
    q = fc23_epilogue(hparts, pp["fc2_b"], pp["fc3_w"], pp["fc3_b"],
                      n1_split=2)                                 # (m_pad, 128) f32
    return q[:B, :n_actions]


if __name__ == "__main__":
    key = jax.random.PRNGKey(0)
    pkey, xkey = jax.random.split(key)
    n_actions = 9  # MsPacman action space
    params = init_params(pkey, n_actions=n_actions)
    prepped = prepare_params(params)   # one-time weight prep, outside the jit hot path

    # Spatial size 84x84 is forced by Linear(4096, ...): 64 * 8 * 8 = 4096.
    x = jax.random.uniform(xkey, (2, 4, 84, 84), dtype=jnp.float32)

    fwd = jax.jit(functools.partial(agent_forward, n_actions=n_actions))
    q = fwd(prepped, x)
    q = jax.block_until_ready(q)

    assert q.shape == (2, n_actions), q.shape
    assert bool(jnp.all(jnp.isfinite(q)))
    print("KERNEL_OK")
</pallas_src>

<mosaic_0001>
module attributes {stable_mosaic.version = 11 : i64} {
  func.func @_conv_kernel(%arg0: i32, %arg1: memref<32x512xbf16, #tpu.memory_space<vmem>>, %arg2: memref<512x512xbf16, #tpu.memory_space<vmem>>, %arg3: memref<32x8xf32, #tpu.memory_space<vmem>>, %arg4: memref<32x512xbf16, #tpu.memory_space<vmem>>) attributes {dimension_semantics = [#tpu.dimension_semantics<arbitrary>], iteration_bounds = array<i64: 1>, scalar_prefetch = 0 : i64, scratch_operands = 0 : i64, tpu.core_type = #tpu.core_type<tc>, window_params = [{pipeline_mode = #tpu.pipeline_mode<synchronous>, transform_indices = @transform_0, window_bounds = array<i64: 32, 512>}, {pipeline_mode = #tpu.pipeline_mode<synchronous>, transform_indices = @transform_1, window_bounds = array<i64: 512, 512>}, {pipeline_mode = #tpu.pipeline_mode<synchronous>, transform_indices = @transform_2, window_bounds = array<i64: 32, 8>}, {pipeline_mode = #tpu.pipeline_mode<synchronous>, transform_indices = @transform_3, window_bounds = array<i64: 32, 512>}]} {
    %c0 = arith.constant 0 : index
    %c0_0 = arith.constant 0 : index
    %0 = vector.load %arg1[%c0, %c0_0] : memref<32x512xbf16, #tpu.memory_space<vmem>>, vector<32x512xbf16>
    %c0_1 = arith.constant 0 : index
    %c0_2 = arith.constant 0 : index
    %1 = vector.load %arg2[%c0_1, %c0_2] : memref<512x512xbf16, #tpu.memory_space<vmem>>, vector<512x512xbf16>
    %cst = arith.constant dense<0.000000e+00> : vector<32x512xf32>
    %2 = tpu.matmul %0, %1, %cst {dimension_numbers = #tpu.dot_dimension_numbers<[1], [0], [0], [1], [0, 0, 1, 1], [], []>} : vector<32x512xbf16>, vector<512x512xbf16>, vector<32x512xf32> -> vector<32x512xf32>
    %c0_3 = arith.constant 0 : index
    %c0_4 = arith.constant 0 : index
    %3 = vector.load %arg3[%c0_3, %c0_4] : memref<32x8xf32, #tpu.memory_space<vmem>>, vector<32x8xf32>
    %4 = vector.extract_strided_slice %3 {offsets = [0, 0], sizes = [32, 1], strides = [1, 1]} : vector<32x8xf32> to vector<32x1xf32>
    %5 = vector.extract_strided_slice %3 {offsets = [0, 1], sizes = [32, 1], strides = [1, 1]} : vector<32x8xf32> to vector<32x1xf32>
    %6 = vector.extract_strided_slice %3 {offsets = [0, 2], sizes = [32, 1], strides = [1, 1]} : vector<32x8xf32> to vector<32x1xf32>
    %7 = vector.broadcast %4 : vector<32x1xf32> to vector<32x512xf32>
    %8 = arith.addf %2, %7 : vector<32x512xf32>
    %cst_5 = arith.constant 0.000000e+00 : f32
    %9 = vector.broadcast %cst_5 : f32 to vector<32x512xf32>
    %10 = arith.maximumf %8, %9 : vector<32x512xf32>
    %11 = vector.broadcast %5 : vector<32x1xf32> to vector<32x512xf32>
    %12 = arith.mulf %10, %11 : vector<32x512xf32>
    %13 = vector.broadcast %6 : vector<32x1xf32> to vector<32x512xf32>
    %14 = arith.addf %12, %13 : vector<32x512xf32>
    %15 = arith.truncf %14 : vector<32x512xf32> to vector<32x512xbf16>
    %c0_6 = arith.constant 0 : index
    %c0_7 = arith.constant 0 : index
    %16 = vector.load %arg4[%c0_6, %c0_7] : memref<32x512xbf16, #tpu.memory_space<vmem>>, vector<32x512xbf16>
    tpu.vector_store %arg4[%c0_6, %c0_7], %15 {strides = array<i32>} : memref<32x512xbf16, #tpu.memory_space<vmem>>, vector<32x512xbf16>,
    return
  }
  func.func @transform_0(%arg0: i32) -> (i32, i32) {
    %c0_i32 = arith.constant 0 : i32
    %c0_i32_0 = arith.constant 0 : i32
    %c0_i32_1 = arith.constant 0 : i32
    return %c0_i32, %c0_i32_0 : i32, i32
  }
  func.func @transform_1(%arg0: i32) -> (i32, i32) {
    %c0_i32 = arith.constant 0 : i32
    %c0_i32_0 = arith.constant 0 : i32
    %c0_i32_1 = arith.constant 0 : i32
    return %c0_i32, %c0_i32_0 : i32, i32
  }
  func.func @transform_2(%arg0: i32) -> (i32, i32) {
    %c0_i32 = arith.constant 0 : i32
    %c0_i32_0 = arith.constant 0 : i32
    %c0_i32_1 = arith.constant 0 : i32
    return %c0_i32, %c0_i32_0 : i32, i32
  }
  func.func @transform_3(%arg0: i32) -> (i32, i32) {
    %c0_i32 = arith.constant 0 : i32
    %c0_i32_0 = arith.constant 0 : i32
    %c0_i32_1 = arith.constant 0 : i32
    return %c0_i32, %c0_i32_0 : i32, i32
  }
}

module attributes {stable_mosaic.version = 11 : i64} {
  func.func @_conv_kernel(%arg0: i32, %arg1: memref<64x512xbf16, #tpu.memory_space<vmem>>, %arg2: memref<512x128xbf16, #tpu.memory_space<vmem>>, %arg3: memref<64x8xf32, #tpu.memory_space<vmem>>, %arg4: memref<64x128xbf16, #tpu.memory_space<vmem>>) attributes {dimension_semantics = [#tpu.dimension_semantics<arbitrary>], iteration_bounds = array<i64: 1>, scalar_prefetch = 0 : i64, scratch_operands = 0 : i64, tpu.core_type = #tpu.core_type<tc>, window_params = [{pipeline_mode = #tpu.pipeline_mode<synchronous>, transform_indices = @transform_0, window_bounds = array<i64: 64, 512>}, {pipeline_mode = #tpu.pipeline_mode<synchronous>, transform_indices = @transform_1, window_bounds = array<i64: 512, 128>}, {pipeline_mode = #tpu.pipeline_mode<synchronous>, transform_indices = @transform_2, window_bounds = array<i64: 64, 8>}, {pipeline_mode = #tpu.pipeline_mode<synchronous>, transform_indices = @transform_3, window_bounds = array<i64: 64, 128>}]} {
    %c0 = arith.constant 0 : index
    %c0_0 = arith.constant 0 : index
    %0 = vector.load %arg1[%c0, %c0_0] : memref<64x512xbf16, #tpu.memory_space<vmem>>, vector<64x512xbf16>
    %c0_1 = arith.constant 0 : index
    %c0_2 = arith.constant 0 : index
    %1 = vector.load %arg2[%c0_1, %c0_2] : memref<512x128xbf16, #tpu.memory_space<vmem>>, vector<512x128xbf16>
    %cst = arith.constant dense<0.000000e+00> : vector<64x128xf32>
    %2 = tpu.matmul %0, %1, %cst {dimension_numbers = #tpu.dot_dimension_numbers<[1], [0], [0], [1], [0, 0, 1, 1], [], []>} : vector<64x512xbf16>, vector<512x128xbf16>, vector<64x128xf32> -> vector<64x128xf32>
    %c0_3 = arith.constant 0 : index
    %c0_4 = arith.constant 0 : index
    %3 = vector.load %arg3[%c0_3, %c0_4] : memref<64x8xf32, #tpu.memory_space<vmem>>, vector<64x8xf32>
    %4 = vector.extract_strided_slice %3 {offsets = [0, 0], sizes = [64, 1], strides = [1, 1]} : vector<64x8xf32> to vector<64x1xf32>
    %5 = vector.extract_strided_slice %3 {offsets = [0, 1], sizes = [64, 1], strides = [1, 1]} : vector<64x8xf32> to vector<64x1xf32>
    %6 = vector.extract_strided_slice %3 {offsets = [0, 2], sizes = [64, 1], strides = [1, 1]} : vector<64x8xf32> to vector<64x1xf32>
    %7 = vector.broadcast %4 : vector<64x1xf32> to vector<64x128xf32>
    %8 = arith.addf %2, %7 : vector<64x128xf32>
    %cst_5 = arith.constant 0.000000e+00 : f32
    %9 = vector.broadcast %cst_5 : f32 to vector<64x128xf32>
    %10 = arith.maximumf %8, %9 : vector<64x128xf32>
    %11 = vector.broadcast %5 : vector<64x1xf32> to vector<64x128xf32>
    %12 = arith.mulf %10, %11 : vector<64x128xf32>
    %13 = vector.broadcast %6 : vector<64x1xf32> to vector<64x128xf32>
    %14 = arith.addf %12, %13 : vector<64x128xf32>
    %15 = arith.truncf %14 : vector<64x128xf32> to vector<64x128xbf16>
    %c0_6 = arith.constant 0 : index
    %c0_7 = arith.constant 0 : index
    %16 = vector.load %arg4[%c0_6, %c0_7] : memref<64x128xbf16, #tpu.memory_space<vmem>>, vector<64x128xbf16>
    tpu.vector_store %arg4[%c0_6, %c0_7], %15 {strides = array<i32>} : memref<64x128xbf16, #tpu.memory_space<vmem>>, vector<64x128xbf16>,
    return
  }
  func.func @transform_0(%arg0: i32) -> (i32, i32) {
    %c0_i32 = arith.constant 0 : i32
    %c0_i32_0 = arith.constant 0 : i32
    %c0_i32_1 = arith.constant 0 : i32
    return %c0_i32, %c0_i32_0 : i32, i32
  }
  func.func @transform_1(%arg0: i32) -> (i32, i32) {
    %c0_i32 = arith.constant 0 : i32
    %c0_i32_0 = arith.constant 0 : i32
    %c0_i32_1 = arith.constant 0 : i32
    return %c0_i32, %c0_i32_0 : i32, i32
  }
  func.func @transform_2(%arg0: i32) -> (i32, i32) {
    %c0_i32 = arith.constant 0 : i32
    %c0_i32_0 = arith.constant 0 : i32
    %c0_i32_1 = arith.constant 0 : i32
    return %c0_i32, %c0_i32_0 : i32, i32
  }
  func.func @transform_3(%arg0: i32) -> (i32, i32) {
    %c0_i32 = arith.constant 0 : i32
    %c0_i32_0 = arith.constant 0 : i32
    %c0_i32_1 = arith.constant 0 : i32
    return %c0_i32, %c0_i32_0 : i32, i32
  }
}

module attributes {stable_mosaic.version = 11 : i64} {
  func.func @_fc1_kernel(%arg0: i32, %arg1: i32, %arg2: memref<8x2048xbf16, #tpu.memory_space<vmem>>, %arg3: memref<2048x640xbf16, #tpu.memory_space<vmem>>, %arg4: memref<1x640xf32, #tpu.memory_space<vmem>>, %arg5: memref<640x512xbf16, #tpu.memory_space<vmem>>, %arg6: memref<8x512xf32, #tpu.memory_space<vmem>>, %arg7: memref<8x640xf32, #tpu.memory_space<vmem>>) attributes {dimension_semantics = [#tpu.dimension_semantics<parallel>, #tpu.dimension_semantics<arbitrary>], iteration_bounds = array<i64: 2, 2>, scalar_prefetch = 0 : i64, scratch_operands = 1 : i64, tpu.core_type = #tpu.core_type<tc>, window_params = [{transform_indices = @transform_0, window_bounds = array<i64: 8, 2048>}, {transform_indices = @transform_1, window_bounds = array<i64: 2048, 640>}, {transform_indices = @transform_2, window_bounds = array<i64: 1, 640>}, {transform_indices = @transform_3, window_bounds = array<i64: 640, 512>}, {transform_indices = @transform_4, window_bounds = array<i64: 8, 512>}]} {
    %c0_i32 = arith.constant 0 : i32
    %0 = arith.cmpi eq, %arg1, %c0_i32 : i32
    %1 = arith.extui %0 : i1 to i32
    %c0_i32_0 = arith.constant 0 : i32
    %2 = arith.cmpi ne, %1, %c0_i32_0 : i32
    scf.if %2 {
      %cst_9 = arith.constant 0.000000e+00 : f32
      %12 = vector.broadcast %cst_9 : f32 to vector<8x640xf32>
      %c0_10 = arith.constant 0 : index
      %c0_11 = arith.constant 0 : index
      %13 = vector.load %arg7[%c0_10, %c0_11] : memref<8x640xf32, #tpu.memory_space<vmem>>, vector<8x640xf32>
      tpu.vector_store %arg7[%c0_10, %c0_11], %12 {strides = array<i32>} : memref<8x640xf32, #tpu.memory_space<vmem>>, vector<8x640xf32>,
    } else {
    }
    %c0 = arith.constant 0 : index
    %c0_1 = arith.constant 0 : index
    %3 = vector.load %arg7[%c0, %c0_1] : memref<8x640xf32, #tpu.memory_space<vmem>>, vector<8x640xf32>
    %c0_2 = arith.constant 0 : index
    %c0_3 = arith.constant 0 : index
    %4 = vector.load %arg2[%c0_2, %c0_3] : memref<8x2048xbf16, #tpu.memory_space<vmem>>, vector<8x2048xbf16>
    %c0_4 = arith.constant 0 : index
    %c0_5 = arith.constant 0 : index
    %5 = vector.load %arg3[%c0_4, %c0_5] : memref<2048x640xbf16, #tpu.memory_space<vmem>>, vector<2048x640xbf16>
    %cst = arith.constant dense<0.000000e+00> : vector<8x640xf32>
    %6 = tpu.matmul %4, %5, %cst {dimension_numbers = #tpu.dot_dimension_numbers<[1], [0], [0], [1], [0, 0, 1, 1], [], []>} : vector<8x2048xbf16>, vector<2048x640xbf16>, vector<8x640xf32> -> vector<8x640xf32>
    %7 = arith.addf %3, %6 : vector<8x640xf32>
    %c0_6 = arith.constant 0 : index
    %c0_7 = arith.constant 0 : index
    %8 = vector.load %arg7[%c0_6, %c0_7] : memref<8x640xf32, #tpu.memory_space<vmem>>, vector<8x640xf32>
    tpu.vector_store %arg7[%c0_6, %c0_7], %7 {strides = array<i32>} : memref<8x640xf32, #tpu.memory_space<vmem>>, vector<8x640xf32>,
    %c1_i32 = arith.constant 1 : i32
    %9 = arith.cmpi eq, %arg1, %c1_i32 : i32
    %10 = arith.extui %9 : i1 to i32
    %c0_i32_8 = arith.constant 0 : i32
    %11 = arith.cmpi ne, %10, %c0_i32_8 : i32
    scf.if %11 {
      %c0_9 = arith.constant 0 : index
      %c0_10 = arith.constant 0 : index
      %12 = vector.load %arg7[%c0_9, %c0_10] : memref<8x640xf32, #tpu.memory_space<vmem>>, vector<8x640xf32>
      %c0_11 = arith.constant 0 : index
      %c0_12 = arith.constant 0 : index
      %13 = vector.load %arg4[%c0_11, %c0_12] : memref<1x640xf32, #tpu.memory_space<vmem>>, vector<1x640xf32>
      %14 = vector.broadcast %13 : vector<1x640xf32> to vector<8x640xf32>
      %15 = arith.addf %12, %14 : vector<8x640xf32>
      %cst_13 = arith.constant 0.000000e+00 : f32
      %16 = vector.broadcast %cst_13 : f32 to vector<8x640xf32>
      %17 = arith.maximumf %15, %16 : vector<8x640xf32>
      %18 = arith.truncf %17 : vector<8x640xf32> to vector<8x640xbf16>
      %c0_14 = arith.constant 0 : index
      %c0_15 = arith.constant 0 : index
      %19 = vector.load %arg5[%c0_14, %c0_15] : memref<640x512xbf16, #tpu.memory_space<vmem>>, vector<640x512xbf16>
      %cst_16 = arith.constant dense<0.000000e+00> : vector<8x512xf32>
      %20 = tpu.matmul %18, %19, %cst_16 {dimension_numbers = #tpu.dot_dimension_numbers<[1], [0], [0], [1], [0, 0, 1, 1], [], []>} : vector<8x640xbf16>, vector<640x512xbf16>, vector<8x512xf32> -> vector<8x512xf32>
      %c0_17 = arith.constant 0 : index
      %c0_18 = arith.constant 0 : index
      %21 = vector.load %arg6[%c0_17, %c0_18] : memref<8x512xf32, #tpu.memory_space<vmem>>, vector<8x512xf32>
      tpu.vector_store %arg6[%c0_17, %c0_18], %20 {strides = array<i32>} : memref<8x512xf32, #tpu.memory_space<vmem>>, vector<8x512xf32>,
    } else {
    }
    return
  }
  func.func @transform_0(%arg0: i32, %arg1: i32) -> (i32, i32) {
    %c0_i32 = arith.constant 0 : i32
    %c0_i32_0 = arith.constant 0 : i32
    return %c0_i32, %arg1 : i32, i32
  }
  func.func @transform_1(%arg0: i32, %arg1: i32) -> (i32, i32) {
    %c0_i32 = arith.constant 0 : i32
    return %arg1, %arg0 : i32, i32
  }
  func.func @transform_2(%arg0: i32, %arg1: i32) -> (i32, i32) {
    %c0_i32 = arith.constant 0 : i32
    %c0_i32_0 = arith.constant 0 : i32
    return %c0_i32, %arg0 : i32, i32
  }
  func.func @transform_3(%arg0: i32, %arg1: i32) -> (i32, i32) {
    %c0_i32 = arith.constant 0 : i32
    %c0_i32_0 = arith.constant 0 : i32
    return %arg0, %c0_i32 : i32, i32
  }
  func.func @transform_4(%arg0: i32, %arg1: i32) -> (i32, i32) {
    %c0_i32 = arith.constant 0 : i32
    %c0_i32_0 = arith.constant 0 : i32
    return %c0_i32, %arg0 : i32, i32
  }
}

module attributes {stable_mosaic.version = 11 : i64} {
  func.func @_fc23_kernel(%arg0: i32, %arg1: memref<8x1024xf32, #tpu.memory_space<vmem>>, %arg2: memref<1x512xf32, #tpu.memory_space<vmem>>, %arg3: memref<512x128xbf16, #tpu.memory_space<vmem>>, %arg4: memref<1x128xf32, #tpu.memory_space<vmem>>, %arg5: memref<8x128xf32, #tpu.memory_space<vmem>>) attributes {dimension_semantics = [#tpu.dimension_semantics<arbitrary>], iteration_bounds = array<i64: 1>, scalar_prefetch = 0 : i64, scratch_operands = 0 : i64, tpu.core_type = #tpu.core_type<tc>, window_params = [{pipeline_mode = #tpu.pipeline_mode<synchronous>, transform_indices = @transform_0, window_bounds = array<i64: 8, 1024>}, {pipeline_mode = #tpu.pipeline_mode<synchronous>, transform_indices = @transform_1, window_bounds = array<i64: 1, 512>}, {pipeline_mode = #tpu.pipeline_mode<synchronous>, transform_indices = @transform_2, window_bounds = array<i64: 512, 128>}, {pipeline_mode = #tpu.pipeline_mode<synchronous>, transform_indices = @transform_3, window_bounds = array<i64: 1, 128>}, {pipeline_mode = #tpu.pipeline_mode<synchronous>, transform_indices = @transform_4, window_bounds = array<i64: 8, 128>}]} {
    %c0 = arith.constant 0 : index
    %c0_0 = arith.constant 0 : index
    %0 = vector.load %arg1[%c0, %c0_0] : memref<8x1024xf32, #tpu.memory_space<vmem>>, vector<8x1024xf32>
    %1 = vector.extract_strided_slice %0 {offsets = [0, 0], sizes = [8, 512], strides = [1, 1]} : vector<8x1024xf32> to vector<8x512xf32>
    %2 = vector.extract_strided_slice %0 {offsets = [0, 512], sizes = [8, 512], strides = [1, 1]} : vector<8x1024xf32> to vector<8x512xf32>
    %3 = arith.addf %1, %2 : vector<8x512xf32>
    %c0_1 = arith.constant 0 : index
    %c0_2 = arith.constant 0 : index
    %4 = vector.load %arg2[%c0_1, %c0_2] : memref<1x512xf32, #tpu.memory_space<vmem>>, vector<1x512xf32>
    %5 = vector.broadcast %4 : vector<1x512xf32> to vector<8x512xf32>
    %6 = arith.addf %3, %5 : vector<8x512xf32>
    %cst = arith.constant 0.000000e+00 : f32
    %7 = vector.broadcast %cst : f32 to vector<8x512xf32>
    %8 = arith.maximumf %6, %7 : vector<8x512xf32>
    %9 = arith.truncf %8 : vector<8x512xf32> to vector<8x512xbf16>
    %c0_3 = arith.constant 0 : index
    %c0_4 = arith.constant 0 : index
    %10 = vector.load %arg3[%c0_3, %c0_4] : memref<512x128xbf16, #tpu.memory_space<vmem>>, vector<512x128xbf16>
    %cst_5 = arith.constant dense<0.000000e+00> : vector<8x128xf32>
    %11 = tpu.matmul %9, %10, %cst_5 {dimension_numbers = #tpu.dot_dimension_numbers<[1], [0], [0], [1], [0, 0, 1, 1], [], []>} : vector<8x512xbf16>, vector<512x128xbf16>, vector<8x128xf32> -> vector<8x128xf32>
    %c0_6 = arith.constant 0 : index
    %c0_7 = arith.constant 0 : index
    %12 = vector.load %arg4[%c0_6, %c0_7] : memref<1x128xf32, #tpu.memory_space<vmem>>, vector<1x128xf32>
    %13 = vector.broadcast %12 : vector<1x128xf32> to vector<8x128xf32>
    %14 = arith.addf %11, %13 : vector<8x128xf32>
    %c0_8 = arith.constant 0 : index
    %c0_9 = arith.constant 0 : index
    %15 = vector.load %arg5[%c0_8, %c0_9] : memref<8x128xf32, #tpu.memory_space<vmem>>, vector<8x128xf32>
    tpu.vector_store %arg5[%c0_8, %c0_9], %14 {strides = array<i32>} : memref<8x128xf32, #tpu.memory_space<vmem>>, vector<8x128xf32>,
    return
  }
  func.func @transform_0(%arg0: i32) -> (i32, i32) {
    %c0_i32 = arith.constant 0 : i32
    %c0_i32_0 = arith.constant 0 : i32
    %c0_i32_1 = arith.constant 0 : i32
    return %c0_i32, %c0_i32_0 : i32, i32
  }
  func.func @transform_1(%arg0: i32) -> (i32, i32) {
    %c0_i32 = arith.constant 0 : i32
    %c0_i32_0 = arith.constant 0 : i32
    %c0_i32_1 = arith.constant 0 : i32
    return %c0_i32, %c0_i32_0 : i32, i32
  }
  func.func @transform_2(%arg0: i32) -> (i32, i32) {
    %c0_i32 = arith.constant 0 : i32
    %c0_i32_0 = arith.constant 0 : i32
    %c0_i32_1 = arith.constant 0 : i32
    return %c0_i32, %c0_i32_0 : i32, i32
  }
  func.func @transform_3(%arg0: i32) -> (i32, i32) {
    %c0_i32 = arith.constant 0 : i32
    %c0_i32_0 = arith.constant 0 : i32
    %c0_i32_1 = arith.constant 0 : i32
    return %c0_i32, %c0_i32_0 : i32, i32
  }
  func.func @transform_4(%arg0: i32) -> (i32, i32) {
    %c0_i32 = arith.constant 0 : i32
    %c0_i32_0 = arith.constant 0 : i32
    %c0_i32_1 = arith.constant 0 : i32
    return %c0_i32, %c0_i32_0 : i32, i32
  }
}

</mosaic_0001>

<llo_original>
// kernel: agent_forward.4
$region0: #{agent_forward.4}
  #allocation0 [shape = 'u32[]', space=smem, size = 0x4, offset = 0x4, fixed_abs, tag = 'smem constant byte address 0x4 - core index']
  #allocation1 [shape = 'u32[144,128]{1,0:T(1,128)}', space=vmem, size = 0x12000, scoped, tag = 'internal scratch']
  %s0 = inlined_call_operand.vmem [shape: bf16[32,512], index: 0, kind: input, shape index: {}]
  %s1 = inlined_call_operand.vmem [shape: bf16[512,512], index: 1, kind: input, shape index: {}]
  %s2 = inlined_call_operand.vmem [shape: f32[32,8], index: 2, kind: input, shape index: {}]
  %s3 = inlined_call_operand.vmem [shape: bf16[32,512], index: 3, kind: output, shape index: {}]
  %s4 = sld [smem:[#allocation0]]
  $region22: #{agent_forward.4} parent=0
    _
  %s6 = ssub.s32 1, %s4
  %s7 = scalar_select 0, %s6, %s4
  // Predicated region
  $region2: #{agent_forward.4} parent=0 // pred_check
    _
  $region3: #{agent_forward.4} parent=0 // pred_check_branch
    %9 = sbr.rel (0) target = $region5
  $region4: #{agent_forward.4} parent=0 // pred_region
    _
  $region5: #{agent_forward.4} parent=0 // pred_fallthru
    _
  // Predicated region
  $region6: #{agent_forward.4} parent=0 // pred_check
    _
  $region7: #{agent_forward.4} parent=0 // pred_check_branch
    %11 = sbr.rel (0) target = $region9
  $region8: #{agent_forward.4} parent=0 // pred_region
    _
  $region9: #{agent_forward.4} parent=0 // pred_fallthru
    _
  // Predicated region
  $region10: #{agent_forward.4} parent=0 // pred_check
    _
  $region11: #{agent_forward.4} parent=0 // pred_check_branch
    %13 = sbr.rel (0) target = $region13
  $region12: #{agent_forward.4} parent=0 // pred_region
    _
  $region13: #{agent_forward.4} parent=0 // pred_fallthru
    _
  %v14 = vld [vmem:[%s0] sm:$0xff]
  %v15 = vld [vmem:[%s0 + $0x8] sm:$0xff]
  %v16 = vld [vmem:[%s0 + $0x10] sm:$0xff]
  %v17 = vld [vmem:[%s0 + $0x18] sm:$0xff]
  %v18 = vld [vmem:[%s0 + $0x20] sm:$0xff]
  %v19 = vld [vmem:[%s0 + $0x28] sm:$0xff]
  %v20 = vld [vmem:[%s0 + $0x30] sm:$0xff]
  %v21 = vld [vmem:[%s0 + $0x38] sm:$0xff]
  %v22 = vld [vmem:[%s1] sm:$0xff]
  %v23 = vld [vmem:[%s1 + $0x8] sm:$0xff]
  %v24 = vld [vmem:[%s1 + $0x10] sm:$0xff]
  %v25 = vld [vmem:[%s1 + $0x18] sm:$0xff]
  %v26 = vld [vmem:[%s1 + $0x20] sm:$0xff]
  %v27 = vld [vmem:[%s1 + $0x28] sm:$0xff]
  %v28 = vld [vmem:[%s1 + $0x30] sm:$0xff]
  %v29 = vld [vmem:[%s1 + $0x38] sm:$0xff]
  %v30 = vld [vmem:[%s1 + $0x40] sm:$0xff]
  %v31 = vld [vmem:[%s1 + $0x48] sm:$0xff]
  %v32 = vld [vmem:[%s1 + $0x50] sm:$0xff]
  %v33 = vld [vmem:[%s1 + $0x58] sm:$0xff]
  %v34 = vld [vmem:[%s1 + $0x60] sm:$0xff]
  %v35 = vld [vmem:[%s1 + $0x68] sm:$0xff]
  %v36 = vld [vmem:[%s1 + $0x70] sm:$0xff]
  %v37 = vld [vmem:[%s1 + $0x78] sm:$0xff]
  %v38 = vld [vmem:[%s1 + $0x80] sm:$0xff]
  %v39 = vld [vmem:[%s1 + $0x88] sm:$0xff]
  %v40 = vld [vmem:[%s1 + $0x90] sm:$0xff]
  %v41 = vld [vmem:[%s1 + $0x98] sm:$0xff]
  %v42 = vld [vmem:[%s1 + $0xa0] sm:$0xff]
  %v43 = vld [vmem:[%s1 + $0xa8] sm:$0xff]
  %v44 = vld [vmem:[%s1 + $0xb0] sm:$0xff]
  %v45 = vld [vmem:[%s1 + $0xb8] sm:$0xff]
  %v46 = vld [vmem:[%s1 + $0xc0] sm:$0xff]
  %v47 = vld [vmem:[%s1 + $0xc8] sm:$0xff]
  %v48 = vld [vmem:[%s1 + $0xd0] sm:$0xff]
  %v49 = vld [vmem:[%s1 + $0xd8] sm:$0xff]
  %v50 = vld [vmem:[%s1 + $0xe0] sm:$0xff]
  %v51 = vld [vmem:[%s1 + $0xe8] sm:$0xff]
  %v52 = vld [vmem:[%s1 + $0xf0] sm:$0xff]
  %v53 = vld [vmem:[%s1 + $0xf8] sm:$0xff]
  %v54 = vld [vmem:[%s1 + $0x100] sm:$0xff]
  %v55 = vld [vmem:[%s1 + $0x108] sm:$0xff]
  %v56 = vld [vmem:[%s1 + $0x110] sm:$0xff]
  %v57 = vld [vmem:[%s1 + $0x118] sm:$0xff]
  %v58 = vld [vmem:[%s1 + $0x120] sm:$0xff]
  %v59 = vld [vmem:[%s1 + $0x128] sm:$0xff]
  %v60 = vld [vmem:[%s1 + $0x130] sm:$0xff]
  %v61 = vld [vmem:[%s1 + $0x138] sm:$0xff]
  %v62 = vld [vmem:[%s1 + $0x140] sm:$0xff]
  %v63 = vld [vmem:[%s1 + $0x148] sm:$0xff]
  %v64 = vld [vmem:[%s1 + $0x150] sm:$0xff]
  %v65 = vld [vmem:[%s1 + $0x158] sm:$0xff]
  %v66 = vld [vmem:[%s1 + $0x160] sm:$0xff]
  %v67 = vld [vmem:[%s1 + $0x168] sm:$0xff]
  %v68 = vld [vmem:[%s1 + $0x170] sm:$0xff]
  %v69 = vld [vmem:[%s1 + $0x178] sm:$0xff]
  %v70 = vld [vmem:[%s1 + $0x180] sm:$0xff]
  %v71 = vld [vmem:[%s1 + $0x188] sm:$0xff]
  %v72 = vld [vmem:[%s1 + $0x190] sm:$0xff]
  %v73 = vld [vmem:[%s1 + $0x198] sm:$0xff]
  %v74 = vld [vmem:[%s1 + $0x1a0] sm:$0xff]
  %v75 = vld [vmem:[%s1 + $0x1a8] sm:$0xff]
  %v76 = vld [vmem:[%s1 + $0x1b0] sm:$0xff]
  %v77 = vld [vmem:[%s1 + $0x1b8] sm:$0xff]
  %v78 = vld [vmem:[%s1 + $0x1c0] sm:$0xff]
  %v79 = vld [vmem:[%s1 + $0x1c8] sm:$0xff]
  %v80 = vld [vmem:[%s1 + $0x1d0] sm:$0xff]
  %v81 = vld [vmem:[%s1 + $0x1d8] sm:$0xff]
  %v82 = vld [vmem:[%s1 + $0x1e0] sm:$0xff]
  %v83 = vld [vmem:[%s1 + $0x1e8] sm:$0xff]
  %v84 = vld [vmem:[%s1 + $0x1f0] sm:$0xff]
  %v85 = vld [vmem:[%s1 + $0x1f8] sm:$0xff]
  %v86 = vld [vmem:[%s1 + $0x200] sm:$0xff]
  %v87 = vld [vmem:[%s1 + $0x208] sm:$0xff]
  %v88 = vld [vmem:[%s1 + $0x210] sm:$0xff]
  %v89 = vld [vmem:[%s1 + $0x218] sm:$0xff]
  %v90 = vld [vmem:[%s1 + $0x220] sm:$0xff]
  %v91 = vld [vmem:[%s1 + $0x228] sm:$0xff]
  %v92 = vld [vmem:[%s1 + $0x230] sm:$0xff]
  %v93 = vld [vmem:[%s1 + $0x238] sm:$0xff]
  %v94 = vld [vmem:[%s1 + $0x240] sm:$0xff]
  %v95 = vld [vmem:[%s1 + $0x248] sm:$0xff]
  %v96 = vld [vmem:[%s1 + $0x250] sm:$0xff]
  %v97 = vld [vmem:[%s1 + $0x258] sm:$0xff]
  %v98 = vld [vmem:[%s1 + $0x260] sm:$0xff]
  %v99 = vld [vmem:[%s1 + $0x268] sm:$0xff]
  %v100 = vld [vmem:[%s1 + $0x270] sm:$0xff]
  %v101 = vld [vmem:[%s1 + $0x278] sm:$0xff]
  %v102 = vld [vmem:[%s1 + $0x280] sm:$0xff]
  %v103 = vld [vmem:[%s1 + $0x288] sm:$0xff]
  %v104 = vld [vmem:[%s1 + $0x290] sm:$0xff]
  %v105 = vld [vmem:[%s1 + $0x298] sm:$0xff]
  %v106 = vld [vmem:[%s1 + $0x2a0] sm:$0xff]
  %v107 = vld [vmem:[%s1 + $0x2a8] sm:$0xff]
  %v108 = vld [vmem:[%s1 + $0x2b0] sm:$0xff]
  %v109 = vld [vmem:[%s1 + $0x2b8] sm:$0xff]
  %v110 = vld [vmem:[%s1 + $0x2c0] sm:$0xff]
  %v111 = vld [vmem:[%s1 + $0x2c8] sm:$0xff]
  %v112 = vld [vmem:[%s1 + $0x2d0] sm:$0xff]
  %v113 = vld [vmem:[%s1 + $0x2d8] sm:$0xff]
  %v114 = vld [vmem:[%s1 + $0x2e0] sm:$0xff]
  %v115 = vld [vmem:[%s1 + $0x2e8] sm:$0xff]
  %v116 = vld [vmem:[%s1 + $0x2f0] sm:$0xff]
  %v117 = vld [vmem:[%s1 + $0x2f8] sm:$0xff]
  %v118 = vld [vmem:[%s1 + $0x300] sm:$0xff]
  %v119 = vld [vmem:[%s1 + $0x308] sm:$0xff]
  %v120 = vld [vmem:[%s1 + $0x310] sm:$0xff]
  %v121 = vld [vmem:[%s1 + $0x318] sm:$0xff]
  %v122 = vld [vmem:[%s1 + $0x320] sm:$0xff]
  %v123 = vld [vmem:[%s1 + $0x328] sm:$0xff]
  %v124 = vld [vmem:[%s1 + $0x330] sm:$0xff]
  %v125 = vld [vmem:[%s1 + $0x338] sm:$0xff]
  %v126 = vld [vmem:[%s1 + $0x340] sm:$0xff]
  %v127 = vld [vmem:[%s1 + $0x348] sm:$0xff]
  %v128 = vld [vmem:[%s1 + $0x350] sm:$0xff]
  %v129 = vld [vmem:[%s1 + $0x358] sm:$0xff]
  %v130 = vld [vmem:[%s1 + $0x360] sm:$0xff]
  %v131 = vld [vmem:[%s1 + $0x368] sm:$0xff]
  %v132 = vld [vmem:[%s1 + $0x370] sm:$0xff]
  %v133 = vld [vmem:[%s1 + $0x378] sm:$0xff]
  %v134 = vld [vmem:[%s1 + $0x380] sm:$0xff]
  %v135 = vld [vmem:[%s1 + $0x388] sm:$0xff]
  %v136 = vld [vmem:[%s1 + $0x390] sm:$0xff]
  %v137 = vld [vmem:[%s1 + $0x398] sm:$0xff]
  %v138 = vld [vmem:[%s1 + $0x3a0] sm:$0xff]
  %v139 = vld [vmem:[%s1 + $0x3a8] sm:$0xff]
  %v140 = vld [vmem:[%s1 + $0x3b0] sm:$0xff]
  %v141 = vld [vmem:[%s1 + $0x3b8] sm:$0xff]
  %v142 = vld [vmem:[%s1 + $0x3c0] sm:$0xff]
  %v143 = vld [vmem:[%s1 + $0x3c8] sm:$0xff]
  %v144 = vld [vmem:[%s1 + $0x3d0] sm:$0xff]
  %v145 = vld [vmem:[%s1 + $0x3d8] sm:$0xff]
  %v146 = vld [vmem:[%s1 + $0x3e0] sm:$0xff]
  %v147 = vld [vmem:[%s1 + $0x3e8] sm:$0xff]
  %v148 = vld [vmem:[%s1 + $0x3f0] sm:$0xff]
  %v149 = vld [vmem:[%s1 + $0x3f8] sm:$0xff]
  %v150 = vld [vmem:[%s2] sm:$0xff]
  %v151 = vld [vmem:[%s2 + $0x8] sm:$0xff]
  %v152 = vld [vmem:[%s2 + $0x10] sm:$0xff]
  %v153 = vld [vmem:[%s2 + $0x18] sm:$0xff]
  %155 = vset.pattern.permute.xlu0 0
  %156 = vperm.xlu0 %155, %v150
  %v157 = vpop.permute.xlu0 %156
  %160 = vset.pattern.permute.xlu0 0
  %161 = vperm.xlu0 %160, %v151
  %v162 = vpop.permute.xlu0 %161
  %165 = vset.pattern.permute.xlu0 0
  %166 = vperm.xlu0 %165, %v152
  %v167 = vpop.permute.xlu0 %166
  %170 = vset.pattern.permute.xlu0 0
  %171 = vperm.xlu0 %170, %v153
  %v172 = vpop.permute.xlu0 %171
  %v182 = vunpack.c.l.b16 %v14
  %v183 = vunpack.c.h.b16 %v14
  %v184 = vunpack.c.l.b16 %v15
  %v185 = vunpack.c.h.b16 %v15
  %v186 = vunpack.c.l.b16 %v16
  %v187 = vunpack.c.h.b16 %v16
  %v188 = vunpack.c.l.b16 %v17
  %v189 = vunpack.c.h.b16 %v17
  %v190 = vunpack.c.l.b16 %v18
  %v191 = vunpack.c.h.b16 %v18
  %v192 = vunpack.c.l.b16 %v19
  %v193 = vunpack.c.h.b16 %v19
  %v194 = vunpack.c.l.b16 %v20
  %v195 = vunpack.c.h.b16 %v20
  %v196 = vunpack.c.l.b16 %v21
  %v197 = vunpack.c.h.b16 %v21
  %v198 = vpack.c.b16 %v186, %v182
  %v199 = vpack.c.b16 %v187, %v183
  %v200 = vpack.c.b16 %v188, %v184
  %v201 = vpack.c.b16 %v189, %v185
  %v202 = vpack.c.b16 %v194, %v190
  %v203 = vpack.c.b16 %v195, %v191
  %v204 = vpack.c.b16 %v196, %v192
  %v205 = vpack.c.b16 %v197, %v193
  %v342 = vunpack.c.l.b16 %v22
  %v343 = vunpack.c.h.b16 %v22
  %v344 = vunpack.c.l.b16 %v23
  %v345 = vunpack.c.h.b16 %v23
  %v346 = vunpack.c.l.b16 %v24
  %v347 = vunpack.c.h.b16 %v24
  %v348 = vunpack.c.l.b16 %v25
  %v349 = vunpack.c.h.b16 %v25
  %v350 = vunpack.c.l.b16 %v26
  %v351 = vunpack.c.h.b16 %v26
  %v352 = vunpack.c.l.b16 %v27
  %v353 = vunpack.c.h.b16 %v27
  %v354 = vunpack.c.l.b16 %v28
  %v355 = vunpack.c.h.b16 %v28
  %v356 = vunpack.c.l.b16 %v29
  %v357 = vunpack.c.h.b16 %v29
  %v358 = vunpack.c.l.b16 %v30
  %v359 = vunpack.c.h.b16 %v30
  %v360 = vunpack.c.l.b16 %v31
  %v361 = vunpack.c.h.b16 %v31
  %v362 = vunpack.c.l.b16 %v32
  %v363 = vunpack.c.h.b16 %v32
  %v364 = vunpack.c.l.b16 %v33
  %v365 = vunpack.c.h.b16 %v33
  %v366 = vunpack.c.l.b16 %v34
  %v367 = vunpack.c.h.b16 %v34
  %v368 = vunpack.c.l.b16 %v35
  %v369 = vunpack.c.h.b16 %v35
  %v370 = vunpack.c.l.b16 %v36
  %v371 = vunpack.c.h.b16 %v36
  %v372 = vunpack.c.l.b16 %v37
  %v373 = vunpack.c.h.b16 %v37
  %v374 = vunpack.c.l.b16 %v38
  %v375 = vunpack.c.h.b16 %v38
  %v376 = vunpack.c.l.b16 %v39
  %v377 = vunpack.c.h.b16 %v39
  %v378 = vunpack.c.l.b16 %v40
  %v379 = vunpack.c.h.b16 %v40
  %v380 = vunpack.c.l.b16 %v41
  %v381 = vunpack.c.h.b16 %v41
  %v382 = vunpack.c.l.b16 %v42
  %v383 = vunpack.c.h.b16 %v42
  %v384 = vunpack.c.l.b16 %v43
  %v385 = vunpack.c.h.b16 %v43
  %v386 = vunpack.c.l.b16 %v44
  %v387 = vunpack.c.h.b16 %v44
  %v388 = vunpack.c.l.b16 %v45
  %v389 = vunpack.c.h.b16 %v45
  %v390 = vunpack.c.l.b16 %v46
  %v391 = vunpack.c.h.b16 %v46
  %v392 = vunpack.c.l.b16 %v47
  %v393 = vunpack.c.h.b16 %v47
  %v394 = vunpack.c.l.b16 %v48
  %v395 = vunpack.c.h.b16 %v48
  %v396 = vunpack.c.l.b16 %v49
  %v397 = vunpack.c.h.b16 %v49
  %v398 = vunpack.c.l.b16 %v50
  %v399 = vunpack.c.h.b16 %v50
  %v400 = vunpack.c.l.b16 %v51
  %v401 = vunpack.c.h.b16 %v51
  %v402 = vunpack.c.l.b16 %v52
  %v403 = vunpack.c.h.b16 %v52
  %v404 = vunpack.c.l.b16 %v53
  %v405 = vunpack.c.h.b16 %v53
  %v406 = vunpack.c.l.b16 %v54
  %v407 = vunpack.c.h.b16 %v54
  %v408 = vunpack.c.l.b16 %v55
  %v409 = vunpack.c.h.b16 %v55
  %v410 = vunpack.c.l.b16 %v56
  %v411 = vunpack.c.h.b16 %v56
  %v412 = vunpack.c.l.b16 %v57
  %v413 = vunpack.c.h.b16 %v57
  %v414 = vunpack.c.l.b16 %v58
  %v415 = vunpack.c.h.b16 %v58
  %v416 = vunpack.c.l.b16 %v59
  %v417 = vunpack.c.h.b16 %v59
  %v418 = vunpack.c.l.b16 %v60
  %v419 = vunpack.c.h.b16 %v60
  %v420 = vunpack.c.l.b16 %v61
  %v421 = vunpack.c.h.b16 %v61
  %v422 = vunpack.c.l.b16 %v62
  %v423 = vunpack.c.h.b16 %v62
  %v424 = vunpack.c.l.b16 %v63
  %v425 = vunpack.c.h.b16 %v63
  %v426 = vunpack.c.l.b16 %v64
  %v427 = vunpack.c.h.b16 %v64
  %v428 = vunpack.c.l.b16 %v65
  %v429 = vunpack.c.h.b16 %v65
  %v430 = vunpack.c.l.b16 %v66
  %v431 = vunpack.c.h.b16 %v66
  %v432 = vunpack.c.l.b16 %v67
  %v433 = vunpack.c.h.b16 %v67
  %v434 = vunpack.c.l.b16 %v68
  %v435 = vunpack.c.h.b16 %v68
  %v436 = vunpack.c.l.b16 %v69
  %v437 = vunpack.c.h.b16 %v69
  %v438 = vunpack.c.l.b16 %v70
  %v439 = vunpack.c.h.b16 %v70
  %v440 = vunpack.c.l.b16 %v71
  %v441 = vunpack.c.h.b16 %v71
  %v442 = vunpack.c.l.b16 %v72
  %v443 = vunpack.c.h.b16 %v72
  %v444 = vunpack.c.l.b16 %v73
  %v445 = vunpack.c.h.b16 %v73
  %v446 = vunpack.c.l.b16 %v74
  %v447 = vunpack.c.h.b16 %v74
  %v448 = vunpack.c.l.b16 %v75
  %v449 = vunpack.c.h.b16 %v75
  %v450 = vunpack.c.l.b16 %v76
  %v451 = vunpack.c.h.b16 %v76
  %v452 = vunpack.c.l.b16 %v77
  %v453 = vunpack.c.h.b16 %v77
  %v454 = vunpack.c.l.b16 %v78
  %v455 = vunpack.c.h.b16 %v78
  %v456 = vunpack.c.l.b16 %v79
  %v457 = vunpack.c.h.b16 %v79
  %v458 = vunpack.c.l.b16 %v80
  %v459 = vunpack.c.h.b16 %v80
  %v460 = vunpack.c.l.b16 %v81
  %v461 = vunpack.c.h.b16 %v81
  %v462 = vunpack.c.l.b16 %v82
  %v463 = vunpack.c.h.b16 %v82
  %v464 = vunpack.c.l.b16 %v83
  %v465 = vunpack.c.h.b16 %v83
  %v466 = vunpack.c.l.b16 %v84
  %v467 = vunpack.c.h.b16 %v84
  %v468 = vunpack.c.l.b16 %v85
  %v469 = vunpack.c.h.b16 %v85
  %v470 = vunpack.c.l.b16 %v86
  %v471 = vunpack.c.h.b16 %v86
  %v472 = vunpack.c.l.b16 %v87
  %v473 = vunpack.c.h.b16 %v87
  %v474 = vunpack.c.l.b16 %v88
  %v475 = vunpack.c.h.b16 %v88
  %v476 = vunpack.c.l.b16 %v89
  %v477 = vunpack.c.h.b16 %v89
  %v478 = vunpack.c.l.b16 %v90
  %v479 = vunpack.c.h.b16 %v90
  %v480 = vunpack.c.l.b16 %v91
  %v481 = vunpack.c.h.b16 %v91
  %v482 = vunpack.c.l.b16 %v92
  %v483 = vunpack.c.h.b16 %v92
  %v484 = vunpack.c.l.b16 %v93
  %v485 = vunpack.c.h.b16 %v93
  %v486 = vunpack.c.l.b16 %v94
  %v487 = vunpack.c.h.b16 %v94
  %v488 = vunpack.c.l.b16 %v95
  %v489 = vunpack.c.h.b16 %v95
  %v490 = vunpack.c.l.b16 %v96
  %v491 = vunpack.c.h.b16 %v96
  %v492 = vunpack.c.l.b16 %v97
  %v493 = vunpack.c.h.b16 %v97
  %v494 = vunpack.c.l.b16 %v98
  %v495 = vunpack.c.h.b16 %v98
  %v496 = vunpack.c.l.b16 %v99
  %v497 = vunpack.c.h.b16 %v99
  %v498 = vunpack.c.l.b16 %v100
  %v499 = vunpack.c.h.b16 %v100
  %v500 = vunpack.c.l.b16 %v101
  %v501 = vunpack.c.h.b16 %v101
  %v502 = vunpack.c.l.b16 %v102
  %v503 = vunpack.c.h.b16 %v102
  %v504 = vunpack.c.l.b16 %v103
  %v505 = vunpack.c.h.b16 %v103
  %v506 = vunpack.c.l.b16 %v104
  %v507 = vunpack.c.h.b16 %v104
  %v508 = vunpack.c.l.b16 %v105
  %v509 = vunpack.c.h.b16 %v105
  %v510 = vunpack.c.l.b16 %v106
  %v511 = vunpack.c.h.b16 %v106
  %v512 = vunpack.c.l.b16 %v107
  %v513 = vunpack.c.h.b16 %v107
  %v514 = vunpack.c.l.b16 %v108
  %v515 = vunpack.c.h.b16 %v108
  %v516 = vunpack.c.l.b16 %v109
  %v517 = vunpack.c.h.b16 %v109
  %v518 = vunpack.c.l.b16 %v110
  %v519 = vunpack.c.h.b16 %v110
  %v520 = vunpack.c.l.b16 %v111
  %v521 = vunpack.c.h.b16 %v111
  %v522 = vunpack.c.l.b16 %v112
  %v523 = vunpack.c.h.b16 %v112
  %v524 = vunpack.c.l.b16 %v113
  %v525 = vunpack.c.h.b16 %v113
  %v526 = vunpack.c.l.b16 %v114
  %v527 = vunpack.c.h.b16 %v114
  %v528 = vunpack.c.l.b16 %v115
  %v529 = vunpack.c.h.b16 %v115
  %v530 = vunpack.c.l.b16 %v116
  %v531 = vunpack.c.h.b16 %v116
  %v532 = vunpack.c.l.b16 %v117
  %v533 = vunpack.c.h.b16 %v117
  %v534 = vunpack.c.l.b16 %v118
  %v535 = vunpack.c.h.b16 %v118
  %v536 = vunpack.c.l.b16 %v119
  %v537 = vunpack.c.h.b16 %v119
  %v538 = vunpack.c.l.b16 %v120
  %v539 = vunpack.c.h.b16 %v120
  %v540 = vunpack.c.l.b16 %v121
  %v541 = vunpack.c.h.b16 %v121
  %v542 = vunpack.c.l.b16 %v122
  %v543 = vunpack.c.h.b16 %v122
  %v544 = vunpack.c.l.b16 %v123
  %v545 = vunpack.c.h.b16 %v123
  %v546 = vunpack.c.l.b16 %v124
  %v547 = vunpack.c.h.b16 %v124
  %v548 = vunpack.c.l.b16 %v125
  %v549 = vunpack.c.h.b16 %v125
  %v550 = vunpack.c.l.b16 %v126
  %v551 = vunpack.c.h.b16 %v126
  %v552 = vunpack.c.l.b16 %v127
  %v553 = vunpack.c.h.b16 %v127
  %v554 = vunpack.c.l.b16 %v128
  %v555 = vunpack.c.h.b16 %v128
  %v556 = vunpack.c.l.b16 %v129
  %v557 = vunpack.c.h.b16 %v129
  %v558 = vunpack.c.l.b16 %v130
  %v559 = vunpack.c.h.b16 %v130
  %v560 = vunpack.c.l.b16 %v131
  %v561 = vunpack.c.h.b16 %v131
  %v562 = vunpack.c.l.b16 %v132
  %v563 = vunpack.c.h.b16 %v132
  %v564 = vunpack.c.l.b16 %v133
  %v565 = vunpack.c.h.b16 %v133
  %v566 = vunpack.c.l.b16 %v134
  %v567 = vunpack.c.h.b16 %v134
  %v568 = vunpack.c.l.b16 %v135
  %v569 = vunpack.c.h.b16 %v135
  %v570 = vunpack.c.l.b16 %v136
  %v571 = vunpack.c.h.b16 %v136
  %v572 = vunpack.c.l.b16 %v137
  %v573 = vunpack.c.h.b16 %v137
  %v574 = vunpack.c.l.b16 %v138
  %v575 = vunpack.c.h.b16 %v138
  %v576 = vunpack.c.l.b16 %v139
  %v577 = vunpack.c.h.b16 %v139
  %v578 = vunpack.c.l.b16 %v140
  %v579 = vunpack.c.h.b16 %v140
  %v580 = vunpack.c.l.b16 %v141
  %v581 = vunpack.c.h.b16 %v141
  %v582 = vunpack.c.l.b16 %v142
  %v583 = vunpack.c.h.b16 %v142
  %v584 = vunpack.c.l.b16 %v143
  %v585 = vunpack.c.h.b16 %v143
  %v586 = vunpack.c.l.b16 %v144
  %v587 = vunpack.c.h.b16 %v144
  %v588 = vunpack.c.l.b16 %v145
  %v589 = vunpack.c.h.b16 %v145
  %v590 = vunpack.c.l.b16 %v146
  %v591 = vunpack.c.h.b16 %v146
  %v592 = vunpack.c.l.b16 %v147
  %v593 = vunpack.c.h.b16 %v147
  %v594 = vunpack.c.l.b16 %v148
  %v595 = vunpack.c.h.b16 %v148
  %v596 = vunpack.c.l.b16 %v149
  %v597 = vunpack.c.h.b16 %v149
  %v598 = vpack.c.b16 %v346, %v342
  %v599 = vpack.c.b16 %v347, %v343
  %v600 = vpack.c.b16 %v348, %v344
  %v601 = vpack.c.b16 %v349, %v345
  %v602 = vpack.c.b16 %v354, %v350
  %v603 = vpack.c.b16 %v355, %v351
  %v604 = vpack.c.b16 %v356, %v352
  %v605 = vpack.c.b16 %v357, %v353
  %v606 = vpack.c.b16 %v362, %v358
  %v607 = vpack.c.b16 %v363, %v359
  %v608 = vpack.c.b16 %v364, %v360
  %v609 = vpack.c.b16 %v365, %v361
  %v610 = vpack.c.b16 %v370, %v366
  %v611 = vpack.c.b16 %v371, %v367
  %v612 = vpack.c.b16 %v372, %v368
  %v613 = vpack.c.b16 %v373, %v369
  %v614 = vpack.c.b16 %v378, %v374
  %v615 = vpack.c.b16 %v379, %v375
  %v616 = vpack.c.b16 %v380, %v376
  %v617 = vpack.c.b16 %v381, %v377
  %v618 = vpack.c.b16 %v386, %v382
  %v619 = vpack.c.b16 %v387, %v383
  %v620 = vpack.c.b16 %v388, %v384
  %v621 = vpack.c.b16 %v389, %v385
  %v622 = vpack.c.b16 %v394, %v390
  %v623 = vpack.c.b16 %v395, %v391
  %v624 = vpack.c.b16 %v396, %v392
  %v625 = vpack.c.b16 %v397, %v393
  %v626 = vpack.c.b16 %v402, %v398
  %v627 = vpack.c.b16 %v403, %v399
  %v628 = vpack.c.b16 %v404, %v400
  %v629 = vpack.c.b16 %v405, %v401
  %v630 = vpack.c.b16 %v410, %v406
  %v631 = vpack.c.b16 %v411, %v407
  %v632 = vpack.c.b16 %v412, %v408
  %v633 = vpack.c.b16 %v413, %v409
  %v634 = vpack.c.b16 %v418, %v414
  %v635 = vpack.c.b16 %v419, %v415
  %v636 = vpack.c.b16 %v420, %v416
  %v637 = vpack.c.b16 %v421, %v417
  %v638 = vpack.c.b16 %v426, %v422
  %v639 = vpack.c.b16 %v427, %v423
  %v640 = vpack.c.b16 %v428, %v424
  %v641 = vpack.c.b16 %v429, %v425
  %v642 = vpack.c.b16 %v434, %v430
  %v643 = vpack.c.b16 %v435, %v431
  %v644 = vpack.c.b16 %v436, %v432
  %v645 = vpack.c.b16 %v437, %v433
  %v646 = vpack.c.b16 %v442, %v438
  %v647 = vpack.c.b16 %v443, %v439
  %v648 = vpack.c.b16 %v444, %v440
  %v649 = vpack.c.b16 %v445, %v441
  %v650 = vpack.c.b16 %v450, %v446
  %v651 = vpack.c.b16 %v451, %v447
  %v652 = vpack.c.b16 %v452, %v448
  %v653 = vpack.c.b16 %v453, %v449
  %v654 = vpack.c.b16 %v458, %v454
  %v655 = vpack.c.b16 %v459, %v455
  %v656 = vpack.c.b16 %v460, %v456
  %v657 = vpack.c.b16 %v461, %v457
  %v658 = vpack.c.b16 %v466, %v462
  %v659 = vpack.c.b16 %v467, %v463
  %v660 = vpack.c.b16 %v468, %v464
  %v661 = vpack.c.b16 %v469, %v465
  %v662 = vpack.c.b16 %v474, %v470
  %v663 = vpack.c.b16 %v475, %v471
  %v664 = vpack.c.b16 %v476, %v472
  %v665 = vpack.c.b16 %v477, %v473
  %v666 = vpack.c.b16 %v482, %v478
  %v667 = vpack.c.b16 %v483, %v479
  %v668 = vpack.c.b16 %v484, %v480
  %v669 = vpack.c.b16 %v485, %v481
  %v670 = vpack.c.b16 %v490, %v486
  %v671 = vpack.c.b16 %v491, %v487
  %v672 = vpack.c.b16 %v492, %v488
  %v673 = vpack.c.b16 %v493, %v489
  %v674 = vpack.c.b16 %v498, %v494
  %v675 = vpack.c.b16 %v499, %v495
  %v676 = vpack.c.b16 %v500, %v496
  %v677 = vpack.c.b16 %v501, %v497
  %v678 = vpack.c.b16 %v506, %v502
  %v679 = vpack.c.b16 %v507, %v503
  %v680 = vpack.c.b16 %v508, %v504
  %v681 = vpack.c.b16 %v509, %v505
  %v682 = vpack.c.b16 %v514, %v510
  %v683 = vpack.c.b16 %v515, %v511
  %v684 = vpack.c.b16 %v516, %v512
  %v685 = vpack.c.b16 %v517, %v513
  %v686 = vpack.c.b16 %v522, %v518
  %v687 = vpack.c.b16 %v523, %v519
  %v688 = vpack.c.b16 %v524, %v520
  %v689 = vpack.c.b16 %v525, %v521
  %v690 = vpack.c.b16 %v530, %v526
  %v691 = vpack.c.b16 %v531, %v527
  %v692 = vpack.c.b16 %v532, %v528
  %v693 = vpack.c.b16 %v533, %v529
  %v694 = vpack.c.b16 %v538, %v534
  %v695 = vpack.c.b16 %v539, %v535
  %v696 = vpack.c.b16 %v540, %v536
  %v697 = vpack.c.b16 %v541, %v537
  %v698 = vpack.c.b16 %v546, %v542
  %v699 = vpack.c.b16 %v547, %v543
  %v700 = vpack.c.b16 %v548, %v544
  %v701 = vpack.c.b16 %v549, %v545
  %v702 = vpack.c.b16 %v554, %v550
  %v703 = vpack.c.b16 %v555, %v551
  %v704 = vpack.c.b16 %v556, %v552
  %v705 = vpack.c.b16 %v557, %v553
  %v706 = vpack.c.b16 %v562, %v558
  %v707 = vpack.c.b16 %v563, %v559
  %v708 = vpack.c.b16 %v564, %v560
  %v709 = vpack.c.b16 %v565, %v561
  %v710 = vpack.c.b16 %v570, %v566
  %v711 = vpack.c.b16 %v571, %v567
  %v712 = vpack.c.b16 %v572, %v568
  %v713 = vpack.c.b16 %v573, %v569
  %v714 = vpack.c.b16 %v578, %v574
  %v715 = vpack.c.b16 %v579, %v575
  %v716 = vpack.c.b16 %v580, %v576
  %v717 = vpack.c.b16 %v581, %v577
  %v718 = vpack.c.b16 %v586, %v582
  %v719 = vpack.c.b16 %v587, %v583
  %v720 = vpack.c.b16 %v588, %v584
  %v721 = vpack.c.b16 %v589, %v585
  %v722 = vpack.c.b16 %v594, %v590
  %v723 = vpack.c.b16 %v595, %v591
  %v724 = vpack.c.b16 %v596, %v592
  %v725 = vpack.c.b16 %v597, %v593
  %854 = vmatprep.subr.bf16.mxu0 %v599
  %855 = vmatpush1.bf16.msra.mxu0 %v598
  %856 = vmatprep.subr.bf16.mxu0 %v603
  %857 = vmatpush1.bf16.msra.mxu0 %v602
  %858 = vmatprep.subr.bf16.mxu0 %v607
  %859 = vmatpush1.bf16.msra.mxu0 %v606
  %860 = vmatprep.subr.bf16.mxu0 %v611
  %861 = vmatpush1.bf16.msra.mxu0 %v610
  %862 = vmatprep.subr.bf16.mxu0 %v615
  %863 = vmatpush1.bf16.msra.mxu0 %v614
  %864 = vmatprep.subr.bf16.mxu0 %v619
  %865 = vmatpush1.bf16.msra.mxu0 %v618
  %866 = vmatprep.subr.bf16.mxu0 %v623
  %867 = vmatpush1.bf16.msra.mxu0 %v622
  %868 = vmatprep.subr.bf16.mxu0 %v627
  %869 = vmatpush1.bf16.msra.mxu0 %v626
  %870 = vmatprep.subr.bf16.mxu0 %v631
  %871 = vmatpush1.bf16.msra.mxu0 %v630
  %872 = vmatprep.subr.bf16.mxu0 %v635
  %873 = vmatpush1.bf16.msra.mxu0 %v634
  %874 = vmatprep.subr.bf16.mxu0 %v639
  %875 = vmatpush1.bf16.msra.mxu0 %v638
  %876 = vmatprep.subr.bf16.mxu0 %v643
  %877 = vmatpush1.bf16.msra.mxu0 %v642
  %878 = vmatprep.subr.bf16.mxu0 %v647
  %879 = vmatpush1.bf16.msra.mxu0 %v646
  %880 = vmatprep.subr.bf16.mxu0 %v651
  %881 = vmatpush1.bf16.msra.mxu0 %v650
  %882 = vmatprep.subr.bf16.mxu0 %v655
  %883 = vmatpush1.bf16.msra.mxu0 %v654
  %884 = vmatprep.subr.bf16.mxu0 %v659
  %885 = vmatpush1.bf16.msra.mxu0 %v658
  %886 = vmatprep.mubr.bf16.mxu0 %v199
  %887 = vmatmul.mubr.bf16.gmra.mrb[0].mxu0 %v198
  %v888 = vpop.f32.mrb[0].mxu0
  %v889 = vadd.f32 %v157, %v888
  %v890 = vpop.f32.mrb[0].mxu0
  %v891 = vadd.f32 %v157, %v890
  %v892 = vpop.f32.mrb[0].mxu0
  %v893 = vadd.f32 %v162, %v892
  %v894 = vpop.f32.mrb[0].mxu0
  %v895 = vadd.f32 %v162, %v894
  %896 = vmatprep.mubr.bf16.mxu0 %v203
  %897 = vmatmul.mubr.bf16.gmra.mrb[0].mxu0 %v202
  %v898 = vpop.f32.mrb[0].mxu0
  %v899 = vadd.f32 %v167, %v898
  %v900 = vpop.f32.mrb[0].mxu0
  %v901 = vadd.f32 %v167, %v900
  %v902 = vpop.f32.mrb[0].mxu0
  %v903 = vadd.f32 %v172, %v902
  %v904 = vpop.f32.mrb[0].mxu0
  %v905 = vadd.f32 %v172, %v904
  %906 = vdwg.mxu0
  %907 = vmatprep.subr.bf16.mxu0 %v663
  %908 = vmatpush1.bf16.msra.mxu0 %v662
  %909 = vmatprep.subr.bf16.mxu0 %v667
  %910 = vmatpush1.bf16.msra.mxu0 %v666
  %911 = vmatprep.subr.bf16.mxu0 %v671
  %912 = vmatpush1.bf16.msra.mxu0 %v670
  %913 = vmatprep.subr.bf16.mxu0 %v675
  %914 = vmatpush1.bf16.msra.mxu0 %v674
  %915 = vmatprep.subr.bf16.mxu0 %v679
  %916 = vmatpush1.bf16.msra.mxu0 %v678
  %917 = vmatprep.subr.bf16.mxu0 %v683
  %918 = vmatpush1.bf16.msra.mxu0 %v682
  %919 = vmatprep.subr.bf16.mxu0 %v687
  %920 = vmatpush1.bf16.msra.mxu0 %v686
  %921 = vmatprep.subr.bf16.mxu0 %v691
  %922 = vmatpush1.bf16.msra.mxu0 %v690
  %923 = vmatprep.subr.bf16.mxu0 %v695
  %924 = vmatpush1.bf16.msra.mxu0 %v694
  %925 = vmatprep.subr.bf16.mxu0 %v699
  %926 = vmatpush1.bf16.msra.mxu0 %v698
  %927 = vmatprep.subr.bf16.mxu0 %v703
  %928 = vmatpush1.bf16.msra.mxu0 %v702
  %929 = vmatprep.subr.bf16.mxu0 %v707
  %930 = vmatpush1.bf16.msra.mxu0 %v706
  %931 = vmatprep.subr.bf16.mxu0 %v711
  %932 = vmatpush1.bf16.msra.mxu0 %v710
  %933 = vmatprep.subr.bf16.mxu0 %v715
  %934 = vmatpush1.bf16.msra.mxu0 %v714
  %935 = vmatprep.subr.bf16.mxu0 %v719
  %936 = vmatpush1.bf16.msra.mxu0 %v718
  %937 = vmatprep.subr.bf16.mxu0 %v723
  %938 = vmatpush1.bf16.msra.mxu0 %v722
  %939 = vmatprep.mubr.bf16.mxu0 %v201
  %940 = vmatmul.mubr.bf16.gmra.mrb[0].mxu0 %v200
  %v941 = vpop.f32.mrb[0].mxu0
  %v942 = vadd.f32 %v889, %v941
  %v943 = vpop.f32.mrb[0].mxu0
  %v944 = vadd.f32 %v891, %v943
  %v945 = vpop.f32.mrb[0].mxu0
  %v946 = vadd.f32 %v893, %v945
  %v947 = vpop.f32.mrb[0].mxu0
  %v948 = vadd.f32 %v895, %v947
  %949 = vmatprep.mubr.bf16.mxu0 %v205
  %950 = vmatmul.mubr.bf16.gmra.mrb[0].mxu0 %v204
  %v951 = vpop.f32.mrb[0].mxu0
  %v952 = vadd.f32 %v899, %v951
  %v953 = vpop.f32.mrb[0].mxu0
  %v954 = vadd.f32 %v901, %v953
  %v955 = vpop.f32.mrb[0].mxu0
  %v956 = vadd.f32 %v903, %v955
  %v957 = vpop.f32.mrb[0].mxu0
  %v958 = vadd.f32 %v905, %v957
  %959 = vdwg.mxu0
  %960 = vmatprep.subr.bf16.mxu0 %v601
  %961 = vmatpush1.bf16.msra.mxu0 %v600
  %962 = vmatprep.subr.bf16.mxu0 %v605
  %963 = vmatpush1.bf16.msra.mxu0 %v604
  %964 = vmatprep.subr.bf16.mxu0 %v609
  %965 = vmatpush1.bf16.msra.mxu0 %v608
  %966 = vmatprep.subr.bf16.mxu0 %v613
  %967 = vmatpush1.bf16.msra.mxu0 %v612
  %968 = vmatprep.subr.bf16.mxu0 %v617
  %969 = vmatpush1.bf16.msra.mxu0 %v616
  %970 = vmatprep.subr.bf16.mxu0 %v621
  %971 = vmatpush1.bf16.msra.mxu0 %v620
  %972 = vmatprep.subr.bf16.mxu0 %v625
  %973 = vmatpush1.bf16.msra.mxu0 %v624
  %974 = vmatprep.subr.bf16.mxu0 %v629
  %975 = vmatpush1.bf16.msra.mxu0 %v628
  %976 = vmatprep.subr.bf16.mxu0 %v633
  %977 = vmatpush1.bf16.msra.mxu0 %v632
  %978 = vmatprep.subr.bf16.mxu0 %v637
  %979 = vmatpush1.bf16.msra.mxu0 %v636
  %980 = vmatprep.subr.bf16.mxu0 %v641
  %981 = vmatpush1.bf16.msra.mxu0 %v640
  %982 = vmatprep.subr.bf16.mxu0 %v645
  %983 = vmatpush1.bf16.msra.mxu0 %v644
  %984 = vmatprep.subr.bf16.mxu0 %v649
  %985 = vmatpush1.bf16.msra.mxu0 %v648
  %986 = vmatprep.subr.bf16.mxu0 %v653
  %987 = vmatpush1.bf16.msra.mxu0 %v652
  %988 = vmatprep.subr.bf16.mxu0 %v657
  %989 = vmatpush1.bf16.msra.mxu0 %v656
  %990 = vmatprep.subr.bf16.mxu0 %v661
  %991 = vmatpush1.bf16.msra.mxu0 %v660
  %992 = vmatprep.mubr.bf16.mxu0 %v199
  %993 = vmatmul.mubr.bf16.gmra.mrb[0].mxu0 %v198
  %v994 = vpop.f32.mrb[0].mxu0
  %v995 = vadd.f32 %v157, %v994
  %v996 = vpop.f32.mrb[0].mxu0
  %v997 = vadd.f32 %v157, %v996
  %v998 = vpop.f32.mrb[0].mxu0
  %v999 = vadd.f32 %v162, %v998
  %v1000 = vpop.f32.mrb[0].mxu0
  %v1001 = vadd.f32 %v162, %v1000
  %1002 = vmatprep.mubr.bf16.mxu0 %v203
  %1003 = vmatmul.mubr.bf16.gmra.mrb[0].mxu0 %v202
  %v1004 = vpop.f32.mrb[0].mxu0
  %v1005 = vadd.f32 %v167, %v1004
  %v1006 = vpop.f32.mrb[0].mxu0
  %v1007 = vadd.f32 %v167, %v1006
  %v1008 = vpop.f32.mrb[0].mxu0
  %v1009 = vadd.f32 %v172, %v1008
  %v1010 = vpop.f32.mrb[0].mxu0
  %v1011 = vadd.f32 %v172, %v1010
  %1012 = vdwg.mxu0
  %1013 = vmatprep.subr.bf16.mxu0 %v665
  %1014 = vmatpush1.bf16.msra.mxu0 %v664
  %1015 = vmatprep.subr.bf16.mxu0 %v669
  %1016 = vmatpush1.bf16.msra.mxu0 %v668
  %1017 = vmatprep.subr.bf16.mxu0 %v673
  %1018 = vmatpush1.bf16.msra.mxu0 %v672
  %1019 = vmatprep.subr.bf16.mxu0 %v677
  %1020 = vmatpush1.bf16.msra.mxu0 %v676
  %1021 = vmatprep.subr.bf16.mxu0 %v681
  %1022 = vmatpush1.bf16.msra.mxu0 %v680
  %1023 = vmatprep.subr.bf16.mxu0 %v685
  %1024 = vmatpush1.bf16.msra.mxu0 %v684
  %1025 = vmatprep.subr.bf16.mxu0 %v689
  %1026 = vmatpush1.bf16.msra.mxu0 %v688
  %1027 = vmatprep.subr.bf16.mxu0 %v693
  %1028 = vmatpush1.bf16.msra.mxu0 %v692
  %1029 = vmatprep.subr.bf16.mxu0 %v697
  %1030 = vmatpush1.bf16.msra.mxu0 %v696
  %1031 = vmatprep.subr.bf16.mxu0 %v701
  %1032 = vmatpush1.bf16.msra.mxu0 %v700
  %1033 = vmatprep.subr.bf16.mxu0 %v705
  %1034 = vmatpush1.bf16.msra.mxu0 %v704
  %1035 = vmatprep.subr.bf16.mxu0 %v709
  %1036 = vmatpush1.bf16.msra.mxu0 %v708
  %1037 = vmatprep.subr.bf16.mxu0 %v713
  %1038 = vmatpush1.bf16.msra.mxu0 %v712
  %1039 = vmatprep.subr.bf16.mxu0 %v717
  %1040 = vmatpush1.bf16.msra.mxu0 %v716
  %1041 = vmatprep.subr.bf16.mxu0 %v721
  %1042 = vmatpush1.bf16.msra.mxu0 %v720
  %1043 = vmatprep.subr.bf16.mxu0 %v725
  %1044 = vmatpush1.bf16.msra.mxu0 %v724
  %1045 = vmatprep.mubr.bf16.mxu0 %v201
  %1046 = vmatmul.mubr.bf16.gmra.mrb[0].mxu0 %v200
  %v1047 = vpop.f32.mrb[0].mxu0
  %v1048 = vadd.f32 %v995, %v1047
  %v1049 = vpop.f32.mrb[0].mxu0
  %v1050 = vadd.f32 %v997, %v1049
  %v1051 = vpop.f32.mrb[0].mxu0
  %v1052 = vadd.f32 %v999, %v1051
  %v1053 = vpop.f32.mrb[0].mxu0
  %v1054 = vadd.f32 %v1001, %v1053
  %1055 = vmatprep.mubr.bf16.mxu0 %v205
  %1056 = vmatmul.mubr.bf16.gmra.mrb[0].mxu0 %v204
  %v1057 = vpop.f32.mrb[0].mxu0
  %v1058 = vadd.f32 %v1005, %v1057
  %v1059 = vpop.f32.mrb[0].mxu0
  %v1060 = vadd.f32 %v1007, %v1059
  %v1061 = vpop.f32.mrb[0].mxu0
  %v1062 = vadd.f32 %v1009, %v1061
  %v1063 = vpop.f32.mrb[0].mxu0
  %v1064 = vadd.f32 %v1011, %v1063
  %1065 = vdwg.mxu0
  %v1066 = vmax.f32 %v942, 0.0
  %v1067 = vmax.f32 %v944, 0.0
  %v1068 = vmax.f32 %v1048, 0.0
  %v1069 = vmax.f32 %v1050, 0.0
  %v1070 = vmax.f32 %v946, 0.0
  %v1071 = vmax.f32 %v948, 0.0
  %v1072 = vmax.f32 %v1052, 0.0
  %v1073 = vmax.f32 %v1054, 0.0
  %v1074 = vmax.f32 %v952, 0.0
  %v1075 = vmax.f32 %v954, 0.0
  %v1076 = vmax.f32 %v1058, 0.0
  %v1077 = vmax.f32 %v1060, 0.0
  %v1078 = vmax.f32 %v956, 0.0
  %v1079 = vmax.f32 %v958, 0.0
  %v1080 = vmax.f32 %v1062, 0.0
  %v1081 = vmax.f32 %v1064, 0.0
  %1082 = vset.pattern.permute.xlu0 1
  %1083 = vperm.xlu0 %1082, %v150
  %v1084 = vpop.permute.xlu0 %1083
  %1086 = vset.pattern.permute.xlu0 1
  %1087 = vperm.xlu0 %1086, %v151
  %v1088 = vpop.permute.xlu0 %1087
  %1090 = vset.pattern.permute.xlu0 1
  %1091 = vperm.xlu0 %1090, %v152
  %v1092 = vpop.permute.xlu0 %1091
  %1094 = vset.pattern.permute.xlu0 1
  %1095 = vperm.xlu0 %1094, %v153
  %v1096 = vpop.permute.xlu0 %1095
  %v1098 = vmul.f32 %v1066, %v1084
  %v1099 = vmul.f32 %v1067, %v1084
  %v1100 = vmul.f32 %v1068, %v1084
  %v1101 = vmul.f32 %v1069, %v1084
  %v1102 = vmul.f32 %v1070, %v1088
  %v1103 = vmul.f32 %v1071, %v1088
  %v1104 = vmul.f32 %v1072, %v1088
  %v1105 = vmul.f32 %v1073, %v1088
  %v1106 = vmul.f32 %v1074, %v1092
  %v1107 = vmul.f32 %v1075, %v1092
  %v1108 = vmul.f32 %v1076, %v1092
  %v1109 = vmul.f32 %v1077, %v1092
  %v1110 = vmul.f32 %v1078, %v1096
  %v1111 = vmul.f32 %v1079, %v1096
  %v1112 = vmul.f32 %v1080, %v1096
  %v1113 = vmul.f32 %v1081, %v1096
  %1114 = vset.pattern.permute.xlu0 2
  %1115 = vperm.xlu0 %1114, %v150
  %v1116 = vpop.permute.xlu0 %1115
  %1118 = vset.pattern.permute.xlu0 2
  %1119 = vperm.xlu0 %1118, %v151
  %v1120 = vpop.permute.xlu0 %1119
  %1122 = vset.pattern.permute.xlu0 2
  %1123 = vperm.xlu0 %1122, %v152
  %v1124 = vpop.permute.xlu0 %1123
  %1126 = vset.pattern.permute.xlu0 2
  %1127 = vperm.xlu0 %1126, %v153
  %v1128 = vpop.permute.xlu0 %1127
  %v1130 = vadd.f32 %v1098, %v1116
  %v1131 = vadd.f32 %v1099, %v1116
  %v1132 = vadd.f32 %v1100, %v1116
  %v1133 = vadd.f32 %v1101, %v1116
  %v1134 = vadd.f32 %v1102, %v1120
  %v1135 = vadd.f32 %v1103, %v1120
  %v1136 = vadd.f32 %v1104, %v1120
  %v1137 = vadd.f32 %v1105, %v1120
  %v1138 = vadd.f32 %v1106, %v1124
  %v1139 = vadd.f32 %v1107, %v1124
  %v1140 = vadd.f32 %v1108, %v1124
  %v1141 = vadd.f32 %v1109, %v1124
  %v1142 = vadd.f32 %v1110, %v1128
  %v1143 = vadd.f32 %v1111, %v1128
  %v1144 = vadd.f32 %v1112, %v1128
  %v1145 = vadd.f32 %v1113, %v1128
  %v1146 = vpack.c.bf16 %v1134, %v1130
  %v1147 = vpack.c.bf16 %v1135, %v1131
  %v1148 = vpack.c.bf16 %v1136, %v1132
  %v1149 = vpack.c.bf16 %v1137, %v1133
  %v1150 = vpack.c.bf16 %v1142, %v1138
  %v1151 = vpack.c.bf16 %v1143, %v1139
  %v1152 = vpack.c.bf16 %v1144, %v1140
  %v1153 = vpack.c.bf16 %v1145, %v1141
  %v1162 = vunpack.c.l.b16 %v1146
  %v1163 = vunpack.c.l.b16 %v1147
  %v1164 = vunpack.c.l.b16 %v1148
  %v1165 = vunpack.c.l.b16 %v1149
  %v1166 = vunpack.c.h.b16 %v1146
  %v1167 = vunpack.c.h.b16 %v1147
  %v1168 = vunpack.c.h.b16 %v1148
  %v1169 = vunpack.c.h.b16 %v1149
  %v1170 = vunpack.c.l.b16 %v1150
  %v1171 = vunpack.c.l.b16 %v1151
  %v1172 = vunpack.c.l.b16 %v1152
  %v1173 = vunpack.c.l.b16 %v1153
  %v1174 = vunpack.c.h.b16 %v1150
  %v1175 = vunpack.c.h.b16 %v1151
  %v1176 = vunpack.c.h.b16 %v1152
  %v1177 = vunpack.c.h.b16 %v1153
  %v1178 = vpack.c.b16 %v1163, %v1162
  %v1179 = vpack.c.b16 %v1165, %v1164
  %v1180 = vpack.c.b16 %v1167, %v1166
  %v1181 = vpack.c.b16 %v1169, %v1168
  %v1182 = vpack.c.b16 %v1171, %v1170
  %v1183 = vpack.c.b16 %v1173, %v1172
  %v1184 = vpack.c.b16 %v1175, %v1174
  %v1185 = vpack.c.b16 %v1177, %v1176
  %1194 = vst [vmem:[%s3] sm:$0xff] %v1178
  %1195 = vst [vmem:[%s3 + $0x8] sm:$0xff] %v1179
  %1196 = vst [vmem:[%s3 + $0x10] sm:$0xff] %v1180
  %1197 = vst [vmem:[%s3 + $0x18] sm:$0xff] %v1181
  %1198 = vst [vmem:[%s3 + $0x20] sm:$0xff] %v1182
  %1199 = vst [vmem:[%s3 + $0x28] sm:$0xff] %v1183
  %1200 = vst [vmem:[%s3 + $0x30] sm:$0xff] %v1184
  %1201 = vst [vmem:[%s3 + $0x38] sm:$0xff] %v1185
  // Predicated region
  $region14: #{agent_forward.4} parent=0 // pred_check
    _
  $region15: #{agent_forward.4} parent=0 // pred_check_branch
    %1203 = sbr.rel (0) target = $region17
  $region16: #{agent_forward.4} parent=0 // pred_region
    _
  $region17: #{agent_forward.4} parent=0 // pred_fallthru
    _
  // Predicated region
  $region18: #{agent_forward.4} parent=0 // pred_check
    _
  $region19: #{agent_forward.4} parent=0 // pred_check_branch
    %1205 = sbr.rel (0) target = $region21
  $region20: #{agent_forward.4} parent=0 // pred_region
    _
  $region21: #{agent_forward.4} parent=0 // pred_fallthru
    _

// kernel: agent_forward.5
$region0: #{agent_forward.5}
  #allocation0 [shape = 'u32[]', space=smem, size = 0x4, offset = 0x4, fixed_abs, tag = 'smem constant byte address 0x4 - core index']
  #allocation1 [shape = 'u32[144,128]{1,0:T(1,128)}', space=vmem, size = 0x12000, scoped, tag = 'internal scratch']
  %s0 = inlined_call_operand.vmem [shape: bf16[64,512], index: 0, kind: input, shape index: {}]
  %s1 = inlined_call_operand.vmem [shape: bf16[512,128], index: 1, kind: input, shape index: {}]
  %s2 = inlined_call_operand.vmem [shape: f32[64,8], index: 2, kind: input, shape index: {}]
  %s3 = inlined_call_operand.vmem [shape: bf16[64,128], index: 3, kind: output, shape index: {}]
  %s4 = sld [smem:[#allocation0]]
  $region22: #{agent_forward.5} parent=0
    _
  %s6 = ssub.s32 1, %s4
  %s7 = scalar_select 0, %s6, %s4
  // Predicated region
  $region2: #{agent_forward.5} parent=0 // pred_check
    _
  $region3: #{agent_forward.5} parent=0 // pred_check_branch
    %9 = sbr.rel (0) target = $region5
  $region4: #{agent_forward.5} parent=0 // pred_region
    _
  $region5: #{agent_forward.5} parent=0 // pred_fallthru
    _
  // Predicated region
  $region6: #{agent_forward.5} parent=0 // pred_check
    _
  $region7: #{agent_forward.5} parent=0 // pred_check_branch
    %11 = sbr.rel (0) target = $region9
  $region8: #{agent_forward.5} parent=0 // pred_region
    _
  $region9: #{agent_forward.5} parent=0 // pred_fallthru
    _
  // Predicated region
  $region10: #{agent_forward.5} parent=0 // pred_check
    _
  $region11: #{agent_forward.5} parent=0 // pred_check_branch
    %13 = sbr.rel (0) target = $region13
  $region12: #{agent_forward.5} parent=0 // pred_region
    _
  $region13: #{agent_forward.5} parent=0 // pred_fallthru
    _
  %v15 = vld [vmem:[%s0] sm:$0xff]
  %v16 = vld [vmem:[%s0 + $0x8] sm:$0xff]
  %v17 = vld [vmem:[%s0 + $0x10] sm:$0xff]
  %v18 = vld [vmem:[%s0 + $0x18] sm:$0xff]
  %v19 = vld [vmem:[%s0 + $0x20] sm:$0xff]
  %v20 = vld [vmem:[%s0 + $0x28] sm:$0xff]
  %v21 = vld [vmem:[%s0 + $0x30] sm:$0xff]
  %v22 = vld [vmem:[%s0 + $0x38] sm:$0xff]
  %v23 = vld [vmem:[%s0 + $0x40] sm:$0xff]
  %v24 = vld [vmem:[%s0 + $0x48] sm:$0xff]
  %v25 = vld [vmem:[%s0 + $0x50] sm:$0xff]
  %v26 = vld [vmem:[%s0 + $0x58] sm:$0xff]
  %v27 = vld [vmem:[%s0 + $0x60] sm:$0xff]
  %v28 = vld [vmem:[%s0 + $0x68] sm:$0xff]
  %v29 = vld [vmem:[%s0 + $0x70] sm:$0xff]
  %v30 = vld [vmem:[%s0 + $0x78] sm:$0xff]
  %v31 = vld [vmem:[%s1] sm:$0xf]
  %v32 = vld [vmem:[%s1 + $0x4] sm:$0xf]
  %v33 = vld [vmem:[%s1 + $0x8] sm:$0xf]
  %v34 = vld [vmem:[%s1 + $0xc] sm:$0xf]
  %v35 = vld [vmem:[%s1 + $0x10] sm:$0xf]
  %v36 = vld [vmem:[%s1 + $0x14] sm:$0xf]
  %v37 = vld [vmem:[%s1 + $0x18] sm:$0xf]
  %v38 = vld [vmem:[%s1 + $0x1c] sm:$0xf]
  %v39 = vld [vmem:[%s1 + $0x20] sm:$0xf]
  %v40 = vld [vmem:[%s1 + $0x24] sm:$0xf]
  %v41 = vld [vmem:[%s1 + $0x28] sm:$0xf]
  %v42 = vld [vmem:[%s1 + $0x2c] sm:$0xf]
  %v43 = vld [vmem:[%s1 + $0x30] sm:$0xf]
  %v44 = vld [vmem:[%s1 + $0x34] sm:$0xf]
  %v45 = vld [vmem:[%s1 + $0x38] sm:$0xf]
  %v46 = vld [vmem:[%s1 + $0x3c] sm:$0xf]
  %v47 = vld [vmem:[%s1 + $0x40] sm:$0xf]
  %v48 = vld [vmem:[%s1 + $0x44] sm:$0xf]
  %v49 = vld [vmem:[%s1 + $0x48] sm:$0xf]
  %v50 = vld [vmem:[%s1 + $0x4c] sm:$0xf]
  %v51 = vld [vmem:[%s1 + $0x50] sm:$0xf]
  %v52 = vld [vmem:[%s1 + $0x54] sm:$0xf]
  %v53 = vld [vmem:[%s1 + $0x58] sm:$0xf]
  %v54 = vld [vmem:[%s1 + $0x5c] sm:$0xf]
  %v55 = vld [vmem:[%s1 + $0x60] sm:$0xf]
  %v56 = vld [vmem:[%s1 + $0x64] sm:$0xf]
  %v57 = vld [vmem:[%s1 + $0x68] sm:$0xf]
  %v58 = vld [vmem:[%s1 + $0x6c] sm:$0xf]
  %v59 = vld [vmem:[%s1 + $0x70] sm:$0xf]
  %v60 = vld [vmem:[%s1 + $0x74] sm:$0xf]
  %v61 = vld [vmem:[%s1 + $0x78] sm:$0xf]
  %v62 = vld [vmem:[%s1 + $0x7c] sm:$0xf]
  %v63 = vld [vmem:[%s1 + $0x80] sm:$0xf]
  %v64 = vld [vmem:[%s1 + $0x84] sm:$0xf]
  %v65 = vld [vmem:[%s1 + $0x88] sm:$0xf]
  %v66 = vld [vmem:[%s1 + $0x8c] sm:$0xf]
  %v67 = vld [vmem:[%s1 + $0x90] sm:$0xf]
  %v68 = vld [vmem:[%s1 + $0x94] sm:$0xf]
  %v69 = vld [vmem:[%s1 + $0x98] sm:$0xf]
  %v70 = vld [vmem:[%s1 + $0x9c] sm:$0xf]
  %v71 = vld [vmem:[%s1 + $0xa0] sm:$0xf]
  %v72 = vld [vmem:[%s1 + $0xa4] sm:$0xf]
  %v73 = vld [vmem:[%s1 + $0xa8] sm:$0xf]
  %v74 = vld [vmem:[%s1 + $0xac] sm:$0xf]
  %v75 = vld [vmem:[%s1 + $0xb0] sm:$0xf]
  %v76 = vld [vmem:[%s1 + $0xb4] sm:$0xf]
  %v77 = vld [vmem:[%s1 + $0xb8] sm:$0xf]
  %v78 = vld [vmem:[%s1 + $0xbc] sm:$0xf]
  %v79 = vld [vmem:[%s1 + $0xc0] sm:$0xf]
  %v80 = vld [vmem:[%s1 + $0xc4] sm:$0xf]
  %v81 = vld [vmem:[%s1 + $0xc8] sm:$0xf]
  %v82 = vld [vmem:[%s1 + $0xcc] sm:$0xf]
  %v83 = vld [vmem:[%s1 + $0xd0] sm:$0xf]
  %v84 = vld [vmem:[%s1 + $0xd4] sm:$0xf]
  %v85 = vld [vmem:[%s1 + $0xd8] sm:$0xf]
  %v86 = vld [vmem:[%s1 + $0xdc] sm:$0xf]
  %v87 = vld [vmem:[%s1 + $0xe0] sm:$0xf]
  %v88 = vld [vmem:[%s1 + $0xe4] sm:$0xf]
  %v89 = vld [vmem:[%s1 + $0xe8] sm:$0xf]
  %v90 = vld [vmem:[%s1 + $0xec] sm:$0xf]
  %v91 = vld [vmem:[%s1 + $0xf0] sm:$0xf]
  %v92 = vld [vmem:[%s1 + $0xf4] sm:$0xf]
  %v93 = vld [vmem:[%s1 + $0xf8] sm:$0xf]
  %v94 = vld [vmem:[%s1 + $0xfc] sm:$0xf]
  %v95 = vld [vmem:[%s2] sm:$0xff]
  %v96 = vld [vmem:[%s2 + $0x8] sm:$0xff]
  %v97 = vld [vmem:[%s2 + $0x10] sm:$0xff]
  %v98 = vld [vmem:[%s2 + $0x18] sm:$0xff]
  %v99 = vld [vmem:[%s2 + $0x20] sm:$0xff]
  %v100 = vld [vmem:[%s2 + $0x28] sm:$0xff]
  %v101 = vld [vmem:[%s2 + $0x30] sm:$0xff]
  %v102 = vld [vmem:[%s2 + $0x38] sm:$0xff]
  %104 = vset.pattern.permute.xlu0 0
  %105 = vperm.xlu0 %104, %v95
  %v106 = vpop.permute.xlu0 %105
  %109 = vset.pattern.permute.xlu0 0
  %110 = vperm.xlu0 %109, %v96
  %v111 = vpop.permute.xlu0 %110
  %114 = vset.pattern.permute.xlu0 0
  %115 = vperm.xlu0 %114, %v97
  %v116 = vpop.permute.xlu0 %115
  %119 = vset.pattern.permute.xlu0 0
  %120 = vperm.xlu0 %119, %v98
  %v121 = vpop.permute.xlu0 %120
  %124 = vset.pattern.permute.xlu0 0
  %125 = vperm.xlu0 %124, %v99
  %v126 = vpop.permute.xlu0 %125
  %129 = vset.pattern.permute.xlu0 0
  %130 = vperm.xlu0 %129, %v100
  %v131 = vpop.permute.xlu0 %130
  %134 = vset.pattern.permute.xlu0 0
  %135 = vperm.xlu0 %134, %v101
  %v136 = vpop.permute.xlu0 %135
  %139 = vset.pattern.permute.xlu0 0
  %140 = vperm.xlu0 %139, %v102
  %v141 = vpop.permute.xlu0 %140
  %v159 = vunpack.c.l.b16 %v15
  %v160 = vunpack.c.h.b16 %v15
  %v161 = vunpack.c.l.b16 %v16
  %v162 = vunpack.c.h.b16 %v16
  %v163 = vunpack.c.l.b16 %v17
  %v164 = vunpack.c.h.b16 %v17
  %v165 = vunpack.c.l.b16 %v18
  %v166 = vunpack.c.h.b16 %v18
  %v167 = vunpack.c.l.b16 %v19
  %v168 = vunpack.c.h.b16 %v19
  %v169 = vunpack.c.l.b16 %v20
  %v170 = vunpack.c.h.b16 %v20
  %v171 = vunpack.c.l.b16 %v21
  %v172 = vunpack.c.h.b16 %v21
  %v173 = vunpack.c.l.b16 %v22
  %v174 = vunpack.c.h.b16 %v22
  %v175 = vunpack.c.l.b16 %v23
  %v176 = vunpack.c.h.b16 %v23
  %v177 = vunpack.c.l.b16 %v24
  %v178 = vunpack.c.h.b16 %v24
  %v179 = vunpack.c.l.b16 %v25
  %v180 = vunpack.c.h.b16 %v25
  %v181 = vunpack.c.l.b16 %v26
  %v182 = vunpack.c.h.b16 %v26
  %v183 = vunpack.c.l.b16 %v27
  %v184 = vunpack.c.h.b16 %v27
  %v185 = vunpack.c.l.b16 %v28
  %v186 = vunpack.c.h.b16 %v28
  %v187 = vunpack.c.l.b16 %v29
  %v188 = vunpack.c.h.b16 %v29
  %v189 = vunpack.c.l.b16 %v30
  %v190 = vunpack.c.h.b16 %v30
  %v191 = vpack.c.b16 %v163, %v159
  %v192 = vpack.c.b16 %v164, %v160
  %v193 = vpack.c.b16 %v165, %v161
  %v194 = vpack.c.b16 %v166, %v162
  %v195 = vpack.c.b16 %v171, %v167
  %v196 = vpack.c.b16 %v172, %v168
  %v197 = vpack.c.b16 %v173, %v169
  %v198 = vpack.c.b16 %v174, %v170
  %v199 = vpack.c.b16 %v179, %v175
  %v200 = vpack.c.b16 %v180, %v176
  %v201 = vpack.c.b16 %v181, %v177
  %v202 = vpack.c.b16 %v182, %v178
  %v203 = vpack.c.b16 %v187, %v183
  %v204 = vpack.c.b16 %v188, %v184
  %v205 = vpack.c.b16 %v189, %v185
  %v206 = vpack.c.b16 %v190, %v186
  %v287 = vunpack.c.l.b16 %v31
  %v288 = vunpack.c.l.b16 %v32
  %v289 = vunpack.c.l.b16 %v33
  %v290 = vunpack.c.l.b16 %v34
  %v291 = vunpack.c.l.b16 %v35
  %v292 = vunpack.c.l.b16 %v36
  %v293 = vunpack.c.l.b16 %v37
  %v294 = vunpack.c.l.b16 %v38
  %v295 = vunpack.c.l.b16 %v39
  %v296 = vunpack.c.l.b16 %v40
  %v297 = vunpack.c.l.b16 %v41
  %v298 = vunpack.c.l.b16 %v42
  %v299 = vunpack.c.l.b16 %v43
  %v300 = vunpack.c.l.b16 %v44
  %v301 = vunpack.c.l.b16 %v45
  %v302 = vunpack.c.l.b16 %v46
  %v303 = vunpack.c.l.b16 %v47
  %v304 = vunpack.c.l.b16 %v48
  %v305 = vunpack.c.l.b16 %v49
  %v306 = vunpack.c.l.b16 %v50
  %v307 = vunpack.c.l.b16 %v51
  %v308 = vunpack.c.l.b16 %v52
  %v309 = vunpack.c.l.b16 %v53
  %v310 = vunpack.c.l.b16 %v54
  %v311 = vunpack.c.l.b16 %v55
  %v312 = vunpack.c.l.b16 %v56
  %v313 = vunpack.c.l.b16 %v57
  %v314 = vunpack.c.l.b16 %v58
  %v315 = vunpack.c.l.b16 %v59
  %v316 = vunpack.c.l.b16 %v60
  %v317 = vunpack.c.l.b16 %v61
  %v318 = vunpack.c.l.b16 %v62
  %v319 = vunpack.c.l.b16 %v63
  %v320 = vunpack.c.l.b16 %v64
  %v321 = vunpack.c.l.b16 %v65
  %v322 = vunpack.c.l.b16 %v66
  %v323 = vunpack.c.l.b16 %v67
  %v324 = vunpack.c.l.b16 %v68
  %v325 = vunpack.c.l.b16 %v69
  %v326 = vunpack.c.l.b16 %v70
  %v327 = vunpack.c.l.b16 %v71
  %v328 = vunpack.c.l.b16 %v72
  %v329 = vunpack.c.l.b16 %v73
  %v330 = vunpack.c.l.b16 %v74
  %v331 = vunpack.c.l.b16 %v75
  %v332 = vunpack.c.l.b16 %v76
  %v333 = vunpack.c.l.b16 %v77
  %v334 = vunpack.c.l.b16 %v78
  %v335 = vunpack.c.l.b16 %v79
  %v336 = vunpack.c.l.b16 %v80
  %v337 = vunpack.c.l.b16 %v81
  %v338 = vunpack.c.l.b16 %v82
  %v339 = vunpack.c.l.b16 %v83
  %v340 = vunpack.c.l.b16 %v84
  %v341 = vunpack.c.l.b16 %v85
  %v342 = vunpack.c.l.b16 %v86
  %v343 = vunpack.c.l.b16 %v87
  %v344 = vunpack.c.l.b16 %v88
  %v345 = vunpack.c.l.b16 %v89
  %v346 = vunpack.c.l.b16 %v90
  %v347 = vunpack.c.l.b16 %v91
  %v348 = vunpack.c.l.b16 %v92
  %v349 = vunpack.c.l.b16 %v93
  %v350 = vunpack.c.l.b16 %v94
  %v351 = vpack.c.b16 %v288, %v287
  %v352 = vpack.c.b16 %v290, %v289
  %v353 = vpack.c.b16 %v292, %v291
  %v354 = vpack.c.b16 %v294, %v293
  %v355 = vpack.c.b16 %v296, %v295
  %v356 = vpack.c.b16 %v298, %v297
  %v357 = vpack.c.b16 %v300, %v299
  %v358 = vpack.c.b16 %v302, %v301
  %v359 = vpack.c.b16 %v304, %v303
  %v360 = vpack.c.b16 %v306, %v305
  %v361 = vpack.c.b16 %v308, %v307
  %v362 = vpack.c.b16 %v310, %v309
  %v363 = vpack.c.b16 %v312, %v311
  %v364 = vpack.c.b16 %v314, %v313
  %v365 = vpack.c.b16 %v316, %v315
  %v366 = vpack.c.b16 %v318, %v317
  %v367 = vpack.c.b16 %v320, %v319
  %v368 = vpack.c.b16 %v322, %v321
  %v369 = vpack.c.b16 %v324, %v323
  %v370 = vpack.c.b16 %v326, %v325
  %v371 = vpack.c.b16 %v328, %v327
  %v372 = vpack.c.b16 %v330, %v329
  %v373 = vpack.c.b16 %v332, %v331
  %v374 = vpack.c.b16 %v334, %v333
  %v375 = vpack.c.b16 %v336, %v335
  %v376 = vpack.c.b16 %v338, %v337
  %v377 = vpack.c.b16 %v340, %v339
  %v378 = vpack.c.b16 %v342, %v341
  %v379 = vpack.c.b16 %v344, %v343
  %v380 = vpack.c.b16 %v346, %v345
  %v381 = vpack.c.b16 %v348, %v347
  %v382 = vpack.c.b16 %v350, %v349
  %415 = vmatprep.subr.bf16.mxu0 0
  %416 = vmatpush1.bf16.msra.mxu0 %v351
  %417 = vmatprep.subr.bf16.mxu0 0
  %418 = vmatpush1.bf16.msra.mxu0 %v352
  %419 = vmatprep.subr.bf16.mxu0 0
  %420 = vmatpush1.bf16.msra.mxu0 %v353
  %421 = vmatprep.subr.bf16.mxu0 0
  %422 = vmatpush1.bf16.msra.mxu0 %v354
  %423 = vmatprep.subr.bf16.mxu0 0
  %424 = vmatpush1.bf16.msra.mxu0 %v355
  %425 = vmatprep.subr.bf16.mxu0 0
  %426 = vmatpush1.bf16.msra.mxu0 %v356
  %427 = vmatprep.subr.bf16.mxu0 0
  %428 = vmatpush1.bf16.msra.mxu0 %v357
  %429 = vmatprep.subr.bf16.mxu0 0
  %430 = vmatpush1.bf16.msra.mxu0 %v358
  %431 = vmatprep.subr.bf16.mxu0 0
  %432 = vmatpush1.bf16.msra.mxu0 %v359
  %433 = vmatprep.subr.bf16.mxu0 0
  %434 = vmatpush1.bf16.msra.mxu0 %v360
  %435 = vmatprep.subr.bf16.mxu0 0
  %436 = vmatpush1.bf16.msra.mxu0 %v361
  %437 = vmatprep.subr.bf16.mxu0 0
  %438 = vmatpush1.bf16.msra.mxu0 %v362
  %439 = vmatprep.subr.bf16.mxu0 0
  %440 = vmatpush1.bf16.msra.mxu0 %v363
  %441 = vmatprep.subr.bf16.mxu0 0
  %442 = vmatpush1.bf16.msra.mxu0 %v364
  %443 = vmatprep.subr.bf16.mxu0 0
  %444 = vmatpush1.bf16.msra.mxu0 %v365
  %445 = vmatprep.subr.bf16.mxu0 0
  %446 = vmatpush1.bf16.msra.mxu0 %v366
  %447 = vmatprep.mubr.bf16.mxu0 %v192
  %448 = vmatmul.mubr.bf16.gmra.mrb[0].mxu0 %v191
  %v449 = vpop.f32.mrb[0].mxu0
  %v450 = vadd.f32 %v106, %v449
  %v451 = vpop.f32.mrb[0].mxu0
  %v452 = vpop.f32.mrb[0].mxu0
  %v453 = vadd.f32 %v111, %v452
  %v454 = vpop.f32.mrb[0].mxu0
  %455 = vmatprep.mubr.bf16.mxu0 %v196
  %456 = vmatmul.mubr.bf16.gmra.mrb[0].mxu0 %v195
  %v457 = vpop.f32.mrb[0].mxu0
  %v458 = vadd.f32 %v116, %v457
  %v459 = vpop.f32.mrb[0].mxu0
  %v460 = vpop.f32.mrb[0].mxu0
  %v461 = vadd.f32 %v121, %v460
  %v462 = vpop.f32.mrb[0].mxu0
  %463 = vmatprep.mubr.bf16.mxu0 %v200
  %464 = vmatmul.mubr.bf16.gmra.mrb[0].mxu0 %v199
  %v465 = vpop.f32.mrb[0].mxu0
  %v466 = vadd.f32 %v126, %v465
  %v467 = vpop.f32.mrb[0].mxu0
  %v468 = vpop.f32.mrb[0].mxu0
  %v469 = vadd.f32 %v131, %v468
  %v470 = vpop.f32.mrb[0].mxu0
  %471 = vmatprep.mubr.bf16.mxu0 %v204
  %472 = vmatmul.mubr.bf16.gmra.mrb[0].mxu0 %v203
  %v473 = vpop.f32.mrb[0].mxu0
  %v474 = vadd.f32 %v136, %v473
  %v475 = vpop.f32.mrb[0].mxu0
  %v476 = vpop.f32.mrb[0].mxu0
  %v477 = vadd.f32 %v141, %v476
  %v478 = vpop.f32.mrb[0].mxu0
  %479 = vdwg.mxu0
  %480 = vmatprep.subr.bf16.mxu0 0
  %481 = vmatpush1.bf16.msra.mxu0 %v367
  %482 = vmatprep.subr.bf16.mxu0 0
  %483 = vmatpush1.bf16.msra.mxu0 %v368
  %484 = vmatprep.subr.bf16.mxu0 0
  %485 = vmatpush1.bf16.msra.mxu0 %v369
  %486 = vmatprep.subr.bf16.mxu0 0
  %487 = vmatpush1.bf16.msra.mxu0 %v370
  %488 = vmatprep.subr.bf16.mxu0 0
  %489 = vmatpush1.bf16.msra.mxu0 %v371
  %490 = vmatprep.subr.bf16.mxu0 0
  %491 = vmatpush1.bf16.msra.mxu0 %v372
  %492 = vmatprep.subr.bf16.mxu0 0
  %493 = vmatpush1.bf16.msra.mxu0 %v373
  %494 = vmatprep.subr.bf16.mxu0 0
  %495 = vmatpush1.bf16.msra.mxu0 %v374
  %496 = vmatprep.subr.bf16.mxu0 0
  %497 = vmatpush1.bf16.msra.mxu0 %v375
  %498 = vmatprep.subr.bf16.mxu0 0
  %499 = vmatpush1.bf16.msra.mxu0 %v376
  %500 = vmatprep.subr.bf16.mxu0 0
  %501 = vmatpush1.bf16.msra.mxu0 %v377
  %502 = vmatprep.subr.bf16.mxu0 0
  %503 = vmatpush1.bf16.msra.mxu0 %v378
  %504 = vmatprep.subr.bf16.mxu0 0
  %505 = vmatpush1.bf16.msra.mxu0 %v379
  %506 = vmatprep.subr.bf16.mxu0 0
  %507 = vmatpush1.bf16.msra.mxu0 %v380
  %508 = vmatprep.subr.bf16.mxu0 0
  %509 = vmatpush1.bf16.msra.mxu0 %v381
  %510 = vmatprep.subr.bf16.mxu0 0
  %511 = vmatpush1.bf16.msra.mxu0 %v382
  %512 = vmatprep.mubr.bf16.mxu0 %v194
  %513 = vmatmul.mubr.bf16.gmra.mrb[0].mxu0 %v193
  %v514 = vpop.f32.mrb[0].mxu0
  %v515 = vadd.f32 %v450, %v514
  %v516 = vpop.f32.mrb[0].mxu0
  %v517 = vpop.f32.mrb[0].mxu0
  %v518 = vadd.f32 %v453, %v517
  %v519 = vpop.f32.mrb[0].mxu0
  %520 = vmatprep.mubr.bf16.mxu0 %v198
  %521 = vmatmul.mubr.bf16.gmra.mrb[0].mxu0 %v197
  %v522 = vpop.f32.mrb[0].mxu0
  %v523 = vadd.f32 %v458, %v522
  %v524 = vpop.f32.mrb[0].mxu0
  %v525 = vpop.f32.mrb[0].mxu0
  %v526 = vadd.f32 %v461, %v525
  %v527 = vpop.f32.mrb[0].mxu0
  %528 = vmatprep.mubr.bf16.mxu0 %v202
  %529 = vmatmul.mubr.bf16.gmra.mrb[0].mxu0 %v201
  %v530 = vpop.f32.mrb[0].mxu0
  %v531 = vadd.f32 %v466, %v530
  %v532 = vpop.f32.mrb[0].mxu0
  %v533 = vpop.f32.mrb[0].mxu0
  %v534 = vadd.f32 %v469, %v533
  %v535 = vpop.f32.mrb[0].mxu0
  %536 = vmatprep.mubr.bf16.mxu0 %v206
  %537 = vmatmul.mubr.bf16.gmra.mrb[0].mxu0 %v205
  %v538 = vpop.f32.mrb[0].mxu0
  %v539 = vadd.f32 %v474, %v538
  %v540 = vpop.f32.mrb[0].mxu0
  %v541 = vpop.f32.mrb[0].mxu0
  %v542 = vadd.f32 %v477, %v541
  %v543 = vpop.f32.mrb[0].mxu0
  %544 = vdwg.mxu0
  %v545 = vmax.f32 %v515, 0.0
  %v546 = vmax.f32 %v518, 0.0
  %v547 = vmax.f32 %v523, 0.0
  %v548 = vmax.f32 %v526, 0.0
  %v549 = vmax.f32 %v531, 0.0
  %v550 = vmax.f32 %v534, 0.0
  %v551 = vmax.f32 %v539, 0.0
  %v552 = vmax.f32 %v542, 0.0
  %553 = vset.pattern.permute.xlu0 1
  %554 = vperm.xlu0 %553, %v95
  %v555 = vpop.permute.xlu0 %554
  %557 = vset.pattern.permute.xlu0 1
  %558 = vperm.xlu0 %557, %v96
  %v559 = vpop.permute.xlu0 %558
  %561 = vset.pattern.permute.xlu0 1
  %562 = vperm.xlu0 %561, %v97
  %v563 = vpop.permute.xlu0 %562
  %565 = vset.pattern.permute.xlu0 1
  %566 = vperm.xlu0 %565, %v98
  %v567 = vpop.permute.xlu0 %566
  %569 = vset.pattern.permute.xlu0 1
  %570 = vperm.xlu0 %569, %v99
  %v571 = vpop.permute.xlu0 %570
  %573 = vset.pattern.permute.xlu0 1
  %574 = vperm.xlu0 %573, %v100
  %v575 = vpop.permute.xlu0 %574
  %577 = vset.pattern.permute.xlu0 1
  %578 = vperm.xlu0 %577, %v101
  %v579 = vpop.permute.xlu0 %578
  %581 = vset.pattern.permute.xlu0 1
  %582 = vperm.xlu0 %581, %v102
  %v583 = vpop.permute.xlu0 %582
  %v585 = vmul.f32 %v545, %v555
  %v586 = vmul.f32 %v546, %v559
  %v587 = vmul.f32 %v547, %v563
  %v588 = vmul.f32 %v548, %v567
  %v589 = vmul.f32 %v549, %v571
  %v590 = vmul.f32 %v550, %v575
  %v591 = vmul.f32 %v551, %v579
  %v592 = vmul.f32 %v552, %v583
  %593 = vset.pattern.permute.xlu0 2
  %594 = vperm.xlu0 %593, %v95
  %v595 = vpop.permute.xlu0 %594
  %597 = vset.pattern.permute.xlu0 2
  %598 = vperm.xlu0 %597, %v96
  %v599 = vpop.permute.xlu0 %598
  %601 = vset.pattern.permute.xlu0 2
  %602 = vperm.xlu0 %601, %v97
  %v603 = vpop.permute.xlu0 %602
  %605 = vset.pattern.permute.xlu0 2
  %606 = vperm.xlu0 %605, %v98
  %v607 = vpop.permute.xlu0 %606
  %609 = vset.pattern.permute.xlu0 2
  %610 = vperm.xlu0 %609, %v99
  %v611 = vpop.permute.xlu0 %610
  %613 = vset.pattern.permute.xlu0 2
  %614 = vperm.xlu0 %613, %v100
  %v615 = vpop.permute.xlu0 %614
  %617 = vset.pattern.permute.xlu0 2
  %618 = vperm.xlu0 %617, %v101
  %v619 = vpop.permute.xlu0 %618
  %621 = vset.pattern.permute.xlu0 2
  %622 = vperm.xlu0 %621, %v102
  %v623 = vpop.permute.xlu0 %622
  %v625 = vadd.f32 %v585, %v595
  %v626 = vadd.f32 %v586, %v599
  %v627 = vadd.f32 %v587, %v603
  %v628 = vadd.f32 %v588, %v607
  %v629 = vadd.f32 %v589, %v611
  %v630 = vadd.f32 %v590, %v615
  %v631 = vadd.f32 %v591, %v619
  %v632 = vadd.f32 %v592, %v623
  %v633 = vpack.c.bf16 %v626, %v625
  %v634 = vpack.c.bf16 %v628, %v627
  %v635 = vpack.c.bf16 %v630, %v629
  %v636 = vpack.c.bf16 %v632, %v631
  %v641 = vunpack.c.l.b16 %v633
  %v642 = vunpack.c.h.b16 %v633
  %v643 = vunpack.c.l.b16 %v634
  %v644 = vunpack.c.h.b16 %v634
  %v645 = vunpack.c.l.b16 %v635
  %v646 = vunpack.c.h.b16 %v635
  %v647 = vunpack.c.l.b16 %v636
  %v648 = vunpack.c.h.b16 %v636
  %v649 = vpack.c.b16 %v641, %v641
  %v650 = vpack.c.b16 %v642, %v642
  %v651 = vpack.c.b16 %v643, %v643
  %v652 = vpack.c.b16 %v644, %v644
  %v653 = vpack.c.b16 %v645, %v645
  %v654 = vpack.c.b16 %v646, %v646
  %v655 = vpack.c.b16 %v647, %v647
  %v656 = vpack.c.b16 %v648, %v648
  %665 = vst [vmem:[%s3] sm:$0xf] %v649
  %666 = vst [vmem:[%s3 + $0x4] sm:$0xf] %v650
  %667 = vst [vmem:[%s3 + $0x8] sm:$0xf] %v651
  %668 = vst [vmem:[%s3 + $0xc] sm:$0xf] %v652
  %669 = vst [vmem:[%s3 + $0x10] sm:$0xf] %v653
  %670 = vst [vmem:[%s3 + $0x14] sm:$0xf] %v654
  %671 = vst [vmem:[%s3 + $0x18] sm:$0xf] %v655
  %672 = vst [vmem:[%s3 + $0x1c] sm:$0xf] %v656
  // Predicated region
  $region14: #{agent_forward.5} parent=0 // pred_check
    _
  $region15: #{agent_forward.5} parent=0 // pred_check_branch
    %674 = sbr.rel (0) target = $region17
  $region16: #{agent_forward.5} parent=0 // pred_region
    _
  $region17: #{agent_forward.5} parent=0 // pred_fallthru
    _
  // Predicated region
  $region18: #{agent_forward.5} parent=0 // pred_check
    _
  $region19: #{agent_forward.5} parent=0 // pred_check_branch
    %676 = sbr.rel (0) target = $region21
  $region20: #{agent_forward.5} parent=0 // pred_region
    _
  $region21: #{agent_forward.5} parent=0 // pred_fallthru
    _

// kernel: agent_forward.7
$region0: #{agent_forward.7}
  #allocation0 [shape = 'u32[]', space=smem, size = 0x4, offset = 0x4, fixed_abs, tag = 'smem constant byte address 0x4 - core index']
  #allocation1 [shape = 'u32[144,128]{1,0:T(1,128)}', space=vmem, size = 0x12000, scoped, tag = 'internal scratch']
  %s0 = inlined_call_operand.vmem [shape: f32[8,1024], index: 0, kind: input, shape index: {}]
  %s1 = inlined_call_operand.vmem [shape: f32[1,512], index: 1, kind: input, shape index: {}]
  %s2 = inlined_call_operand.vmem [shape: bf16[512,128], index: 2, kind: input, shape index: {}]
  %s3 = inlined_call_operand.vmem [shape: f32[1,128], index: 3, kind: input, shape index: {}]
  %s4 = inlined_call_operand.vmem [shape: f32[8,128], index: 4, kind: output, shape index: {}]
  %s5 = sld [smem:[#allocation0]]
  $region26: #{agent_forward.7} parent=0
    _
  %s7 = ssub.s32 1, %s5
  %s8 = scalar_select 0, %s7, %s5
  // Predicated region
  $region2: #{agent_forward.7} parent=0 // pred_check
    _
  $region3: #{agent_forward.7} parent=0 // pred_check_branch
    %10 = sbr.rel (0) target = $region5
  $region4: #{agent_forward.7} parent=0 // pred_region
    _
  $region5: #{agent_forward.7} parent=0 // pred_fallthru
    _
  // Predicated region
  $region6: #{agent_forward.7} parent=0 // pred_check
    _
  $region7: #{agent_forward.7} parent=0 // pred_check_branch
    %12 = sbr.rel (0) target = $region9
  $region8: #{agent_forward.7} parent=0 // pred_region
    _
  $region9: #{agent_forward.7} parent=0 // pred_fallthru
    _
  // Predicated region
  $region10: #{agent_forward.7} parent=0 // pred_check
    _
  $region11: #{agent_forward.7} parent=0 // pred_check_branch
    %14 = sbr.rel (0) target = $region13
  $region12: #{agent_forward.7} parent=0 // pred_region
    _
  $region13: #{agent_forward.7} parent=0 // pred_fallthru
    _
  // Predicated region
  $region14: #{agent_forward.7} parent=0 // pred_check
    _
  $region15: #{agent_forward.7} parent=0 // pred_check_branch
    %16 = sbr.rel (0) target = $region17
  $region16: #{agent_forward.7} parent=0 // pred_region
    _
  $region17: #{agent_forward.7} parent=0 // pred_fallthru
    _
  %v18 = vld [vmem:[%s0] sm:$0xff]
  %v19 = vld [vmem:[%s0 + $0x8] sm:$0xff]
  %v20 = vld [vmem:[%s0 + $0x10] sm:$0xff]
  %v21 = vld [vmem:[%s0 + $0x18] sm:$0xff]
  %v22 = vld [vmem:[%s0 + $0x20] sm:$0xff]
  %v23 = vld [vmem:[%s0 + $0x28] sm:$0xff]
  %v24 = vld [vmem:[%s0 + $0x30] sm:$0xff]
  %v25 = vld [vmem:[%s0 + $0x38] sm:$0xff]
  %v26 = vadd.f32 %v18, %v22
  %v27 = vadd.f32 %v19, %v23
  %v28 = vadd.f32 %v20, %v24
  %v29 = vadd.f32 %v21, %v25
  %v30 = vld [vmem:[%s1] sm:$0xf]
  %v32 = vlaneseq
  %v33 = vshrl.u32 %v32, 7
  %v34 = vsub.s32 0, %v33
  %v35 = vrot.slane %v30, %v34
  %v36 = vlaneseq
  %v37 = vshrl.u32 %v36, 7
  %v38 = vsub.s32 1, %v37
  %v39 = vrot.slane %v30, %v38
  %v40 = vlaneseq
  %v41 = vshrl.u32 %v40, 7
  %v42 = vsub.s32 2, %v41
  %v43 = vrot.slane %v30, %v42
  %v44 = vlaneseq
  %v45 = vshrl.u32 %v44, 7
  %v46 = vsub.s32 3, %v45
  %v47 = vrot.slane %v30, %v46
  %v52 = vadd.f32 %v26, %v35
  %v53 = vadd.f32 %v27, %v39
  %v54 = vadd.f32 %v28, %v43
  %v55 = vadd.f32 %v29, %v47
  %v56 = vmax.f32 %v52, 0.0
  %v57 = vmax.f32 %v53, 0.0
  %v58 = vmax.f32 %v54, 0.0
  %v59 = vmax.f32 %v55, 0.0
  %v60 = vpack.c.bf16 %v56, %v56
  %v61 = vpack.c.bf16 %v57, %v57
  %v62 = vpack.c.bf16 %v58, %v58
  %v63 = vpack.c.bf16 %v59, %v59
  %v64 = vld [vmem:[%s2] sm:$0xf]
  %v65 = vld [vmem:[%s2 + $0x4] sm:$0xf]
  %v66 = vld [vmem:[%s2 + $0x8] sm:$0xf]
  %v67 = vld [vmem:[%s2 + $0xc] sm:$0xf]
  %v68 = vld [vmem:[%s2 + $0x10] sm:$0xf]
  %v69 = vld [vmem:[%s2 + $0x14] sm:$0xf]
  %v70 = vld [vmem:[%s2 + $0x18] sm:$0xf]
  %v71 = vld [vmem:[%s2 + $0x1c] sm:$0xf]
  %v72 = vld [vmem:[%s2 + $0x20] sm:$0xf]
  %v73 = vld [vmem:[%s2 + $0x24] sm:$0xf]
  %v74 = vld [vmem:[%s2 + $0x28] sm:$0xf]
  %v75 = vld [vmem:[%s2 + $0x2c] sm:$0xf]
  %v76 = vld [vmem:[%s2 + $0x30] sm:$0xf]
  %v77 = vld [vmem:[%s2 + $0x34] sm:$0xf]
  %v78 = vld [vmem:[%s2 + $0x38] sm:$0xf]
  %v79 = vld [vmem:[%s2 + $0x3c] sm:$0xf]
  %v80 = vld [vmem:[%s2 + $0x40] sm:$0xf]
  %v81 = vld [vmem:[%s2 + $0x44] sm:$0xf]
  %v82 = vld [vmem:[%s2 + $0x48] sm:$0xf]
  %v83 = vld [vmem:[%s2 + $0x4c] sm:$0xf]
  %v84 = vld [vmem:[%s2 + $0x50] sm:$0xf]
  %v85 = vld [vmem:[%s2 + $0x54] sm:$0xf]
  %v86 = vld [vmem:[%s2 + $0x58] sm:$0xf]
  %v87 = vld [vmem:[%s2 + $0x5c] sm:$0xf]
  %v88 = vld [vmem:[%s2 + $0x60] sm:$0xf]
  %v89 = vld [vmem:[%s2 + $0x64] sm:$0xf]
  %v90 = vld [vmem:[%s2 + $0x68] sm:$0xf]
  %v91 = vld [vmem:[%s2 + $0x6c] sm:$0xf]
  %v92 = vld [vmem:[%s2 + $0x70] sm:$0xf]
  %v93 = vld [vmem:[%s2 + $0x74] sm:$0xf]
  %v94 = vld [vmem:[%s2 + $0x78] sm:$0xf]
  %v95 = vld [vmem:[%s2 + $0x7c] sm:$0xf]
  %v96 = vld [vmem:[%s2 + $0x80] sm:$0xf]
  %v97 = vld [vmem:[%s2 + $0x84] sm:$0xf]
  %v98 = vld [vmem:[%s2 + $0x88] sm:$0xf]
  %v99 = vld [vmem:[%s2 + $0x8c] sm:$0xf]
  %v100 = vld [vmem:[%s2 + $0x90] sm:$0xf]
  %v101 = vld [vmem:[%s2 + $0x94] sm:$0xf]
  %v102 = vld [vmem:[%s2 + $0x98] sm:$0xf]
  %v103 = vld [vmem:[%s2 + $0x9c] sm:$0xf]
  %v104 = vld [vmem:[%s2 + $0xa0] sm:$0xf]
  %v105 = vld [vmem:[%s2 + $0xa4] sm:$0xf]
  %v106 = vld [vmem:[%s2 + $0xa8] sm:$0xf]
  %v107 = vld [vmem:[%s2 + $0xac] sm:$0xf]
  %v108 = vld [vmem:[%s2 + $0xb0] sm:$0xf]
  %v109 = vld [vmem:[%s2 + $0xb4] sm:$0xf]
  %v110 = vld [vmem:[%s2 + $0xb8] sm:$0xf]
  %v111 = vld [vmem:[%s2 + $0xbc] sm:$0xf]
  %v112 = vld [vmem:[%s2 + $0xc0] sm:$0xf]
  %v113 = vld [vmem:[%s2 + $0xc4] sm:$0xf]
  %v114 = vld [vmem:[%s2 + $0xc8] sm:$0xf]
  %v115 = vld [vmem:[%s2 + $0xcc] sm:$0xf]
  %v116 = vld [vmem:[%s2 + $0xd0] sm:$0xf]
  %v117 = vld [vmem:[%s2 + $0xd4] sm:$0xf]
  %v118 = vld [vmem:[%s2 + $0xd8] sm:$0xf]
  %v119 = vld [vmem:[%s2 + $0xdc] sm:$0xf]
  %v120 = vld [vmem:[%s2 + $0xe0] sm:$0xf]
  %v121 = vld [vmem:[%s2 + $0xe4] sm:$0xf]
  %v122 = vld [vmem:[%s2 + $0xe8] sm:$0xf]
  %v123 = vld [vmem:[%s2 + $0xec] sm:$0xf]
  %v124 = vld [vmem:[%s2 + $0xf0] sm:$0xf]
  %v125 = vld [vmem:[%s2 + $0xf4] sm:$0xf]
  %v126 = vld [vmem:[%s2 + $0xf8] sm:$0xf]
  %v127 = vld [vmem:[%s2 + $0xfc] sm:$0xf]
  %v128 = vld [vmem:[%s3] sm:$0x1]
  %v130 = vlaneseq
  %v131 = vshrl.u32 %v130, 7
  %v132 = vsub.s32 0, %v131
  %v133 = vrot.slane %v128, %v132
  %v199 = vunpack.c.l.b16 %v64
  %v200 = vunpack.c.l.b16 %v65
  %v201 = vunpack.c.l.b16 %v66
  %v202 = vunpack.c.l.b16 %v67
  %v203 = vunpack.c.l.b16 %v68
  %v204 = vunpack.c.l.b16 %v69
  %v205 = vunpack.c.l.b16 %v70
  %v206 = vunpack.c.l.b16 %v71
  %v207 = vunpack.c.l.b16 %v72
  %v208 = vunpack.c.l.b16 %v73
  %v209 = vunpack.c.l.b16 %v74
  %v210 = vunpack.c.l.b16 %v75
  %v211 = vunpack.c.l.b16 %v76
  %v212 = vunpack.c.l.b16 %v77
  %v213 = vunpack.c.l.b16 %v78
  %v214 = vunpack.c.l.b16 %v79
  %v215 = vunpack.c.l.b16 %v80
  %v216 = vunpack.c.l.b16 %v81
  %v217 = vunpack.c.l.b16 %v82
  %v218 = vunpack.c.l.b16 %v83
  %v219 = vunpack.c.l.b16 %v84
  %v220 = vunpack.c.l.b16 %v85
  %v221 = vunpack.c.l.b16 %v86
  %v222 = vunpack.c.l.b16 %v87
  %v223 = vunpack.c.l.b16 %v88
  %v224 = vunpack.c.l.b16 %v89
  %v225 = vunpack.c.l.b16 %v90
  %v226 = vunpack.c.l.b16 %v91
  %v227 = vunpack.c.l.b16 %v92
  %v228 = vunpack.c.l.b16 %v93
  %v229 = vunpack.c.l.b16 %v94
  %v230 = vunpack.c.l.b16 %v95
  %v231 = vunpack.c.l.b16 %v96
  %v232 = vunpack.c.l.b16 %v97
  %v233 = vunpack.c.l.b16 %v98
  %v234 = vunpack.c.l.b16 %v99
  %v235 = vunpack.c.l.b16 %v100
  %v236 = vunpack.c.l.b16 %v101
  %v237 = vunpack.c.l.b16 %v102
  %v238 = vunpack.c.l.b16 %v103
  %v239 = vunpack.c.l.b16 %v104
  %v240 = vunpack.c.l.b16 %v105
  %v241 = vunpack.c.l.b16 %v106
  %v242 = vunpack.c.l.b16 %v107
  %v243 = vunpack.c.l.b16 %v108
  %v244 = vunpack.c.l.b16 %v109
  %v245 = vunpack.c.l.b16 %v110
  %v246 = vunpack.c.l.b16 %v111
  %v247 = vunpack.c.l.b16 %v112
  %v248 = vunpack.c.l.b16 %v113
  %v249 = vunpack.c.l.b16 %v114
  %v250 = vunpack.c.l.b16 %v115
  %v251 = vunpack.c.l.b16 %v116
  %v252 = vunpack.c.l.b16 %v117
  %v253 = vunpack.c.l.b16 %v118
  %v254 = vunpack.c.l.b16 %v119
  %v255 = vunpack.c.l.b16 %v120
  %v256 = vunpack.c.l.b16 %v121
  %v257 = vunpack.c.l.b16 %v122
  %v258 = vunpack.c.l.b16 %v123
  %v259 = vunpack.c.l.b16 %v124
  %v260 = vunpack.c.l.b16 %v125
  %v261 = vunpack.c.l.b16 %v126
  %v262 = vunpack.c.l.b16 %v127
  %v263 = vpack.c.b16 %v200, %v199
  %v264 = vpack.c.b16 %v202, %v201
  %v265 = vpack.c.b16 %v204, %v203
  %v266 = vpack.c.b16 %v206, %v205
  %v267 = vpack.c.b16 %v208, %v207
  %v268 = vpack.c.b16 %v210, %v209
  %v269 = vpack.c.b16 %v212, %v211
  %v270 = vpack.c.b16 %v214, %v213
  %v271 = vpack.c.b16 %v216, %v215
  %v272 = vpack.c.b16 %v218, %v217
  %v273 = vpack.c.b16 %v220, %v219
  %v274 = vpack.c.b16 %v222, %v221
  %v275 = vpack.c.b16 %v224, %v223
  %v276 = vpack.c.b16 %v226, %v225
  %v277 = vpack.c.b16 %v228, %v227
  %v278 = vpack.c.b16 %v230, %v229
  %v279 = vpack.c.b16 %v232, %v231
  %v280 = vpack.c.b16 %v234, %v233
  %v281 = vpack.c.b16 %v236, %v235
  %v282 = vpack.c.b16 %v238, %v237
  %v283 = vpack.c.b16 %v240, %v239
  %v284 = vpack.c.b16 %v242, %v241
  %v285 = vpack.c.b16 %v244, %v243
  %v286 = vpack.c.b16 %v246, %v245
  %v287 = vpack.c.b16 %v248, %v247
  %v288 = vpack.c.b16 %v250, %v249
  %v289 = vpack.c.b16 %v252, %v251
  %v290 = vpack.c.b16 %v254, %v253
  %v291 = vpack.c.b16 %v256, %v255
  %v292 = vpack.c.b16 %v258, %v257
  %v293 = vpack.c.b16 %v260, %v259
  %v294 = vpack.c.b16 %v262, %v261
  %327 = vmatprep.subr.bf16.mxu0 0
  %328 = vmatpush1.bf16.msra.mxu0 %v263
  %329 = vmatprep.subr.bf16.mxu0 0
  %330 = vmatpush1.bf16.msra.mxu0 %v264
  %331 = vmatprep.subr.bf16.mxu0 0
  %332 = vmatpush1.bf16.msra.mxu0 %v265
  %333 = vmatprep.subr.bf16.mxu0 0
  %334 = vmatpush1.bf16.msra.mxu0 %v266
  %335 = vmatprep.subr.bf16.mxu0 0
  %336 = vmatpush1.bf16.msra.mxu0 %v267
  %337 = vmatprep.subr.bf16.mxu0 0
  %338 = vmatpush1.bf16.msra.mxu0 %v268
  %339 = vmatprep.subr.bf16.mxu0 0
  %340 = vmatpush1.bf16.msra.mxu0 %v269
  %341 = vmatprep.subr.bf16.mxu0 0
  %342 = vmatpush1.bf16.msra.mxu0 %v270
  %343 = vmatprep.subr.bf16.mxu0 0
  %344 = vmatpush1.bf16.msra.mxu0 %v271
  %345 = vmatprep.subr.bf16.mxu0 0
  %346 = vmatpush1.bf16.msra.mxu0 %v272
  %347 = vmatprep.subr.bf16.mxu0 0
  %348 = vmatpush1.bf16.msra.mxu0 %v273
  %349 = vmatprep.subr.bf16.mxu0 0
  %350 = vmatpush1.bf16.msra.mxu0 %v274
  %351 = vmatprep.subr.bf16.mxu0 0
  %352 = vmatpush1.bf16.msra.mxu0 %v275
  %353 = vmatprep.subr.bf16.mxu0 0
  %354 = vmatpush1.bf16.msra.mxu0 %v276
  %355 = vmatprep.subr.bf16.mxu0 0
  %356 = vmatpush1.bf16.msra.mxu0 %v277
  %357 = vmatprep.subr.bf16.mxu0 0
  %358 = vmatpush1.bf16.msra.mxu0 %v278
  %359 = vmatprep.mubr.bf16.mxu0 %v61
  %360 = vmatmul.mubr.bf16.gmra.mrb[0].mxu0 %v60
  %v361 = vpop.f32.mrb[0].mxu0
  %v362 = vadd.f32 %v133, %v361
  %v363 = vpop.f32.mrb[0].mxu0
  %v364 = vpop.f32.mrb[0].mxu0
  %v365 = vpop.f32.mrb[0].mxu0
  %366 = vdwg.mxu0
  %367 = vmatprep.subr.bf16.mxu0 0
  %368 = vmatpush1.bf16.msra.mxu0 %v279
  %369 = vmatprep.subr.bf16.mxu0 0
  %370 = vmatpush1.bf16.msra.mxu0 %v280
  %371 = vmatprep.subr.bf16.mxu0 0
  %372 = vmatpush1.bf16.msra.mxu0 %v281
  %373 = vmatprep.subr.bf16.mxu0 0
  %374 = vmatpush1.bf16.msra.mxu0 %v282
  %375 = vmatprep.subr.bf16.mxu0 0
  %376 = vmatpush1.bf16.msra.mxu0 %v283
  %377 = vmatprep.subr.bf16.mxu0 0
  %378 = vmatpush1.bf16.msra.mxu0 %v284
  %379 = vmatprep.subr.bf16.mxu0 0
  %380 = vmatpush1.bf16.msra.mxu0 %v285
  %381 = vmatprep.subr.bf16.mxu0 0
  %382 = vmatpush1.bf16.msra.mxu0 %v286
  %383 = vmatprep.subr.bf16.mxu0 0
  %384 = vmatpush1.bf16.msra.mxu0 %v287
  %385 = vmatprep.subr.bf16.mxu0 0
  %386 = vmatpush1.bf16.msra.mxu0 %v288
  %387 = vmatprep.subr.bf16.mxu0 0
  %388 = vmatpush1.bf16.msra.mxu0 %v289
  %389 = vmatprep.subr.bf16.mxu0 0
  %390 = vmatpush1.bf16.msra.mxu0 %v290
  %391 = vmatprep.subr.bf16.mxu0 0
  %392 = vmatpush1.bf16.msra.mxu0 %v291
  %393 = vmatprep.subr.bf16.mxu0 0
  %394 = vmatpush1.bf16.msra.mxu0 %v292
  %395 = vmatprep.subr.bf16.mxu0 0
  %396 = vmatpush1.bf16.msra.mxu0 %v293
  %397 = vmatprep.subr.bf16.mxu0 0
  %398 = vmatpush1.bf16.msra.mxu0 %v294
  %399 = vmatprep.mubr.bf16.mxu0 %v63
  %400 = vmatmul.mubr.bf16.gmra.mrb[0].mxu0 %v62
  %v401 = vpop.f32.mrb[0].mxu0
  %v402 = vadd.f32 %v362, %v401
  %v403 = vpop.f32.mrb[0].mxu0
  %v404 = vpop.f32.mrb[0].mxu0
  %v405 = vpop.f32.mrb[0].mxu0
  %406 = vdwg.mxu0
  %407 = vst [vmem:[%s4] sm:$0xff] %v402
  // Predicated region
  $region18: #{agent_forward.7} parent=0 // pred_check
    _
  $region19: #{agent_forward.7} parent=0 // pred_check_branch
    %409 = sbr.rel (0) target = $region21
  $region20: #{agent_forward.7} parent=0 // pred_region
    _
  $region21: #{agent_forward.7} parent=0 // pred_fallthru
    _
  // Predicated region
  $region22: #{agent_forward.7} parent=0 // pred_check
    _
  $region23: #{agent_forward.7} parent=0 // pred_check_branch
    %411 = sbr.rel (0) target = $region25
  $region24: #{agent_forward.7} parent=0 // pred_region
    _
  $region25: #{agent_forward.7} parent=0 // pred_fallthru
    _

// kernel: agent_forward.6
$region0: #{agent_forward.6}
  #allocation0 [shape = 'u32[]', space=smem, size = 0x4, offset = 0x4, fixed_abs, tag = 'smem constant byte address 0x4 - core index']
  #allocation1 [shape = 'u32[144,128]{1,0:T(1,128)}', space=vmem, size = 0x12000, scoped, tag = 'internal scratch']
  #allocation2 [shape = 'f32[8,640]{1,0:T(8,128)}', space=vmem, size = 0x5000, scoped, tag = 'scratch operand']
  %s0 = inlined_call_operand.vmem [shape: bf16[8,4096], index: 0, kind: input, shape index: {}]
  %s1 = inlined_call_operand.vmem [shape: bf16[4096,1280], index: 1, kind: input, shape index: {}]
  %s2 = inlined_call_operand.vmem [shape: f32[1,1280], index: 2, kind: input, shape index: {}]
  %s3 = inlined_call_operand.vmem [shape: bf16[1280,512], index: 3, kind: input, shape index: {}]
  %s4 = inlined_call_operand.vmem [shape: f32[8,1024], index: 4, kind: output, shape index: {}]
  %s5 = sld [smem:[#allocation0]]
  $region83: #{agent_forward.6} parent=0
    _
  %s7 = ssub.s32 1, %s5
  %s8 = scalar_select 0, %s7, %s5
  $region1: #{agent_forward.6} parent=0
    #allocation3 [shape = 'u8[5242880]{0}', space=vmem, size = 0x500000, scoped, tag = 'input window, operand 1']
    loop: start=0, step=1, limit=6
    $region2: #{agent_forward.6} parent=1 // loop_pre_header
      _
    $region3: #{agent_forward.6} parent=1 // loop_header
      %s10 = sphi 0, %s14
      %p11 = scmp.ge.s32.totalorder %s10, 6
      %s17 = sphi 0, %s29
      %s18 = sphi 0, %s25
      %s19 = sphi 0, %s17
      %s20 = sphi 0, %s18
      %s21 = sphi 0, %s19
      %s22 = sphi 0, %s20
      %s32 = sphi 0, %s34
      %s35 = sphi 0, %s32
      %s36 = sphi 0, %s35
      %s52 = sphi 0, %s36
      %s60 = sphi 0, %s62
      %s63 = sphi 0, %s60
      %s64 = sphi 0, %s63
      %s80 = sphi 0, %s64
      %s86 = sphi 0, %s88
      %s89 = sphi 0, %s86
      %s90 = sphi 0, %s89
      %s106 = sphi 0, %s90
      %s112 = sphi 0, %s114
      %s115 = sphi 0, %s112
      %s116 = sphi 0, %s115
      %s132 = sphi 0, %s116
      %s138 = sphi 0, %s140
      %s141 = sphi 0, %s138
      %s142 = sphi 0, %s141
      %s158 = sphi 0, %s142
    $region4: #{agent_forward.6} parent=1 // loop_header_branch
      %13 = sbr.rel (%p11) target = $region8
    $region5: #{agent_forward.6} parent=1 // loop_body
      %s15 = ssub.s32 %s10, 1
      %s16 = ssub.s32 %s10, 2
      %s23 = sadd.s32 1, %s18
      %p24 = scmp.ge.s32.totalorder %s23, 2
      %s25 = scalar_select %p24, 0, %s23
      %s26 = sadd.s32 1, %s17
      %s27 = scalar_select %p24, %s26, %s17
      %p28 = scmp.ge.s32.totalorder %s27, 2
      %s29 = scalar_select %p28, 0, %s27
      %s30 = ssub.s32 %s18, %s25
      %p31 = scmp.eq.s32.totalorder %s30, 0
      %s33 = sadd.s32 %s32, 1
      %s34 = scalar_select %p31, %s32, %s33
      %p37 = pneg %p31
      %p38 = scmp.eq.s32.totalorder %s10, 3
      %p39 = por %p37, %p38
      %p40 = scmp.ne.s32.totalorder %s32, %s35
      %p41 = scmp.eq.s32.totalorder %s10, 0
      %p42 = por %p40, %p41
      %p43 = scmp.ne.s32.totalorder %s32, %s35
      %p44 = scmp.eq.s32.totalorder %s15, 3
      %p45 = por %p43, %p44
      %p46 = scmp.ne.s32.totalorder %s35, %s36
      %p47 = scmp.eq.s32.totalorder %s15, 0
      %p48 = por %p46, %p47
      %p49 = scmp.ne.s32.totalorder %s35, %s36
      %p50 = scmp.eq.s32.totalorder %s16, 3
      %p51 = por %p49, %p50
      %p53 = scmp.ne.s32.totalorder %s36, %s52
      %p54 = scmp.eq.s32.totalorder %s16, 0
      %p55 = por %p53, %p54
      %s56 = ssub.s32 %s18, %s25
      %s57 = ssub.s32 %s17, %s29
      %s58 = sor.u32 %s56, %s57
      %p59 = scmp.eq.s32.totalorder %s58, 0
      %s61 = sadd.s32 %s60, 1
      %s62 = scalar_select %p59, %s60, %s61
      %p65 = pneg %p59
      %p66 = scmp.eq.s32.totalorder %s10, 3
      %p67 = por %p65, %p66
      %p68 = scmp.ne.s32.totalorder %s60, %s63
      %p69 = scmp.eq.s32.totalorder %s10, 0
      %p70 = por %p68, %p69
      %p71 = scmp.ne.s32.totalorder %s60, %s63
      %p72 = scmp.eq.s32.totalorder %s15, 3
      %p73 = por %p71, %p72
      %p74 = scmp.ne.s32.totalorder %s63, %s64
      %p75 = scmp.eq.s32.totalorder %s15, 0
      %p76 = por %p74, %p75
      %p77 = scmp.ne.s32.totalorder %s63, %s64
      %p78 = scmp.eq.s32.totalorder %s16, 3
      %p79 = por %p77, %p78
      %p81 = scmp.ne.s32.totalorder %s64, %s80
      %p82 = scmp.eq.s32.totalorder %s16, 0
      %p83 = por %p81, %p82
      %s84 = ssub.s32 %s17, %s29
      %p85 = scmp.eq.s32.totalorder %s84, 0
      %s87 = sadd.s32 %s86, 1
      %s88 = scalar_select %p85, %s86, %s87
      %p91 = pneg %p85
      %p92 = scmp.eq.s32.totalorder %s10, 3
      %p93 = por %p91, %p92
      %p94 = scmp.ne.s32.totalorder %s86, %s89
      %p95 = scmp.eq.s32.totalorder %s10, 0
      %p96 = por %p94, %p95
      %p97 = scmp.ne.s32.totalorder %s86, %s89
      %p98 = scmp.eq.s32.totalorder %s15, 3
      %p99 = por %p97, %p98
      %p100 = scmp.ne.s32.totalorder %s89, %s90
      %p101 = scmp.eq.s32.totalorder %s15, 0
      %p102 = por %p100, %p101
      %p103 = scmp.ne.s32.totalorder %s89, %s90
      %p104 = scmp.eq.s32.totalorder %s16, 3
      %p105 = por %p103, %p104
      %p107 = scmp.ne.s32.totalorder %s90, %s106
      %p108 = scmp.eq.s32.totalorder %s16, 0
      %p109 = por %p107, %p108
      %s110 = ssub.s32 %s17, %s29
      %p111 = scmp.eq.s32.totalorder %s110, 0
      %s113 = sadd.s32 %s112, 1
      %s114 = scalar_select %p111, %s112, %s113
      %p117 = pneg %p111
      %p118 = scmp.eq.s32.totalorder %s10, 3
      %p119 = por %p117, %p118
      %p120 = scmp.ne.s32.totalorder %s112, %s115
      %p121 = scmp.eq.s32.totalorder %s10, 0
      %p122 = por %p120, %p121
      %p123 = scmp.ne.s32.totalorder %s112, %s115
      %p124 = scmp.eq.s32.totalorder %s15, 3
      %p125 = por %p123, %p124
      %p126 = scmp.ne.s32.totalorder %s115, %s116
      %p127 = scmp.eq.s32.totalorder %s15, 0
      %p128 = por %p126, %p127
      %p129 = scmp.ne.s32.totalorder %s115, %s116
      %p130 = scmp.eq.s32.totalorder %s16, 3
      %p131 = por %p129, %p130
      %p133 = scmp.ne.s32.totalorder %s116, %s132
      %p134 = scmp.eq.s32.totalorder %s16, 0
      %p135 = por %p133, %p134
      %s136 = ssub.s32 %s17, %s29
      %p137 = scmp.eq.s32.totalorder %s136, 0
      %s139 = sadd.s32 %s138, 1
      %s140 = scalar_select %p137, %s138, %s139
      %p143 = pneg %p137
      %p144 = scmp.eq.s32.totalorder %s10, 3
      %p145 = por %p143, %p144
      %p146 = scmp.ne.s32.totalorder %s138, %s141
      %p147 = scmp.eq.s32.totalorder %s10, 0
      %p148 = por %p146, %p147
      %p149 = scmp.ne.s32.totalorder %s138, %s141
      %p150 = scmp.eq.s32.totalorder %s15, 3
      %p151 = por %p149, %p150
      %p152 = scmp.ne.s32.totalorder %s141, %s142
      %p153 = scmp.eq.s32.totalorder %s15, 0
      %p154 = por %p152, %p153
      %p155 = scmp.ne.s32.totalorder %s141, %s142
      %p156 = scmp.eq.s32.totalorder %s16, 3
      %p157 = por %p155, %p156
      %p159 = scmp.ne.s32.totalorder %s142, %s158
      %p160 = scmp.eq.s32.totalorder %s16, 0
      %p161 = por %p159, %p160
      %p162 = scmp.le.s32.totalorder 1, %s10
      %p163 = scmp.lt.s32.totalorder %s10, 5
      %p164 = pnand %p162, %p163
      %p165 = pneg %p164
      // Predicated region
      $region9: #{agent_forward.6} parent=5 // pred_check
        _
      $region10: #{agent_forward.6} parent=5 // pred_check_branch
        %167 = sbr.rel (%p164) target = $region12
      $region11: #{agent_forward.6} parent=5 // pred_region
        %s168 = ssub.s32 %s10, 1
      $region12: #{agent_forward.6} parent=5 // pred_fallthru
        _
      %p169 = scmp.lt.s32.totalorder %s10, 4
      // Predicated region
      $region13: #{agent_forward.6} parent=5 // pred_check
        %p170 = pneg %p169
      $region14: #{agent_forward.6} parent=5 // pred_check_branch
        %172 = sbr.rel (%p170) target = $region16
      $region15: #{agent_forward.6} parent=5 // pred_region
        // Predicated region
        $region17: #{agent_forward.6} parent=15 // pred_check
          %p173 = pneg %p42
        $region18: #{agent_forward.6} parent=15 // pred_check_branch
          %175 = sbr.rel (%p173) target = $region20
        $region19: #{agent_forward.6} parent=15 // pred_region
          %s176 = smul.u32 16, %s18
          %p177 = scmp.lt.s32.totalorder %s176, 31
          %s178 = scalar_select %p177, %s176, 31
          %s179 = smul.addr %s178, 4
          %s180 = scalar_lea.vmem %s0, %s179
          %s181 = smul.u32 16, %s18
        $region20: #{agent_forward.6} parent=15 // pred_fallthru
          _
        // Predicated region
        $region21: #{agent_forward.6} parent=15 // pred_check
          %p182 = pneg %p70
        $region22: #{agent_forward.6} parent=15 // pred_check_branch
          %184 = sbr.rel (%p182) target = $region24
        $region23: #{agent_forward.6} parent=15 // pred_region
          %s185 = sand.u32 %s60, 1
          %s186 = sand.u32 %s60, 1
          %s187 = smul.addr %s186, 5120
          %s188 = scalar_lea.vmem [#allocation3], %s187
          %s189 = smul.u32 256, %s18
          %s190 = smul.u32 5, %s17
          %s191 = smul.addr %s189, 10
          %s192 = sadd.s32 %s190, %s191
          %s193 = smul.addr %s192, 4
          %s194 = scalar_lea.vmem %s1, %s193
          // Predicated region
          $region25: #{agent_forward.6} parent=23 // pred_check
            _
          $region26: #{agent_forward.6} parent=23 // pred_check_branch
            %196 = sbr.rel (0) target = $region28
          $region27: #{agent_forward.6} parent=23 // pred_region
            // Predicated region
            $region29: #{agent_forward.6} parent=27 // pred_check
              _
            $region30: #{agent_forward.6} parent=27 // pred_check_branch
              %198 = sbr.rel (0) target = $region32
            $region31: #{agent_forward.6} parent=27 // pred_region
              %s199 = scalar_lea.vmem %s194, 16
              %s200 = scalar_lea.vmem %s188, 16 [#allocation3]
              loop: start=0, step=1, limit=1
              $region33: #{agent_forward.6} parent=31 // loop_pre_header
                _
              $region34: #{agent_forward.6} parent=31 // loop_header
                %s202 = sphi 0, %s206
                %p203 = scmp.ge.s32.totalorder %s202, 1
                %s207 = sphi %s194, %s194
                %s208 = sphi %s188, %s188
              $region35: #{agent_forward.6} parent=31 // loop_header_branch
                %205 = sbr.rel (%p203) target = $region39
              $region36: #{agent_forward.6} parent=31 // loop_body
                %v209 = vld [vmem:[%s207] sm:$0xff]
                %210 = vst [vmem:[%s208] sm:$0xff] %v209
                %v211 = vld [vmem:[%s207 + $0x8] sm:$0xff]
                %212 = vst [vmem:[%s208 + $0x8] sm:$0xff] %v211
                %v213 = vld [vmem:[%s207 + $0x28] sm:$0xff]
                %214 = vst [vmem:[%s208 + $0x14] sm:$0xff] %v213
                %v215 = vld [vmem:[%s207 + $0x30] sm:$0xff]
                %216 = vst [vmem:[%s208 + $0x1c] sm:$0xff] %v215
                %v217 = vld [vmem:[%s207 + $0x50] sm:$0xff]
                %218 = vst [vmem:[%s208 + $0x28] sm:$0xff] %v217
                %v219 = vld [vmem:[%s207 + $0x58] sm:$0xff]
                %220 = vst [vmem:[%s208 + $0x30] sm:$0xff] %v219
                %v221 = vld [vmem:[%s207 + $0x78] sm:$0xff]
                %222 = vst [vmem:[%s208 + $0x3c] sm:$0xff] %v221
                %v223 = vld [vmem:[%s207 + $0x80] sm:$0xff]
                %224 = vst [vmem:[%s208 + $0x44] sm:$0xff] %v223
                %v225 = vld [vmem:[%s207 + $0xa0] sm:$0xff]
                %226 = vst [vmem:[%s208 + $0x50] sm:$0xff] %v225
                %v227 = vld [vmem:[%s207 + $0xa8] sm:$0xff]
                %228 = vst [vmem:[%s208 + $0x58] sm:$0xff] %v227
                %v229 = vld [vmem:[%s207 + $0xc8] sm:$0xff]
                %230 = vst [vmem:[%s208 + $0x64] sm:$0xff] %v229
                %v231 = vld [vmem:[%s207 + $0xd0] sm:$0xff]
                %232 = vst [vmem:[%s208 + $0x6c] sm:$0xff] %v231
                %v233 = vld [vmem:[%s207 + $0xf0] sm:$0xff]
                %234 = vst [vmem:[%s208 + $0x78] sm:$0xff] %v233
                %v235 = vld [vmem:[%s207 + $0xf8] sm:$0xff]
                %236 = vst [vmem:[%s208 + $0x80] sm:$0xff] %v235
                %v237 = vld [vmem:[%s207 + $0x118] sm:$0xff]
                %238 = vst [vmem:[%s208 + $0x8c] sm:$0xff] %v237
                %v239 = vld [vmem:[%s207 + $0x120] sm:$0xff]
                %240 = vst [vmem:[%s208 + $0x94] sm:$0xff] %v239
                %v241 = vld [vmem:[%s207 + $0x140] sm:$0xff]
                %242 = vst [vmem:[%s208 + $0xa0] sm:$0xff] %v241
                %v243 = vld [vmem:[%s207 + $0x148] sm:$0xff]
                %244 = vst [vmem:[%s208 + $0xa8] sm:$0xff] %v243
                %v245 = vld [vmem:[%s207 + $0x168] sm:$0xff]
                %246 = vst [vmem:[%s208 + $0xb4] sm:$0xff] %v245
                %v247 = vld [vmem:[%s207 + $0x170] sm:$0xff]
                %248 = vst [vmem:[%s208 + $0xbc] sm:$0xff] %v247
                %v249 = vld [vmem:[%s207 + $0x190] sm:$0xff]
                %250 = vst [vmem:[%s208 + $0xc8] sm:$0xff] %v249
                %v251 = vld [vmem:[%s207 + $0x198] sm:$0xff]
                %252 = vst [vmem:[%s208 + $0xd0] sm:$0xff] %v251
                %v253 = vld [vmem:[%s207 + $0x1b8] sm:$0xff]
                %254 = vst [vmem:[%s208 + $0xdc] sm:$0xff] %v253
                %v255 = vld [vmem:[%s207 + $0x1c0] sm:$0xff]
                %256 = vst [vmem:[%s208 + $0xe4] sm:$0xff] %v255
                %v257 = vld [vmem:[%s207 + $0x1e0] sm:$0xff]
                %258 = vst [vmem:[%s208 + $0xf0] sm:$0xff] %v257
                %v259 = vld [vmem:[%s207 + $0x1e8] sm:$0xff]
                %260 = vst [vmem:[%s208 + $0xf8] sm:$0xff] %v259
                %v261 = vld [vmem:[%s207 + $0x208] sm:$0xff]
                %262 = vst [vmem:[%s208 + $0x104] sm:$0xff] %v261
                %v263 = vld [vmem:[%s207 + $0x210] sm:$0xff]
                %264 = vst [vmem:[%s208 + $0x10c] sm:$0xff] %v263
                %v265 = vld [vmem:[%s207 + $0x230] sm:$0xff]
                %266 = vst [vmem:[%s208 + $0x118] sm:$0xff] %v265
                %v267 = vld [vmem:[%s207 + $0x238] sm:$0xff]
                %268 = vst [vmem:[%s208 + $0x120] sm:$0xff] %v267
                %v269 = vld [vmem:[%s207 + $0x258] sm:$0xff]
                %270 = vst [vmem:[%s208 + $0x12c] sm:$0xff] %v269
                %v271 = vld [vmem:[%s207 + $0x260] sm:$0xff]
                %272 = vst [vmem:[%s208 + $0x134] sm:$0xff] %v271
                %v273 = vld [vmem:[%s207 + $0x280] sm:$0xff]
                %274 = vst [vmem:[%s208 + $0x140] sm:$0xff] %v273
                %v275 = vld [vmem:[%s207 + $0x288] sm:$0xff]
                %276 = vst [vmem:[%s208 + $0x148] sm:$0xff] %v275
                %v277 = vld [vmem:[%s207 + $0x2a8] sm:$0xff]
                %278 = vst [vmem:[%s208 + $0x154] sm:$0xff] %v277
                %v279 = vld [vmem:[%s207 + $0x2b0] sm:$0xff]
                %280 = vst [vmem:[%s208 + $0x15c] sm:$0xff] %v279
                %v281 = vld [vmem:[%s207 + $0x2d0] sm:$0xff]
                %282 = vst [vmem:[%s208 + $0x168] sm:$0xff] %v281
                %v283 = vld [vmem:[%s207 + $0x2d8] sm:$0xff]
                %284 = vst [vmem:[%s208 + $0x170] sm:$0xff] %v283
                %v285 = vld [vmem:[%s207 + $0x2f8] sm:$0xff]
                %286 = vst [vmem:[%s208 + $0x17c] sm:$0xff] %v285
                %v287 = vld [vmem:[%s207 + $0x300] sm:$0xff]
                %288 = vst [vmem:[%s208 + $0x184] sm:$0xff] %v287
                %v289 = vld [vmem:[%s207 + $0x320] sm:$0xff]
                %290 = vst [vmem:[%s208 + $0x190] sm:$0xff] %v289
                %v291 = vld [vmem:[%s207 + $0x328] sm:$0xff]
                %292 = vst [vmem:[%s208 + $0x198] sm:$0xff] %v291
                %v293 = vld [vmem:[%s207 + $0x348] sm:$0xff]
                %294 = vst [vmem:[%s208 + $0x1a4] sm:$0xff] %v293
                %v295 = vld [vmem:[%s207 + $0x350] sm:$0xff]
                %296 = vst [vmem:[%s208 + $0x1ac] sm:$0xff] %v295
                %v297 = vld [vmem:[%s207 + $0x370] sm:$0xff]
                %298 = vst [vmem:[%s208 + $0x1b8] sm:$0xff] %v297
                %v299 = vld [vmem:[%s207 + $0x378] sm:$0xff]
                %300 = vst [vmem:[%s208 + $0x1c0] sm:$0xff] %v299
                %v301 = vld [vmem:[%s207 + $0x398] sm:$0xff]
                %302 = vst [vmem:[%s208 + $0x1cc] sm:$0xff] %v301
                %v303 = vld [vmem:[%s207 + $0x3a0] sm:$0xff]
                %304 = vst [vmem:[%s208 + $0x1d4] sm:$0xff] %v303
                %v305 = vld [vmem:[%s207 + $0x3c0] sm:$0xff]
                %306 = vst [vmem:[%s208 + $0x1e0] sm:$0xff] %v305
                %v307 = vld [vmem:[%s207 + $0x3c8] sm:$0xff]
                %308 = vst [vmem:[%s208 + $0x1e8] sm:$0xff] %v307
                %v309 = vld [vmem:[%s207 + $0x3e8] sm:$0xff]
                %310 = vst [vmem:[%s208 + $0x1f4] sm:$0xff] %v309
                %v311 = vld [vmem:[%s207 + $0x3f0] sm:$0xff]
                %312 = vst [vmem:[%s208 + $0x1fc] sm:$0xff] %v311
                %v313 = vld [vmem:[%s207 + $0x410] sm:$0xff]
                %314 = vst [vmem:[%s208 + $0x208] sm:$0xff] %v313
                %v315 = vld [vmem:[%s207 + $0x418] sm:$0xff]
                %316 = vst [vmem:[%s208 + $0x210] sm:$0xff] %v315
                %v317 = vld [vmem:[%s207 + $0x438] sm:$0xff]
                %318 = vst [vmem:[%s208 + $0x21c] sm:$0xff] %v317
                %v319 = vld [vmem:[%s207 + $0x440] sm:$0xff]
                %320 = vst [vmem:[%s208 + $0x224] sm:$0xff] %v319
                %v321 = vld [vmem:[%s207 + $0x460] sm:$0xff]
                %322 = vst [vmem:[%s208 + $0x230] sm:$0xff] %v321
                %v323 = vld [vmem:[%s207 + $0x468] sm:$0xff]
                %324 = vst [vmem:[%s208 + $0x238] sm:$0xff] %v323
                %v325 = vld [vmem:[%s207 + $0x488] sm:$0xff]
                %326 = vst [vmem:[%s208 + $0x244] sm:$0xff] %v325
                %v327 = vld [vmem:[%s207 + $0x490] sm:$0xff]
                %328 = vst [vmem:[%s208 + $0x24c] sm:$0xff] %v327
                %v329 = vld [vmem:[%s207 + $0x4b0] sm:$0xff]
                %330 = vst [vmem:[%s208 + $0x258] sm:$0xff] %v329
                %v331 = vld [vmem:[%s207 + $0x4b8] sm:$0xff]
                %332 = vst [vmem:[%s208 + $0x260] sm:$0xff] %v331
                %v333 = vld [vmem:[%s207 + $0x4d8] sm:$0xff]
                %334 = vst [vmem:[%s208 + $0x26c] sm:$0xff] %v333
                %v335 = vld [vmem:[%s207 + $0x4e0] sm:$0xff]
                %336 = vst [vmem:[%s208 + $0x274] sm:$0xff] %v335
                %v337 = vld [vmem:[%s207 + $0x500] sm:$0xff]
                %338 = vst [vmem:[%s208 + $0x280] sm:$0xff] %v337
                %v339 = vld [vmem:[%s207 + $0x508] sm:$0xff]
                %340 = vst [vmem:[%s208 + $0x288] sm:$0xff] %v339
                %v341 = vld [vmem:[%s207 + $0x528] sm:$0xff]
                %342 = vst [vmem:[%s208 + $0x294] sm:$0xff] %v341
                %v343 = vld [vmem:[%s207 + $0x530] sm:$0xff]
                %344 = vst [vmem:[%s208 + $0x29c] sm:$0xff] %v343
                %v345 = vld [vmem:[%s207 + $0x550] sm:$0xff]
                %346 = vst [vmem:[%s208 + $0x2a8] sm:$0xff] %v345
                %v347 = vld [vmem:[%s207 + $0x558] sm:$0xff]
                %348 = vst [vmem:[%s208 + $0x2b0] sm:$0xff] %v347
                %v349 = vld [vmem:[%s207 + $0x578] sm:$0xff]
                %350 = vst [vmem:[%s208 + $0x2bc] sm:$0xff] %v349
                %v351 = vld [vmem:[%s207 + $0x580] sm:$0xff]
                %352 = vst [vmem:[%s208 + $0x2c4] sm:$0xff] %v351
                %v353 = vld [vmem:[%s207 + $0x5a0] sm:$0xff]
                %354 = vst [vmem:[%s208 + $0x2d0] sm:$0xff] %v353
                %v355 = vld [vmem:[%s207 + $0x5a8] sm:$0xff]
                %356 = vst [vmem:[%s208 + $0x2d8] sm:$0xff] %v355
                %v357 = vld [vmem:[%s207 + $0x5c8] sm:$0xff]
                %358 = vst [vmem:[%s208 + $0x2e4] sm:$0xff] %v357
                %v359 = vld [vmem:[%s207 + $0x5d0] sm:$0xff]
                %360 = vst [vmem:[%s208 + $0x2ec] sm:$0xff] %v359
                %v361 = vld [vmem:[%s207 + $0x5f0] sm:$0xff]
                %362 = vst [vmem:[%s208 + $0x2f8] sm:$0xff] %v361
                %v363 = vld [vmem:[%s207 + $0x5f8] sm:$0xff]
                %364 = vst [vmem:[%s208 + $0x300] sm:$0xff] %v363
                %v365 = vld [vmem:[%s207 + $0x618] sm:$0xff]
                %366 = vst [vmem:[%s208 + $0x30c] sm:$0xff] %v365
                %v367 = vld [vmem:[%s207 + $0x620] sm:$0xff]
                %368 = vst [vmem:[%s208 + $0x314] sm:$0xff] %v367
                %v369 = vld [vmem:[%s207 + $0x640] sm:$0xff]
                %370 = vst [vmem:[%s208 + $0x320] sm:$0xff] %v369
                %v371 = vld [vmem:[%s207 + $0x648] sm:$0xff]
                %372 = vst [vmem:[%s208 + $0x328] sm:$0xff] %v371
                %v373 = vld [vmem:[%s207 + $0x668] sm:$0xff]
                %374 = vst [vmem:[%s208 + $0x334] sm:$0xff] %v373
                %v375 = vld [vmem:[%s207 + $0x670] sm:$0xff]
                %376 = vst [vmem:[%s208 + $0x33c] sm:$0xff] %v375
                %v377 = vld [vmem:[%s207 + $0x690] sm:$0xff]
                %378 = vst [vmem:[%s208 + $0x348] sm:$0xff] %v377
                %v379 = vld [vmem:[%s207 + $0x698] sm:$0xff]
                %380 = vst [vmem:[%s208 + $0x350] sm:$0xff] %v379
                %v381 = vld [vmem:[%s207 + $0x6b8] sm:$0xff]
                %382 = vst [vmem:[%s208 + $0x35c] sm:$0xff] %v381
                %v383 = vld [vmem:[%s207 + $0x6c0] sm:$0xff]
                %384 = vst [vmem:[%s208 + $0x364] sm:$0xff] %v383
                %v385 = vld [vmem:[%s207 + $0x6e0] sm:$0xff]
                %386 = vst [vmem:[%s208 + $0x370] sm:$0xff] %v385
                %v387 = vld [vmem:[%s207 + $0x6e8] sm:$0xff]
                %388 = vst [vmem:[%s208 + $0x378] sm:$0xff] %v387
                %v389 = vld [vmem:[%s207 + $0x708] sm:$0xff]
                %390 = vst [vmem:[%s208 + $0x384] sm:$0xff] %v389
                %v391 = vld [vmem:[%s207 + $0x710] sm:$0xff]
                %392 = vst [vmem:[%s208 + $0x38c] sm:$0xff] %v391
                %v393 = vld [vmem:[%s207 + $0x730] sm:$0xff]
                %394 = vst [vmem:[%s208 + $0x398] sm:$0xff] %v393
                %v395 = vld [vmem:[%s207 + $0x738] sm:$0xff]
                %396 = vst [vmem:[%s208 + $0x3a0] sm:$0xff] %v395
                %v397 = vld [vmem:[%s207 + $0x758] sm:$0xff]
                %398 = vst [vmem:[%s208 + $0x3ac] sm:$0xff] %v397
                %v399 = vld [vmem:[%s207 + $0x760] sm:$0xff]
                %400 = vst [vmem:[%s208 + $0x3b4] sm:$0xff] %v399
                %v401 = vld [vmem:[%s207 + $0x780] sm:$0xff]
                %402 = vst [vmem:[%s208 + $0x3c0] sm:$0xff] %v401
                %v403 = vld [vmem:[%s207 + $0x788] sm:$0xff]
                %404 = vst [vmem:[%s208 + $0x3c8] sm:$0xff] %v403
                %v405 = vld [vmem:[%s207 + $0x7a8] sm:$0xff]
                %406 = vst [vmem:[%s208 + $0x3d4] sm:$0xff] %v405
                %v407 = vld [vmem:[%s207 + $0x7b0] sm:$0xff]
                %408 = vst [vmem:[%s208 + $0x3dc] sm:$0xff] %v407
                %v409 = vld [vmem:[%s207 + $0x7d0] sm:$0xff]
                %410 = vst [vmem:[%s208 + $0x3e8] sm:$0xff] %v409
                %v411 = vld [vmem:[%s207 + $0x7d8] sm:$0xff]
                %412 = vst [vmem:[%s208 + $0x3f0] sm:$0xff] %v411
                %v413 = vld [vmem:[%s207 + $0x7f8] sm:$0xff]
                %414 = vst [vmem:[%s208 + $0x3fc] sm:$0xff] %v413
                %v415 = vld [vmem:[%s207 + $0x800] sm:$0xff]
                %416 = vst [vmem:[%s208 + $0x404] sm:$0xff] %v415
                %v417 = vld [vmem:[%s207 + $0x820] sm:$0xff]
                %418 = vst [vmem:[%s208 + $0x410] sm:$0xff] %v417
                %v419 = vld [vmem:[%s207 + $0x828] sm:$0xff]
                %420 = vst [vmem:[%s208 + $0x418] sm:$0xff] %v419
                %v421 = vld [vmem:[%s207 + $0x848] sm:$0xff]
                %422 = vst [vmem:[%s208 + $0x424] sm:$0xff] %v421
                %v423 = vld [vmem:[%s207 + $0x850] sm:$0xff]
                %424 = vst [vmem:[%s208 + $0x42c] sm:$0xff] %v423
                %v425 = vld [vmem:[%s207 + $0x870] sm:$0xff]
                %426 = vst [vmem:[%s208 + $0x438] sm:$0xff] %v425
                %v427 = vld [vmem:[%s207 + $0x878] sm:$0xff]
                %428 = vst [vmem:[%s208 + $0x440] sm:$0xff] %v427
                %v429 = vld [vmem:[%s207 + $0x898] sm:$0xff]
                %430 = vst [vmem:[%s208 + $0x44c] sm:$0xff] %v429
                %v431 = vld [vmem:[%s207 + $0x8a0] sm:$0xff]
                %432 = vst [vmem:[%s208 + $0x454] sm:$0xff] %v431
                %v433 = vld [vmem:[%s207 + $0x8c0] sm:$0xff]
                %434 = vst [vmem:[%s208 + $0x460] sm:$0xff] %v433
                %v435 = vld [vmem:[%s207 + $0x8c8] sm:$0xff]
                %436 = vst [vmem:[%s208 + $0x468] sm:$0xff] %v435
                %v437 = vld [vmem:[%s207 + $0x8e8] sm:$0xff]
                %438 = vst [vmem:[%s208 + $0x474] sm:$0xff] %v437
                %v439 = vld [vmem:[%s207 + $0x8f0] sm:$0xff]
                %440 = vst [vmem:[%s208 + $0x47c] sm:$0xff] %v439
                %v441 = vld [vmem:[%s207 + $0x910] sm:$0xff]
                %442 = vst [vmem:[%s208 + $0x488] sm:$0xff] %v441
                %v443 = vld [vmem:[%s207 + $0x918] sm:$0xff]
                %444 = vst [vmem:[%s208 + $0x490] sm:$0xff] %v443
                %v445 = vld [vmem:[%s207 + $0x938] sm:$0xff]
                %446 = vst [vmem:[%s208 + $0x49c] sm:$0xff] %v445
                %v447 = vld [vmem:[%s207 + $0x940] sm:$0xff]
                %448 = vst [vmem:[%s208 + $0x4a4] sm:$0xff] %v447
                %v449 = vld [vmem:[%s207 + $0x960] sm:$0xff]
                %450 = vst [vmem:[%s208 + $0x4b0] sm:$0xff] %v449
                %v451 = vld [vmem:[%s207 + $0x968] sm:$0xff]
                %452 = vst [vmem:[%s208 + $0x4b8] sm:$0xff] %v451
                %v453 = vld [vmem:[%s207 + $0x988] sm:$0xff]
                %454 = vst [vmem:[%s208 + $0x4c4] sm:$0xff] %v453
                %v455 = vld [vmem:[%s207 + $0x990] sm:$0xff]
                %456 = vst [vmem:[%s208 + $0x4cc] sm:$0xff] %v455
                %v457 = vld [vmem:[%s207 + $0x9b0] sm:$0xff]
                %458 = vst [vmem:[%s208 + $0x4d8] sm:$0xff] %v457
                %v459 = vld [vmem:[%s207 + $0x9b8] sm:$0xff]
                %460 = vst [vmem:[%s208 + $0x4e0] sm:$0xff] %v459
                %v461 = vld [vmem:[%s207 + $0x9d8] sm:$0xff]
                %462 = vst [vmem:[%s208 + $0x4ec] sm:$0xff] %v461
                %v463 = vld [vmem:[%s207 + $0x9e0] sm:$0xff]
                %464 = vst [vmem:[%s208 + $0x4f4] sm:$0xff] %v463
                %v465 = vld [vmem:[%s207 + $0xa00] sm:$0xff]
                %466 = vst [vmem:[%s208 + $0x500] sm:$0xff] %v465
                %v467 = vld [vmem:[%s207 + $0xa08] sm:$0xff]
                %468 = vst [vmem:[%s208 + $0x508] sm:$0xff] %v467
                %v469 = vld [vmem:[%s207 + $0xa28] sm:$0xff]
                %470 = vst [vmem:[%s208 + $0x514] sm:$0xff] %v469
                %v471 = vld [vmem:[%s207 + $0xa30] sm:$0xff]
                %472 = vst [vmem:[%s208 + $0x51c] sm:$0xff] %v471
                %v473 = vld [vmem:[%s207 + $0xa50] sm:$0xff]
                %474 = vst [vmem:[%s208 + $0x528] sm:$0xff] %v473
                %v475 = vld [vmem:[%s207 + $0xa58] sm:$0xff]
                %476 = vst [vmem:[%s208 + $0x530] sm:$0xff] %v475
                %v477 = vld [vmem:[%s207 + $0xa78] sm:$0xff]
                %478 = vst [vmem:[%s208 + $0x53c] sm:$0xff] %v477
                %v479 = vld [vmem:[%s207 + $0xa80] sm:$0xff]
                %480 = vst [vmem:[%s208 + $0x544] sm:$0xff] %v479
                %v481 = vld [vmem:[%s207 + $0xaa0] sm:$0xff]
                %482 = vst [vmem:[%s208 + $0x550] sm:$0xff] %v481
                %v483 = vld [vmem:[%s207 + $0xaa8] sm:$0xff]
                %484 = vst [vmem:[%s208 + $0x558] sm:$0xff] %v483
                %v485 = vld [vmem:[%s207 + $0xac8] sm:$0xff]
                %486 = vst [vmem:[%s208 + $0x564] sm:$0xff] %v485
                %v487 = vld [vmem:[%s207 + $0xad0] sm:$0xff]
                %488 = vst [vmem:[%s208 + $0x56c] sm:$0xff] %v487
                %v489 = vld [vmem:[%s207 + $0xaf0] sm:$0xff]
                %490 = vst [vmem:[%s208 + $0x578] sm:$0xff] %v489
                %v491 = vld [vmem:[%s207 + $0xaf8] sm:$0xff]
                %492 = vst [vmem:[%s208 + $0x580] sm:$0xff] %v491
                %v493 = vld [vmem:[%s207 + $0xb18] sm:$0xff]
                %494 = vst [vmem:[%s208 + $0x58c] sm:$0xff] %v493
                %v495 = vld [vmem:[%s207 + $0xb20] sm:$0xff]
                %496 = vst [vmem:[%s208 + $0x594] sm:$0xff] %v495
                %v497 = vld [vmem:[%s207 + $0xb40] sm:$0xff]
                %498 = vst [vmem:[%s208 + $0x5a0] sm:$0xff] %v497
                %v499 = vld [vmem:[%s207 + $0xb48] sm:$0xff]
                %500 = vst [vmem:[%s208 + $0x5a8] sm:$0xff] %v499
                %v501 = vld [vmem:[%s207 + $0xb68] sm:$0xff]
                %502 = vst [vmem:[%s208 + $0x5b4] sm:$0xff] %v501
                %v503 = vld [vmem:[%s207 + $0xb70] sm:$0xff]
                %504 = vst [vmem:[%s208 + $0x5bc] sm:$0xff] %v503
                %v505 = vld [vmem:[%s207 + $0xb90] sm:$0xff]
                %506 = vst [vmem:[%s208 + $0x5c8] sm:$0xff] %v505
                %v507 = vld [vmem:[%s207 + $0xb98] sm:$0xff]
                %508 = vst [vmem:[%s208 + $0x5d0] sm:$0xff] %v507
                %v509 = vld [vmem:[%s207 + $0xbb8] sm:$0xff]
                %510 = vst [vmem:[%s208 + $0x5dc] sm:$0xff] %v509
                %v511 = vld [vmem:[%s207 + $0xbc0] sm:$0xff]
                %512 = vst [vmem:[%s208 + $0x5e4] sm:$0xff] %v511
                %v513 = vld [vmem:[%s207 + $0xbe0] sm:$0xff]
                %514 = vst [vmem:[%s208 + $0x5f0] sm:$0xff] %v513
                %v515 = vld [vmem:[%s207 + $0xbe8] sm:$0xff]
                %516 = vst [vmem:[%s208 + $0x5f8] sm:$0xff] %v515
                %v517 = vld [vmem:[%s207 + $0xc08] sm:$0xff]
                %518 = vst [vmem:[%s208 + $0x604] sm:$0xff] %v517
                %v519 = vld [vmem:[%s207 + $0xc10] sm:$0xff]
                %520 = vst [vmem:[%s208 + $0x60c] sm:$0xff] %v519
                %v521 = vld [vmem:[%s207 + $0xc30] sm:$0xff]
                %522 = vst [vmem:[%s208 + $0x618] sm:$0xff] %v521
                %v523 = vld [vmem:[%s207 + $0xc38] sm:$0xff]
                %524 = vst [vmem:[%s208 + $0x620] sm:$0xff] %v523
                %v525 = vld [vmem:[%s207 + $0xc58] sm:$0xff]
                %526 = vst [vmem:[%s208 + $0x62c] sm:$0xff] %v525
                %v527 = vld [vmem:[%s207 + $0xc60] sm:$0xff]
                %528 = vst [vmem:[%s208 + $0x634] sm:$0xff] %v527
                %v529 = vld [vmem:[%s207 + $0xc80] sm:$0xff]
                %530 = vst [vmem:[%s208 + $0x640] sm:$0xff] %v529
                %v531 = vld [vmem:[%s207 + $0xc88] sm:$0xff]
                %532 = vst [vmem:[%s208 + $0x648] sm:$0xff] %v531
                %v533 = vld [vmem:[%s207 + $0xca8] sm:$0xff]
                %534 = vst [vmem:[%s208 + $0x654] sm:$0xff] %v533
                %v535 = vld [vmem:[%s207 + $0xcb0] sm:$0xff]
                %536 = vst [vmem:[%s208 + $0x65c] sm:$0xff] %v535
                %v537 = vld [vmem:[%s207 + $0xcd0] sm:$0xff]
                %538 = vst [vmem:[%s208 + $0x668] sm:$0xff] %v537
                %v539 = vld [vmem:[%s207 + $0xcd8] sm:$0xff]
                %540 = vst [vmem:[%s208 + $0x670] sm:$0xff] %v539
                %v541 = vld [vmem:[%s207 + $0xcf8] sm:$0xff]
                %542 = vst [vmem:[%s208 + $0x67c] sm:$0xff] %v541
                %v543 = vld [vmem:[%s207 + $0xd00] sm:$0xff]
                %544 = vst [vmem:[%s208 + $0x684] sm:$0xff] %v543
                %v545 = vld [vmem:[%s207 + $0xd20] sm:$0xff]
                %546 = vst [vmem:[%s208 + $0x690] sm:$0xff] %v545
                %v547 = vld [vmem:[%s207 + $0xd28] sm:$0xff]
                %548 = vst [vmem:[%s208 + $0x698] sm:$0xff] %v547
                %v549 = vld [vmem:[%s207 + $0xd48] sm:$0xff]
                %550 = vst [vmem:[%s208 + $0x6a4] sm:$0xff] %v549
                %v551 = vld [vmem:[%s207 + $0xd50] sm:$0xff]
                %552 = vst [vmem:[%s208 + $0x6ac] sm:$0xff] %v551
                %v553 = vld [vmem:[%s207 + $0xd70] sm:$0xff]
                %554 = vst [vmem:[%s208 + $0x6b8] sm:$0xff] %v553
                %v555 = vld [vmem:[%s207 + $0xd78] sm:$0xff]
                %556 = vst [vmem:[%s208 + $0x6c0] sm:$0xff] %v555
                %v557 = vld [vmem:[%s207 + $0xd98] sm:$0xff]
                %558 = vst [vmem:[%s208 + $0x6cc] sm:$0xff] %v557
                %v559 = vld [vmem:[%s207 + $0xda0] sm:$0xff]
                %560 = vst [vmem:[%s208 + $0x6d4] sm:$0xff] %v559
                %v561 = vld [vmem:[%s207 + $0xdc0] sm:$0xff]
                %562 = vst [vmem:[%s208 + $0x6e0] sm:$0xff] %v561
                %v563 = vld [vmem:[%s207 + $0xdc8] sm:$0xff]
                %564 = vst [vmem:[%s208 + $0x6e8] sm:$0xff] %v563
                %v565 = vld [vmem:[%s207 + $0xde8] sm:$0xff]
                %566 = vst [vmem:[%s208 + $0x6f4] sm:$0xff] %v565
                %v567 = vld [vmem:[%s207 + $0xdf0] sm:$0xff]
                %568 = vst [vmem:[%s208 + $0x6fc] sm:$0xff] %v567
                %v569 = vld [vmem:[%s207 + $0xe10] sm:$0xff]
                %570 = vst [vmem:[%s208 + $0x708] sm:$0xff] %v569
                %v571 = vld [vmem:[%s207 + $0xe18] sm:$0xff]
                %572 = vst [vmem:[%s208 + $0x710] sm:$0xff] %v571
                %v573 = vld [vmem:[%s207 + $0xe38] sm:$0xff]
                %574 = vst [vmem:[%s208 + $0x71c] sm:$0xff] %v573
                %v575 = vld [vmem:[%s207 + $0xe40] sm:$0xff]
                %576 = vst [vmem:[%s208 + $0x724] sm:$0xff] %v575
                %v577 = vld [vmem:[%s207 + $0xe60] sm:$0xff]
                %578 = vst [vmem:[%s208 + $0x730] sm:$0xff] %v577
                %v579 = vld [vmem:[%s207 + $0xe68] sm:$0xff]
                %580 = vst [vmem:[%s208 + $0x738] sm:$0xff] %v579
                %v581 = vld [vmem:[%s207 + $0xe88] sm:$0xff]
                %582 = vst [vmem:[%s208 + $0x744] sm:$0xff] %v581
                %v583 = vld [vmem:[%s207 + $0xe90] sm:$0xff]
                %584 = vst [vmem:[%s208 + $0x74c] sm:$0xff] %v583
                %v585 = vld [vmem:[%s207 + $0xeb0] sm:$0xff]
                %586 = vst [vmem:[%s208 + $0x758] sm:$0xff] %v585
                %v587 = vld [vmem:[%s207 + $0xeb8] sm:$0xff]
                %588 = vst [vmem:[%s208 + $0x760] sm:$0xff] %v587
                %v589 = vld [vmem:[%s207 + $0xed8] sm:$0xff]
                %590 = vst [vmem:[%s208 + $0x76c] sm:$0xff] %v589
                %v591 = vld [vmem:[%s207 + $0xee0] sm:$0xff]
                %592 = vst [vmem:[%s208 + $0x774] sm:$0xff] %v591
                %v593 = vld [vmem:[%s207 + $0xf00] sm:$0xff]
                %594 = vst [vmem:[%s208 + $0x780] sm:$0xff] %v593
                %v595 = vld [vmem:[%s207 + $0xf08] sm:$0xff]
                %596 = vst [vmem:[%s208 + $0x788] sm:$0xff] %v595
                %v597 = vld [vmem:[%s207 + $0xf28] sm:$0xff]
                %598 = vst [vmem:[%s208 + $0x794] sm:$0xff] %v597
                %v599 = vld [vmem:[%s207 + $0xf30] sm:$0xff]
                %600 = vst [vmem:[%s208 + $0x79c] sm:$0xff] %v599
                %v601 = vld [vmem:[%s207 + $0xf50] sm:$0xff]
                %602 = vst [vmem:[%s208 + $0x7a8] sm:$0xff] %v601
                %v603 = vld [vmem:[%s207 + $0xf58] sm:$0xff]
                %604 = vst [vmem:[%s208 + $0x7b0] sm:$0xff] %v603
                %v605 = vld [vmem:[%s207 + $0xf78] sm:$0xff]
                %606 = vst [vmem:[%s208 + $0x7bc] sm:$0xff] %v605
                %v607 = vld [vmem:[%s207 + $0xf80] sm:$0xff]
                %608 = vst [vmem:[%s208 + $0x7c4] sm:$0xff] %v607
                %v609 = vld [vmem:[%s207 + $0xfa0] sm:$0xff]
                %610 = vst [vmem:[%s208 + $0x7d0] sm:$0xff] %v609
                %v611 = vld [vmem:[%s207 + $0xfa8] sm:$0xff]
                %612 = vst [vmem:[%s208 + $0x7d8] sm:$0xff] %v611
                %v613 = vld [vmem:[%s207 + $0xfc8] sm:$0xff]
                %614 = vst [vmem:[%s208 + $0x7e4] sm:$0xff] %v613
                %v615 = vld [vmem:[%s207 + $0xfd0] sm:$0xff]
                %616 = vst [vmem:[%s208 + $0x7ec] sm:$0xff] %v615
                %v617 = vld [vmem:[%s207 + $0xff0] sm:$0xff]
                %618 = vst [vmem:[%s208 + $0x7f8] sm:$0xff] %v617
                %v619 = vld [vmem:[%s207 + $0xff8] sm:$0xff]
                %620 = vst [vmem:[%s208 + $0x800] sm:$0xff] %v619
                %v621 = vld [vmem:[%s207 + $0x1018] sm:$0xff]
                %622 = vst [vmem:[%s208 + $0x80c] sm:$0xff] %v621
                %v623 = vld [vmem:[%s207 + $0x1020] sm:$0xff]
                %624 = vst [vmem:[%s208 + $0x814] sm:$0xff] %v623
                %v625 = vld [vmem:[%s207 + $0x1040] sm:$0xff]
                %626 = vst [vmem:[%s208 + $0x820] sm:$0xff] %v625
                %v627 = vld [vmem:[%s207 + $0x1048] sm:$0xff]
                %628 = vst [vmem:[%s208 + $0x828] sm:$0xff] %v627
                %v629 = vld [vmem:[%s207 + $0x1068] sm:$0xff]
                %630 = vst [vmem:[%s208 + $0x834] sm:$0xff] %v629
                %v631 = vld [vmem:[%s207 + $0x1070] sm:$0xff]
                %632 = vst [vmem:[%s208 + $0x83c] sm:$0xff] %v631
                %v633 = vld [vmem:[%s207 + $0x1090] sm:$0xff]
                %634 = vst [vmem:[%s208 + $0x848] sm:$0xff] %v633
                %v635 = vld [vmem:[%s207 + $0x1098] sm:$0xff]
                %636 = vst [vmem:[%s208 + $0x850] sm:$0xff] %v635
                %v637 = vld [vmem:[%s207 + $0x10b8] sm:$0xff]
                %638 = vst [vmem:[%s208 + $0x85c] sm:$0xff] %v637
                %v639 = vld [vmem:[%s207 + $0x10c0] sm:$0xff]
                %640 = vst [vmem:[%s208 + $0x864] sm:$0xff] %v639
                %v641 = vld [vmem:[%s207 + $0x10e0] sm:$0xff]
                %642 = vst [vmem:[%s208 + $0x870] sm:$0xff] %v641
                %v643 = vld [vmem:[%s207 + $0x10e8] sm:$0xff]
                %644 = vst [vmem:[%s208 + $0x878] sm:$0xff] %v643
                %v645 = vld [vmem:[%s207 + $0x1108] sm:$0xff]
                %646 = vst [vmem:[%s208 + $0x884] sm:$0xff] %v645
                %v647 = vld [vmem:[%s207 + $0x1110] sm:$0xff]
                %648 = vst [vmem:[%s208 + $0x88c] sm:$0xff] %v647
                %v649 = vld [vmem:[%s207 + $0x1130] sm:$0xff]
                %650 = vst [vmem:[%s208 + $0x898] sm:$0xff] %v649
                %v651 = vld [vmem:[%s207 + $0x1138] sm:$0xff]
                %652 = vst [vmem:[%s208 + $0x8a0] sm:$0xff] %v651
                %v653 = vld [vmem:[%s207 + $0x1158] sm:$0xff]
                %654 = vst [vmem:[%s208 + $0x8ac] sm:$0xff] %v653
                %v655 = vld [vmem:[%s207 + $0x1160] sm:$0xff]
                %656 = vst [vmem:[%s208 + $0x8b4] sm:$0xff] %v655
                %v657 = vld [vmem:[%s207 + $0x1180] sm:$0xff]
                %658 = vst [vmem:[%s208 + $0x8c0] sm:$0xff] %v657
                %v659 = vld [vmem:[%s207 + $0x1188] sm:$0xff]
                %660 = vst [vmem:[%s208 + $0x8c8] sm:$0xff] %v659
                %v661 = vld [vmem:[%s207 + $0x11a8] sm:$0xff]
                %662 = vst [vmem:[%s208 + $0x8d4] sm:$0xff] %v661
                %v663 = vld [vmem:[%s207 + $0x11b0] sm:$0xff]
                %664 = vst [vmem:[%s208 + $0x8dc] sm:$0xff] %v663
                %v665 = vld [vmem:[%s207 + $0x11d0] sm:$0xff]
                %666 = vst [vmem:[%s208 + $0x8e8] sm:$0xff] %v665
                %v667 = vld [vmem:[%s207 + $0x11d8] sm:$0xff]
                %668 = vst [vmem:[%s208 + $0x8f0] sm:$0xff] %v667
                %v669 = vld [vmem:[%s207 + $0x11f8] sm:$0xff]
                %670 = vst [vmem:[%s208 + $0x8fc] sm:$0xff] %v669
                %v671 = vld [vmem:[%s207 + $0x1200] sm:$0xff]
                %672 = vst [vmem:[%s208 + $0x904] sm:$0xff] %v671
                %v673 = vld [vmem:[%s207 + $0x1220] sm:$0xff]
                %674 = vst [vmem:[%s208 + $0x910] sm:$0xff] %v673
                %v675 = vld [vmem:[%s207 + $0x1228] sm:$0xff]
                %676 = vst [vmem:[%s208 + $0x918] sm:$0xff] %v675
                %v677 = vld [vmem:[%s207 + $0x1248] sm:$0xff]
                %678 = vst [vmem:[%s208 + $0x924] sm:$0xff] %v677
                %v679 = vld [vmem:[%s207 + $0x1250] sm:$0xff]
                %680 = vst [vmem:[%s208 + $0x92c] sm:$0xff] %v679
                %v681 = vld [vmem:[%s207 + $0x1270] sm:$0xff]
                %682 = vst [vmem:[%s208 + $0x938] sm:$0xff] %v681
                %v683 = vld [vmem:[%s207 + $0x1278] sm:$0xff]
                %684 = vst [vmem:[%s208 + $0x940] sm:$0xff] %v683
                %v685 = vld [vmem:[%s207 + $0x1298] sm:$0xff]
                %686 = vst [vmem:[%s208 + $0x94c] sm:$0xff] %v685
                %v687 = vld [vmem:[%s207 + $0x12a0] sm:$0xff]
                %688 = vst [vmem:[%s208 + $0x954] sm:$0xff] %v687
                %v689 = vld [vmem:[%s207 + $0x12c0] sm:$0xff]
                %690 = vst [vmem:[%s208 + $0x960] sm:$0xff] %v689
                %v691 = vld [vmem:[%s207 + $0x12c8] sm:$0xff]
                %692 = vst [vmem:[%s208 + $0x968] sm:$0xff] %v691
                %v693 = vld [vmem:[%s207 + $0x12e8] sm:$0xff]
                %694 = vst [vmem:[%s208 + $0x974] sm:$0xff] %v693
                %v695 = vld [vmem:[%s207 + $0x12f0] sm:$0xff]
                %696 = vst [vmem:[%s208 + $0x97c] sm:$0xff] %v695
                %v697 = vld [vmem:[%s207 + $0x1310] sm:$0xff]
                %698 = vst [vmem:[%s208 + $0x988] sm:$0xff] %v697
                %v699 = vld [vmem:[%s207 + $0x1318] sm:$0xff]
                %700 = vst [vmem:[%s208 + $0x990] sm:$0xff] %v699
                %v701 = vld [vmem:[%s207 + $0x1338] sm:$0xff]
                %702 = vst [vmem:[%s208 + $0x99c] sm:$0xff] %v701
                %v703 = vld [vmem:[%s207 + $0x1340] sm:$0xff]
                %704 = vst [vmem:[%s208 + $0x9a4] sm:$0xff] %v703
                %v705 = vld [vmem:[%s207 + $0x1360] sm:$0xff]
                %706 = vst [vmem:[%s208 + $0x9b0] sm:$0xff] %v705
                %v707 = vld [vmem:[%s207 + $0x1368] sm:$0xff]
                %708 = vst [vmem:[%s208 + $0x9b8] sm:$0xff] %v707
                %v709 = vld [vmem:[%s207 + $0x1388] sm:$0xff]
                %710 = vst [vmem:[%s208 + $0x9c4] sm:$0xff] %v709
                %v711 = vld [vmem:[%s207 + $0x1390] sm:$0xff]
                %712 = vst [vmem:[%s208 + $0x9cc] sm:$0xff] %v711
                %v713 = vld [vmem:[%s207 + $0x13b0] sm:$0xff]
                %714 = vst [vmem:[%s208 + $0x9d8] sm:$0xff] %v713
                %v715 = vld [vmem:[%s207 + $0x13b8] sm:$0xff]
                %716 = vst [vmem:[%s208 + $0x9e0] sm:$0xff] %v715
                %v717 = vld [vmem:[%s207 + $0x13d8] sm:$0xff]
                %718 = vst [vmem:[%s208 + $0x9ec] sm:$0xff] %v717
                %v719 = vld [vmem:[%s207 + $0x13e0] sm:$0xff]
                %720 = vst [vmem:[%s208 + $0x9f4] sm:$0xff] %v719
                %v721 = vld [vmem:[%s207 + $0x1400] sm:$0xff]
                %722 = vst [vmem:[%s208 + $0xa00] sm:$0xff] %v721
                %v723 = vld [vmem:[%s207 + $0x1408] sm:$0xff]
                %724 = vst [vmem:[%s208 + $0xa08] sm:$0xff] %v723
                %v725 = vld [vmem:[%s207 + $0x1428] sm:$0xff]
                %726 = vst [vmem:[%s208 + $0xa14] sm:$0xff] %v725
                %v727 = vld [vmem:[%s207 + $0x1430] sm:$0xff]
                %728 = vst [vmem:[%s208 + $0xa1c] sm:$0xff] %v727
                %v729 = vld [vmem:[%s207 + $0x1450] sm:$0xff]
                %730 = vst [vmem:[%s208 + $0xa28] sm:$0xff] %v729
                %v731 = vld [vmem:[%s207 + $0x1458] sm:$0xff]
                %732 = vst [vmem:[%s208 + $0xa30] sm:$0xff] %v731
                %v733 = vld [vmem:[%s207 + $0x1478] sm:$0xff]
                %734 = vst [vmem:[%s208 + $0xa3c] sm:$0xff] %v733
                %v735 = vld [vmem:[%s207 + $0x1480] sm:$0xff]
                %736 = vst [vmem:[%s208 + $0xa44] sm:$0xff] %v735
                %v737 = vld [vmem:[%s207 + $0x14a0] sm:$0xff]
                %738 = vst [vmem:[%s208 + $0xa50] sm:$0xff] %v737
                %v739 = vld [vmem:[%s207 + $0x14a8] sm:$0xff]
                %740 = vst [vmem:[%s208 + $0xa58] sm:$0xff] %v739
                %v741 = vld [vmem:[%s207 + $0x14c8] sm:$0xff]
                %742 = vst [vmem:[%s208 + $0xa64] sm:$0xff] %v741
                %v743 = vld [vmem:[%s207 + $0x14d0] sm:$0xff]
                %744 = vst [vmem:[%s208 + $0xa6c] sm:$0xff] %v743
                %v745 = vld [vmem:[%s207 + $0x14f0] sm:$0xff]
                %746 = vst [vmem:[%s208 + $0xa78] sm:$0xff] %v745
                %v747 = vld [vmem:[%s207 + $0x14f8] sm:$0xff]
                %748 = vst [vmem:[%s208 + $0xa80] sm:$0xff] %v747
                %v749 = vld [vmem:[%s207 + $0x1518] sm:$0xff]
                %750 = vst [vmem:[%s208 + $0xa8c] sm:$0xff] %v749
                %v751 = vld [vmem:[%s207 + $0x1520] sm:$0xff]
                %752 = vst [vmem:[%s208 + $0xa94] sm:$0xff] %v751
                %v753 = vld [vmem:[%s207 + $0x1540] sm:$0xff]
                %754 = vst [vmem:[%s208 + $0xaa0] sm:$0xff] %v753
                %v755 = vld [vmem:[%s207 + $0x1548] sm:$0xff]
                %756 = vst [vmem:[%s208 + $0xaa8] sm:$0xff] %v755
                %v757 = vld [vmem:[%s207 + $0x1568] sm:$0xff]
                %758 = vst [vmem:[%s208 + $0xab4] sm:$0xff] %v757
                %v759 = vld [vmem:[%s207 + $0x1570] sm:$0xff]
                %760 = vst [vmem:[%s208 + $0xabc] sm:$0xff] %v759
                %v761 = vld [vmem:[%s207 + $0x1590] sm:$0xff]
                %762 = vst [vmem:[%s208 + $0xac8] sm:$0xff] %v761
                %v763 = vld [vmem:[%s207 + $0x1598] sm:$0xff]
                %764 = vst [vmem:[%s208 + $0xad0] sm:$0xff] %v763
                %v765 = vld [vmem:[%s207 + $0x15b8] sm:$0xff]
                %766 = vst [vmem:[%s208 + $0xadc] sm:$0xff] %v765
                %v767 = vld [vmem:[%s207 + $0x15c0] sm:$0xff]
                %768 = vst [vmem:[%s208 + $0xae4] sm:$0xff] %v767
                %v769 = vld [vmem:[%s207 + $0x15e0] sm:$0xff]
                %770 = vst [vmem:[%s208 + $0xaf0] sm:$0xff] %v769
                %v771 = vld [vmem:[%s207 + $0x15e8] sm:$0xff]
                %772 = vst [vmem:[%s208 + $0xaf8] sm:$0xff] %v771
                %v773 = vld [vmem:[%s207 + $0x1608] sm:$0xff]
                %774 = vst [vmem:[%s208 + $0xb04] sm:$0xff] %v773
                %v775 = vld [vmem:[%s207 + $0x1610] sm:$0xff]
                %776 = vst [vmem:[%s208 + $0xb0c] sm:$0xff] %v775
                %v777 = vld [vmem:[%s207 + $0x1630] sm:$0xff]
                %778 = vst [vmem:[%s208 + $0xb18] sm:$0xff] %v777
                %v779 = vld [vmem:[%s207 + $0x1638] sm:$0xff]
                %780 = vst [vmem:[%s208 + $0xb20] sm:$0xff] %v779
                %v781 = vld [vmem:[%s207 + $0x1658] sm:$0xff]
                %782 = vst [vmem:[%s208 + $0xb2c] sm:$0xff] %v781
                %v783 = vld [vmem:[%s207 + $0x1660] sm:$0xff]
                %784 = vst [vmem:[%s208 + $0xb34] sm:$0xff] %v783
                %v785 = vld [vmem:[%s207 + $0x1680] sm:$0xff]
                %786 = vst [vmem:[%s208 + $0xb40] sm:$0xff] %v785
                %v787 = vld [vmem:[%s207 + $0x1688] sm:$0xff]
                %788 = vst [vmem:[%s208 + $0xb48] sm:$0xff] %v787
                %v789 = vld [vmem:[%s207 + $0x16a8] sm:$0xff]
                %790 = vst [vmem:[%s208 + $0xb54] sm:$0xff] %v789
                %v791 = vld [vmem:[%s207 + $0x16b0] sm:$0xff]
                %792 = vst [vmem:[%s208 + $0xb5c] sm:$0xff] %v791
                %v793 = vld [vmem:[%s207 + $0x16d0] sm:$0xff]
                %794 = vst [vmem:[%s208 + $0xb68] sm:$0xff] %v793
                %v795 = vld [vmem:[%s207 + $0x16d8] sm:$0xff]
                %796 = vst [vmem:[%s208 + $0xb70] sm:$0xff] %v795
                %v797 = vld [vmem:[%s207 + $0x16f8] sm:$0xff]
                %798 = vst [vmem:[%s208 + $0xb7c] sm:$0xff] %v797
                %v799 = vld [vmem:[%s207 + $0x1700] sm:$0xff]
                %800 = vst [vmem:[%s208 + $0xb84] sm:$0xff] %v799
                %v801 = vld [vmem:[%s207 + $0x1720] sm:$0xff]
                %802 = vst [vmem:[%s208 + $0xb90] sm:$0xff] %v801
                %v803 = vld [vmem:[%s207 + $0x1728] sm:$0xff]
                %804 = vst [vmem:[%s208 + $0xb98] sm:$0xff] %v803
                %v805 = vld [vmem:[%s207 + $0x1748] sm:$0xff]
                %806 = vst [vmem:[%s208 + $0xba4] sm:$0xff] %v805
                %v807 = vld [vmem:[%s207 + $0x1750] sm:$0xff]
                %808 = vst [vmem:[%s208 + $0xbac] sm:$0xff] %v807
                %v809 = vld [vmem:[%s207 + $0x1770] sm:$0xff]
                %810 = vst [vmem:[%s208 + $0xbb8] sm:$0xff] %v809
                %v811 = vld [vmem:[%s207 + $0x1778] sm:$0xff]
                %812 = vst [vmem:[%s208 + $0xbc0] sm:$0xff] %v811
                %v813 = vld [vmem:[%s207 + $0x1798] sm:$0xff]
                %814 = vst [vmem:[%s208 + $0xbcc] sm:$0xff] %v813
                %v815 = vld [vmem:[%s207 + $0x17a0] sm:$0xff]
                %816 = vst [vmem:[%s208 + $0xbd4] sm:$0xff] %v815
                %v817 = vld [vmem:[%s207 + $0x17c0] sm:$0xff]
                %818 = vst [vmem:[%s208 + $0xbe0] sm:$0xff] %v817
                %v819 = vld [vmem:[%s207 + $0x17c8] sm:$0xff]
                %820 = vst [vmem:[%s208 + $0xbe8] sm:$0xff] %v819
                %v821 = vld [vmem:[%s207 + $0x17e8] sm:$0xff]
                %822 = vst [vmem:[%s208 + $0xbf4] sm:$0xff] %v821
                %v823 = vld [vmem:[%s207 + $0x17f0] sm:$0xff]
                %824 = vst [vmem:[%s208 + $0xbfc] sm:$0xff] %v823
                %v825 = vld [vmem:[%s207 + $0x1810] sm:$0xff]
                %826 = vst [vmem:[%s208 + $0xc08] sm:$0xff] %v825
                %v827 = vld [vmem:[%s207 + $0x1818] sm:$0xff]
                %828 = vst [vmem:[%s208 + $0xc10] sm:$0xff] %v827
                %v829 = vld [vmem:[%s207 + $0x1838] sm:$0xff]
                %830 = vst [vmem:[%s208 + $0xc1c] sm:$0xff] %v829
                %v831 = vld [vmem:[%s207 + $0x1840] sm:$0xff]
                %832 = vst [vmem:[%s208 + $0xc24] sm:$0xff] %v831
                %v833 = vld [vmem:[%s207 + $0x1860] sm:$0xff]
                %834 = vst [vmem:[%s208 + $0xc30] sm:$0xff] %v833
                %v835 = vld [vmem:[%s207 + $0x1868] sm:$0xff]
                %836 = vst [vmem:[%s208 + $0xc38] sm:$0xff] %v835
                %v837 = vld [vmem:[%s207 + $0x1888] sm:$0xff]
                %838 = vst [vmem:[%s208 + $0xc44] sm:$0xff] %v837
                %v839 = vld [vmem:[%s207 + $0x1890] sm:$0xff]
                %840 = vst [vmem:[%s208 + $0xc4c] sm:$0xff] %v839
                %v841 = vld [vmem:[%s207 + $0x18b0] sm:$0xff]
                %842 = vst [vmem:[%s208 + $0xc58] sm:$0xff] %v841
                %v843 = vld [vmem:[%s207 + $0x18b8] sm:$0xff]
                %844 = vst [vmem:[%s208 + $0xc60] sm:$0xff] %v843
                %v845 = vld [vmem:[%s207 + $0x18d8] sm:$0xff]
                %846 = vst [vmem:[%s208 + $0xc6c] sm:$0xff] %v845
                %v847 = vld [vmem:[%s207 + $0x18e0] sm:$0xff]
                %848 = vst [vmem:[%s208 + $0xc74] sm:$0xff] %v847
                %v849 = vld [vmem:[%s207 + $0x1900] sm:$0xff]
                %850 = vst [vmem:[%s208 + $0xc80] sm:$0xff] %v849
                %v851 = vld [vmem:[%s207 + $0x1908] sm:$0xff]
                %852 = vst [vmem:[%s208 + $0xc88] sm:$0xff] %v851
                %v853 = vld [vmem:[%s207 + $0x1928] sm:$0xff]
                %854 = vst [vmem:[%s208 + $0xc94] sm:$0xff] %v853
                %v855 = vld [vmem:[%s207 + $0x1930] sm:$0xff]
                %856 = vst [vmem:[%s208 + $0xc9c] sm:$0xff] %v855
                %v857 = vld [vmem:[%s207 + $0x1950] sm:$0xff]
                %858 = vst [vmem:[%s208 + $0xca8] sm:$0xff] %v857
                %v859 = vld [vmem:[%s207 + $0x1958] sm:$0xff]
                %860 = vst [vmem:[%s208 + $0xcb0] sm:$0xff] %v859
                %v861 = vld [vmem:[%s207 + $0x1978] sm:$0xff]
                %862 = vst [vmem:[%s208 + $0xcbc] sm:$0xff] %v861
                %v863 = vld [vmem:[%s207 + $0x1980] sm:$0xff]
                %864 = vst [vmem:[%s208 + $0xcc4] sm:$0xff] %v863
                %v865 = vld [vmem:[%s207 + $0x19a0] sm:$0xff]
                %866 = vst [vmem:[%s208 + $0xcd0] sm:$0xff] %v865
                %v867 = vld [vmem:[%s207 + $0x19a8] sm:$0xff]
                %868 = vst [vmem:[%s208 + $0xcd8] sm:$0xff] %v867
                %v869 = vld [vmem:[%s207 + $0x19c8] sm:$0xff]
                %870 = vst [vmem:[%s208 + $0xce4] sm:$0xff] %v869
                %v871 = vld [vmem:[%s207 + $0x19d0] sm:$0xff]
                %872 = vst [vmem:[%s208 + $0xcec] sm:$0xff] %v871
                %v873 = vld [vmem:[%s207 + $0x19f0] sm:$0xff]
                %874 = vst [vmem:[%s208 + $0xcf8] sm:$0xff] %v873
                %v875 = vld [vmem:[%s207 + $0x19f8] sm:$0xff]
                %876 = vst [vmem:[%s208 + $0xd00] sm:$0xff] %v875
                %v877 = vld [vmem:[%s207 + $0x1a18] sm:$0xff]
                %878 = vst [vmem:[%s208 + $0xd0c] sm:$0xff] %v877
                %v879 = vld [vmem:[%s207 + $0x1a20] sm:$0xff]
                %880 = vst [vmem:[%s208 + $0xd14] sm:$0xff] %v879
                %v881 = vld [vmem:[%s207 + $0x1a40] sm:$0xff]
                %882 = vst [vmem:[%s208 + $0xd20] sm:$0xff] %v881
                %v883 = vld [vmem:[%s207 + $0x1a48] sm:$0xff]
                %884 = vst [vmem:[%s208 + $0xd28] sm:$0xff] %v883
                %v885 = vld [vmem:[%s207 + $0x1a68] sm:$0xff]
                %886 = vst [vmem:[%s208 + $0xd34] sm:$0xff] %v885
                %v887 = vld [vmem:[%s207 + $0x1a70] sm:$0xff]
                %888 = vst [vmem:[%s208 + $0xd3c] sm:$0xff] %v887
                %v889 = vld [vmem:[%s207 + $0x1a90] sm:$0xff]
                %890 = vst [vmem:[%s208 + $0xd48] sm:$0xff] %v889
                %v891 = vld [vmem:[%s207 + $0x1a98] sm:$0xff]
                %892 = vst [vmem:[%s208 + $0xd50] sm:$0xff] %v891
                %v893 = vld [vmem:[%s207 + $0x1ab8] sm:$0xff]
                %894 = vst [vmem:[%s208 + $0xd5c] sm:$0xff] %v893
                %v895 = vld [vmem:[%s207 + $0x1ac0] sm:$0xff]
                %896 = vst [vmem:[%s208 + $0xd64] sm:$0xff] %v895
                %v897 = vld [vmem:[%s207 + $0x1ae0] sm:$0xff]
                %898 = vst [vmem:[%s208 + $0xd70] sm:$0xff] %v897
                %v899 = vld [vmem:[%s207 + $0x1ae8] sm:$0xff]
                %900 = vst [vmem:[%s208 + $0xd78] sm:$0xff] %v899
                %v901 = vld [vmem:[%s207 + $0x1b08] sm:$0xff]
                %902 = vst [vmem:[%s208 + $0xd84] sm:$0xff] %v901
                %v903 = vld [vmem:[%s207 + $0x1b10] sm:$0xff]
                %904 = vst [vmem:[%s208 + $0xd8c] sm:$0xff] %v903
                %v905 = vld [vmem:[%s207 + $0x1b30] sm:$0xff]
                %906 = vst [vmem:[%s208 + $0xd98] sm:$0xff] %v905
                %v907 = vld [vmem:[%s207 + $0x1b38] sm:$0xff]
                %908 = vst [vmem:[%s208 + $0xda0] sm:$0xff] %v907
                %v909 = vld [vmem:[%s207 + $0x1b58] sm:$0xff]
                %910 = vst [vmem:[%s208 + $0xdac] sm:$0xff] %v909
                %v911 = vld [vmem:[%s207 + $0x1b60] sm:$0xff]
                %912 = vst [vmem:[%s208 + $0xdb4] sm:$0xff] %v911
                %v913 = vld [vmem:[%s207 + $0x1b80] sm:$0xff]
                %914 = vst [vmem:[%s208 + $0xdc0] sm:$0xff] %v913
                %v915 = vld [vmem:[%s207 + $0x1b88] sm:$0xff]
                %916 = vst [vmem:[%s208 + $0xdc8] sm:$0xff] %v915
                %v917 = vld [vmem:[%s207 + $0x1ba8] sm:$0xff]
                %918 = vst [vmem:[%s208 + $0xdd4] sm:$0xff] %v917
                %v919 = vld [vmem:[%s207 + $0x1bb0] sm:$0xff]
                %920 = vst [vmem:[%s208 + $0xddc] sm:$0xff] %v919
                %v921 = vld [vmem:[%s207 + $0x1bd0] sm:$0xff]
                %922 = vst [vmem:[%s208 + $0xde8] sm:$0xff] %v921
                %v923 = vld [vmem:[%s207 + $0x1bd8] sm:$0xff]
                %924 = vst [vmem:[%s208 + $0xdf0] sm:$0xff] %v923
                %v925 = vld [vmem:[%s207 + $0x1bf8] sm:$0xff]
                %926 = vst [vmem:[%s208 + $0xdfc] sm:$0xff] %v925
                %v927 = vld [vmem:[%s207 + $0x1c00] sm:$0xff]
                %928 = vst [vmem:[%s208 + $0xe04] sm:$0xff] %v927
                %v929 = vld [vmem:[%s207 + $0x1c20] sm:$0xff]
                %930 = vst [vmem:[%s208 + $0xe10] sm:$0xff] %v929
                %v931 = vld [vmem:[%s207 + $0x1c28] sm:$0xff]
                %932 = vst [vmem:[%s208 + $0xe18] sm:$0xff] %v931
                %v933 = vld [vmem:[%s207 + $0x1c48] sm:$0xff]
                %934 = vst [vmem:[%s208 + $0xe24] sm:$0xff] %v933
                %v935 = vld [vmem:[%s207 + $0x1c50] sm:$0xff]
                %936 = vst [vmem:[%s208 + $0xe2c] sm:$0xff] %v935
                %v937 = vld [vmem:[%s207 + $0x1c70] sm:$0xff]
                %938 = vst [vmem:[%s208 + $0xe38] sm:$0xff] %v937
                %v939 = vld [vmem:[%s207 + $0x1c78] sm:$0xff]
                %940 = vst [vmem:[%s208 + $0xe40] sm:$0xff] %v939
                %v941 = vld [vmem:[%s207 + $0x1c98] sm:$0xff]
                %942 = vst [vmem:[%s208 + $0xe4c] sm:$0xff] %v941
                %v943 = vld [vmem:[%s207 + $0x1ca0] sm:$0xff]
                %944 = vst [vmem:[%s208 + $0xe54] sm:$0xff] %v943
                %v945 = vld [vmem:[%s207 + $0x1cc0] sm:$0xff]
                %946 = vst [vmem:[%s208 + $0xe60] sm:$0xff] %v945
                %v947 = vld [vmem:[%s207 + $0x1cc8] sm:$0xff]
                %948 = vst [vmem:[%s208 + $0xe68] sm:$0xff] %v947
                %v949 = vld [vmem:[%s207 + $0x1ce8] sm:$0xff]
                %950 = vst [vmem:[%s208 + $0xe74] sm:$0xff] %v949
                %v951 = vld [vmem:[%s207 + $0x1cf0] sm:$0xff]
                %952 = vst [vmem:[%s208 + $0xe7c] sm:$0xff] %v951
                %v953 = vld [vmem:[%s207 + $0x1d10] sm:$0xff]
                %954 = vst [vmem:[%s208 + $0xe88] sm:$0xff] %v953
                %v955 = vld [vmem:[%s207 + $0x1d18] sm:$0xff]
                %956 = vst [vmem:[%s208 + $0xe90] sm:$0xff] %v955
                %v957 = vld [vmem:[%s207 + $0x1d38] sm:$0xff]
                %958 = vst [vmem:[%s208 + $0xe9c] sm:$0xff] %v957
                %v959 = vld [vmem:[%s207 + $0x1d40] sm:$0xff]
                %960 = vst [vmem:[%s208 + $0xea4] sm:$0xff] %v959
                %v961 = vld [vmem:[%s207 + $0x1d60] sm:$0xff]
                %962 = vst [vmem:[%s208 + $0xeb0] sm:$0xff] %v961
                %v963 = vld [vmem:[%s207 + $0x1d68] sm:$0xff]
                %964 = vst [vmem:[%s208 + $0xeb8] sm:$0xff] %v963
                %v965 = vld [vmem:[%s207 + $0x1d88] sm:$0xff]
                %966 = vst [vmem:[%s208 + $0xec4] sm:$0xff] %v965
                %v967 = vld [vmem:[%s207 + $0x1d90] sm:$0xff]
                %968 = vst [vmem:[%s208 + $0xecc] sm:$0xff] %v967
                %v969 = vld [vmem:[%s207 + $0x1db0] sm:$0xff]
                %970 = vst [vmem:[%s208 + $0xed8] sm:$0xff] %v969
                %v971 = vld [vmem:[%s207 + $0x1db8] sm:$0xff]
                %972 = vst [vmem:[%s208 + $0xee0] sm:$0xff] %v971
                %v973 = vld [vmem:[%s207 + $0x1dd8] sm:$0xff]
                %974 = vst [vmem:[%s208 + $0xeec] sm:$0xff] %v973
                %v975 = vld [vmem:[%s207 + $0x1de0] sm:$0xff]
                %976 = vst [vmem:[%s208 + $0xef4] sm:$0xff] %v975
                %v977 = vld [vmem:[%s207 + $0x1e00] sm:$0xff]
                %978 = vst [vmem:[%s208 + $0xf00] sm:$0xff] %v977
                %v979 = vld [vmem:[%s207 + $0x1e08] sm:$0xff]
                %980 = vst [vmem:[%s208 + $0xf08] sm:$0xff] %v979
                %v981 = vld [vmem:[%s207 + $0x1e28] sm:$0xff]
                %982 = vst [vmem:[%s208 + $0xf14] sm:$0xff] %v981
                %v983 = vld [vmem:[%s207 + $0x1e30] sm:$0xff]
                %984 = vst [vmem:[%s208 + $0xf1c] sm:$0xff] %v983
                %v985 = vld [vmem:[%s207 + $0x1e50] sm:$0xff]
                %986 = vst [vmem:[%s208 + $0xf28] sm:$0xff] %v985
                %v987 = vld [vmem:[%s207 + $0x1e58] sm:$0xff]
                %988 = vst [vmem:[%s208 + $0xf30] sm:$0xff] %v987
                %v989 = vld [vmem:[%s207 + $0x1e78] sm:$0xff]
                %990 = vst [vmem:[%s208 + $0xf3c] sm:$0xff] %v989
                %v991 = vld [vmem:[%s207 + $0x1e80] sm:$0xff]
                %992 = vst [vmem:[%s208 + $0xf44] sm:$0xff] %v991
                %v993 = vld [vmem:[%s207 + $0x1ea0] sm:$0xff]
                %994 = vst [vmem:[%s208 + $0xf50] sm:$0xff] %v993
                %v995 = vld [vmem:[%s207 + $0x1ea8] sm:$0xff]
                %996 = vst [vmem:[%s208 + $0xf58] sm:$0xff] %v995
                %v997 = vld [vmem:[%s207 + $0x1ec8] sm:$0xff]
                %998 = vst [vmem:[%s208 + $0xf64] sm:$0xff] %v997
                %v999 = vld [vmem:[%s207 + $0x1ed0] sm:$0xff]
                %1000 = vst [vmem:[%s208 + $0xf6c] sm:$0xff] %v999
                %v1001 = vld [vmem:[%s207 + $0x1ef0] sm:$0xff]
                %1002 = vst [vmem:[%s208 + $0xf78] sm:$0xff] %v1001
                %v1003 = vld [vmem:[%s207 + $0x1ef8] sm:$0xff]
                %1004 = vst [vmem:[%s208 + $0xf80] sm:$0xff] %v1003
                %v1005 = vld [vmem:[%s207 + $0x1f18] sm:$0xff]
                %1006 = vst [vmem:[%s208 + $0xf8c] sm:$0xff] %v1005
                %v1007 = vld [vmem:[%s207 + $0x1f20] sm:$0xff]
                %1008 = vst [vmem:[%s208 + $0xf94] sm:$0xff] %v1007
                %v1009 = vld [vmem:[%s207 + $0x1f40] sm:$0xff]
                %1010 = vst [vmem:[%s208 + $0xfa0] sm:$0xff] %v1009
                %v1011 = vld [vmem:[%s207 + $0x1f48] sm:$0xff]
                %1012 = vst [vmem:[%s208 + $0xfa8] sm:$0xff] %v1011
                %v1013 = vld [vmem:[%s207 + $0x1f68] sm:$0xff]
                %1014 = vst [vmem:[%s208 + $0xfb4] sm:$0xff] %v1013
                %v1015 = vld [vmem:[%s207 + $0x1f70] sm:$0xff]
                %1016 = vst [vmem:[%s208 + $0xfbc] sm:$0xff] %v1015
                %v1017 = vld [vmem:[%s207 + $0x1f90] sm:$0xff]
                %1018 = vst [vmem:[%s208 + $0xfc8] sm:$0xff] %v1017
                %v1019 = vld [vmem:[%s207 + $0x1f98] sm:$0xff]
                %1020 = vst [vmem:[%s208 + $0xfd0] sm:$0xff] %v1019
                %v1021 = vld [vmem:[%s207 + $0x1fb8] sm:$0xff]
                %1022 = vst [vmem:[%s208 + $0xfdc] sm:$0xff] %v1021
                %v1023 = vld [vmem:[%s207 + $0x1fc0] sm:$0xff]
                %1024 = vst [vmem:[%s208 + $0xfe4] sm:$0xff] %v1023
                %v1025 = vld [vmem:[%s207 + $0x1fe0] sm:$0xff]
                %1026 = vst [vmem:[%s208 + $0xff0] sm:$0xff] %v1025
                %v1027 = vld [vmem:[%s207 + $0x1fe8] sm:$0xff]
                %1028 = vst [vmem:[%s208 + $0xff8] sm:$0xff] %v1027
                %v1029 = vld [vmem:[%s207 + $0x2008] sm:$0xff]
                %1030 = vst [vmem:[%s208 + $0x1004] sm:$0xff] %v1029
                %v1031 = vld [vmem:[%s207 + $0x2010] sm:$0xff]
                %1032 = vst [vmem:[%s208 + $0x100c] sm:$0xff] %v1031
                %v1033 = vld [vmem:[%s207 + $0x2030] sm:$0xff]
                %1034 = vst [vmem:[%s208 + $0x1018] sm:$0xff] %v1033
                %v1035 = vld [vmem:[%s207 + $0x2038] sm:$0xff]
                %1036 = vst [vmem:[%s208 + $0x1020] sm:$0xff] %v1035
                %v1037 = vld [vmem:[%s207 + $0x2058] sm:$0xff]
                %1038 = vst [vmem:[%s208 + $0x102c] sm:$0xff] %v1037
                %v1039 = vld [vmem:[%s207 + $0x2060] sm:$0xff]
                %1040 = vst [vmem:[%s208 + $0x1034] sm:$0xff] %v1039
                %v1041 = vld [vmem:[%s207 + $0x2080] sm:$0xff]
                %1042 = vst [vmem:[%s208 + $0x1040] sm:$0xff] %v1041
                %v1043 = vld [vmem:[%s207 + $0x2088] sm:$0xff]
                %1044 = vst [vmem:[%s208 + $0x1048] sm:$0xff] %v1043
                %v1045 = vld [vmem:[%s207 + $0x20a8] sm:$0xff]
                %1046 = vst [vmem:[%s208 + $0x1054] sm:$0xff] %v1045
                %v1047 = vld [vmem:[%s207 + $0x20b0] sm:$0xff]
                %1048 = vst [vmem:[%s208 + $0x105c] sm:$0xff] %v1047
                %v1049 = vld [vmem:[%s207 + $0x20d0] sm:$0xff]
                %1050 = vst [vmem:[%s208 + $0x1068] sm:$0xff] %v1049
                %v1051 = vld [vmem:[%s207 + $0x20d8] sm:$0xff]
                %1052 = vst [vmem:[%s208 + $0x1070] sm:$0xff] %v1051
                %v1053 = vld [vmem:[%s207 + $0x20f8] sm:$0xff]
                %1054 = vst [vmem:[%s208 + $0x107c] sm:$0xff] %v1053
                %v1055 = vld [vmem:[%s207 + $0x2100] sm:$0xff]
                %1056 = vst [vmem:[%s208 + $0x1084] sm:$0xff] %v1055
                %v1057 = vld [vmem:[%s207 + $0x2120] sm:$0xff]
                %1058 = vst [vmem:[%s208 + $0x1090] sm:$0xff] %v1057
                %v1059 = vld [vmem:[%s207 + $0x2128] sm:$0xff]
                %1060 = vst [vmem:[%s208 + $0x1098] sm:$0xff] %v1059
                %v1061 = vld [vmem:[%s207 + $0x2148] sm:$0xff]
                %1062 = vst [vmem:[%s208 + $0x10a4] sm:$0xff] %v1061
                %v1063 = vld [vmem:[%s207 + $0x2150] sm:$0xff]
                %1064 = vst [vmem:[%s208 + $0x10ac] sm:$0xff] %v1063
                %v1065 = vld [vmem:[%s207 + $0x2170] sm:$0xff]
                %1066 = vst [vmem:[%s208 + $0x10b8] sm:$0xff] %v1065
                %v1067 = vld [vmem:[%s207 + $0x2178] sm:$0xff]
                %1068 = vst [vmem:[%s208 + $0x10c0] sm:$0xff] %v1067
                %v1069 = vld [vmem:[%s207 + $0x2198] sm:$0xff]
                %1070 = vst [vmem:[%s208 + $0x10cc] sm:$0xff] %v1069
                %v1071 = vld [vmem:[%s207 + $0x21a0] sm:$0xff]
                %1072 = vst [vmem:[%s208 + $0x10d4] sm:$0xff] %v1071
                %v1073 = vld [vmem:[%s207 + $0x21c0] sm:$0xff]
                %1074 = vst [vmem:[%s208 + $0x10e0] sm:$0xff] %v1073
                %v1075 = vld [vmem:[%s207 + $0x21c8] sm:$0xff]
                %1076 = vst [vmem:[%s208 + $0x10e8] sm:$0xff] %v1075
                %v1077 = vld [vmem:[%s207 + $0x21e8] sm:$0xff]
                %1078 = vst [vmem:[%s208 + $0x10f4] sm:$0xff] %v1077
                %v1079 = vld [vmem:[%s207 + $0x21f0] sm:$0xff]
                %1080 = vst [vmem:[%s208 + $0x10fc] sm:$0xff] %v1079
                %v1081 = vld [vmem:[%s207 + $0x2210] sm:$0xff]
                %1082 = vst [vmem:[%s208 + $0x1108] sm:$0xff] %v1081
                %v1083 = vld [vmem:[%s207 + $0x2218] sm:$0xff]
                %1084 = vst [vmem:[%s208 + $0x1110] sm:$0xff] %v1083
                %v1085 = vld [vmem:[%s207 + $0x2238] sm:$0xff]
                %1086 = vst [vmem:[%s208 + $0x111c] sm:$0xff] %v1085
                %v1087 = vld [vmem:[%s207 + $0x2240] sm:$0xff]
                %1088 = vst [vmem:[%s208 + $0x1124] sm:$0xff] %v1087
                %v1089 = vld [vmem:[%s207 + $0x2260] sm:$0xff]
                %1090 = vst [vmem:[%s208 + $0x1130] sm:$0xff] %v1089
                %v1091 = vld [vmem:[%s207 + $0x2268] sm:$0xff]
                %1092 = vst [vmem:[%s208 + $0x1138] sm:$0xff] %v1091
                %v1093 = vld [vmem:[%s207 + $0x2288] sm:$0xff]
                %1094 = vst [vmem:[%s208 + $0x1144] sm:$0xff] %v1093
                %v1095 = vld [vmem:[%s207 + $0x2290] sm:$0xff]
                %1096 = vst [vmem:[%s208 + $0x114c] sm:$0xff] %v1095
                %v1097 = vld [vmem:[%s207 + $0x22b0] sm:$0xff]
                %1098 = vst [vmem:[%s208 + $0x1158] sm:$0xff] %v1097
                %v1099 = vld [vmem:[%s207 + $0x22b8] sm:$0xff]
                %1100 = vst [vmem:[%s208 + $0x1160] sm:$0xff] %v1099
                %v1101 = vld [vmem:[%s207 + $0x22d8] sm:$0xff]
                %1102 = vst [vmem:[%s208 + $0x116c] sm:$0xff] %v1101
                %v1103 = vld [vmem:[%s207 + $0x22e0] sm:$0xff]
                %1104 = vst [vmem:[%s208 + $0x1174] sm:$0xff] %v1103
                %v1105 = vld [vmem:[%s207 + $0x2300] sm:$0xff]
                %1106 = vst [vmem:[%s208 + $0x1180] sm:$0xff] %v1105
                %v1107 = vld [vmem:[%s207 + $0x2308] sm:$0xff]
                %1108 = vst [vmem:[%s208 + $0x1188] sm:$0xff] %v1107
                %v1109 = vld [vmem:[%s207 + $0x2328] sm:$0xff]
                %1110 = vst [vmem:[%s208 + $0x1194] sm:$0xff] %v1109
                %v1111 = vld [vmem:[%s207 + $0x2330] sm:$0xff]
                %1112 = vst [vmem:[%s208 + $0x119c] sm:$0xff] %v1111
                %v1113 = vld [vmem:[%s207 + $0x2350] sm:$0xff]
                %1114 = vst [vmem:[%s208 + $0x11a8] sm:$0xff] %v1113
                %v1115 = vld [vmem:[%s207 + $0x2358] sm:$0xff]
                %1116 = vst [vmem:[%s208 + $0x11b0] sm:$0xff] %v1115
                %v1117 = vld [vmem:[%s207 + $0x2378] sm:$0xff]
                %1118 = vst [vmem:[%s208 + $0x11bc] sm:$0xff] %v1117
                %v1119 = vld [vmem:[%s207 + $0x2380] sm:$0xff]
                %1120 = vst [vmem:[%s208 + $0x11c4] sm:$0xff] %v1119
                %v1121 = vld [vmem:[%s207 + $0x23a0] sm:$0xff]
                %1122 = vst [vmem:[%s208 + $0x11d0] sm:$0xff] %v1121
                %v1123 = vld [vmem:[%s207 + $0x23a8] sm:$0xff]
                %1124 = vst [vmem:[%s208 + $0x11d8] sm:$0xff] %v1123
                %v1125 = vld [vmem:[%s207 + $0x23c8] sm:$0xff]
                %1126 = vst [vmem:[%s208 + $0x11e4] sm:$0xff] %v1125
                %v1127 = vld [vmem:[%s207 + $0x23d0] sm:$0xff]
                %1128 = vst [vmem:[%s208 + $0x11ec] sm:$0xff] %v1127
                %v1129 = vld [vmem:[%s207 + $0x23f0] sm:$0xff]
                %1130 = vst [vmem:[%s208 + $0x11f8] sm:$0xff] %v1129
                %v1131 = vld [vmem:[%s207 + $0x23f8] sm:$0xff]
                %1132 = vst [vmem:[%s208 + $0x1200] sm:$0xff] %v1131
                %v1133 = vld [vmem:[%s207 + $0x2418] sm:$0xff]
                %1134 = vst [vmem:[%s208 + $0x120c] sm:$0xff] %v1133
                %v1135 = vld [vmem:[%s207 + $0x2420] sm:$0xff]
                %1136 = vst [vmem:[%s208 + $0x1214] sm:$0xff] %v1135
                %v1137 = vld [vmem:[%s207 + $0x2440] sm:$0xff]
                %1138 = vst [vmem:[%s208 + $0x1220] sm:$0xff] %v1137
                %v1139 = vld [vmem:[%s207 + $0x2448] sm:$0xff]
                %1140 = vst [vmem:[%s208 + $0x1228] sm:$0xff] %v1139
                %v1141 = vld [vmem:[%s207 + $0x2468] sm:$0xff]
                %1142 = vst [vmem:[%s208 + $0x1234] sm:$0xff] %v1141
                %v1143 = vld [vmem:[%s207 + $0x2470] sm:$0xff]
                %1144 = vst [vmem:[%s208 + $0x123c] sm:$0xff] %v1143
                %v1145 = vld [vmem:[%s207 + $0x2490] sm:$0xff]
                %1146 = vst [vmem:[%s208 + $0x1248] sm:$0xff] %v1145
                %v1147 = vld [vmem:[%s207 + $0x2498] sm:$0xff]
                %1148 = vst [vmem:[%s208 + $0x1250] sm:$0xff] %v1147
                %v1149 = vld [vmem:[%s207 + $0x24b8] sm:$0xff]
                %1150 = vst [vmem:[%s208 + $0x125c] sm:$0xff] %v1149
                %v1151 = vld [vmem:[%s207 + $0x24c0] sm:$0xff]
                %1152 = vst [vmem:[%s208 + $0x1264] sm:$0xff] %v1151
                %v1153 = vld [vmem:[%s207 + $0x24e0] sm:$0xff]
                %1154 = vst [vmem:[%s208 + $0x1270] sm:$0xff] %v1153
                %v1155 = vld [vmem:[%s207 + $0x24e8] sm:$0xff]
                %1156 = vst [vmem:[%s208 + $0x1278] sm:$0xff] %v1155
                %v1157 = vld [vmem:[%s207 + $0x2508] sm:$0xff]
                %1158 = vst [vmem:[%s208 + $0x1284] sm:$0xff] %v1157
                %v1159 = vld [vmem:[%s207 + $0x2510] sm:$0xff]
                %1160 = vst [vmem:[%s208 + $0x128c] sm:$0xff] %v1159
                %v1161 = vld [vmem:[%s207 + $0x2530] sm:$0xff]
                %1162 = vst [vmem:[%s208 + $0x1298] sm:$0xff] %v1161
                %v1163 = vld [vmem:[%s207 + $0x2538] sm:$0xff]
                %1164 = vst [vmem:[%s208 + $0x12a0] sm:$0xff] %v1163
                %v1165 = vld [vmem:[%s207 + $0x2558] sm:$0xff]
                %1166 = vst [vmem:[%s208 + $0x12ac] sm:$0xff] %v1165
                %v1167 = vld [vmem:[%s207 + $0x2560] sm:$0xff]
                %1168 = vst [vmem:[%s208 + $0x12b4] sm:$0xff] %v1167
                %v1169 = vld [vmem:[%s207 + $0x2580] sm:$0xff]
                %1170 = vst [vmem:[%s208 + $0x12c0] sm:$0xff] %v1169
                %v1171 = vld [vmem:[%s207 + $0x2588] sm:$0xff]
                %1172 = vst [vmem:[%s208 + $0x12c8] sm:$0xff] %v1171
                %v1173 = vld [vmem:[%s207 + $0x25a8] sm:$0xff]
                %1174 = vst [vmem:[%s208 + $0x12d4] sm:$0xff] %v1173
                %v1175 = vld [vmem:[%s207 + $0x25b0] sm:$0xff]
                %1176 = vst [vmem:[%s208 + $0x12dc] sm:$0xff] %v1175
                %v1177 = vld [vmem:[%s207 + $0x25d0] sm:$0xff]
                %1178 = vst [vmem:[%s208 + $0x12e8] sm:$0xff] %v1177
                %v1179 = vld [vmem:[%s207 + $0x25d8] sm:$0xff]
                %1180 = vst [vmem:[%s208 + $0x12f0] sm:$0xff] %v1179
                %v1181 = vld [vmem:[%s207 + $0x25f8] sm:$0xff]
                %1182 = vst [vmem:[%s208 + $0x12fc] sm:$0xff] %v1181
                %v1183 = vld [vmem:[%s207 + $0x2600] sm:$0xff]
                %1184 = vst [vmem:[%s208 + $0x1304] sm:$0xff] %v1183
                %v1185 = vld [vmem:[%s207 + $0x2620] sm:$0xff]
                %1186 = vst [vmem:[%s208 + $0x1310] sm:$0xff] %v1185
                %v1187 = vld [vmem:[%s207 + $0x2628] sm:$0xff]
                %1188 = vst [vmem:[%s208 + $0x1318] sm:$0xff] %v1187
                %v1189 = vld [vmem:[%s207 + $0x2648] sm:$0xff]
                %1190 = vst [vmem:[%s208 + $0x1324] sm:$0xff] %v1189
                %v1191 = vld [vmem:[%s207 + $0x2650] sm:$0xff]
                %1192 = vst [vmem:[%s208 + $0x132c] sm:$0xff] %v1191
                %v1193 = vld [vmem:[%s207 + $0x2670] sm:$0xff]
                %1194 = vst [vmem:[%s208 + $0x1338] sm:$0xff] %v1193
                %v1195 = vld [vmem:[%s207 + $0x2678] sm:$0xff]
                %1196 = vst [vmem:[%s208 + $0x1340] sm:$0xff] %v1195
                %v1197 = vld [vmem:[%s207 + $0x2698] sm:$0xff]
                %1198 = vst [vmem:[%s208 + $0x134c] sm:$0xff] %v1197
                %v1199 = vld [vmem:[%s207 + $0x26a0] sm:$0xff]
                %1200 = vst [vmem:[%s208 + $0x1354] sm:$0xff] %v1199
                %v1201 = vld [vmem:[%s207 + $0x26c0] sm:$0xff]
                %1202 = vst [vmem:[%s208 + $0x1360] sm:$0xff] %v1201
                %v1203 = vld [vmem:[%s207 + $0x26c8] sm:$0xff]
                %1204 = vst [vmem:[%s208 + $0x1368] sm:$0xff] %v1203
                %v1205 = vld [vmem:[%s207 + $0x26e8] sm:$0xff]
                %1206 = vst [vmem:[%s208 + $0x1374] sm:$0xff] %v1205
                %v1207 = vld [vmem:[%s207 + $0x26f0] sm:$0xff]
                %1208 = vst [vmem:[%s208 + $0x137c] sm:$0xff] %v1207
                %v1209 = vld [vmem:[%s207 + $0x2710] sm:$0xff]
                %1210 = vst [vmem:[%s208 + $0x1388] sm:$0xff] %v1209
                %v1211 = vld [vmem:[%s207 + $0x2718] sm:$0xff]
                %1212 = vst [vmem:[%s208 + $0x1390] sm:$0xff] %v1211
                %v1213 = vld [vmem:[%s207 + $0x2738] sm:$0xff]
                %1214 = vst [vmem:[%s208 + $0x139c] sm:$0xff] %v1213
                %v1215 = vld [vmem:[%s207 + $0x2740] sm:$0xff]
                %1216 = vst [vmem:[%s208 + $0x13a4] sm:$0xff] %v1215
                %v1217 = vld [vmem:[%s207 + $0x2760] sm:$0xff]
                %1218 = vst [vmem:[%s208 + $0x13b0] sm:$0xff] %v1217
                %v1219 = vld [vmem:[%s207 + $0x2768] sm:$0xff]
                %1220 = vst [vmem:[%s208 + $0x13b8] sm:$0xff] %v1219
                %v1221 = vld [vmem:[%s207 + $0x2788] sm:$0xff]
                %1222 = vst [vmem:[%s208 + $0x13c4] sm:$0xff] %v1221
                %v1223 = vld [vmem:[%s207 + $0x2790] sm:$0xff]
                %1224 = vst [vmem:[%s208 + $0x13cc] sm:$0xff] %v1223
                %v1225 = vld [vmem:[%s207 + $0x27b0] sm:$0xff]
                %1226 = vst [vmem:[%s208 + $0x13d8] sm:$0xff] %v1225
                %v1227 = vld [vmem:[%s207 + $0x27b8] sm:$0xff]
                %1228 = vst [vmem:[%s208 + $0x13e0] sm:$0xff] %v1227
                %v1229 = vld [vmem:[%s207 + $0x27d8] sm:$0xff]
                %1230 = vst [vmem:[%s208 + $0x13ec] sm:$0xff] %v1229
                %v1231 = vld [vmem:[%s207 + $0x27e0] sm:$0xff]
                %1232 = vst [vmem:[%s208 + $0x13f4] sm:$0xff] %v1231
              $region37: #{agent_forward.6} parent=31 // loop_footer
                %s206 = sadd.s32 1, %s202
              $region38: #{agent_forward.6} parent=31 // loop_footer_branch
                %201 = sbr.rel target = $region34
              $region39: #{agent_forward.6} parent=31 // loop_exit
                _
              loop: start=0, step=1, limit=1
              $region40: #{agent_forward.6} parent=31 // loop_pre_header
                _
              $region41: #{agent_forward.6} parent=31 // loop_header
                %s1235 = sphi 0, %s1239
                %p1236 = scmp.ge.s32.totalorder %s1235, 1
                %s1240 = sphi %s199, %s199
                %s1241 = sphi %s200, %s200
              $region42: #{agent_forward.6} parent=31 // loop_header_branch
                %1238 = sbr.rel (%p1236) target = $region46
              $region43: #{agent_forward.6} parent=31 // loop_body
                %v1242 = vld [vmem:[%s1240] sm:$0xf]
                %1243 = vst [vmem:[%s1241] sm:$0xf] %v1242
                %v1244 = vld [vmem:[%s1240 + $0x28] sm:$0xf]
                %1245 = vst [vmem:[%s1241 + $0x14] sm:$0xf] %v1244
                %v1246 = vld [vmem:[%s1240 + $0x50] sm:$0xf]
                %1247 = vst [vmem:[%s1241 + $0x28] sm:$0xf] %v1246
                %v1248 = vld [vmem:[%s1240 + $0x78] sm:$0xf]
                %1249 = vst [vmem:[%s1241 + $0x3c] sm:$0xf] %v1248
                %v1250 = vld [vmem:[%s1240 + $0xa0] sm:$0xf]
                %1251 = vst [vmem:[%s1241 + $0x50] sm:$0xf] %v1250
                %v1252 = vld [vmem:[%s1240 + $0xc8] sm:$0xf]
                %1253 = vst [vmem:[%s1241 + $0x64] sm:$0xf] %v1252
                %v1254 = vld [vmem:[%s1240 + $0xf0] sm:$0xf]
                %1255 = vst [vmem:[%s1241 + $0x78] sm:$0xf] %v1254
                %v1256 = vld [vmem:[%s1240 + $0x118] sm:$0xf]
                %1257 = vst [vmem:[%s1241 + $0x8c] sm:$0xf] %v1256
                %v1258 = vld [vmem:[%s1240 + $0x140] sm:$0xf]
                %1259 = vst [vmem:[%s1241 + $0xa0] sm:$0xf] %v1258
                %v1260 = vld [vmem:[%s1240 + $0x168] sm:$0xf]
                %1261 = vst [vmem:[%s1241 + $0xb4] sm:$0xf] %v1260
                %v1262 = vld [vmem:[%s1240 + $0x190] sm:$0xf]
                %1263 = vst [vmem:[%s1241 + $0xc8] sm:$0xf] %v1262
                %v1264 = vld [vmem:[%s1240 + $0x1b8] sm:$0xf]
                %1265 = vst [vmem:[%s1241 + $0xdc] sm:$0xf] %v1264
                %v1266 = vld [vmem:[%s1240 + $0x1e0] sm:$0xf]
                %1267 = vst [vmem:[%s1241 + $0xf0] sm:$0xf] %v1266
                %v1268 = vld [vmem:[%s1240 + $0x208] sm:$0xf]
                %1269 = vst [vmem:[%s1241 + $0x104] sm:$0xf] %v1268
                %v1270 = vld [vmem:[%s1240 + $0x230] sm:$0xf]
                %1271 = vst [vmem:[%s1241 + $0x118] sm:$0xf] %v1270
                %v1272 = vld [vmem:[%s1240 + $0x258] sm:$0xf]
                %1273 = vst [vmem:[%s1241 + $0x12c] sm:$0xf] %v1272
                %v1274 = vld [vmem:[%s1240 + $0x280] sm:$0xf]
                %1275 = vst [vmem:[%s1241 + $0x140] sm:$0xf] %v1274
                %v1276 = vld [vmem:[%s1240 + $0x2a8] sm:$0xf]
                %1277 = vst [vmem:[%s1241 + $0x154] sm:$0xf] %v1276
                %v1278 = vld [vmem:[%s1240 + $0x2d0] sm:$0xf]
                %1279 = vst [vmem:[%s1241 + $0x168] sm:$0xf] %v1278
                %v1280 = vld [vmem:[%s1240 + $0x2f8] sm:$0xf]
                %1281 = vst [vmem:[%s1241 + $0x17c] sm:$0xf] %v1280
                %v1282 = vld [vmem:[%s1240 + $0x320] sm:$0xf]
                %1283 = vst [vmem:[%s1241 + $0x190] sm:$0xf] %v1282
                %v1284 = vld [vmem:[%s1240 + $0x348] sm:$0xf]
                %1285 = vst [vmem:[%s1241 + $0x1a4] sm:$0xf] %v1284
                %v1286 = vld [vmem:[%s1240 + $0x370] sm:$0xf]
                %1287 = vst [vmem:[%s1241 + $0x1b8] sm:$0xf] %v1286
                %v1288 = vld [vmem:[%s1240 + $0x398] sm:$0xf]
                %1289 = vst [vmem:[%s1241 + $0x1cc] sm:$0xf] %v1288
                %v1290 = vld [vmem:[%s1240 + $0x3c0] sm:$0xf]
                %1291 = vst [vmem:[%s1241 + $0x1e0] sm:$0xf] %v1290
                %v1292 = vld [vmem:[%s1240 + $0x3e8] sm:$0xf]
                %1293 = vst [vmem:[%s1241 + $0x1f4] sm:$0xf] %v1292
                %v1294 = vld [vmem:[%s1240 + $0x410] sm:$0xf]
                %1295 = vst [vmem:[%s1241 + $0x208] sm:$0xf] %v1294
                %v1296 = vld [vmem:[%s1240 + $0x438] sm:$0xf]
                %1297 = vst [vmem:[%s1241 + $0x21c] sm:$0xf] %v1296
                %v1298 = vld [vmem:[%s1240 + $0x460] sm:$0xf]
                %1299 = vst [vmem:[%s1241 + $0x230] sm:$0xf] %v1298
                %v1300 = vld [vmem:[%s1240 + $0x488] sm:$0xf]
                %1301 = vst [vmem:[%s1241 + $0x244] sm:$0xf] %v1300
                %v1302 = vld [vmem:[%s1240 + $0x4b0] sm:$0xf]
                %1303 = vst [vmem:[%s1241 + $0x258] sm:$0xf] %v1302
                %v1304 = vld [vmem:[%s1240 + $0x4d8] sm:$0xf]
                %1305 = vst [vmem:[%s1241 + $0x26c] sm:$0xf] %v1304
                %v1306 = vld [vmem:[%s1240 + $0x500] sm:$0xf]
                %1307 = vst [vmem:[%s1241 + $0x280] sm:$0xf] %v1306
                %v1308 = vld [vmem:[%s1240 + $0x528] sm:$0xf]
                %1309 = vst [vmem:[%s1241 + $0x294] sm:$0xf] %v1308
                %v1310 = vld [vmem:[%s1240 + $0x550] sm:$0xf]
                %1311 = vst [vmem:[%s1241 + $0x2a8] sm:$0xf] %v1310
                %v1312 = vld [vmem:[%s1240 + $0x578] sm:$0xf]
                %1313 = vst [vmem:[%s1241 + $0x2bc] sm:$0xf] %v1312
                %v1314 = vld [vmem:[%s1240 + $0x5a0] sm:$0xf]
                %1315 = vst [vmem:[%s1241 + $0x2d0] sm:$0xf] %v1314
                %v1316 = vld [vmem:[%s1240 + $0x5c8] sm:$0xf]
                %1317 = vst [vmem:[%s1241 + $0x2e4] sm:$0xf] %v1316
                %v1318 = vld [vmem:[%s1240 + $0x5f0] sm:$0xf]
                %1319 = vst [vmem:[%s1241 + $0x2f8] sm:$0xf] %v1318
                %v1320 = vld [vmem:[%s1240 + $0x618] sm:$0xf]
                %1321 = vst [vmem:[%s1241 + $0x30c] sm:$0xf] %v1320
                %v1322 = vld [vmem:[%s1240 + $0x640] sm:$0xf]
                %1323 = vst [vmem:[%s1241 + $0x320] sm:$0xf] %v1322
                %v1324 = vld [vmem:[%s1240 + $0x668] sm:$0xf]
                %1325 = vst [vmem:[%s1241 + $0x334] sm:$0xf] %v1324
                %v1326 = vld [vmem:[%s1240 + $0x690] sm:$0xf]
                %1327 = vst [vmem:[%s1241 + $0x348] sm:$0xf] %v1326
                %v1328 = vld [vmem:[%s1240 + $0x6b8] sm:$0xf]
                %1329 = vst [vmem:[%s1241 + $0x35c] sm:$0xf] %v1328
                %v1330 = vld [vmem:[%s1240 + $0x6e0] sm:$0xf]
                %1331 = vst [vmem:[%s1241 + $0x370] sm:$0xf] %v1330
                %v1332 = vld [vmem:[%s1240 + $0x708] sm:$0xf]
                %1333 = vst [vmem:[%s1241 + $0x384] sm:$0xf] %v1332
                %v1334 = vld [vmem:[%s1240 + $0x730] sm:$0xf]
                %1335 = vst [vmem:[%s1241 + $0x398] sm:$0xf] %v1334
                %v1336 = vld [vmem:[%s1240 + $0x758] sm:$0xf]
                %1337 = vst [vmem:[%s1241 + $0x3ac] sm:$0xf] %v1336
                %v1338 = vld [vmem:[%s1240 + $0x780] sm:$0xf]
                %1339 = vst [vmem:[%s1241 + $0x3c0] sm:$0xf] %v1338
                %v1340 = vld [vmem:[%s1240 + $0x7a8] sm:$0xf]
                %1341 = vst [vmem:[%s1241 + $0x3d4] sm:$0xf] %v1340
                %v1342 = vld [vmem:[%s1240 + $0x7d0] sm:$0xf]
                %1343 = vst [vmem:[%s1241 + $0x3e8] sm:$0xf] %v1342
                %v1344 = vld [vmem:[%s1240 + $0x7f8] sm:$0xf]
                %1345 = vst [vmem:[%s1241 + $0x3fc] sm:$0xf] %v1344
                %v1346 = vld [vmem:[%s1240 + $0x820] sm:$0xf]
                %1347 = vst [vmem:[%s1241 + $0x410] sm:$0xf] %v1346
                %v1348 = vld [vmem:[%s1240 + $0x848] sm:$0xf]
                %1349 = vst [vmem:[%s1241 + $0x424] sm:$0xf] %v1348
                %v1350 = vld [vmem:[%s1240 + $0x870] sm:$0xf]
                %1351 = vst [vmem:[%s1241 + $0x438] sm:$0xf] %v1350
                %v1352 = vld [vmem:[%s1240 + $0x898] sm:$0xf]
                %1353 = vst [vmem:[%s1241 + $0x44c] sm:$0xf] %v1352
                %v1354 = vld [vmem:[%s1240 + $0x8c0] sm:$0xf]
                %1355 = vst [vmem:[%s1241 + $0x460] sm:$0xf] %v1354
                %v1356 = vld [vmem:[%s1240 + $0x8e8] sm:$0xf]
                %1357 = vst [vmem:[%s1241 + $0x474] sm:$0xf] %v1356
                %v1358 = vld [vmem:[%s1240 + $0x910] sm:$0xf]
                %1359 = vst [vmem:[%s1241 + $0x488] sm:$0xf] %v1358
                %v1360 = vld [vmem:[%s1240 + $0x938] sm:$0xf]
                %1361 = vst [vmem:[%s1241 + $0x49c] sm:$0xf] %v1360
                %v1362 = vld [vmem:[%s1240 + $0x960] sm:$0xf]
                %1363 = vst [vmem:[%s1241 + $0x4b0] sm:$0xf] %v1362
                %v1364 = vld [vmem:[%s1240 + $0x988] sm:$0xf]
                %1365 = vst [vmem:[%s1241 + $0x4c4] sm:$0xf] %v1364
                %v1366 = vld [vmem:[%s1240 + $0x9b0] sm:$0xf]
                %1367 = vst [vmem:[%s1241 + $0x4d8] sm:$0xf] %v1366
                %v1368 = vld [vmem:[%s1240 + $0x9d8] sm:$0xf]
                %1369 = vst [vmem:[%s1241 + $0x4ec] sm:$0xf] %v1368
                %v1370 = vld [vmem:[%s1240 + $0xa00] sm:$0xf]
                %1371 = vst [vmem:[%s1241 + $0x500] sm:$0xf] %v1370
                %v1372 = vld [vmem:[%s1240 + $0xa28] sm:$0xf]
                %1373 = vst [vmem:[%s1241 + $0x514] sm:$0xf] %v1372
                %v1374 = vld [vmem:[%s1240 + $0xa50] sm:$0xf]
                %1375 = vst [vmem:[%s1241 + $0x528] sm:$0xf] %v1374
                %v1376 = vld [vmem:[%s1240 + $0xa78] sm:$0xf]
                %1377 = vst [vmem:[%s1241 + $0x53c] sm:$0xf] %v1376
                %v1378 = vld [vmem:[%s1240 + $0xaa0] sm:$0xf]
                %1379 = vst [vmem:[%s1241 + $0x550] sm:$0xf] %v1378
                %v1380 = vld [vmem:[%s1240 + $0xac8] sm:$0xf]
                %1381 = vst [vmem:[%s1241 + $0x564] sm:$0xf] %v1380
                %v1382 = vld [vmem:[%s1240 + $0xaf0] sm:$0xf]
                %1383 = vst [vmem:[%s1241 + $0x578] sm:$0xf] %v1382
                %v1384 = vld [vmem:[%s1240 + $0xb18] sm:$0xf]
                %1385 = vst [vmem:[%s1241 + $0x58c] sm:$0xf] %v1384
                %v1386 = vld [vmem:[%s1240 + $0xb40] sm:$0xf]
                %1387 = vst [vmem:[%s1241 + $0x5a0] sm:$0xf] %v1386
                %v1388 = vld [vmem:[%s1240 + $0xb68] sm:$0xf]
                %1389 = vst [vmem:[%s1241 + $0x5b4] sm:$0xf] %v1388
                %v1390 = vld [vmem:[%s1240 + $0xb90] sm:$0xf]
                %1391 = vst [vmem:[%s1241 + $0x5c8] sm:$0xf] %v1390
                %v1392 = vld [vmem:[%s1240 + $0xbb8] sm:$0xf]
                %1393 = vst [vmem:[%s1241 + $0x5dc] sm:$0xf] %v1392
                %v1394 = vld [vmem:[%s1240 + $0xbe0] sm:$0xf]
                %1395 = vst [vmem:[%s1241 + $0x5f0] sm:$0xf] %v1394
                %v1396 = vld [vmem:[%s1240 + $0xc08] sm:$0xf]
                %1397 = vst [vmem:[%s1241 + $0x604] sm:$0xf] %v1396
                %v1398 = vld [vmem:[%s1240 + $0xc30] sm:$0xf]
                %1399 = vst [vmem:[%s1241 + $0x618] sm:$0xf] %v1398
                %v1400 = vld [vmem:[%s1240 + $0xc58] sm:$0xf]
                %1401 = vst [vmem:[%s1241 + $0x62c] sm:$0xf] %v1400
                %v1402 = vld [vmem:[%s1240 + $0xc80] sm:$0xf]
                %1403 = vst [vmem:[%s1241 + $0x640] sm:$0xf] %v1402
                %v1404 = vld [vmem:[%s1240 + $0xca8] sm:$0xf]
                %1405 = vst [vmem:[%s1241 + $0x654] sm:$0xf] %v1404
                %v1406 = vld [vmem:[%s1240 + $0xcd0] sm:$0xf]
                %1407 = vst [vmem:[%s1241 + $0x668] sm:$0xf] %v1406
                %v1408 = vld [vmem:[%s1240 + $0xcf8] sm:$0xf]
                %1409 = vst [vmem:[%s1241 + $0x67c] sm:$0xf] %v1408
                %v1410 = vld [vmem:[%s1240 + $0xd20] sm:$0xf]
                %1411 = vst [vmem:[%s1241 + $0x690] sm:$0xf] %v1410
                %v1412 = vld [vmem:[%s1240 + $0xd48] sm:$0xf]
                %1413 = vst [vmem:[%s1241 + $0x6a4] sm:$0xf] %v1412
                %v1414 = vld [vmem:[%s1240 + $0xd70] sm:$0xf]
                %1415 = vst [vmem:[%s1241 + $0x6b8] sm:$0xf] %v1414
                %v1416 = vld [vmem:[%s1240 + $0xd98] sm:$0xf]
                %1417 = vst [vmem:[%s1241 + $0x6cc] sm:$0xf] %v1416
                %v1418 = vld [vmem:[%s1240 + $0xdc0] sm:$0xf]
                %1419 = vst [vmem:[%s1241 + $0x6e0] sm:$0xf] %v1418
                %v1420 = vld [vmem:[%s1240 + $0xde8] sm:$0xf]
                %1421 = vst [vmem:[%s1241 + $0x6f4] sm:$0xf] %v1420
                %v1422 = vld [vmem:[%s1240 + $0xe10] sm:$0xf]
                %1423 = vst [vmem:[%s1241 + $0x708] sm:$0xf] %v1422
                %v1424 = vld [vmem:[%s1240 + $0xe38] sm:$0xf]
                %1425 = vst [vmem:[%s1241 + $0x71c] sm:$0xf] %v1424
                %v1426 = vld [vmem:[%s1240 + $0xe60] sm:$0xf]
                %1427 = vst [vmem:[%s1241 + $0x730] sm:$0xf] %v1426
                %v1428 = vld [vmem:[%s1240 + $0xe88] sm:$0xf]
                %1429 = vst [vmem:[%s1241 + $0x744] sm:$0xf] %v1428
                %v1430 = vld [vmem:[%s1240 + $0xeb0] sm:$0xf]
                %1431 = vst [vmem:[%s1241 + $0x758] sm:$0xf] %v1430
                %v1432 = vld [vmem:[%s1240 + $0xed8] sm:$0xf]
                %1433 = vst [vmem:[%s1241 + $0x76c] sm:$0xf] %v1432
                %v1434 = vld [vmem:[%s1240 + $0xf00] sm:$0xf]
                %1435 = vst [vmem:[%s1241 + $0x780] sm:$0xf] %v1434
                %v1436 = vld [vmem:[%s1240 + $0xf28] sm:$0xf]
                %1437 = vst [vmem:[%s1241 + $0x794] sm:$0xf] %v1436
                %v1438 = vld [vmem:[%s1240 + $0xf50] sm:$0xf]
                %1439 = vst [vmem:[%s1241 + $0x7a8] sm:$0xf] %v1438
                %v1440 = vld [vmem:[%s1240 + $0xf78] sm:$0xf]
                %1441 = vst [vmem:[%s1241 + $0x7bc] sm:$0xf] %v1440
                %v1442 = vld [vmem:[%s1240 + $0xfa0] sm:$0xf]
                %1443 = vst [vmem:[%s1241 + $0x7d0] sm:$0xf] %v1442
                %v1444 = vld [vmem:[%s1240 + $0xfc8] sm:$0xf]
                %1445 = vst [vmem:[%s1241 + $0x7e4] sm:$0xf] %v1444
                %v1446 = vld [vmem:[%s1240 + $0xff0] sm:$0xf]
                %1447 = vst [vmem:[%s1241 + $0x7f8] sm:$0xf] %v1446
                %v1448 = vld [vmem:[%s1240 + $0x1018] sm:$0xf]
                %1449 = vst [vmem:[%s1241 + $0x80c] sm:$0xf] %v1448
                %v1450 = vld [vmem:[%s1240 + $0x1040] sm:$0xf]
                %1451 = vst [vmem:[%s1241 + $0x820] sm:$0xf] %v1450
                %v1452 = vld [vmem:[%s1240 + $0x1068] sm:$0xf]
                %1453 = vst [vmem:[%s1241 + $0x834] sm:$0xf] %v1452
                %v1454 = vld [vmem:[%s1240 + $0x1090] sm:$0xf]
                %1455 = vst [vmem:[%s1241 + $0x848] sm:$0xf] %v1454
                %v1456 = vld [vmem:[%s1240 + $0x10b8] sm:$0xf]
                %1457 = vst [vmem:[%s1241 + $0x85c] sm:$0xf] %v1456
                %v1458 = vld [vmem:[%s1240 + $0x10e0] sm:$0xf]
                %1459 = vst [vmem:[%s1241 + $0x870] sm:$0xf] %v1458
                %v1460 = vld [vmem:[%s1240 + $0x1108] sm:$0xf]
                %1461 = vst [vmem:[%s1241 + $0x884] sm:$0xf] %v1460
                %v1462 = vld [vmem:[%s1240 + $0x1130] sm:$0xf]
                %1463 = vst [vmem:[%s1241 + $0x898] sm:$0xf] %v1462
                %v1464 = vld [vmem:[%s1240 + $0x1158] sm:$0xf]
                %1465 = vst [vmem:[%s1241 + $0x8ac] sm:$0xf] %v1464
                %v1466 = vld [vmem:[%s1240 + $0x1180] sm:$0xf]
                %1467 = vst [vmem:[%s1241 + $0x8c0] sm:$0xf] %v1466
                %v1468 = vld [vmem:[%s1240 + $0x11a8] sm:$0xf]
                %1469 = vst [vmem:[%s1241 + $0x8d4] sm:$0xf] %v1468
                %v1470 = vld [vmem:[%s1240 + $0x11d0] sm:$0xf]
                %1471 = vst [vmem:[%s1241 + $0x8e8] sm:$0xf] %v1470
                %v1472 = vld [vmem:[%s1240 + $0x11f8] sm:$0xf]
                %1473 = vst [vmem:[%s1241 + $0x8fc] sm:$0xf] %v1472
                %v1474 = vld [vmem:[%s1240 + $0x1220] sm:$0xf]
                %1475 = vst [vmem:[%s1241 + $0x910] sm:$0xf] %v1474
                %v1476 = vld [vmem:[%s1240 + $0x1248] sm:$0xf]
                %1477 = vst [vmem:[%s1241 + $0x924] sm:$0xf] %v1476
                %v1478 = vld [vmem:[%s1240 + $0x1270] sm:$0xf]
                %1479 = vst [vmem:[%s1241 + $0x938] sm:$0xf] %v1478
                %v1480 = vld [vmem:[%s1240 + $0x1298] sm:$0xf]
                %1481 = vst [vmem:[%s1241 + $0x94c] sm:$0xf] %v1480
                %v1482 = vld [vmem:[%s1240 + $0x12c0] sm:$0xf]
                %1483 = vst [vmem:[%s1241 + $0x960] sm:$0xf] %v1482
                %v1484 = vld [vmem:[%s1240 + $0x12e8] sm:$0xf]
                %1485 = vst [vmem:[%s1241 + $0x974] sm:$0xf] %v1484
                %v1486 = vld [vmem:[%s1240 + $0x1310] sm:$0xf]
                %1487 = vst [vmem:[%s1241 + $0x988] sm:$0xf] %v1486
                %v1488 = vld [vmem:[%s1240 + $0x1338] sm:$0xf]
                %1489 = vst [vmem:[%s1241 + $0x99c] sm:$0xf] %v1488
                %v1490 = vld [vmem:[%s1240 + $0x1360] sm:$0xf]
                %1491 = vst [vmem:[%s1241 + $0x9b0] sm:$0xf] %v1490
                %v1492 = vld [vmem:[%s1240 + $0x1388] sm:$0xf]
                %1493 = vst [vmem:[%s1241 + $0x9c4] sm:$0xf] %v1492
                %v1494 = vld [vmem:[%s1240 + $0x13b0] sm:$0xf]
                %1495 = vst [vmem:[%s1241 + $0x9d8] sm:$0xf] %v1494
                %v1496 = vld [vmem:[%s1240 + $0x13d8] sm:$0xf]
                %1497 = vst [vmem:[%s1241 + $0x9ec] sm:$0xf] %v1496
                %v1498 = vld [vmem:[%s1240 + $0x1400] sm:$0xf]
                %1499 = vst [vmem:[%s1241 + $0xa00] sm:$0xf] %v1498
                %v1500 = vld [vmem:[%s1240 + $0x1428] sm:$0xf]
                %1501 = vst [vmem:[%s1241 + $0xa14] sm:$0xf] %v1500
                %v1502 = vld [vmem:[%s1240 + $0x1450] sm:$0xf]
                %1503 = vst [vmem:[%s1241 + $0xa28] sm:$0xf] %v1502
                %v1504 = vld [vmem:[%s1240 + $0x1478] sm:$0xf]
                %1505 = vst [vmem:[%s1241 + $0xa3c] sm:$0xf] %v1504
                %v1506 = vld [vmem:[%s1240 + $0x14a0] sm:$0xf]
                %1507 = vst [vmem:[%s1241 + $0xa50] sm:$0xf] %v1506
                %v1508 = vld [vmem:[%s1240 + $0x14c8] sm:$0xf]
                %1509 = vst [vmem:[%s1241 + $0xa64] sm:$0xf] %v1508
                %v1510 = vld [vmem:[%s1240 + $0x14f0] sm:$0xf]
                %1511 = vst [vmem:[%s1241 + $0xa78] sm:$0xf] %v1510
                %v1512 = vld [vmem:[%s1240 + $0x1518] sm:$0xf]
                %1513 = vst [vmem:[%s1241 + $0xa8c] sm:$0xf] %v1512
                %v1514 = vld [vmem:[%s1240 + $0x1540] sm:$0xf]
                %1515 = vst [vmem:[%s1241 + $0xaa0] sm:$0xf] %v1514
                %v1516 = vld [vmem:[%s1240 + $0x1568] sm:$0xf]
                %1517 = vst [vmem:[%s1241 + $0xab4] sm:$0xf] %v1516
                %v1518 = vld [vmem:[%s1240 + $0x1590] sm:$0xf]
                %1519 = vst [vmem:[%s1241 + $0xac8] sm:$0xf] %v1518
                %v1520 = vld [vmem:[%s1240 + $0x15b8] sm:$0xf]
                %1521 = vst [vmem:[%s1241 + $0xadc] sm:$0xf] %v1520
                %v1522 = vld [vmem:[%s1240 + $0x15e0] sm:$0xf]
                %1523 = vst [vmem:[%s1241 + $0xaf0] sm:$0xf] %v1522
                %v1524 = vld [vmem:[%s1240 + $0x1608] sm:$0xf]
                %1525 = vst [vmem:[%s1241 + $0xb04] sm:$0xf] %v1524
                %v1526 = vld [vmem:[%s1240 + $0x1630] sm:$0xf]
                %1527 = vst [vmem:[%s1241 + $0xb18] sm:$0xf] %v1526
                %v1528 = vld [vmem:[%s1240 + $0x1658] sm:$0xf]
                %1529 = vst [vmem:[%s1241 + $0xb2c] sm:$0xf] %v1528
                %v1530 = vld [vmem:[%s1240 + $0x1680] sm:$0xf]
                %1531 = vst [vmem:[%s1241 + $0xb40] sm:$0xf] %v1530
                %v1532 = vld [vmem:[%s1240 + $0x16a8] sm:$0xf]
                %1533 = vst [vmem:[%s1241 + $0xb54] sm:$0xf] %v1532
                %v1534 = vld [vmem:[%s1240 + $0x16d0] sm:$0xf]
                %1535 = vst [vmem:[%s1241 + $0xb68] sm:$0xf] %v1534
                %v1536 = vld [vmem:[%s1240 + $0x16f8] sm:$0xf]
                %1537 = vst [vmem:[%s1241 + $0xb7c] sm:$0xf] %v1536
                %v1538 = vld [vmem:[%s1240 + $0x1720] sm:$0xf]
                %1539 = vst [vmem:[%s1241 + $0xb90] sm:$0xf] %v1538
                %v1540 = vld [vmem:[%s1240 + $0x1748] sm:$0xf]
                %1541 = vst [vmem:[%s1241 + $0xba4] sm:$0xf] %v1540
                %v1542 = vld [vmem:[%s1240 + $0x1770] sm:$0xf]
                %1543 = vst [vmem:[%s1241 + $0xbb8] sm:$0xf] %v1542
                %v1544 = vld [vmem:[%s1240 + $0x1798] sm:$0xf]
                %1545 = vst [vmem:[%s1241 + $0xbcc] sm:$0xf] %v1544
                %v1546 = vld [vmem:[%s1240 + $0x17c0] sm:$0xf]
                %1547 = vst [vmem:[%s1241 + $0xbe0] sm:$0xf] %v1546
                %v1548 = vld [vmem:[%s1240 + $0x17e8] sm:$0xf]
                %1549 = vst [vmem:[%s1241 + $0xbf4] sm:$0xf] %v1548
                %v1550 = vld [vmem:[%s1240 + $0x1810] sm:$0xf]
                %1551 = vst [vmem:[%s1241 + $0xc08] sm:$0xf] %v1550
                %v1552 = vld [vmem:[%s1240 + $0x1838] sm:$0xf]
                %1553 = vst [vmem:[%s1241 + $0xc1c] sm:$0xf] %v1552
                %v1554 = vld [vmem:[%s1240 + $0x1860] sm:$0xf]
                %1555 = vst [vmem:[%s1241 + $0xc30] sm:$0xf] %v1554
                %v1556 = vld [vmem:[%s1240 + $0x1888] sm:$0xf]
                %1557 = vst [vmem:[%s1241 + $0xc44] sm:$0xf] %v1556
                %v1558 = vld [vmem:[%s1240 + $0x18b0] sm:$0xf]
                %1559 = vst [vmem:[%s1241 + $0xc58] sm:$0xf] %v1558
                %v1560 = vld [vmem:[%s1240 + $0x18d8] sm:$0xf]
                %1561 = vst [vmem:[%s1241 + $0xc6c] sm:$0xf] %v1560
                %v1562 = vld [vmem:[%s1240 + $0x1900] sm:$0xf]
                %1563 = vst [vmem:[%s1241 + $0xc80] sm:$0xf] %v1562
                %v1564 = vld [vmem:[%s1240 + $0x1928] sm:$0xf]
                %1565 = vst [vmem:[%s1241 + $0xc94] sm:$0xf] %v1564
                %v1566 = vld [vmem:[%s1240 + $0x1950] sm:$0xf]
                %1567 = vst [vmem:[%s1241 + $0xca8] sm:$0xf] %v1566
                %v1568 = vld [vmem:[%s1240 + $0x1978] sm:$0xf]
                %1569 = vst [vmem:[%s1241 + $0xcbc] sm:$0xf] %v1568
                %v1570 = vld [vmem:[%s1240 + $0x19a0] sm:$0xf]
                %1571 = vst [vmem:[%s1241 + $0xcd0] sm:$0xf] %v1570
                %v1572 = vld [vmem:[%s1240 + $0x19c8] sm:$0xf]
                %1573 = vst [vmem:[%s1241 + $0xce4] sm:$0xf] %v1572
                %v1574 = vld [vmem:[%s1240 + $0x19f0] sm:$0xf]
                %1575 = vst [vmem:[%s1241 + $0xcf8] sm:$0xf] %v1574
                %v1576 = vld [vmem:[%s1240 + $0x1a18] sm:$0xf]
                %1577 = vst [vmem:[%s1241 + $0xd0c] sm:$0xf] %v1576
                %v1578 = vld [vmem:[%s1240 + $0x1a40] sm:$0xf]
                %1579 = vst [vmem:[%s1241 + $0xd20] sm:$0xf] %v1578
                %v1580 = vld [vmem:[%s1240 + $0x1a68] sm:$0xf]
                %1581 = vst [vmem:[%s1241 + $0xd34] sm:$0xf] %v1580
                %v1582 = vld [vmem:[%s1240 + $0x1a90] sm:$0xf]
                %1583 = vst [vmem:[%s1241 + $0xd48] sm:$0xf] %v1582
                %v1584 = vld [vmem:[%s1240 + $0x1ab8] sm:$0xf]
                %1585 = vst [vmem:[%s1241 + $0xd5c] sm:$0xf] %v1584
                %v1586 = vld [vmem:[%s1240 + $0x1ae0] sm:$0xf]
                %1587 = vst [vmem:[%s1241 + $0xd70] sm:$0xf] %v1586
                %v1588 = vld [vmem:[%s1240 + $0x1b08] sm:$0xf]
                %1589 = vst [vmem:[%s1241 + $0xd84] sm:$0xf] %v1588
                %v1590 = vld [vmem:[%s1240 + $0x1b30] sm:$0xf]
                %1591 = vst [vmem:[%s1241 + $0xd98] sm:$0xf] %v1590
                %v1592 = vld [vmem:[%s1240 + $0x1b58] sm:$0xf]
                %1593 = vst [vmem:[%s1241 + $0xdac] sm:$0xf] %v1592
                %v1594 = vld [vmem:[%s1240 + $0x1b80] sm:$0xf]
                %1595 = vst [vmem:[%s1241 + $0xdc0] sm:$0xf] %v1594
                %v1596 = vld [vmem:[%s1240 + $0x1ba8] sm:$0xf]
                %1597 = vst [vmem:[%s1241 + $0xdd4] sm:$0xf] %v1596
                %v1598 = vld [vmem:[%s1240 + $0x1bd0] sm:$0xf]
                %1599 = vst [vmem:[%s1241 + $0xde8] sm:$0xf] %v1598
                %v1600 = vld [vmem:[%s1240 + $0x1bf8] sm:$0xf]
                %1601 = vst [vmem:[%s1241 + $0xdfc] sm:$0xf] %v1600
                %v1602 = vld [vmem:[%s1240 + $0x1c20] sm:$0xf]
                %1603 = vst [vmem:[%s1241 + $0xe10] sm:$0xf] %v1602
                %v1604 = vld [vmem:[%s1240 + $0x1c48] sm:$0xf]
                %1605 = vst [vmem:[%s1241 + $0xe24] sm:$0xf] %v1604
                %v1606 = vld [vmem:[%s1240 + $0x1c70] sm:$0xf]
                %1607 = vst [vmem:[%s1241 + $0xe38] sm:$0xf] %v1606
                %v1608 = vld [vmem:[%s1240 + $0x1c98] sm:$0xf]
                %1609 = vst [vmem:[%s1241 + $0xe4c] sm:$0xf] %v1608
                %v1610 = vld [vmem:[%s1240 + $0x1cc0] sm:$0xf]
                %1611 = vst [vmem:[%s1241 + $0xe60] sm:$0xf] %v1610
                %v1612 = vld [vmem:[%s1240 + $0x1ce8] sm:$0xf]
                %1613 = vst [vmem:[%s1241 + $0xe74] sm:$0xf] %v1612
                %v1614 = vld [vmem:[%s1240 + $0x1d10] sm:$0xf]
                %1615 = vst [vmem:[%s1241 + $0xe88] sm:$0xf] %v1614
                %v1616 = vld [vmem:[%s1240 + $0x1d38] sm:$0xf]
                %1617 = vst [vmem:[%s1241 + $0xe9c] sm:$0xf] %v1616
                %v1618 = vld [vmem:[%s1240 + $0x1d60] sm:$0xf]
                %1619 = vst [vmem:[%s1241 + $0xeb0] sm:$0xf] %v1618
                %v1620 = vld [vmem:[%s1240 + $0x1d88] sm:$0xf]
                %1621 = vst [vmem:[%s1241 + $0xec4] sm:$0xf] %v1620
                %v1622 = vld [vmem:[%s1240 + $0x1db0] sm:$0xf]
                %1623 = vst [vmem:[%s1241 + $0xed8] sm:$0xf] %v1622
                %v1624 = vld [vmem:[%s1240 + $0x1dd8] sm:$0xf]
                %1625 = vst [vmem:[%s1241 + $0xeec] sm:$0xf] %v1624
                %v1626 = vld [vmem:[%s1240 + $0x1e00] sm:$0xf]
                %1627 = vst [vmem:[%s1241 + $0xf00] sm:$0xf] %v1626
                %v1628 = vld [vmem:[%s1240 + $0x1e28] sm:$0xf]
                %1629 = vst [vmem:[%s1241 + $0xf14] sm:$0xf] %v1628
                %v1630 = vld [vmem:[%s1240 + $0x1e50] sm:$0xf]
                %1631 = vst [vmem:[%s1241 + $0xf28] sm:$0xf] %v1630
                %v1632 = vld [vmem:[%s1240 + $0x1e78] sm:$0xf]
                %1633 = vst [vmem:[%s1241 + $0xf3c] sm:$0xf] %v1632
                %v1634 = vld [vmem:[%s1240 + $0x1ea0] sm:$0xf]
                %1635 = vst [vmem:[%s1241 + $0xf50] sm:$0xf] %v1634
                %v1636 = vld [vmem:[%s1240 + $0x1ec8] sm:$0xf]
                %1637 = vst [vmem:[%s1241 + $0xf64] sm:$0xf] %v1636
                %v1638 = vld [vmem:[%s1240 + $0x1ef0] sm:$0xf]
                %1639 = vst [vmem:[%s1241 + $0xf78] sm:$0xf] %v1638
                %v1640 = vld [vmem:[%s1240 + $0x1f18] sm:$0xf]
                %1641 = vst [vmem:[%s1241 + $0xf8c] sm:$0xf] %v1640
                %v1642 = vld [vmem:[%s1240 + $0x1f40] sm:$0xf]
                %1643 = vst [vmem:[%s1241 + $0xfa0] sm:$0xf] %v1642
                %v1644 = vld [vmem:[%s1240 + $0x1f68] sm:$0xf]
                %1645 = vst [vmem:[%s1241 + $0xfb4] sm:$0xf] %v1644
                %v1646 = vld [vmem:[%s1240 + $0x1f90] sm:$0xf]
                %1647 = vst [vmem:[%s1241 + $0xfc8] sm:$0xf] %v1646
                %v1648 = vld [vmem:[%s1240 + $0x1fb8] sm:$0xf]
                %1649 = vst [vmem:[%s1241 + $0xfdc] sm:$0xf] %v1648
                %v1650 = vld [vmem:[%s1240 + $0x1fe0] sm:$0xf]
                %1651 = vst [vmem:[%s1241 + $0xff0] sm:$0xf] %v1650
                %v1652 = vld [vmem:[%s1240 + $0x2008] sm:$0xf]
                %1653 = vst [vmem:[%s1241 + $0x1004] sm:$0xf] %v1652
                %v1654 = vld [vmem:[%s1240 + $0x2030] sm:$0xf]
                %1655 = vst [vmem:[%s1241 + $0x1018] sm:$0xf] %v1654
                %v1656 = vld [vmem:[%s1240 + $0x2058] sm:$0xf]
                %1657 = vst [vmem:[%s1241 + $0x102c] sm:$0xf] %v1656
                %v1658 = vld [vmem:[%s1240 + $0x2080] sm:$0xf]
                %1659 = vst [vmem:[%s1241 + $0x1040] sm:$0xf] %v1658
                %v1660 = vld [vmem:[%s1240 + $0x20a8] sm:$0xf]
                %1661 = vst [vmem:[%s1241 + $0x1054] sm:$0xf] %v1660
                %v1662 = vld [vmem:[%s1240 + $0x20d0] sm:$0xf]
                %1663 = vst [vmem:[%s1241 + $0x1068] sm:$0xf] %v1662
                %v1664 = vld [vmem:[%s1240 + $0x20f8] sm:$0xf]
                %1665 = vst [vmem:[%s1241 + $0x107c] sm:$0xf] %v1664
                %v1666 = vld [vmem:[%s1240 + $0x2120] sm:$0xf]
                %1667 = vst [vmem:[%s1241 + $0x1090] sm:$0xf] %v1666
                %v1668 = vld [vmem:[%s1240 + $0x2148] sm:$0xf]
                %1669 = vst [vmem:[%s1241 + $0x10a4] sm:$0xf] %v1668
                %v1670 = vld [vmem:[%s1240 + $0x2170] sm:$0xf]
                %1671 = vst [vmem:[%s1241 + $0x10b8] sm:$0xf] %v1670
                %v1672 = vld [vmem:[%s1240 + $0x2198] sm:$0xf]
                %1673 = vst [vmem:[%s1241 + $0x10cc] sm:$0xf] %v1672
                %v1674 = vld [vmem:[%s1240 + $0x21c0] sm:$0xf]
                %1675 = vst [vmem:[%s1241 + $0x10e0] sm:$0xf] %v1674
                %v1676 = vld [vmem:[%s1240 + $0x21e8] sm:$0xf]
                %1677 = vst [vmem:[%s1241 + $0x10f4] sm:$0xf] %v1676
                %v1678 = vld [vmem:[%s1240 + $0x2210] sm:$0xf]
                %1679 = vst [vmem:[%s1241 + $0x1108] sm:$0xf] %v1678
                %v1680 = vld [vmem:[%s1240 + $0x2238] sm:$0xf]
                %1681 = vst [vmem:[%s1241 + $0x111c] sm:$0xf] %v1680
                %v1682 = vld [vmem:[%s1240 + $0x2260] sm:$0xf]
                %1683 = vst [vmem:[%s1241 + $0x1130] sm:$0xf] %v1682
                %v1684 = vld [vmem:[%s1240 + $0x2288] sm:$0xf]
                %1685 = vst [vmem:[%s1241 + $0x1144] sm:$0xf] %v1684
                %v1686 = vld [vmem:[%s1240 + $0x22b0] sm:$0xf]
                %1687 = vst [vmem:[%s1241 + $0x1158] sm:$0xf] %v1686
                %v1688 = vld [vmem:[%s1240 + $0x22d8] sm:$0xf]
                %1689 = vst [vmem:[%s1241 + $0x116c] sm:$0xf] %v1688
                %v1690 = vld [vmem:[%s1240 + $0x2300] sm:$0xf]
                %1691 = vst [vmem:[%s1241 + $0x1180] sm:$0xf] %v1690
                %v1692 = vld [vmem:[%s1240 + $0x2328] sm:$0xf]
                %1693 = vst [vmem:[%s1241 + $0x1194] sm:$0xf] %v1692
                %v1694 = vld [vmem:[%s1240 + $0x2350] sm:$0xf]
                %1695 = vst [vmem:[%s1241 + $0x11a8] sm:$0xf] %v1694
                %v1696 = vld [vmem:[%s1240 + $0x2378] sm:$0xf]
                %1697 = vst [vmem:[%s1241 + $0x11bc] sm:$0xf] %v1696
                %v1698 = vld [vmem:[%s1240 + $0x23a0] sm:$0xf]
                %1699 = vst [vmem:[%s1241 + $0x11d0] sm:$0xf] %v1698
                %v1700 = vld [vmem:[%s1240 + $0x23c8] sm:$0xf]
                %1701 = vst [vmem:[%s1241 + $0x11e4] sm:$0xf] %v1700
                %v1702 = vld [vmem:[%s1240 + $0x23f0] sm:$0xf]
                %1703 = vst [vmem:[%s1241 + $0x11f8] sm:$0xf] %v1702
                %v1704 = vld [vmem:[%s1240 + $0x2418] sm:$0xf]
                %1705 = vst [vmem:[%s1241 + $0x120c] sm:$0xf] %v1704
                %v1706 = vld [vmem:[%s1240 + $0x2440] sm:$0xf]
                %1707 = vst [vmem:[%s1241 + $0x1220] sm:$0xf] %v1706
                %v1708 = vld [vmem:[%s1240 + $0x2468] sm:$0xf]
                %1709 = vst [vmem:[%s1241 + $0x1234] sm:$0xf] %v1708
                %v1710 = vld [vmem:[%s1240 + $0x2490] sm:$0xf]
                %1711 = vst [vmem:[%s1241 + $0x1248] sm:$0xf] %v1710
                %v1712 = vld [vmem:[%s1240 + $0x24b8] sm:$0xf]
                %1713 = vst [vmem:[%s1241 + $0x125c] sm:$0xf] %v1712
                %v1714 = vld [vmem:[%s1240 + $0x24e0] sm:$0xf]
                %1715 = vst [vmem:[%s1241 + $0x1270] sm:$0xf] %v1714
                %v1716 = vld [vmem:[%s1240 + $0x2508] sm:$0xf]
                %1717 = vst [vmem:[%s1241 + $0x1284] sm:$0xf] %v1716
                %v1718 = vld [vmem:[%s1240 + $0x2530] sm:$0xf]
                %1719 = vst [vmem:[%s1241 + $0x1298] sm:$0xf] %v1718
                %v1720 = vld [vmem:[%s1240 + $0x2558] sm:$0xf]
                %1721 = vst [vmem:[%s1241 + $0x12ac] sm:$0xf] %v1720
                %v1722 = vld [vmem:[%s1240 + $0x2580] sm:$0xf]
                %1723 = vst [vmem:[%s1241 + $0x12c0] sm:$0xf] %v1722
                %v1724 = vld [vmem:[%s1240 + $0x25a8] sm:$0xf]
                %1725 = vst [vmem:[%s1241 + $0x12d4] sm:$0xf] %v1724
                %v1726 = vld [vmem:[%s1240 + $0x25d0] sm:$0xf]
                %1727 = vst [vmem:[%s1241 + $0x12e8] sm:$0xf] %v1726
                %v1728 = vld [vmem:[%s1240 + $0x25f8] sm:$0xf]
                %1729 = vst [vmem:[%s1241 + $0x12fc] sm:$0xf] %v1728
                %v1730 = vld [vmem:[%s1240 + $0x2620] sm:$0xf]
                %1731 = vst [vmem:[%s1241 + $0x1310] sm:$0xf] %v1730
                %v1732 = vld [vmem:[%s1240 + $0x2648] sm:$0xf]
                %1733 = vst [vmem:[%s1241 + $0x1324] sm:$0xf] %v1732
                %v1734 = vld [vmem:[%s1240 + $0x2670] sm:$0xf]
                %1735 = vst [vmem:[%s1241 + $0x1338] sm:$0xf] %v1734
                %v1736 = vld [vmem:[%s1240 + $0x2698] sm:$0xf]
                %1737 = vst [vmem:[%s1241 + $0x134c] sm:$0xf] %v1736
                %v1738 = vld [vmem:[%s1240 + $0x26c0] sm:$0xf]
                %1739 = vst [vmem:[%s1241 + $0x1360] sm:$0xf] %v1738
                %v1740 = vld [vmem:[%s1240 + $0x26e8] sm:$0xf]
                %1741 = vst [vmem:[%s1241 + $0x1374] sm:$0xf] %v1740
                %v1742 = vld [vmem:[%s1240 + $0x2710] sm:$0xf]
                %1743 = vst [vmem:[%s1241 + $0x1388] sm:$0xf] %v1742
                %v1744 = vld [vmem:[%s1240 + $0x2738] sm:$0xf]
                %1745 = vst [vmem:[%s1241 + $0x139c] sm:$0xf] %v1744
                %v1746 = vld [vmem:[%s1240 + $0x2760] sm:$0xf]
                %1747 = vst [vmem:[%s1241 + $0x13b0] sm:$0xf] %v1746
                %v1748 = vld [vmem:[%s1240 + $0x2788] sm:$0xf]
                %1749 = vst [vmem:[%s1241 + $0x13c4] sm:$0xf] %v1748
                %v1750 = vld [vmem:[%s1240 + $0x27b0] sm:$0xf]
                %1751 = vst [vmem:[%s1241 + $0x13d8] sm:$0xf] %v1750
                %v1752 = vld [vmem:[%s1240 + $0x27d8] sm:$0xf]
                %1753 = vst [vmem:[%s1241 + $0x13ec] sm:$0xf] %v1752
              $region44: #{agent_forward.6} parent=31 // loop_footer
                %s1239 = sadd.s32 1, %s1235
              $region45: #{agent_forward.6} parent=31 // loop_footer_branch
                %1234 = sbr.rel target = $region41
              $region46: #{agent_forward.6} parent=31 // loop_exit
                _
            $region32: #{agent_forward.6} parent=27 // pred_fallthru
              _
          $region28: #{agent_forward.6} parent=23 // pred_fallthru
            _
          %1754 = vnop
        $region24: #{agent_forward.6} parent=15 // pred_fallthru
          _
        // Predicated region
        $region47: #{agent_forward.6} parent=15 // pred_check
          %p1755 = pneg %p96
        $region48: #{agent_forward.6} parent=15 // pred_check_branch
          %1757 = sbr.rel (%p1755) target = $region50
        $region49: #{agent_forward.6} parent=15 // pred_region
          %s1758 = smul.u32 5, %s17
          %p1759 = scmp.lt.s32.totalorder %s1758, 9
          %s1760 = scalar_select %p1759, %s1758, 9
          %s1761 = scalar_lea.vmem %s2, %s1760
          %s1762 = smul.u32 5, %s17
        $region50: #{agent_forward.6} parent=15 // pred_fallthru
          _
        // Predicated region
        $region51: #{agent_forward.6} parent=15 // pred_check
          %p1763 = pneg %p122
        $region52: #{agent_forward.6} parent=15 // pred_check_branch
          %1765 = sbr.rel (%p1763) target = $region54
        $region53: #{agent_forward.6} parent=15 // pred_region
          %s1766 = smul.u32 80, %s17
          %p1767 = scmp.lt.s32.totalorder %s1766, 159
          %s1768 = scalar_select %p1767, %s1766, 159
          %s1769 = smul.addr %s1768, 4
          %s1770 = smul.addr %s1769, 4
          %s1771 = scalar_lea.vmem %s3, %s1770
          %s1772 = smul.u32 80, %s17
        $region54: #{agent_forward.6} parent=15 // pred_fallthru
          _
      $region16: #{agent_forward.6} parent=5 // pred_fallthru
        _
      %p1773 = scmp.le.s32.totalorder 1, %s10
      %p1774 = scmp.lt.s32.totalorder %s10, 5
      %p1775 = pnand %p1773, %p1774
      %p1776 = pneg %p1775
      // Predicated region
      $region55: #{agent_forward.6} parent=5 // pred_check
        _
      $region56: #{agent_forward.6} parent=5 // pred_check_branch
        %1778 = sbr.rel (%p1775) target = $region58
      $region57: #{agent_forward.6} parent=5 // pred_region
        %s1779 = ssub.s32 %s10, 1
        %s1780 = sand.u32 %s63, 1
        %s1781 = sand.u32 %s63, 1
        %s1782 = smul.addr %s1781, 5120
        %s1783 = scalar_lea.vmem [#allocation3], %s1782
        // Predicated region
        $region59: #{agent_forward.6} parent=57 // pred_check
          %p1784 = pneg %p76
        $region60: #{agent_forward.6} parent=57 // pred_check_branch
          %1786 = sbr.rel (%p1784) target = $region62
        $region61: #{agent_forward.6} parent=57 // pred_region
          _
        $region62: #{agent_forward.6} parent=57 // pred_fallthru
          _
        %s1787 = smul.u32 16, %s20
        %p1788 = scmp.lt.s32.totalorder %s1787, 31
        %s1789 = scalar_select %p1788, %s1787, 31
        %s1790 = smul.addr %s1789, 4
        %s1791 = scalar_lea.vmem %s0, %s1790
        %p1792 = pneg %p48
        %p1793 = pneg %p45
        %s1794 = sand.u32 %s63, 1
        %s1795 = sand.u32 %s63, 1
        %s1796 = smul.addr %s1795, 5120
        %s1797 = scalar_lea.vmem [#allocation3], %s1796
        %p1798 = pneg %p76
        %p1799 = pneg %p73
        %s1800 = smul.u32 5, %s19
        %p1801 = scmp.lt.s32.totalorder %s1800, 9
        %s1802 = scalar_select %p1801, %s1800, 9
        %s1803 = scalar_lea.vmem %s2, %s1802
        %p1804 = pneg %p102
        %p1805 = pneg %p99
        %s1806 = smul.u32 80, %s19
        %p1807 = scmp.lt.s32.totalorder %s1806, 159
        %s1808 = scalar_select %p1807, %s1806, 159
        %s1809 = smul.addr %s1808, 4
        %s1810 = smul.addr %s1809, 4
        %s1811 = scalar_lea.vmem %s3, %s1810
        %p1812 = pneg %p128
        %p1813 = pneg %p125
        %p1814 = pneg %p154
        %p1815 = pneg %p151
        %s1816 = smul.u32 4, %s19
        %p1817 = scmp.lt.s32.totalorder %s1816, 7
        %s1818 = scalar_select %p1817, %s1816, 7
        %s1819 = smul.addr %s1818, 8
        %s1820 = scalar_lea.vmem %s4, %s1819
        %s1821 = smul.u32 16, %s20
        %p1822 = scmp.lt.s32.totalorder %s1821, 31
        %s1823 = scalar_select %p1822, %s1821, 31
        %s1824 = smul.addr %s1823, 4
        %s1825 = scalar_lea.vmem %s0, %s1824
        %s1826 = smul.u32 16, %s20
        %s1827 = smul.u32 256, %s20
        %s1828 = smul.u32 5, %s19
        %s1829 = smul.u32 5, %s19
        %p1830 = scmp.lt.s32.totalorder %s1829, 9
        %s1831 = scalar_select %p1830, %s1829, 9
        %s1832 = scalar_lea.vmem %s2, %s1831
        %s1833 = smul.u32 5, %s19
        %s1834 = smul.u32 80, %s19
        %p1835 = scmp.lt.s32.totalorder %s1834, 159
        %s1836 = scalar_select %p1835, %s1834, 159
        %s1837 = smul.addr %s1836, 4
        %s1838 = smul.addr %s1837, 4
        %s1839 = scalar_lea.vmem %s3, %s1838
        %s1840 = smul.u32 80, %s19
        %s1841 = smul.u32 4, %s19
        %p1842 = scmp.lt.s32.totalorder %s1841, 7
        %s1843 = scalar_select %p1842, %s1841, 7
        %s1844 = smul.addr %s1843, 8
        %s1845 = scalar_lea.vmem %s4, %s1844
        %s1846 = smul.u32 4, %s19
        %p1848 = scmp.eq.s32.totalorder %s20, 0
        // Predicated region
        $region63: #{agent_forward.6} parent=57 // pred_check
          %p1849 = pneg %p1848
        $region64: #{agent_forward.6} parent=57 // pred_check_branch
          %1851 = sbr.rel (%p1849) target = $region66
        $region65: #{agent_forward.6} parent=57 // pred_region
          %1852 = vst [vmem:[#allocation2] sm:$0xff] 0.0
          %1853 = vst [vmem:[#allocation2 + $0x8] sm:$0xff] 0.0
          %1854 = vst [vmem:[#allocation2 + $0x10] sm:$0xff] 0.0
          %1855 = vst [vmem:[#allocation2 + $0x18] sm:$0xff] 0.0
          %1856 = vst [vmem:[#allocation2 + $0x20] sm:$0xff] 0.0
        $region66: #{agent_forward.6} parent=57 // pred_fallthru
          _
        %v1857 = vld [vmem:[#allocation2] sm:$0xff]
        %v1858 = vld [vmem:[#allocation2 + $0x8] sm:$0xff]
        %v1859 = vld [vmem:[#allocation2 + $0x10] sm:$0xff]
        %v1860 = vld [vmem:[#allocation2 + $0x18] sm:$0xff]
        %v1861 = vld [vmem:[#allocation2 + $0x20] sm:$0xff]
        %v1862 = vld [vmem:[%s1825] sm:$0xff]
        %v1863 = vld [vmem:[%s1825 + $0x8] sm:$0xff]
        %v1864 = vld [vmem:[%s1825 + $0x10] sm:$0xff]
        %v1865 = vld [vmem:[%s1825 + $0x18] sm:$0xff]
        %v1866 = vld [vmem:[%s1825 + $0x20] sm:$0xff]
        %v1867 = vld [vmem:[%s1825 + $0x28] sm:$0xff]
        %v1868 = vld [vmem:[%s1825 + $0x30] sm:$0xff]
        %v1869 = vld [vmem:[%s1825 + $0x38] sm:$0xff]
        %v1870 = vld [vmem:[%s1783] sm:$0xff]
        %v1871 = vld [vmem:[%s1783 + $0x8] sm:$0xff]
        %v1872 = vld [vmem:[%s1783 + $0x10] sm:$0xf]
        %v1873 = vld [vmem:[%s1783 + $0x14] sm:$0xff]
        %v1874 = vld [vmem:[%s1783 + $0x1c] sm:$0xff]
        %v1875 = vld [vmem:[%s1783 + $0x24] sm:$0xf]
        %v1876 = vld [vmem:[%s1783 + $0x28] sm:$0xff]
        %v1877 = vld [vmem:[%s1783 + $0x30] sm:$0xff]
        %v1878 = vld [vmem:[%s1783 + $0x38] sm:$0xf]
        %v1879 = vld [vmem:[%s1783 + $0x3c] sm:$0xff]
        %v1880 = vld [vmem:[%s1783 + $0x44] sm:$0xff]
        %v1881 = vld [vmem:[%s1783 + $0x4c] sm:$0xf]
        %v1882 = vld [vmem:[%s1783 + $0x50] sm:$0xff]
        %v1883 = vld [vmem:[%s1783 + $0x58] sm:$0xff]
        %v1884 = vld [vmem:[%s1783 + $0x60] sm:$0xf]
        %v1885 = vld [vmem:[%s1783 + $0x64] sm:$0xff]
        %v1886 = vld [vmem:[%s1783 + $0x6c] sm:$0xff]
        %v1887 = vld [vmem:[%s1783 + $0x74] sm:$0xf]
        %v1888 = vld [vmem:[%s1783 + $0x78] sm:$0xff]
        %v1889 = vld [vmem:[%s1783 + $0x80] sm:$0xff]
        %v1890 = vld [vmem:[%s1783 + $0x88] sm:$0xf]
        %v1891 = vld [vmem:[%s1783 + $0x8c] sm:$0xff]
        %v1892 = vld [vmem:[%s1783 + $0x94] sm:$0xff]
        %v1893 = vld [vmem:[%s1783 + $0x9c] sm:$0xf]
        %v1894 = vld [vmem:[%s1783 + $0xa0] sm:$0xff]
        %v1895 = vld [vmem:[%s1783 + $0xa8] sm:$0xff]
        %v1896 = vld [vmem:[%s1783 + $0xb0] sm:$0xf]
        %v1897 = vld [vmem:[%s1783 + $0xb4] sm:$0xff]
        %v1898 = vld [vmem:[%s1783 + $0xbc] sm:$0xff]
        %v1899 = vld [vmem:[%s1783 + $0xc4] sm:$0xf]
        %v1900 = vld [vmem:[%s1783 + $0xc8] sm:$0xff]
        %v1901 = vld [vmem:[%s1783 + $0xd0] sm:$0xff]
        %v1902 = vld [vmem:[%s1783 + $0xd8] sm:$0xf]
        %v1903 = vld [vmem:[%s1783 + $0xdc] sm:$0xff]
        %v1904 = vld [vmem:[%s1783 + $0xe4] sm:$0xff]
        %v1905 = vld [vmem:[%s1783 + $0xec] sm:$0xf]
        %v1906 = vld [vmem:[%s1783 + $0xf0] sm:$0xff]
        %v1907 = vld [vmem:[%s1783 + $0xf8] sm:$0xff]
        %v1908 = vld [vmem:[%s1783 + $0x100] sm:$0xf]
        %v1909 = vld [vmem:[%s1783 + $0x104] sm:$0xff]
        %v1910 = vld [vmem:[%s1783 + $0x10c] sm:$0xff]
        %v1911 = vld [vmem:[%s1783 + $0x114] sm:$0xf]
        %v1912 = vld [vmem:[%s1783 + $0x118] sm:$0xff]
        %v1913 = vld [vmem:[%s1783 + $0x120] sm:$0xff]
        %v1914 = vld [vmem:[%s1783 + $0x128] sm:$0xf]
        %v1915 = vld [vmem:[%s1783 + $0x12c] sm:$0xff]
        %v1916 = vld [vmem:[%s1783 + $0x134] sm:$0xff]
        %v1917 = vld [vmem:[%s1783 + $0x13c] sm:$0xf]
        %v1918 = vld [vmem:[%s1783 + $0x140] sm:$0xff]
        %v1919 = vld [vmem:[%s1783 + $0x148] sm:$0xff]
        %v1920 = vld [vmem:[%s1783 + $0x150] sm:$0xf]
        %v1921 = vld [vmem:[%s1783 + $0x154] sm:$0xff]
        %v1922 = vld [vmem:[%s1783 + $0x15c] sm:$0xff]
        %v1923 = vld [vmem:[%s1783 + $0x164] sm:$0xf]
        %v1924 = vld [vmem:[%s1783 + $0x168] sm:$0xff]
        %v1925 = vld [vmem:[%s1783 + $0x170] sm:$0xff]
        %v1926 = vld [vmem:[%s1783 + $0x178] sm:$0xf]
        %v1927 = vld [vmem:[%s1783 + $0x17c] sm:$0xff]
        %v1928 = vld [vmem:[%s1783 + $0x184] sm:$0xff]
        %v1929 = vld [vmem:[%s1783 + $0x18c] sm:$0xf]
        %v1930 = vld [vmem:[%s1783 + $0x190] sm:$0xff]
        %v1931 = vld [vmem:[%s1783 + $0x198] sm:$0xff]
        %v1932 = vld [vmem:[%s1783 + $0x1a0] sm:$0xf]
        %v1933 = vld [vmem:[%s1783 + $0x1a4] sm:$0xff]
        %v1934 = vld [vmem:[%s1783 + $0x1ac] sm:$0xff]
        %v1935 = vld [vmem:[%s1783 + $0x1b4] sm:$0xf]
        %v1936 = vld [vmem:[%s1783 + $0x1b8] sm:$0xff]
        %v1937 = vld [vmem:[%s1783 + $0x1c0] sm:$0xff]
        %v1938 = vld [vmem:[%s1783 + $0x1c8] sm:$0xf]
        %v1939 = vld [vmem:[%s1783 + $0x1cc] sm:$0xff]
        %v1940 = vld [vmem:[%s1783 + $0x1d4] sm:$0xff]
        %v1941 = vld [vmem:[%s1783 + $0x1dc] sm:$0xf]
        %v1942 = vld [vmem:[%s1783 + $0x1e0] sm:$0xff]
        %v1943 = vld [vmem:[%s1783 + $0x1e8] sm:$0xff]
        %v1944 = vld [vmem:[%s1783 + $0x1f0] sm:$0xf]
        %v1945 = vld [vmem:[%s1783 + $0x1f4] sm:$0xff]
        %v1946 = vld [vmem:[%s1783 + $0x1fc] sm:$0xff]
        %v1947 = vld [vmem:[%s1783 + $0x204] sm:$0xf]
        %v1948 = vld [vmem:[%s1783 + $0x208] sm:$0xff]
        %v1949 = vld [vmem:[%s1783 + $0x210] sm:$0xff]
        %v1950 = vld [vmem:[%s1783 + $0x218] sm:$0xf]
        %v1951 = vld [vmem:[%s1783 + $0x21c] sm:$0xff]
        %v1952 = vld [vmem:[%s1783 + $0x224] sm:$0xff]
        %v1953 = vld [vmem:[%s1783 + $0x22c] sm:$0xf]
        %v1954 = vld [vmem:[%s1783 + $0x230] sm:$0xff]
        %v1955 = vld [vmem:[%s1783 + $0x238] sm:$0xff]
        %v1956 = vld [vmem:[%s1783 + $0x240] sm:$0xf]
        %v1957 = vld [vmem:[%s1783 + $0x244] sm:$0xff]
        %v1958 = vld [vmem:[%s1783 + $0x24c] sm:$0xff]
        %v1959 = vld [vmem:[%s1783 + $0x254] sm:$0xf]
        %v1960 = vld [vmem:[%s1783 + $0x258] sm:$0xff]
        %v1961 = vld [vmem:[%s1783 + $0x260] sm:$0xff]
        %v1962 = vld [vmem:[%s1783 + $0x268] sm:$0xf]
        %v1963 = vld [vmem:[%s1783 + $0x26c] sm:$0xff]
        %v1964 = vld [vmem:[%s1783 + $0x274] sm:$0xff]
        %v1965 = vld [vmem:[%s1783 + $0x27c] sm:$0xf]
        %v1966 = vld [vmem:[%s1783 + $0x280] sm:$0xff]
        %v1967 = vld [vmem:[%s1783 + $0x288] sm:$0xff]
        %v1968 = vld [vmem:[%s1783 + $0x290] sm:$0xf]
        %v1969 = vld [vmem:[%s1783 + $0x294] sm:$0xff]
        %v1970 = vld [vmem:[%s1783 + $0x29c] sm:$0xff]
        %v1971 = vld [vmem:[%s1783 + $0x2a4] sm:$0xf]
        %v1972 = vld [vmem:[%s1783 + $0x2a8] sm:$0xff]
        %v1973 = vld [vmem:[%s1783 + $0x2b0] sm:$0xff]
        %v1974 = vld [vmem:[%s1783 + $0x2b8] sm:$0xf]
        %v1975 = vld [vmem:[%s1783 + $0x2bc] sm:$0xff]
        %v1976 = vld [vmem:[%s1783 + $0x2c4] sm:$0xff]
        %v1977 = vld [vmem:[%s1783 + $0x2cc] sm:$0xf]
        %v1978 = vld [vmem:[%s1783 + $0x2d0] sm:$0xff]
        %v1979 = vld [vmem:[%s1783 + $0x2d8] sm:$0xff]
        %v1980 = vld [vmem:[%s1783 + $0x2e0] sm:$0xf]
        %v1981 = vld [vmem:[%s1783 + $0x2e4] sm:$0xff]
        %v1982 = vld [vmem:[%s1783 + $0x2ec] sm:$0xff]
        %v1983 = vld [vmem:[%s1783 + $0x2f4] sm:$0xf]
        %v1984 = vld [vmem:[%s1783 + $0x2f8] sm:$0xff]
        %v1985 = vld [vmem:[%s1783 + $0x300] sm:$0xff]
        %v1986 = vld [vmem:[%s1783 + $0x308] sm:$0xf]
        %v1987 = vld [vmem:[%s1783 + $0x30c] sm:$0xff]
        %v1988 = vld [vmem:[%s1783 + $0x314] sm:$0xff]
        %v1989 = vld [vmem:[%s1783 + $0x31c] sm:$0xf]
        %v1990 = vld [vmem:[%s1783 + $0x320] sm:$0xff]
        %v1991 = vld [vmem:[%s1783 + $0x328] sm:$0xff]
        %v1992 = vld [vmem:[%s1783 + $0x330] sm:$0xf]
        %v1993 = vld [vmem:[%s1783 + $0x334] sm:$0xff]
        %v1994 = vld [vmem:[%s1783 + $0x33c] sm:$0xff]
        %v1995 = vld [vmem:[%s1783 + $0x344] sm:$0xf]
        %v1996 = vld [vmem:[%s1783 + $0x348] sm:$0xff]
        %v1997 = vld [vmem:[%s1783 + $0x350] sm:$0xff]
        %v1998 = vld [vmem:[%s1783 + $0x358] sm:$0xf]
        %v1999 = vld [vmem:[%s1783 + $0x35c] sm:$0xff]
        %v2000 = vld [vmem:[%s1783 + $0x364] sm:$0xff]
        %v2001 = vld [vmem:[%s1783 + $0x36c] sm:$0xf]
        %v2002 = vld [vmem:[%s1783 + $0x370] sm:$0xff]
        %v2003 = vld [vmem:[%s1783 + $0x378] sm:$0xff]
        %v2004 = vld [vmem:[%s1783 + $0x380] sm:$0xf]
        %v2005 = vld [vmem:[%s1783 + $0x384] sm:$0xff]
        %v2006 = vld [vmem:[%s1783 + $0x38c] sm:$0xff]
        %v2007 = vld [vmem:[%s1783 + $0x394] sm:$0xf]
        %v2008 = vld [vmem:[%s1783 + $0x398] sm:$0xff]
        %v2009 = vld [vmem:[%s1783 + $0x3a0] sm:$0xff]
        %v2010 = vld [vmem:[%s1783 + $0x3a8] sm:$0xf]
        %v2011 = vld [vmem:[%s1783 + $0x3ac] sm:$0xff]
        %v2012 = vld [vmem:[%s1783 + $0x3b4] sm:$0xff]
        %v2013 = vld [vmem:[%s1783 + $0x3bc] sm:$0xf]
        %v2014 = vld [vmem:[%s1783 + $0x3c0] sm:$0xff]
        %v2015 = vld [vmem:[%s1783 + $0x3c8] sm:$0xff]
        %v2016 = vld [vmem:[%s1783 + $0x3d0] sm:$0xf]
        %v2017 = vld [vmem:[%s1783 + $0x3d4] sm:$0xff]
        %v2018 = vld [vmem:[%s1783 + $0x3dc] sm:$0xff]
        %v2019 = vld [vmem:[%s1783 + $0x3e4] sm:$0xf]
        %v2020 = vld [vmem:[%s1783 + $0x3e8] sm:$0xff]
        %v2021 = vld [vmem:[%s1783 + $0x3f0] sm:$0xff]
        %v2022 = vld [vmem:[%s1783 + $0x3f8] sm:$0xf]
        %v2023 = vld [vmem:[%s1783 + $0x3fc] sm:$0xff]
        %v2024 = vld [vmem:[%s1783 + $0x404] sm:$0xff]
        %v2025 = vld [vmem:[%s1783 + $0x40c] sm:$0xf]
        %v2026 = vld [vmem:[%s1783 + $0x410] sm:$0xff]
        %v2027 = vld [vmem:[%s1783 + $0x418] sm:$0xff]
        %v2028 = vld [vmem:[%s1783 + $0x420] sm:$0xf]
        %v2029 = vld [vmem:[%s1783 + $0x424] sm:$0xff]
        %v2030 = vld [vmem:[%s1783 + $0x42c] sm:$0xff]
        %v2031 = vld [vmem:[%s1783 + $0x434] sm:$0xf]
        %v2032 = vld [vmem:[%s1783 + $0x438] sm:$0xff]
        %v2033 = vld [vmem:[%s1783 + $0x440] sm:$0xff]
        %v2034 = vld [vmem:[%s1783 + $0x448] sm:$0xf]
        %v2035 = vld [vmem:[%s1783 + $0x44c] sm:$0xff]
        %v2036 = vld [vmem:[%s1783 + $0x454] sm:$0xff]
        %v2037 = vld [vmem:[%s1783 + $0x45c] sm:$0xf]
        %v2038 = vld [vmem:[%s1783 + $0x460] sm:$0xff]
        %v2039 = vld [vmem:[%s1783 + $0x468] sm:$0xff]
        %v2040 = vld [vmem:[%s1783 + $0x470] sm:$0xf]
        %v2041 = vld [vmem:[%s1783 + $0x474] sm:$0xff]
        %v2042 = vld [vmem:[%s1783 + $0x47c] sm:$0xff]
        %v2043 = vld [vmem:[%s1783 + $0x484] sm:$0xf]
        %v2044 = vld [vmem:[%s1783 + $0x488] sm:$0xff]
        %v2045 = vld [vmem:[%s1783 + $0x490] sm:$0xff]
        %v2046 = vld [vmem:[%s1783 + $0x498] sm:$0xf]
        %v2047 = vld [vmem:[%s1783 + $0x49c] sm:$0xff]
        %v2048 = vld [vmem:[%s1783 + $0x4a4] sm:$0xff]
        %v2049 = vld [vmem:[%s1783 + $0x4ac] sm:$0xf]
        %v2050 = vld [vmem:[%s1783 + $0x4b0] sm:$0xff]
        %v2051 = vld [vmem:[%s1783 + $0x4b8] sm:$0xff]
        %v2052 = vld [vmem:[%s1783 + $0x4c0] sm:$0xf]
        %v2053 = vld [vmem:[%s1783 + $0x4c4] sm:$0xff]
        %v2054 = vld [vmem:[%s1783 + $0x4cc] sm:$0xff]
        %v2055 = vld [vmem:[%s1783 + $0x4d4] sm:$0xf]
        %v2056 = vld [vmem:[%s1783 + $0x4d8] sm:$0xff]
        %v2057 = vld [vmem:[%s1783 + $0x4e0] sm:$0xff]
        %v2058 = vld [vmem:[%s1783 + $0x4e8] sm:$0xf]
        %v2059 = vld [vmem:[%s1783 + $0x4ec] sm:$0xff]
        %v2060 = vld [vmem:[%s1783 + $0x4f4] sm:$0xff]
        %v2061 = vld [vmem:[%s1783 + $0x4fc] sm:$0xf]
        %v2062 = vld [vmem:[%s1783 + $0x500] sm:$0xff]
        %v2063 = vld [vmem:[%s1783 + $0x508] sm:$0xff]
        %v2064 = vld [vmem:[%s1783 + $0x510] sm:$0xf]
        %v2065 = vld [vmem:[%s1783 + $0x514] sm:$0xff]
        %v2066 = vld [vmem:[%s1783 + $0x51c] sm:$0xff]
        %v2067 = vld [vmem:[%s1783 + $0x524] sm:$0xf]
        %v2068 = vld [vmem:[%s1783 + $0x528] sm:$0xff]
        %v2069 = vld [vmem:[%s1783 + $0x530] sm:$0xff]
        %v2070 = vld [vmem:[%s1783 + $0x538] sm:$0xf]
        %v2071 = vld [vmem:[%s1783 + $0x53c] sm:$0xff]
        %v2072 = vld [vmem:[%s1783 + $0x544] sm:$0xff]
        %v2073 = vld [vmem:[%s1783 + $0x54c] sm:$0xf]
        %v2074 = vld [vmem:[%s1783 + $0x550] sm:$0xff]
        %v2075 = vld [vmem:[%s1783 + $0x558] sm:$0xff]
        %v2076 = vld [vmem:[%s1783 + $0x560] sm:$0xf]
        %v2077 = vld [vmem:[%s1783 + $0x564] sm:$0xff]
        %v2078 = vld [vmem:[%s1783 + $0x56c] sm:$0xff]
        %v2079 = vld [vmem:[%s1783 + $0x574] sm:$0xf]
        %v2080 = vld [vmem:[%s1783 + $0x578] sm:$0xff]
        %v2081 = vld [vmem:[%s1783 + $0x580] sm:$0xff]
        %v2082 = vld [vmem:[%s1783 + $0x588] sm:$0xf]
        %v2083 = vld [vmem:[%s1783 + $0x58c] sm:$0xff]
        %v2084 = vld [vmem:[%s1783 + $0x594] sm:$0xff]
        %v2085 = vld [vmem:[%s1783 + $0x59c] sm:$0xf]
        %v2086 = vld [vmem:[%s1783 + $0x5a0] sm:$0xff]
        %v2087 = vld [vmem:[%s1783 + $0x5a8] sm:$0xff]
        %v2088 = vld [vmem:[%s1783 + $0x5b0] sm:$0xf]
        %v2089 = vld [vmem:[%s1783 + $0x5b4] sm:$0xff]
        %v2090 = vld [vmem:[%s1783 + $0x5bc] sm:$0xff]
        %v2091 = vld [vmem:[%s1783 + $0x5c4] sm:$0xf]
        %v2092 = vld [vmem:[%s1783 + $0x5c8] sm:$0xff]
        %v2093 = vld [vmem:[%s1783 + $0x5d0] sm:$0xff]
        %v2094 = vld [vmem:[%s1783 + $0x5d8] sm:$0xf]
        %v2095 = vld [vmem:[%s1783 + $0x5dc] sm:$0xff]
        %v2096 = vld [vmem:[%s1783 + $0x5e4] sm:$0xff]
        %v2097 = vld [vmem:[%s1783 + $0x5ec] sm:$0xf]
        %v2098 = vld [vmem:[%s1783 + $0x5f0] sm:$0xff]
        %v2099 = vld [vmem:[%s1783 + $0x5f8] sm:$0xff]
        %v2100 = vld [vmem:[%s1783 + $0x600] sm:$0xf]
        %v2101 = vld [vmem:[%s1783 + $0x604] sm:$0xff]
        %v2102 = vld [vmem:[%s1783 + $0x60c] sm:$0xff]
        %v2103 = vld [vmem:[%s1783 + $0x614] sm:$0xf]
        %v2104 = vld [vmem:[%s1783 + $0x618] sm:$0xff]
        %v2105 = vld [vmem:[%s1783 + $0x620] sm:$0xff]
        %v2106 = vld [vmem:[%s1783 + $0x628] sm:$0xf]
        %v2107 = vld [vmem:[%s1783 + $0x62c] sm:$0xff]
        %v2108 = vld [vmem:[%s1783 + $0x634] sm:$0xff]
        %v2109 = vld [vmem:[%s1783 + $0x63c] sm:$0xf]
        %v2110 = vld [vmem:[%s1783 + $0x640] sm:$0xff]
        %v2111 = vld [vmem:[%s1783 + $0x648] sm:$0xff]
        %v2112 = vld [vmem:[%s1783 + $0x650] sm:$0xf]
        %v2113 = vld [vmem:[%s1783 + $0x654] sm:$0xff]
        %v2114 = vld [vmem:[%s1783 + $0x65c] sm:$0xff]
        %v2115 = vld [vmem:[%s1783 + $0x664] sm:$0xf]
        %v2116 = vld [vmem:[%s1783 + $0x668] sm:$0xff]
        %v2117 = vld [vmem:[%s1783 + $0x670] sm:$0xff]
        %v2118 = vld [vmem:[%s1783 + $0x678] sm:$0xf]
        %v2119 = vld [vmem:[%s1783 + $0x67c] sm:$0xff]
        %v2120 = vld [vmem:[%s1783 + $0x684] sm:$0xff]
        %v2121 = vld [vmem:[%s1783 + $0x68c] sm:$0xf]
        %v2122 = vld [vmem:[%s1783 + $0x690] sm:$0xff]
        %v2123 = vld [vmem:[%s1783 + $0x698] sm:$0xff]
        %v2124 = vld [vmem:[%s1783 + $0x6a0] sm:$0xf]
        %v2125 = vld [vmem:[%s1783 + $0x6a4] sm:$0xff]
        %v2126 = vld [vmem:[%s1783 + $0x6ac] sm:$0xff]
        %v2127 = vld [vmem:[%s1783 + $0x6b4] sm:$0xf]
        %v2128 = vld [vmem:[%s1783 + $0x6b8] sm:$0xff]
        %v2129 = vld [vmem:[%s1783 + $0x6c0] sm:$0xff]
        %v2130 = vld [vmem:[%s1783 + $0x6c8] sm:$0xf]
        %v2131 = vld [vmem:[%s1783 + $0x6cc] sm:$0xff]
        %v2132 = vld [vmem:[%s1783 + $0x6d4] sm:$0xff]
        %v2133 = vld [vmem:[%s1783 + $0x6dc] sm:$0xf]
        %v2134 = vld [vmem:[%s1783 + $0x6e0] sm:$0xff]
        %v2135 = vld [vmem:[%s1783 + $0x6e8] sm:$0xff]
        %v2136 = vld [vmem:[%s1783 + $0x6f0] sm:$0xf]
        %v2137 = vld [vmem:[%s1783 + $0x6f4] sm:$0xff]
        %v2138 = vld [vmem:[%s1783 + $0x6fc] sm:$0xff]
        %v2139 = vld [vmem:[%s1783 + $0x704] sm:$0xf]
        %v2140 = vld [vmem:[%s1783 + $0x708] sm:$0xff]
        %v2141 = vld [vmem:[%s1783 + $0x710] sm:$0xff]
        %v2142 = vld [vmem:[%s1783 + $0x718] sm:$0xf]
        %v2143 = vld [vmem:[%s1783 + $0x71c] sm:$0xff]
        %v2144 = vld [vmem:[%s1783 + $0x724] sm:$0xff]
        %v2145 = vld [vmem:[%s1783 + $0x72c] sm:$0xf]
        %v2146 = vld [vmem:[%s1783 + $0x730] sm:$0xff]
        %v2147 = vld [vmem:[%s1783 + $0x738] sm:$0xff]
        %v2148 = vld [vmem:[%s1783 + $0x740] sm:$0xf]
        %v2149 = vld [vmem:[%s1783 + $0x744] sm:$0xff]
        %v2150 = vld [vmem:[%s1783 + $0x74c] sm:$0xff]
        %v2151 = vld [vmem:[%s1783 + $0x754] sm:$0xf]
        %v2152 = vld [vmem:[%s1783 + $0x758] sm:$0xff]
        %v2153 = vld [vmem:[%s1783 + $0x760] sm:$0xff]
        %v2154 = vld [vmem:[%s1783 + $0x768] sm:$0xf]
        %v2155 = vld [vmem:[%s1783 + $0x76c] sm:$0xff]
        %v2156 = vld [vmem:[%s1783 + $0x774] sm:$0xff]
        %v2157 = vld [vmem:[%s1783 + $0x77c] sm:$0xf]
        %v2158 = vld [vmem:[%s1783 + $0x780] sm:$0xff]
        %v2159 = vld [vmem:[%s1783 + $0x788] sm:$0xff]
        %v2160 = vld [vmem:[%s1783 + $0x790] sm:$0xf]
        %v2161 = vld [vmem:[%s1783 + $0x794] sm:$0xff]
        %v2162 = vld [vmem:[%s1783 + $0x79c] sm:$0xff]
        %v2163 = vld [vmem:[%s1783 + $0x7a4] sm:$0xf]
        %v2164 = vld [vmem:[%s1783 + $0x7a8] sm:$0xff]
        %v2165 = vld [vmem:[%s1783 + $0x7b0] sm:$0xff]
        %v2166 = vld [vmem:[%s1783 + $0x7b8] sm:$0xf]
        %v2167 = vld [vmem:[%s1783 + $0x7bc] sm:$0xff]
        %v2168 = vld [vmem:[%s1783 + $0x7c4] sm:$0xff]
        %v2169 = vld [vmem:[%s1783 + $0x7cc] sm:$0xf]
        %v2170 = vld [vmem:[%s1783 + $0x7d0] sm:$0xff]
        %v2171 = vld [vmem:[%s1783 + $0x7d8] sm:$0xff]
        %v2172 = vld [vmem:[%s1783 + $0x7e0] sm:$0xf]
        %v2173 = vld [vmem:[%s1783 + $0x7e4] sm:$0xff]
        %v2174 = vld [vmem:[%s1783 + $0x7ec] sm:$0xff]
        %v2175 = vld [vmem:[%s1783 + $0x7f4] sm:$0xf]
        %v2176 = vld [vmem:[%s1783 + $0x7f8] sm:$0xff]
        %v2177 = vld [vmem:[%s1783 + $0x800] sm:$0xff]
        %v2178 = vld [vmem:[%s1783 + $0x808] sm:$0xf]
        %v2179 = vld [vmem:[%s1783 + $0x80c] sm:$0xff]
        %v2180 = vld [vmem:[%s1783 + $0x814] sm:$0xff]
        %v2181 = vld [vmem:[%s1783 + $0x81c] sm:$0xf]
        %v2182 = vld [vmem:[%s1783 + $0x820] sm:$0xff]
        %v2183 = vld [vmem:[%s1783 + $0x828] sm:$0xff]
        %v2184 = vld [vmem:[%s1783 + $0x830] sm:$0xf]
        %v2185 = vld [vmem:[%s1783 + $0x834] sm:$0xff]
        %v2186 = vld [vmem:[%s1783 + $0x83c] sm:$0xff]
        %v2187 = vld [vmem:[%s1783 + $0x844] sm:$0xf]
        %v2188 = vld [vmem:[%s1783 + $0x848] sm:$0xff]
        %v2189 = vld [vmem:[%s1783 + $0x850] sm:$0xff]
        %v2190 = vld [vmem:[%s1783 + $0x858] sm:$0xf]
        %v2191 = vld [vmem:[%s1783 + $0x85c] sm:$0xff]
        %v2192 = vld [vmem:[%s1783 + $0x864] sm:$0xff]
        %v2193 = vld [vmem:[%s1783 + $0x86c] sm:$0xf]
        %v2194 = vld [vmem:[%s1783 + $0x870] sm:$0xff]
        %v2195 = vld [vmem:[%s1783 + $0x878] sm:$0xff]
        %v2196 = vld [vmem:[%s1783 + $0x880] sm:$0xf]
        %v2197 = vld [vmem:[%s1783 + $0x884] sm:$0xff]
        %v2198 = vld [vmem:[%s1783 + $0x88c] sm:$0xff]
        %v2199 = vld [vmem:[%s1783 + $0x894] sm:$0xf]
        %v2200 = vld [vmem:[%s1783 + $0x898] sm:$0xff]
        %v2201 = vld [vmem:[%s1783 + $0x8a0] sm:$0xff]
        %v2202 = vld [vmem:[%s1783 + $0x8a8] sm:$0xf]
        %v2203 = vld [vmem:[%s1783 + $0x8ac] sm:$0xff]
        %v2204 = vld [vmem:[%s1783 + $0x8b4] sm:$0xff]
        %v2205 = vld [vmem:[%s1783 + $0x8bc] sm:$0xf]
        %v2206 = vld [vmem:[%s1783 + $0x8c0] sm:$0xff]
        %v2207 = vld [vmem:[%s1783 + $0x8c8] sm:$0xff]
        %v2208 = vld [vmem:[%s1783 + $0x8d0] sm:$0xf]
        %v2209 = vld [vmem:[%s1783 + $0x8d4] sm:$0xff]
        %v2210 = vld [vmem:[%s1783 + $0x8dc] sm:$0xff]
        %v2211 = vld [vmem:[%s1783 + $0x8e4] sm:$0xf]
        %v2212 = vld [vmem:[%s1783 + $0x8e8] sm:$0xff]
        %v2213 = vld [vmem:[%s1783 + $0x8f0] sm:$0xff]
        %v2214 = vld [vmem:[%s1783 + $0x8f8] sm:$0xf]
        %v2215 = vld [vmem:[%s1783 + $0x8fc] sm:$0xff]
        %v2216 = vld [vmem:[%s1783 + $0x904] sm:$0xff]
        %v2217 = vld [vmem:[%s1783 + $0x90c] sm:$0xf]
        %v2218 = vld [vmem:[%s1783 + $0x910] sm:$0xff]
        %v2219 = vld [vmem:[%s1783 + $0x918] sm:$0xff]
        %v2220 = vld [vmem:[%s1783 + $0x920] sm:$0xf]
        %v2221 = vld [vmem:[%s1783 + $0x924] sm:$0xff]
        %v2222 = vld [vmem:[%s1783 + $0x92c] sm:$0xff]
        %v2223 = vld [vmem:[%s1783 + $0x934] sm:$0xf]
        %v2224 = vld [vmem:[%s1783 + $0x938] sm:$0xff]
        %v2225 = vld [vmem:[%s1783 + $0x940] sm:$0xff]
        %v2226 = vld [vmem:[%s1783 + $0x948] sm:$0xf]
        %v2227 = vld [vmem:[%s1783 + $0x94c] sm:$0xff]
        %v2228 = vld [vmem:[%s1783 + $0x954] sm:$0xff]
        %v2229 = vld [vmem:[%s1783 + $0x95c] sm:$0xf]
        %v2230 = vld [vmem:[%s1783 + $0x960] sm:$0xff]
        %v2231 = vld [vmem:[%s1783 + $0x968] sm:$0xff]
        %v2232 = vld [vmem:[%s1783 + $0x970] sm:$0xf]
        %v2233 = vld [vmem:[%s1783 + $0x974] sm:$0xff]
        %v2234 = vld [vmem:[%s1783 + $0x97c] sm:$0xff]
        %v2235 = vld [vmem:[%s1783 + $0x984] sm:$0xf]
        %v2236 = vld [vmem:[%s1783 + $0x988] sm:$0xff]
        %v2237 = vld [vmem:[%s1783 + $0x990] sm:$0xff]
        %v2238 = vld [vmem:[%s1783 + $0x998] sm:$0xf]
        %v2239 = vld [vmem:[%s1783 + $0x99c] sm:$0xff]
        %v2240 = vld [vmem:[%s1783 + $0x9a4] sm:$0xff]
        %v2241 = vld [vmem:[%s1783 + $0x9ac] sm:$0xf]
        %v2242 = vld [vmem:[%s1783 + $0x9b0] sm:$0xff]
        %v2243 = vld [vmem:[%s1783 + $0x9b8] sm:$0xff]
        %v2244 = vld [vmem:[%s1783 + $0x9c0] sm:$0xf]
        %v2245 = vld [vmem:[%s1783 + $0x9c4] sm:$0xff]
        %v2246 = vld [vmem:[%s1783 + $0x9cc] sm:$0xff]
        %v2247 = vld [vmem:[%s1783 + $0x9d4] sm:$0xf]
        %v2248 = vld [vmem:[%s1783 + $0x9d8] sm:$0xff]
        %v2249 = vld [vmem:[%s1783 + $0x9e0] sm:$0xff]
        %v2250 = vld [vmem:[%s1783 + $0x9e8] sm:$0xf]
        %v2251 = vld [vmem:[%s1783 + $0x9ec] sm:$0xff]
        %v2252 = vld [vmem:[%s1783 + $0x9f4] sm:$0xff]
        %v2253 = vld [vmem:[%s1783 + $0x9fc] sm:$0xf]
        %v2254 = vld [vmem:[%s1783 + $0xa00] sm:$0xff]
        %v2255 = vld [vmem:[%s1783 + $0xa08] sm:$0xff]
        %v2256 = vld [vmem:[%s1783 + $0xa10] sm:$0xf]
        %v2257 = vld [vmem:[%s1783 + $0xa14] sm:$0xff]
        %v2258 = vld [vmem:[%s1783 + $0xa1c] sm:$0xff]
        %v2259 = vld [vmem:[%s1783 + $0xa24] sm:$0xf]
        %v2260 = vld [vmem:[%s1783 + $0xa28] sm:$0xff]
        %v2261 = vld [vmem:[%s1783 + $0xa30] sm:$0xff]
        %v2262 = vld [vmem:[%s1783 + $0xa38] sm:$0xf]
        %v2263 = vld [vmem:[%s1783 + $0xa3c] sm:$0xff]
        %v2264 = vld [vmem:[%s1783 + $0xa44] sm:$0xff]
        %v2265 = vld [vmem:[%s1783 + $0xa4c] sm:$0xf]
        %v2266 = vld [vmem:[%s1783 + $0xa50] sm:$0xff]
        %v2267 = vld [vmem:[%s1783 + $0xa58] sm:$0xff]
        %v2268 = vld [vmem:[%s1783 + $0xa60] sm:$0xf]
        %v2269 = vld [vmem:[%s1783 + $0xa64] sm:$0xff]
        %v2270 = vld [vmem:[%s1783 + $0xa6c] sm:$0xff]
        %v2271 = vld [vmem:[%s1783 + $0xa74] sm:$0xf]
        %v2272 = vld [vmem:[%s1783 + $0xa78] sm:$0xff]
        %v2273 = vld [vmem:[%s1783 + $0xa80] sm:$0xff]
        %v2274 = vld [vmem:[%s1783 + $0xa88] sm:$0xf]
        %v2275 = vld [vmem:[%s1783 + $0xa8c] sm:$0xff]
        %v2276 = vld [vmem:[%s1783 + $0xa94] sm:$0xff]
        %v2277 = vld [vmem:[%s1783 + $0xa9c] sm:$0xf]
        %v2278 = vld [vmem:[%s1783 + $0xaa0] sm:$0xff]
        %v2279 = vld [vmem:[%s1783 + $0xaa8] sm:$0xff]
        %v2280 = vld [vmem:[%s1783 + $0xab0] sm:$0xf]
        %v2281 = vld [vmem:[%s1783 + $0xab4] sm:$0xff]
        %v2282 = vld [vmem:[%s1783 + $0xabc] sm:$0xff]
        %v2283 = vld [vmem:[%s1783 + $0xac4] sm:$0xf]
        %v2284 = vld [vmem:[%s1783 + $0xac8] sm:$0xff]
        %v2285 = vld [vmem:[%s1783 + $0xad0] sm:$0xff]
        %v2286 = vld [vmem:[%s1783 + $0xad8] sm:$0xf]
        %v2287 = vld [vmem:[%s1783 + $0xadc] sm:$0xff]
        %v2288 = vld [vmem:[%s1783 + $0xae4] sm:$0xff]
        %v2289 = vld [vmem:[%s1783 + $0xaec] sm:$0xf]
        %v2290 = vld [vmem:[%s1783 + $0xaf0] sm:$0xff]
        %v2291 = vld [vmem:[%s1783 + $0xaf8] sm:$0xff]
        %v2292 = vld [vmem:[%s1783 + $0xb00] sm:$0xf]
        %v2293 = vld [vmem:[%s1783 + $0xb04] sm:$0xff]
        %v2294 = vld [vmem:[%s1783 + $0xb0c] sm:$0xff]
        %v2295 = vld [vmem:[%s1783 + $0xb14] sm:$0xf]
        %v2296 = vld [vmem:[%s1783 + $0xb18] sm:$0xff]
        %v2297 = vld [vmem:[%s1783 + $0xb20] sm:$0xff]
        %v2298 = vld [vmem:[%s1783 + $0xb28] sm:$0xf]
        %v2299 = vld [vmem:[%s1783 + $0xb2c] sm:$0xff]
        %v2300 = vld [vmem:[%s1783 + $0xb34] sm:$0xff]
        %v2301 = vld [vmem:[%s1783 + $0xb3c] sm:$0xf]
        %v2302 = vld [vmem:[%s1783 + $0xb40] sm:$0xff]
        %v2303 = vld [vmem:[%s1783 + $0xb48] sm:$0xff]
        %v2304 = vld [vmem:[%s1783 + $0xb50] sm:$0xf]
        %v2305 = vld [vmem:[%s1783 + $0xb54] sm:$0xff]
        %v2306 = vld [vmem:[%s1783 + $0xb5c] sm:$0xff]
        %v2307 = vld [vmem:[%s1783 + $0xb64] sm:$0xf]
        %v2308 = vld [vmem:[%s1783 + $0xb68] sm:$0xff]
        %v2309 = vld [vmem:[%s1783 + $0xb70] sm:$0xff]
        %v2310 = vld [vmem:[%s1783 + $0xb78] sm:$0xf]
        %v2311 = vld [vmem:[%s1783 + $0xb7c] sm:$0xff]
        %v2312 = vld [vmem:[%s1783 + $0xb84] sm:$0xff]
        %v2313 = vld [vmem:[%s1783 + $0xb8c] sm:$0xf]
        %v2314 = vld [vmem:[%s1783 + $0xb90] sm:$0xff]
        %v2315 = vld [vmem:[%s1783 + $0xb98] sm:$0xff]
        %v2316 = vld [vmem:[%s1783 + $0xba0] sm:$0xf]
        %v2317 = vld [vmem:[%s1783 + $0xba4] sm:$0xff]
        %v2318 = vld [vmem:[%s1783 + $0xbac] sm:$0xff]
        %v2319 = vld [vmem:[%s1783 + $0xbb4] sm:$0xf]
        %v2320 = vld [vmem:[%s1783 + $0xbb8] sm:$0xff]
        %v2321 = vld [vmem:[%s1783 + $0xbc0] sm:$0xff]
        %v2322 = vld [vmem:[%s1783 + $0xbc8] sm:$0xf]
        %v2323 = vld [vmem:[%s1783 + $0xbcc] sm:$0xff]
        %v2324 = vld [vmem:[%s1783 + $0xbd4] sm:$0xff]
        %v2325 = vld [vmem:[%s1783 + $0xbdc] sm:$0xf]
        %v2326 = vld [vmem:[%s1783 + $0xbe0] sm:$0xff]
        %v2327 = vld [vmem:[%s1783 + $0xbe8] sm:$0xff]
        %v2328 = vld [vmem:[%s1783 + $0xbf0] sm:$0xf]
        %v2329 = vld [vmem:[%s1783 + $0xbf4] sm:$0xff]
        %v2330 = vld [vmem:[%s1783 + $0xbfc] sm:$0xff]
        %v2331 = vld [vmem:[%s1783 + $0xc04] sm:$0xf]
        %v2332 = vld [vmem:[%s1783 + $0xc08] sm:$0xff]
        %v2333 = vld [vmem:[%s1783 + $0xc10] sm:$0xff]
        %v2334 = vld [vmem:[%s1783 + $0xc18] sm:$0xf]
        %v2335 = vld [vmem:[%s1783 + $0xc1c] sm:$0xff]
        %v2336 = vld [vmem:[%s1783 + $0xc24] sm:$0xff]
        %v2337 = vld [vmem:[%s1783 + $0xc2c] sm:$0xf]
        %v2338 = vld [vmem:[%s1783 + $0xc30] sm:$0xff]
        %v2339 = vld [vmem:[%s1783 + $0xc38] sm:$0xff]
        %v2340 = vld [vmem:[%s1783 + $0xc40] sm:$0xf]
        %v2341 = vld [vmem:[%s1783 + $0xc44] sm:$0xff]
        %v2342 = vld [vmem:[%s1783 + $0xc4c] sm:$0xff]
        %v2343 = vld [vmem:[%s1783 + $0xc54] sm:$0xf]
        %v2344 = vld [vmem:[%s1783 + $0xc58] sm:$0xff]
        %v2345 = vld [vmem:[%s1783 + $0xc60] sm:$0xff]
        %v2346 = vld [vmem:[%s1783 + $0xc68] sm:$0xf]
        %v2347 = vld [vmem:[%s1783 + $0xc6c] sm:$0xff]
        %v2348 = vld [vmem:[%s1783 + $0xc74] sm:$0xff]
        %v2349 = vld [vmem:[%s1783 + $0xc7c] sm:$0xf]
        %v2350 = vld [vmem:[%s1783 + $0xc80] sm:$0xff]
        %v2351 = vld [vmem:[%s1783 + $0xc88] sm:$0xff]
        %v2352 = vld [vmem:[%s1783 + $0xc90] sm:$0xf]
        %v2353 = vld [vmem:[%s1783 + $0xc94] sm:$0xff]
        %v2354 = vld [vmem:[%s1783 + $0xc9c] sm:$0xff]
        %v2355 = vld [vmem:[%s1783 + $0xca4] sm:$0xf]
        %v2356 = vld [vmem:[%s1783 + $0xca8] sm:$0xff]
        %v2357 = vld [vmem:[%s1783 + $0xcb0] sm:$0xff]
        %v2358 = vld [vmem:[%s1783 + $0xcb8] sm:$0xf]
        %v2359 = vld [vmem:[%s1783 + $0xcbc] sm:$0xff]
        %v2360 = vld [vmem:[%s1783 + $0xcc4] sm:$0xff]
        %v2361 = vld [vmem:[%s1783 + $0xccc] sm:$0xf]
        %v2362 = vld [vmem:[%s1783 + $0xcd0] sm:$0xff]
        %v2363 = vld [vmem:[%s1783 + $0xcd8] sm:$0xff]
        %v2364 = vld [vmem:[%s1783 + $0xce0] sm:$0xf]
        %v2365 = vld [vmem:[%s1783 + $0xce4] sm:$0xff]
        %v2366 = vld [vmem:[%s1783 + $0xcec] sm:$0xff]
        %v2367 = vld [vmem:[%s1783 + $0xcf4] sm:$0xf]
        %v2368 = vld [vmem:[%s1783 + $0xcf8] sm:$0xff]
        %v2369 = vld [vmem:[%s1783 + $0xd00] sm:$0xff]
        %v2370 = vld [vmem:[%s1783 + $0xd08] sm:$0xf]
        %v2371 = vld [vmem:[%s1783 + $0xd0c] sm:$0xff]
        %v2372 = vld [vmem:[%s1783 + $0xd14] sm:$0xff]
        %v2373 = vld [vmem:[%s1783 + $0xd1c] sm:$0xf]
        %v2374 = vld [vmem:[%s1783 + $0xd20] sm:$0xff]
        %v2375 = vld [vmem:[%s1783 + $0xd28] sm:$0xff]
        %v2376 = vld [vmem:[%s1783 + $0xd30] sm:$0xf]
        %v2377 = vld [vmem:[%s1783 + $0xd34] sm:$0xff]
        %v2378 = vld [vmem:[%s1783 + $0xd3c] sm:$0xff]
        %v2379 = vld [vmem:[%s1783 + $0xd44] sm:$0xf]
        %v2380 = vld [vmem:[%s1783 + $0xd48] sm:$0xff]
        %v2381 = vld [vmem:[%s1783 + $0xd50] sm:$0xff]
        %v2382 = vld [vmem:[%s1783 + $0xd58] sm:$0xf]
        %v2383 = vld [vmem:[%s1783 + $0xd5c] sm:$0xff]
        %v2384 = vld [vmem:[%s1783 + $0xd64] sm:$0xff]
        %v2385 = vld [vmem:[%s1783 + $0xd6c] sm:$0xf]
        %v2386 = vld [vmem:[%s1783 + $0xd70] sm:$0xff]
        %v2387 = vld [vmem:[%s1783 + $0xd78] sm:$0xff]
        %v2388 = vld [vmem:[%s1783 + $0xd80] sm:$0xf]
        %v2389 = vld [vmem:[%s1783 + $0xd84] sm:$0xff]
        %v2390 = vld [vmem:[%s1783 + $0xd8c] sm:$0xff]
        %v2391 = vld [vmem:[%s1783 + $0xd94] sm:$0xf]
        %v2392 = vld [vmem:[%s1783 + $0xd98] sm:$0xff]
        %v2393 = vld [vmem:[%s1783 + $0xda0] sm:$0xff]
        %v2394 = vld [vmem:[%s1783 + $0xda8] sm:$0xf]
        %v2395 = vld [vmem:[%s1783 + $0xdac] sm:$0xff]
        %v2396 = vld [vmem:[%s1783 + $0xdb4] sm:$0xff]
        %v2397 = vld [vmem:[%s1783 + $0xdbc] sm:$0xf]
        %v2398 = vld [vmem:[%s1783 + $0xdc0] sm:$0xff]
        %v2399 = vld [vmem:[%s1783 + $0xdc8] sm:$0xff]
        %v2400 = vld [vmem:[%s1783 + $0xdd0] sm:$0xf]
        %v2401 = vld [vmem:[%s1783 + $0xdd4] sm:$0xff]
        %v2402 = vld [vmem:[%s1783 + $0xddc] sm:$0xff]
        %v2403 = vld [vmem:[%s1783 + $0xde4] sm:$0xf]
        %v2404 = vld [vmem:[%s1783 + $0xde8] sm:$0xff]
        %v2405 = vld [vmem:[%s1783 + $0xdf0] sm:$0xff]
        %v2406 = vld [vmem:[%s1783 + $0xdf8] sm:$0xf]
        %v2407 = vld [vmem:[%s1783 + $0xdfc] sm:$0xff]
        %v2408 = vld [vmem:[%s1783 + $0xe04] sm:$0xff]
        %v2409 = vld [vmem:[%s1783 + $0xe0c] sm:$0xf]
        %v2410 = vld [vmem:[%s1783 + $0xe10] sm:$0xff]
        %v2411 = vld [vmem:[%s1783 + $0xe18] sm:$0xff]
        %v2412 = vld [vmem:[%s1783 + $0xe20] sm:$0xf]
        %v2413 = vld [vmem:[%s1783 + $0xe24] sm:$0xff]
        %v2414 = vld [vmem:[%s1783 + $0xe2c] sm:$0xff]
        %v2415 = vld [vmem:[%s1783 + $0xe34] sm:$0xf]
        %v2416 = vld [vmem:[%s1783 + $0xe38] sm:$0xff]
        %v2417 = vld [vmem:[%s1783 + $0xe40] sm:$0xff]
        %v2418 = vld [vmem:[%s1783 + $0xe48] sm:$0xf]
        %v2419 = vld [vmem:[%s1783 + $0xe4c] sm:$0xff]
        %v2420 = vld [vmem:[%s1783 + $0xe54] sm:$0xff]
        %v2421 = vld [vmem:[%s1783 + $0xe5c] sm:$0xf]
        %v2422 = vld [vmem:[%s1783 + $0xe60] sm:$0xff]
        %v2423 = vld [vmem:[%s1783 + $0xe68] sm:$0xff]
        %v2424 = vld [vmem:[%s1783 + $0xe70] sm:$0xf]
        %v2425 = vld [vmem:[%s1783 + $0xe74] sm:$0xff]
        %v2426 = vld [vmem:[%s1783 + $0xe7c] sm:$0xff]
        %v2427 = vld [vmem:[%s1783 + $0xe84] sm:$0xf]
        %v2428 = vld [vmem:[%s1783 + $0xe88] sm:$0xff]
        %v2429 = vld [vmem:[%s1783 + $0xe90] sm:$0xff]
        %v2430 = vld [vmem:[%s1783 + $0xe98] sm:$0xf]
        %v2431 = vld [vmem:[%s1783 + $0xe9c] sm:$0xff]
        %v2432 = vld [vmem:[%s1783 + $0xea4] sm:$0xff]
        %v2433 = vld [vmem:[%s1783 + $0xeac] sm:$0xf]
        %v2434 = vld [vmem:[%s1783 + $0xeb0] sm:$0xff]
        %v2435 = vld [vmem:[%s1783 + $0xeb8] sm:$0xff]
        %v2436 = vld [vmem:[%s1783 + $0xec0] sm:$0xf]
        %v2437 = vld [vmem:[%s1783 + $0xec4] sm:$0xff]
        %v2438 = vld [vmem:[%s1783 + $0xecc] sm:$0xff]
        %v2439 = vld [vmem:[%s1783 + $0xed4] sm:$0xf]
        %v2440 = vld [vmem:[%s1783 + $0xed8] sm:$0xff]
        %v2441 = vld [vmem:[%s1783 + $0xee0] sm:$0xff]
        %v2442 = vld [vmem:[%s1783 + $0xee8] sm:$0xf]
        %v2443 = vld [vmem:[%s1783 + $0xeec] sm:$0xff]
        %v2444 = vld [vmem:[%s1783 + $0xef4] sm:$0xff]
        %v2445 = vld [vmem:[%s1783 + $0xefc] sm:$0xf]
        %v2446 = vld [vmem:[%s1783 + $0xf00] sm:$0xff]
        %v2447 = vld [vmem:[%s1783 + $0xf08] sm:$0xff]
        %v2448 = vld [vmem:[%s1783 + $0xf10] sm:$0xf]
        %v2449 = vld [vmem:[%s1783 + $0xf14] sm:$0xff]
        %v2450 = vld [vmem:[%s1783 + $0xf1c] sm:$0xff]
        %v2451 = vld [vmem:[%s1783 + $0xf24] sm:$0xf]
        %v2452 = vld [vmem:[%s1783 + $0xf28] sm:$0xff]
        %v2453 = vld [vmem:[%s1783 + $0xf30] sm:$0xff]
        %v2454 = vld [vmem:[%s1783 + $0xf38] sm:$0xf]
        %v2455 = vld [vmem:[%s1783 + $0xf3c] sm:$0xff]
        %v2456 = vld [vmem:[%s1783 + $0xf44] sm:$0xff]
        %v2457 = vld [vmem:[%s1783 + $0xf4c] sm:$0xf]
        %v2458 = vld [vmem:[%s1783 + $0xf50] sm:$0xff]
        %v2459 = vld [vmem:[%s1783 + $0xf58] sm:$0xff]
        %v2460 = vld [vmem:[%s1783 + $0xf60] sm:$0xf]
        %v2461 = vld [vmem:[%s1783 + $0xf64] sm:$0xff]
        %v2462 = vld [vmem:[%s1783 + $0xf6c] sm:$0xff]
        %v2463 = vld [vmem:[%s1783 + $0xf74] sm:$0xf]
        %v2464 = vld [vmem:[%s1783 + $0xf78] sm:$0xff]
        %v2465 = vld [vmem:[%s1783 + $0xf80] sm:$0xff]
        %v2466 = vld [vmem:[%s1783 + $0xf88] sm:$0xf]
        %v2467 = vld [vmem:[%s1783 + $0xf8c] sm:$0xff]
        %v2468 = vld [vmem:[%s1783 + $0xf94] sm:$0xff]
        %v2469 = vld [vmem:[%s1783 + $0xf9c] sm:$0xf]
        %v2470 = vld [vmem:[%s1783 + $0xfa0] sm:$0xff]
        %v2471 = vld [vmem:[%s1783 + $0xfa8] sm:$0xff]
        %v2472 = vld [vmem:[%s1783 + $0xfb0] sm:$0xf]
        %v2473 = vld [vmem:[%s1783 + $0xfb4] sm:$0xff]
        %v2474 = vld [vmem:[%s1783 + $0xfbc] sm:$0xff]
        %v2475 = vld [vmem:[%s1783 + $0xfc4] sm:$0xf]
        %v2476 = vld [vmem:[%s1783 + $0xfc8] sm:$0xff]
        %v2477 = vld [vmem:[%s1783 + $0xfd0] sm:$0xff]
        %v2478 = vld [vmem:[%s1783 + $0xfd8] sm:$0xf]
        %v2479 = vld [vmem:[%s1783 + $0xfdc] sm:$0xff]
        %v2480 = vld [vmem:[%s1783 + $0xfe4] sm:$0xff]
        %v2481 = vld [vmem:[%s1783 + $0xfec] sm:$0xf]
        %v2482 = vld [vmem:[%s1783 + $0xff0] sm:$0xff]
        %v2483 = vld [vmem:[%s1783 + $0xff8] sm:$0xff]
        %v2484 = vld [vmem:[%s1783 + $0x1000] sm:$0xf]
        %v2485 = vld [vmem:[%s1783 + $0x1004] sm:$0xff]
        %v2486 = vld [vmem:[%s1783 + $0x100c] sm:$0xff]
        %v2487 = vld [vmem:[%s1783 + $0x1014] sm:$0xf]
        %v2488 = vld [vmem:[%s1783 + $0x1018] sm:$0xff]
        %v2489 = vld [vmem:[%s1783 + $0x1020] sm:$0xff]
        %v2490 = vld [vmem:[%s1783 + $0x1028] sm:$0xf]
        %v2491 = vld [vmem:[%s1783 + $0x102c] sm:$0xff]
        %v2492 = vld [vmem:[%s1783 + $0x1034] sm:$0xff]
        %v2493 = vld [vmem:[%s1783 + $0x103c] sm:$0xf]
        %v2494 = vld [vmem:[%s1783 + $0x1040] sm:$0xff]
        %v2495 = vld [vmem:[%s1783 + $0x1048] sm:$0xff]
        %v2496 = vld [vmem:[%s1783 + $0x1050] sm:$0xf]
        %v2497 = vld [vmem:[%s1783 + $0x1054] sm:$0xff]
        %v2498 = vld [vmem:[%s1783 + $0x105c] sm:$0xff]
        %v2499 = vld [vmem:[%s1783 + $0x1064] sm:$0xf]
        %v2500 = vld [vmem:[%s1783 + $0x1068] sm:$0xff]
        %v2501 = vld [vmem:[%s1783 + $0x1070] sm:$0xff]
        %v2502 = vld [vmem:[%s1783 + $0x1078] sm:$0xf]
        %v2503 = vld [vmem:[%s1783 + $0x107c] sm:$0xff]
        %v2504 = vld [vmem:[%s1783 + $0x1084] sm:$0xff]
        %v2505 = vld [vmem:[%s1783 + $0x108c] sm:$0xf]
        %v2506 = vld [vmem:[%s1783 + $0x1090] sm:$0xff]
        %v2507 = vld [vmem:[%s1783 + $0x1098] sm:$0xff]
        %v2508 = vld [vmem:[%s1783 + $0x10a0] sm:$0xf]
        %v2509 = vld [vmem:[%s1783 + $0x10a4] sm:$0xff]
        %v2510 = vld [vmem:[%s1783 + $0x10ac] sm:$0xff]
        %v2511 = vld [vmem:[%s1783 + $0x10b4] sm:$0xf]
        %v2512 = vld [vmem:[%s1783 + $0x10b8] sm:$0xff]
        %v2513 = vld [vmem:[%s1783 + $0x10c0] sm:$0xff]
        %v2514 = vld [vmem:[%s1783 + $0x10c8] sm:$0xf]
        %v2515 = vld [vmem:[%s1783 + $0x10cc] sm:$0xff]
        %v2516 = vld [vmem:[%s1783 + $0x10d4] sm:$0xff]
        %v2517 = vld [vmem:[%s1783 + $0x10dc] sm:$0xf]
        %v2518 = vld [vmem:[%s1783 + $0x10e0] sm:$0xff]
        %v2519 = vld [vmem:[%s1783 + $0x10e8] sm:$0xff]
        %v2520 = vld [vmem:[%s1783 + $0x10f0] sm:$0xf]
        %v2521 = vld [vmem:[%s1783 + $0x10f4] sm:$0xff]
        %v2522 = vld [vmem:[%s1783 + $0x10fc] sm:$0xff]
        %v2523 = vld [vmem:[%s1783 + $0x1104] sm:$0xf]
        %v2524 = vld [vmem:[%s1783 + $0x1108] sm:$0xff]
        %v2525 = vld [vmem:[%s1783 + $0x1110] sm:$0xff]
        %v2526 = vld [vmem:[%s1783 + $0x1118] sm:$0xf]
        %v2527 = vld [vmem:[%s1783 + $0x111c] sm:$0xff]
        %v2528 = vld [vmem:[%s1783 + $0x1124] sm:$0xff]
        %v2529 = vld [vmem:[%s1783 + $0x112c] sm:$0xf]
        %v2530 = vld [vmem:[%s1783 + $0x1130] sm:$0xff]
        %v2531 = vld [vmem:[%s1783 + $0x1138] sm:$0xff]
        %v2532 = vld [vmem:[%s1783 + $0x1140] sm:$0xf]
        %v2533 = vld [vmem:[%s1783 + $0x1144] sm:$0xff]
        %v2534 = vld [vmem:[%s1783 + $0x114c] sm:$0xff]
        %v2535 = vld [vmem:[%s1783 + $0x1154] sm:$0xf]
        %v2536 = vld [vmem:[%s1783 + $0x1158] sm:$0xff]
        %v2537 = vld [vmem:[%s1783 + $0x1160] sm:$0xff]
        %v2538 = vld [vmem:[%s1783 + $0x1168] sm:$0xf]
        %v2539 = vld [vmem:[%s1783 + $0x116c] sm:$0xff]
        %v2540 = vld [vmem:[%s1783 + $0x1174] sm:$0xff]
        %v2541 = vld [vmem:[%s1783 + $0x117c] sm:$0xf]
        %v2542 = vld [vmem:[%s1783 + $0x1180] sm:$0xff]
        %v2543 = vld [vmem:[%s1783 + $0x1188] sm:$0xff]
        %v2544 = vld [vmem:[%s1783 + $0x1190] sm:$0xf]
        %v2545 = vld [vmem:[%s1783 + $0x1194] sm:$0xff]
        %v2546 = vld [vmem:[%s1783 + $0x119c] sm:$0xff]
        %v2547 = vld [vmem:[%s1783 + $0x11a4] sm:$0xf]
        %v2548 = vld [vmem:[%s1783 + $0x11a8] sm:$0xff]
        %v2549 = vld [vmem:[%s1783 + $0x11b0] sm:$0xff]
        %v2550 = vld [vmem:[%s1783 + $0x11b8] sm:$0xf]
        %v2551 = vld [vmem:[%s1783 + $0x11bc] sm:$0xff]
        %v2552 = vld [vmem:[%s1783 + $0x11c4] sm:$0xff]
        %v2553 = vld [vmem:[%s1783 + $0x11cc] sm:$0xf]
        %v2554 = vld [vmem:[%s1783 + $0x11d0] sm:$0xff]
        %v2555 = vld [vmem:[%s1783 + $0x11d8] sm:$0xff]
        %v2556 = vld [vmem:[%s1783 + $0x11e0] sm:$0xf]
        %v2557 = vld [vmem:[%s1783 + $0x11e4] sm:$0xff]
        %v2558 = vld [vmem:[%s1783 + $0x11ec] sm:$0xff]
        %v2559 = vld [vmem:[%s1783 + $0x11f4] sm:$0xf]
        %v2560 = vld [vmem:[%s1783 + $0x11f8] sm:$0xff]
        %v2561 = vld [vmem:[%s1783 + $0x1200] sm:$0xff]
        %v2562 = vld [vmem:[%s1783 + $0x1208] sm:$0xf]
        %v2563 = vld [vmem:[%s1783 + $0x120c] sm:$0xff]
        %v2564 = vld [vmem:[%s1783 + $0x1214] sm:$0xff]
        %v2565 = vld [vmem:[%s1783 + $0x121c] sm:$0xf]
        %v2566 = vld [vmem:[%s1783 + $0x1220] sm:$0xff]
        %v2567 = vld [vmem:[%s1783 + $0x1228] sm:$0xff]
        %v2568 = vld [vmem:[%s1783 + $0x1230] sm:$0xf]
        %v2569 = vld [vmem:[%s1783 + $0x1234] sm:$0xff]
        %v2570 = vld [vmem:[%s1783 + $0x123c] sm:$0xff]
        %v2571 = vld [vmem:[%s1783 + $0x1244] sm:$0xf]
        %v2572 = vld [vmem:[%s1783 + $0x1248] sm:$0xff]
        %v2573 = vld [vmem:[%s1783 + $0x1250] sm:$0xff]
        %v2574 = vld [vmem:[%s1783 + $0x1258] sm:$0xf]
        %v2575 = vld [vmem:[%s1783 + $0x125c] sm:$0xff]
        %v2576 = vld [vmem:[%s1783 + $0x1264] sm:$0xff]
        %v2577 = vld [vmem:[%s1783 + $0x126c] sm:$0xf]
        %v2578 = vld [vmem:[%s1783 + $0x1270] sm:$0xff]
        %v2579 = vld [vmem:[%s1783 + $0x1278] sm:$0xff]
        %v2580 = vld [vmem:[%s1783 + $0x1280] sm:$0xf]
        %v2581 = vld [vmem:[%s1783 + $0x1284] sm:$0xff]
        %v2582 = vld [vmem:[%s1783 + $0x128c] sm:$0xff]
        %v2583 = vld [vmem:[%s1783 + $0x1294] sm:$0xf]
        %v2584 = vld [vmem:[%s1783 + $0x1298] sm:$0xff]
        %v2585 = vld [vmem:[%s1783 + $0x12a0] sm:$0xff]
        %v2586 = vld [vmem:[%s1783 + $0x12a8] sm:$0xf]
        %v2587 = vld [vmem:[%s1783 + $0x12ac] sm:$0xff]
        %v2588 = vld [vmem:[%s1783 + $0x12b4] sm:$0xff]
        %v2589 = vld [vmem:[%s1783 + $0x12bc] sm:$0xf]
        %v2590 = vld [vmem:[%s1783 + $0x12c0] sm:$0xff]
        %v2591 = vld [vmem:[%s1783 + $0x12c8] sm:$0xff]
        %v2592 = vld [vmem:[%s1783 + $0x12d0] sm:$0xf]
        %v2593 = vld [vmem:[%s1783 + $0x12d4] sm:$0xff]
        %v2594 = vld [vmem:[%s1783 + $0x12dc] sm:$0xff]
        %v2595 = vld [vmem:[%s1783 + $0x12e4] sm:$0xf]
        %v2596 = vld [vmem:[%s1783 + $0x12e8] sm:$0xff]
        %v2597 = vld [vmem:[%s1783 + $0x12f0] sm:$0xff]
        %v2598 = vld [vmem:[%s1783 + $0x12f8] sm:$0xf]
        %v2599 = vld [vmem:[%s1783 + $0x12fc] sm:$0xff]
        %v2600 = vld [vmem:[%s1783 + $0x1304] sm:$0xff]
        %v2601 = vld [vmem:[%s1783 + $0x130c] sm:$0xf]
        %v2602 = vld [vmem:[%s1783 + $0x1310] sm:$0xff]
        %v2603 = vld [vmem:[%s1783 + $0x1318] sm:$0xff]
        %v2604 = vld [vmem:[%s1783 + $0x1320] sm:$0xf]
        %v2605 = vld [vmem:[%s1783 + $0x1324] sm:$0xff]
        %v2606 = vld [vmem:[%s1783 + $0x132c] sm:$0xff]
        %v2607 = vld [vmem:[%s1783 + $0x1334] sm:$0xf]
        %v2608 = vld [vmem:[%s1783 + $0x1338] sm:$0xff]
        %v2609 = vld [vmem:[%s1783 + $0x1340] sm:$0xff]
        %v2610 = vld [vmem:[%s1783 + $0x1348] sm:$0xf]
        %v2611 = vld [vmem:[%s1783 + $0x134c] sm:$0xff]
        %v2612 = vld [vmem:[%s1783 + $0x1354] sm:$0xff]
        %v2613 = vld [vmem:[%s1783 + $0x135c] sm:$0xf]
        %v2614 = vld [vmem:[%s1783 + $0x1360] sm:$0xff]
        %v2615 = vld [vmem:[%s1783 + $0x1368] sm:$0xff]
        %v2616 = vld [vmem:[%s1783 + $0x1370] sm:$0xf]
        %v2617 = vld [vmem:[%s1783 + $0x1374] sm:$0xff]
        %v2618 = vld [vmem:[%s1783 + $0x137c] sm:$0xff]
        %v2619 = vld [vmem:[%s1783 + $0x1384] sm:$0xf]
        %v2620 = vld [vmem:[%s1783 + $0x1388] sm:$0xff]
        %v2621 = vld [vmem:[%s1783 + $0x1390] sm:$0xff]
        %v2622 = vld [vmem:[%s1783 + $0x1398] sm:$0xf]
        %v2623 = vld [vmem:[%s1783 + $0x139c] sm:$0xff]
        %v2624 = vld [vmem:[%s1783 + $0x13a4] sm:$0xff]
        %v2625 = vld [vmem:[%s1783 + $0x13ac] sm:$0xf]
        %v2626 = vld [vmem:[%s1783 + $0x13b0] sm:$0xff]
        %v2627 = vld [vmem:[%s1783 + $0x13b8] sm:$0xff]
        %v2628 = vld [vmem:[%s1783 + $0x13c0] sm:$0xf]
        %v2629 = vld [vmem:[%s1783 + $0x13c4] sm:$0xff]
        %v2630 = vld [vmem:[%s1783 + $0x13cc] sm:$0xff]
        %v2631 = vld [vmem:[%s1783 + $0x13d4] sm:$0xf]
        %v2632 = vld [vmem:[%s1783 + $0x13d8] sm:$0xff]
        %v2633 = vld [vmem:[%s1783 + $0x13e0] sm:$0xff]
        %v2634 = vld [vmem:[%s1783 + $0x13e8] sm:$0xf]
        %v2635 = vld [vmem:[%s1783 + $0x13ec] sm:$0xff]
        %v2636 = vld [vmem:[%s1783 + $0x13f4] sm:$0xff]
        %v2637 = vld [vmem:[%s1783 + $0x13fc] sm:$0xf]
        %v2646 = vunpack.c.l.b16 %v1862
        %v2647 = vunpack.c.h.b16 %v1862
        %v2648 = vunpack.c.l.b16 %v1863
        %v2649 = vunpack.c.h.b16 %v1863
        %v2650 = vunpack.c.l.b16 %v1864
        %v2651 = vunpack.c.h.b16 %v1864
        %v2652 = vunpack.c.l.b16 %v1865
        %v2653 = vunpack.c.h.b16 %v1865
        %v2654 = vunpack.c.l.b16 %v1866
        %v2655 = vunpack.c.h.b16 %v1866
        %v2656 = vunpack.c.l.b16 %v1867
        %v2657 = vunpack.c.h.b16 %v1867
        %v2658 = vunpack.c.l.b16 %v1868
        %v2659 = vunpack.c.h.b16 %v1868
        %v2660 = vunpack.c.l.b16 %v1869
        %v2661 = vunpack.c.h.b16 %v1869
        %v2662 = vpack.c.b16 %v2646, %v2646
        %v2663 = vpack.c.b16 %v2647, %v2647
        %v2664 = vpack.c.b16 %v2648, %v2648
        %v2665 = vpack.c.b16 %v2649, %v2649
        %v2666 = vpack.c.b16 %v2650, %v2650
        %v2667 = vpack.c.b16 %v2651, %v2651
        %v2668 = vpack.c.b16 %v2652, %v2652
        %v2669 = vpack.c.b16 %v2653, %v2653
        %v2670 = vpack.c.b16 %v2654, %v2654
        %v2671 = vpack.c.b16 %v2655, %v2655
        %v2672 = vpack.c.b16 %v2656, %v2656
        %v2673 = vpack.c.b16 %v2657, %v2657
        %v2674 = vpack.c.b16 %v2658, %v2658
        %v2675 = vpack.c.b16 %v2659, %v2659
        %v2676 = vpack.c.b16 %v2660, %v2660
        %v2677 = vpack.c.b16 %v2661, %v2661
        %v3462 = vunpack.c.l.b16 %v1870
        %v3463 = vunpack.c.h.b16 %v1870
        %v3464 = vunpack.c.l.b16 %v1871
        %v3465 = vunpack.c.h.b16 %v1871
        %v3466 = vunpack.c.l.b16 %v1872
        %v3467 = vunpack.c.l.b16 %v1873
        %v3468 = vunpack.c.h.b16 %v1873
        %v3469 = vunpack.c.l.b16 %v1874
        %v3470 = vunpack.c.h.b16 %v1874
        %v3471 = vunpack.c.l.b16 %v1875
        %v3472 = vunpack.c.l.b16 %v1876
        %v3473 = vunpack.c.h.b16 %v1876
        %v3474 = vunpack.c.l.b16 %v1877
        %v3475 = vunpack.c.h.b16 %v1877
        %v3476 = vunpack.c.l.b16 %v1878
        %v3477 = vunpack.c.l.b16 %v1879
        %v3478 = vunpack.c.h.b16 %v1879
        %v3479 = vunpack.c.l.b16 %v1880
        %v3480 = vunpack.c.h.b16 %v1880
        %v3481 = vunpack.c.l.b16 %v1881
        %v3482 = vunpack.c.l.b16 %v1882
        %v3483 = vunpack.c.h.b16 %v1882
        %v3484 = vunpack.c.l.b16 %v1883
        %v3485 = vunpack.c.h.b16 %v1883
        %v3486 = vunpack.c.l.b16 %v1884
        %v3487 = vunpack.c.l.b16 %v1885
        %v3488 = vunpack.c.h.b16 %v1885
        %v3489 = vunpack.c.l.b16 %v1886
        %v3490 = vunpack.c.h.b16 %v1886
        %v3491 = vunpack.c.l.b16 %v1887
        %v3492 = vunpack.c.l.b16 %v1888
        %v3493 = vunpack.c.h.b16 %v1888
        %v3494 = vunpack.c.l.b16 %v1889
        %v3495 = vunpack.c.h.b16 %v1889
        %v3496 = vunpack.c.l.b16 %v1890
        %v3497 = vunpack.c.l.b16 %v1891
        %v3498 = vunpack.c.h.b16 %v1891
        %v3499 = vunpack.c.l.b16 %v1892
        %v3500 = vunpack.c.h.b16 %v1892
        %v3501 = vunpack.c.l.b16 %v1893
        %v3502 = vunpack.c.l.b16 %v1894
        %v3503 = vunpack.c.h.b16 %v1894
        %v3504 = vunpack.c.l.b16 %v1895
        %v3505 = vunpack.c.h.b16 %v1895
        %v3506 = vunpack.c.l.b16 %v1896
        %v3507 = vunpack.c.l.b16 %v1897
        %v3508 = vunpack.c.h.b16 %v1897
        %v3509 = vunpack.c.l.b16 %v1898
        %v3510 = vunpack.c.h.b16 %v1898
        %v3511 = vunpack.c.l.b16 %v1899
        %v3512 = vunpack.c.l.b16 %v1900
        %v3513 = vunpack.c.h.b16 %v1900
        %v3514 = vunpack.c.l.b16 %v1901
        %v3515 = vunpack.c.h.b16 %v1901
        %v3516 = vunpack.c.l.b16 %v1902
        %v3517 = vunpack.c.l.b16 %v1903
        %v3518 = vunpack.c.h.b16 %v1903
        %v3519 = vunpack.c.l.b16 %v1904
        %v3520 = vunpack.c.h.b16 %v1904
        %v3521 = vunpack.c.l.b16 %v1905
        %v3522 = vunpack.c.l.b16 %v1906
        %v3523 = vunpack.c.h.b16 %v1906
        %v3524 = vunpack.c.l.b16 %v1907
        %v3525 = vunpack.c.h.b16 %v1907
        %v3526 = vunpack.c.l.b16 %v1908
        %v3527 = vunpack.c.l.b16 %v1909
        %v3528 = vunpack.c.h.b16 %v1909
        %v3529 = vunpack.c.l.b16 %v1910
        %v3530 = vunpack.c.h.b16 %v1910
        %v3531 = vunpack.c.l.b16 %v1911
        %v3532 = vunpack.c.l.b16 %v1912
        %v3533 = vunpack.c.h.b16 %v1912
        %v3534 = vunpack.c.l.b16 %v1913
        %v3535 = vunpack.c.h.b16 %v1913
        %v3536 = vunpack.c.l.b16 %v1914
        %v3537 = vunpack.c.l.b16 %v1915
        %v3538 = vunpack.c.h.b16 %v1915
        %v3539 = vunpack.c.l.b16 %v1916
        %v3540 = vunpack.c.h.b16 %v1916
        %v3541 = vunpack.c.l.b16 %v1917
        %v3542 = vunpack.c.l.b16 %v1918
        %v3543 = vunpack.c.h.b16 %v1918
        %v3544 = vunpack.c.l.b16 %v1919
        %v3545 = vunpack.c.h.b16 %v1919
        %v3546 = vunpack.c.l.b16 %v1920
        %v3547 = vunpack.c.l.b16 %v1921
        %v3548 = vunpack.c.h.b16 %v1921
        %v3549 = vunpack.c.l.b16 %v1922
        %v3550 = vunpack.c.h.b16 %v1922
        %v3551 = vunpack.c.l.b16 %v1923
        %v3552 = vunpack.c.l.b16 %v1924
        %v3553 = vunpack.c.h.b16 %v1924
        %v3554 = vunpack.c.l.b16 %v1925
        %v3555 = vunpack.c.h.b16 %v1925
        %v3556 = vunpack.c.l.b16 %v1926
        %v3557 = vunpack.c.l.b16 %v1927
        %v3558 = vunpack.c.h.b16 %v1927
        %v3559 = vunpack.c.l.b16 %v1928
        %v3560 = vunpack.c.h.b16 %v1928
        %v3561 = vunpack.c.l.b16 %v1929
        %v3562 = vunpack.c.l.b16 %v1930
        %v3563 = vunpack.c.h.b16 %v1930
        %v3564 = vunpack.c.l.b16 %v1931
        %v3565 = vunpack.c.h.b16 %v1931
        %v3566 = vunpack.c.l.b16 %v1932
        %v3567 = vunpack.c.l.b16 %v1933
        %v3568 = vunpack.c.h.b16 %v1933
        %v3569 = vunpack.c.l.b16 %v1934
        %v3570 = vunpack.c.h.b16 %v1934
        %v3571 = vunpack.c.l.b16 %v1935
        %v3572 = vunpack.c.l.b16 %v1936
        %v3573 = vunpack.c.h.b16 %v1936
        %v3574 = vunpack.c.l.b16 %v1937
        %v3575 = vunpack.c.h.b16 %v1937
        %v3576 = vunpack.c.l.b16 %v1938
        %v3577 = vunpack.c.l.b16 %v1939
        %v3578 = vunpack.c.h.b16 %v1939
        %v3579 = vunpack.c.l.b16 %v1940
        %v3580 = vunpack.c.h.b16 %v1940
        %v3581 = vunpack.c.l.b16 %v1941
        %v3582 = vunpack.c.l.b16 %v1942
        %v3583 = vunpack.c.h.b16 %v1942
        %v3584 = vunpack.c.l.b16 %v1943
        %v3585 = vunpack.c.h.b16 %v1943
        %v3586 = vunpack.c.l.b16 %v1944
        %v3587 = vunpack.c.l.b16 %v1945
        %v3588 = vunpack.c.h.b16 %v1945
        %v3589 = vunpack.c.l.b16 %v1946
        %v3590 = vunpack.c.h.b16 %v1946
        %v3591 = vunpack.c.l.b16 %v1947
        %v3592 = vunpack.c.l.b16 %v1948
        %v3593 = vunpack.c.h.b16 %v1948
        %v3594 = vunpack.c.l.b16 %v1949
        %v3595 = vunpack.c.h.b16 %v1949
        %v3596 = vunpack.c.l.b16 %v1950
        %v3597 = vunpack.c.l.b16 %v1951
        %v3598 = vunpack.c.h.b16 %v1951
        %v3599 = vunpack.c.l.b16 %v1952
        %v3600 = vunpack.c.h.b16 %v1952
        %v3601 = vunpack.c.l.b16 %v1953
        %v3602 = vunpack.c.l.b16 %v1954
        %v3603 = vunpack.c.h.b16 %v1954
        %v3604 = vunpack.c.l.b16 %v1955
        %v3605 = vunpack.c.h.b16 %v1955
        %v3606 = vunpack.c.l.b16 %v1956
        %v3607 = vunpack.c.l.b16 %v1957
        %v3608 = vunpack.c.h.b16 %v1957
        %v3609 = vunpack.c.l.b16 %v1958
        %v3610 = vunpack.c.h.b16 %v1958
        %v3611 = vunpack.c.l.b16 %v1959
        %v3612 = vunpack.c.l.b16 %v1960
        %v3613 = vunpack.c.h.b16 %v1960
        %v3614 = vunpack.c.l.b16 %v1961
        %v3615 = vunpack.c.h.b16 %v1961
        %v3616 = vunpack.c.l.b16 %v1962
        %v3617 = vunpack.c.l.b16 %v1963
        %v3618 = vunpack.c.h.b16 %v1963
        %v3619 = vunpack.c.l.b16 %v1964
        %v3620 = vunpack.c.h.b16 %v1964
        %v3621 = vunpack.c.l.b16 %v1965
        %v3622 = vunpack.c.l.b16 %v1966
        %v3623 = vunpack.c.h.b16 %v1966
        %v3624 = vunpack.c.l.b16 %v1967
        %v3625 = vunpack.c.h.b16 %v1967
        %v3626 = vunpack.c.l.b16 %v1968
        %v3627 = vunpack.c.l.b16 %v1969
        %v3628 = vunpack.c.h.b16 %v1969
        %v3629 = vunpack.c.l.b16 %v1970
        %v3630 = vunpack.c.h.b16 %v1970
        %v3631 = vunpack.c.l.b16 %v1971
        %v3632 = vunpack.c.l.b16 %v1972
        %v3633 = vunpack.c.h.b16 %v1972
        %v3634 = vunpack.c.l.b16 %v1973
        %v3635 = vunpack.c.h.b16 %v1973
        %v3636 = vunpack.c.l.b16 %v1974
        %v3637 = vunpack.c.l.b16 %v1975
        %v3638 = vunpack.c.h.b16 %v1975
        %v3639 = vunpack.c.l.b16 %v1976
        %v3640 = vunpack.c.h.b16 %v1976
        %v3641 = vunpack.c.l.b16 %v1977
        %v3642 = vunpack.c.l.b16 %v1978
        %v3643 = vunpack.c.h.b16 %v1978
        %v3644 = vunpack.c.l.b16 %v1979
        %v3645 = vunpack.c.h.b16 %v1979
        %v3646 = vunpack.c.l.b16 %v1980
        %v3647 = vunpack.c.l.b16 %v1981
        %v3648 = vunpack.c.h.b16 %v1981
        %v3649 = vunpack.c.l.b16 %v1982
        %v3650 = vunpack.c.h.b16 %v1982
        %v3651 = vunpack.c.l.b16 %v1983
        %v3652 = vunpack.c.l.b16 %v1984
        %v3653 = vunpack.c.h.b16 %v1984
        %v3654 = vunpack.c.l.b16 %v1985
        %v3655 = vunpack.c.h.b16 %v1985
        %v3656 = vunpack.c.l.b16 %v1986
        %v3657 = vunpack.c.l.b16 %v1987
        %v3658 = vunpack.c.h.b16 %v1987
        %v3659 = vunpack.c.l.b16 %v1988
        %v3660 = vunpack.c.h.b16 %v1988
        %v3661 = vunpack.c.l.b16 %v1989
        %v3662 = vunpack.c.l.b16 %v1990
        %v3663 = vunpack.c.h.b16 %v1990
        %v3664 = vunpack.c.l.b16 %v1991
        %v3665 = vunpack.c.h.b16 %v1991
        %v3666 = vunpack.c.l.b16 %v1992
        %v3667 = vunpack.c.l.b16 %v1993
        %v3668 = vunpack.c.h.b16 %v1993
        %v3669 = vunpack.c.l.b16 %v1994
        %v3670 = vunpack.c.h.b16 %v1994
        %v3671 = vunpack.c.l.b16 %v1995
        %v3672 = vunpack.c.l.b16 %v1996
        %v3673 = vunpack.c.h.b16 %v1996
        %v3674 = vunpack.c.l.b16 %v1997
        %v3675 = vunpack.c.h.b16 %v1997
        %v3676 = vunpack.c.l.b16 %v1998
        %v3677 = vunpack.c.l.b16 %v1999
        %v3678 = vunpack.c.h.b16 %v1999
        %v3679 = vunpack.c.l.b16 %v2000
        %v3680 = vunpack.c.h.b16 %v2000
        %v3681 = vunpack.c.l.b16 %v2001
        %v3682 = vunpack.c.l.b16 %v2002
        %v3683 = vunpack.c.h.b16 %v2002
        %v3684 = vunpack.c.l.b16 %v2003
        %v3685 = vunpack.c.h.b16 %v2003
        %v3686 = vunpack.c.l.b16 %v2004
        %v3687 = vunpack.c.l.b16 %v2005
        %v3688 = vunpack.c.h.b16 %v2005
        %v3689 = vunpack.c.l.b16 %v2006
        %v3690 = vunpack.c.h.b16 %v2006
        %v3691 = vunpack.c.l.b16 %v2007
        %v3692 = vunpack.c.l.b16 %v2008
        %v3693 = vunpack.c.h.b16 %v2008
        %v3694 = vunpack.c.l.b16 %v2009
        %v3695 = vunpack.c.h.b16 %v2009
        %v3696 = vunpack.c.l.b16 %v2010
        %v3697 = vunpack.c.l.b16 %v2011
        %v3698 = vunpack.c.h.b16 %v2011
        %v3699 = vunpack.c.l.b16 %v2012
        %v3700 = vunpack.c.h.b16 %v2012
        %v3701 = vunpack.c.l.b16 %v2013
        %v3702 = vunpack.c.l.b16 %v2014
        %v3703 = vunpack.c.h.b16 %v2014
        %v3704 = vunpack.c.l.b16 %v2015
        %v3705 = vunpack.c.h.b16 %v2015
        %v3706 = vunpack.c.l.b16 %v2016
        %v3707 = vunpack.c.l.b16 %v2017
        %v3708 = vunpack.c.h.b16 %v2017
        %v3709 = vunpack.c.l.b16 %v2018
        %v3710 = vunpack.c.h.b16 %v2018
        %v3711 = vunpack.c.l.b16 %v2019
        %v3712 = vunpack.c.l.b16 %v2020
        %v3713 = vunpack.c.h.b16 %v2020
        %v3714 = vunpack.c.l.b16 %v2021
        %v3715 = vunpack.c.h.b16 %v2021
        %v3716 = vunpack.c.l.b16 %v2022
        %v3717 = vunpack.c.l.b16 %v2023
        %v3718 = vunpack.c.h.b16 %v2023
        %v3719 = vunpack.c.l.b16 %v2024
        %v3720 = vunpack.c.h.b16 %v2024
        %v3721 = vunpack.c.l.b16 %v2025
        %v3722 = vunpack.c.l.b16 %v2026
        %v3723 = vunpack.c.h.b16 %v2026
        %v3724 = vunpack.c.l.b16 %v2027
        %v3725 = vunpack.c.h.b16 %v2027
        %v3726 = vunpack.c.l.b16 %v2028
        %v3727 = vunpack.c.l.b16 %v2029
        %v3728 = vunpack.c.h.b16 %v2029
        %v3729 = vunpack.c.l.b16 %v2030
        %v3730 = vunpack.c.h.b16 %v2030
        %v3731 = vunpack.c.l.b16 %v2031
        %v3732 = vunpack.c.l.b16 %v2032
        %v3733 = vunpack.c.h.b16 %v2032
        %v3734 = vunpack.c.l.b16 %v2033
        %v3735 = vunpack.c.h.b16 %v2033
        %v3736 = vunpack.c.l.b16 %v2034
        %v3737 = vunpack.c.l.b16 %v2035
        %v3738 = vunpack.c.h.b16 %v2035
        %v3739 = vunpack.c.l.b16 %v2036
        %v3740 = vunpack.c.h.b16 %v2036
        %v3741 = vunpack.c.l.b16 %v2037
        %v3742 = vunpack.c.l.b16 %v2038
        %v3743 = vunpack.c.h.b16 %v2038
        %v3744 = vunpack.c.l.b16 %v2039
        %v3745 = vunpack.c.h.b16 %v2039
        %v3746 = vunpack.c.l.b16 %v2040
        %v3747 = vunpack.c.l.b16 %v2041
        %v3748 = vunpack.c.h.b16 %v2041
        %v3749 = vunpack.c.l.b16 %v2042
        %v3750 = vunpack.c.h.b16 %v2042
        %v3751 = vunpack.c.l.b16 %v2043
        %v3752 = vunpack.c.l.b16 %v2044
        %v3753 = vunpack.c.h.b16 %v2044
        %v3754 = vunpack.c.l.b16 %v2045
        %v3755 = vunpack.c.h.b16 %v2045
        %v3756 = vunpack.c.l.b16 %v2046
        %v3757 = vunpack.c.l.b16 %v2047
        %v3758 = vunpack.c.h.b16 %v2047
        %v3759 = vunpack.c.l.b16 %v2048
        %v3760 = vunpack.c.h.b16 %v2048
        %v3761 = vunpack.c.l.b16 %v2049
        %v3762 = vunpack.c.l.b16 %v2050
        %v3763 = vunpack.c.h.b16 %v2050
        %v3764 = vunpack.c.l.b16 %v2051
        %v3765 = vunpack.c.h.b16 %v2051
        %v3766 = vunpack.c.l.b16 %v2052
        %v3767 = vunpack.c.l.b16 %v2053
        %v3768 = vunpack.c.h.b16 %v2053
        %v3769 = vunpack.c.l.b16 %v2054
        %v3770 = vunpack.c.h.b16 %v2054
        %v3771 = vunpack.c.l.b16 %v2055
        %v3772 = vunpack.c.l.b16 %v2056
        %v3773 = vunpack.c.h.b16 %v2056
        %v3774 = vunpack.c.l.b16 %v2057
        %v3775 = vunpack.c.h.b16 %v2057
        %v3776 = vunpack.c.l.b16 %v2058
        %v3777 = vunpack.c.l.b16 %v2059
        %v3778 = vunpack.c.h.b16 %v2059
        %v3779 = vunpack.c.l.b16 %v2060
        %v3780 = vunpack.c.h.b16 %v2060
        %v3781 = vunpack.c.l.b16 %v2061
        %v3782 = vunpack.c.l.b16 %v2062
        %v3783 = vunpack.c.h.b16 %v2062
        %v3784 = vunpack.c.l.b16 %v2063
        %v3785 = vunpack.c.h.b16 %v2063
        %v3786 = vunpack.c.l.b16 %v2064
        %v3787 = vunpack.c.l.b16 %v2065
        %v3788 = vunpack.c.h.b16 %v2065
        %v3789 = vunpack.c.l.b16 %v2066
        %v3790 = vunpack.c.h.b16 %v2066
        %v3791 = vunpack.c.l.b16 %v2067
        %v3792 = vunpack.c.l.b16 %v2068
        %v3793 = vunpack.c.h.b16 %v2068
        %v3794 = vunpack.c.l.b16 %v2069
        %v3795 = vunpack.c.h.b16 %v2069
        %v3796 = vunpack.c.l.b16 %v2070
        %v3797 = vunpack.c.l.b16 %v2071
        %v3798 = vunpack.c.h.b16 %v2071
        %v3799 = vunpack.c.l.b16 %v2072
        %v3800 = vunpack.c.h.b16 %v2072
        %v3801 = vunpack.c.l.b16 %v2073
        %v3802 = vunpack.c.l.b16 %v2074
        %v3803 = vunpack.c.h.b16 %v2074
        %v3804 = vunpack.c.l.b16 %v2075
        %v3805 = vunpack.c.h.b16 %v2075
        %v3806 = vunpack.c.l.b16 %v2076
        %v3807 = vunpack.c.l.b16 %v2077
        %v3808 = vunpack.c.h.b16 %v2077
        %v3809 = vunpack.c.l.b16 %v2078
        %v3810 = vunpack.c.h.b16 %v2078
        %v3811 = vunpack.c.l.b16 %v2079
        %v3812 = vunpack.c.l.b16 %v2080
        %v3813 = vunpack.c.h.b16 %v2080
        %v3814 = vunpack.c.l.b16 %v2081
        %v3815 = vunpack.c.h.b16 %v2081
        %v3816 = vunpack.c.l.b16 %v2082
        %v3817 = vunpack.c.l.b16 %v2083
        %v3818 = vunpack.c.h.b16 %v2083
        %v3819 = vunpack.c.l.b16 %v2084
        %v3820 = vunpack.c.h.b16 %v2084
        %v3821 = vunpack.c.l.b16 %v2085
        %v3822 = vunpack.c.l.b16 %v2086
        %v3823 = vunpack.c.h.b16 %v2086
        %v3824 = vunpack.c.l.b16 %v2087
        %v3825 = vunpack.c.h.b16 %v2087
        %v3826 = vunpack.c.l.b16 %v2088
        %v3827 = vunpack.c.l.b16 %v2089
        %v3828 = vunpack.c.h.b16 %v2089
        %v3829 = vunpack.c.l.b16 %v2090
        %v3830 = vunpack.c.h.b16 %v2090
        %v3831 = vunpack.c.l.b16 %v2091
        %v3832 = vunpack.c.l.b16 %v2092
        %v3833 = vunpack.c.h.b16 %v2092
        %v3834 = vunpack.c.l.b16 %v2093
        %v3835 = vunpack.c.h.b16 %v2093
        %v3836 = vunpack.c.l.b16 %v2094
        %v3837 = vunpack.c.l.b16 %v2095
        %v3838 = vunpack.c.h.b16 %v2095
        %v3839 = vunpack.c.l.b16 %v2096
        %v3840 = vunpack.c.h.b16 %v2096
        %v3841 = vunpack.c.l.b16 %v2097
        %v3842 = vunpack.c.l.b16 %v2098
        %v3843 = vunpack.c.h.b16 %v2098
        %v3844 = vunpack.c.l.b16 %v2099
        %v3845 = vunpack.c.h.b16 %v2099
        %v3846 = vunpack.c.l.b16 %v2100
        %v3847 = vunpack.c.l.b16 %v2101
        %v3848 = vunpack.c.h.b16 %v2101
        %v3849 = vunpack.c.l.b16 %v2102
        %v3850 = vunpack.c.h.b16 %v2102
        %v3851 = vunpack.c.l.b16 %v2103
        %v3852 = vunpack.c.l.b16 %v2104
        %v3853 = vunpack.c.h.b16 %v2104
        %v3854 = vunpack.c.l.b16 %v2105
        %v3855 = vunpack.c.h.b16 %v2105
        %v3856 = vunpack.c.l.b16 %v2106
        %v3857 = vunpack.c.l.b16 %v2107
        %v3858 = vunpack.c.h.b16 %v2107
        %v3859 = vunpack.c.l.b16 %v2108
        %v3860 = vunpack.c.h.b16 %v2108
        %v3861 = vunpack.c.l.b16 %v2109
        %v3862 = vunpack.c.l.b16 %v2110
        %v3863 = vunpack.c.h.b16 %v2110
        %v3864 = vunpack.c.l.b16 %v2111
        %v3865 = vunpack.c.h.b16 %v2111
        %v3866 = vunpack.c.l.b16 %v2112
        %v3867 = vunpack.c.l.b16 %v2113
        %v3868 = vunpack.c.h.b16 %v2113
        %v3869 = vunpack.c.l.b16 %v2114
        %v3870 = vunpack.c.h.b16 %v2114
        %v3871 = vunpack.c.l.b16 %v2115
        %v3872 = vunpack.c.l.b16 %v2116
        %v3873 = vunpack.c.h.b16 %v2116
        %v3874 = vunpack.c.l.b16 %v2117
        %v3875 = vunpack.c.h.b16 %v2117
        %v3876 = vunpack.c.l.b16 %v2118
        %v3877 = vunpack.c.l.b16 %v2119
        %v3878 = vunpack.c.h.b16 %v2119
        %v3879 = vunpack.c.l.b16 %v2120
        %v3880 = vunpack.c.h.b16 %v2120
        %v3881 = vunpack.c.l.b16 %v2121
        %v3882 = vunpack.c.l.b16 %v2122
        %v3883 = vunpack.c.h.b16 %v2122
        %v3884 = vunpack.c.l.b16 %v2123
        %v3885 = vunpack.c.h.b16 %v2123
        %v3886 = vunpack.c.l.b16 %v2124
        %v3887 = vunpack.c.l.b16 %v2125
        %v3888 = vunpack.c.h.b16 %v2125
        %v3889 = vunpack.c.l.b16 %v2126
        %v3890 = vunpack.c.h.b16 %v2126
        %v3891 = vunpack.c.l.b16 %v2127
        %v3892 = vunpack.c.l.b16 %v2128
        %v3893 = vunpack.c.h.b16 %v2128
        %v3894 = vunpack.c.l.b16 %v2129
        %v3895 = vunpack.c.h.b16 %v2129
        %v3896 = vunpack.c.l.b16 %v2130
        %v3897 = vunpack.c.l.b16 %v2131
        %v3898 = vunpack.c.h.b16 %v2131
        %v3899 = vunpack.c.l.b16 %v2132
        %v3900 = vunpack.c.h.b16 %v2132
        %v3901 = vunpack.c.l.b16 %v2133
        %v3902 = vunpack.c.l.b16 %v2134
        %v3903 = vunpack.c.h.b16 %v2134
        %v3904 = vunpack.c.l.b16 %v2135
        %v3905 = vunpack.c.h.b16 %v2135
        %v3906 = vunpack.c.l.b16 %v2136
        %v3907 = vunpack.c.l.b16 %v2137
        %v3908 = vunpack.c.h.b16 %v2137
        %v3909 = vunpack.c.l.b16 %v2138
        %v3910 = vunpack.c.h.b16 %v2138
        %v3911 = vunpack.c.l.b16 %v2139
        %v3912 = vunpack.c.l.b16 %v2140
        %v3913 = vunpack.c.h.b16 %v2140
        %v3914 = vunpack.c.l.b16 %v2141
        %v3915 = vunpack.c.h.b16 %v2141
        %v3916 = vunpack.c.l.b16 %v2142
        %v3917 = vunpack.c.l.b16 %v2143
        %v3918 = vunpack.c.h.b16 %v2143
        %v3919 = vunpack.c.l.b16 %v2144
        %v3920 = vunpack.c.h.b16 %v2144
        %v3921 = vunpack.c.l.b16 %v2145
        %v3922 = vunpack.c.l.b16 %v2146
        %v3923 = vunpack.c.h.b16 %v2146
        %v3924 = vunpack.c.l.b16 %v2147
        %v3925 = vunpack.c.h.b16 %v2147
        %v3926 = vunpack.c.l.b16 %v2148
        %v3927 = vunpack.c.l.b16 %v2149
        %v3928 = vunpack.c.h.b16 %v2149
        %v3929 = vunpack.c.l.b16 %v2150
        %v3930 = vunpack.c.h.b16 %v2150
        %v3931 = vunpack.c.l.b16 %v2151
        %v3932 = vunpack.c.l.b16 %v2152
        %v3933 = vunpack.c.h.b16 %v2152
        %v3934 = vunpack.c.l.b16 %v2153
        %v3935 = vunpack.c.h.b16 %v2153
        %v3936 = vunpack.c.l.b16 %v2154
        %v3937 = vunpack.c.l.b16 %v2155
        %v3938 = vunpack.c.h.b16 %v2155
        %v3939 = vunpack.c.l.b16 %v2156
        %v3940 = vunpack.c.h.b16 %v2156
        %v3941 = vunpack.c.l.b16 %v2157
        %v3942 = vunpack.c.l.b16 %v2158
        %v3943 = vunpack.c.h.b16 %v2158
        %v3944 = vunpack.c.l.b16 %v2159
        %v3945 = vunpack.c.h.b16 %v2159
        %v3946 = vunpack.c.l.b16 %v2160
        %v3947 = vunpack.c.l.b16 %v2161
        %v3948 = vunpack.c.h.b16 %v2161
        %v3949 = vunpack.c.l.b16 %v2162
        %v3950 = vunpack.c.h.b16 %v2162
        %v3951 = vunpack.c.l.b16 %v2163
        %v3952 = vunpack.c.l.b16 %v2164
        %v3953 = vunpack.c.h.b16 %v2164
        %v3954 = vunpack.c.l.b16 %v2165
        %v3955 = vunpack.c.h.b16 %v2165
        %v3956 = vunpack.c.l.b16 %v2166
        %v3957 = vunpack.c.l.b16 %v2167
        %v3958 = vunpack.c.h.b16 %v2167
        %v3959 = vunpack.c.l.b16 %v2168
        %v3960 = vunpack.c.h.b16 %v2168
        %v3961 = vunpack.c.l.b16 %v2169
        %v3962 = vunpack.c.l.b16 %v2170
        %v3963 = vunpack.c.h.b16 %v2170
        %v3964 = vunpack.c.l.b16 %v2171
        %v3965 = vunpack.c.h.b16 %v2171
        %v3966 = vunpack.c.l.b16 %v2172
        %v3967 = vunpack.c.l.b16 %v2173
        %v3968 = vunpack.c.h.b16 %v2173
        %v3969 = vunpack.c.l.b16 %v2174
        %v3970 = vunpack.c.h.b16 %v2174
        %v3971 = vunpack.c.l.b16 %v2175
        %v3972 = vunpack.c.l.b16 %v2176
        %v3973 = vunpack.c.h.b16 %v2176
        %v3974 = vunpack.c.l.b16 %v2177
        %v3975 = vunpack.c.h.b16 %v2177
        %v3976 = vunpack.c.l.b16 %v2178
        %v3977 = vunpack.c.l.b16 %v2179
        %v3978 = vunpack.c.h.b16 %v2179
        %v3979 = vunpack.c.l.b16 %v2180
        %v3980 = vunpack.c.h.b16 %v2180
        %v3981 = vunpack.c.l.b16 %v2181
        %v3982 = vunpack.c.l.b16 %v2182
        %v3983 = vunpack.c.h.b16 %v2182
        %v3984 = vunpack.c.l.b16 %v2183
        %v3985 = vunpack.c.h.b16 %v2183
        %v3986 = vunpack.c.l.b16 %v2184
        %v3987 = vunpack.c.l.b16 %v2185
        %v3988 = vunpack.c.h.b16 %v2185
        %v3989 = vunpack.c.l.b16 %v2186
        %v3990 = vunpack.c.h.b16 %v2186
        %v3991 = vunpack.c.l.b16 %v2187
        %v3992 = vunpack.c.l.b16 %v2188
        %v3993 = vunpack.c.h.b16 %v2188
        %v3994 = vunpack.c.l.b16 %v2189
        %v3995 = vunpack.c.h.b16 %v2189
        %v3996 = vunpack.c.l.b16 %v2190
        %v3997 = vunpack.c.l.b16 %v2191
        %v3998 = vunpack.c.h.b16 %v2191
        %v3999 = vunpack.c.l.b16 %v2192
        %v4000 = vunpack.c.h.b16 %v2192
        %v4001 = vunpack.c.l.b16 %v2193
        %v4002 = vunpack.c.l.b16 %v2194
        %v4003 = vunpack.c.h.b16 %v2194
        %v4004 = vunpack.c.l.b16 %v2195
        %v4005 = vunpack.c.h.b16 %v2195
        %v4006 = vunpack.c.l.b16 %v2196
        %v4007 = vunpack.c.l.b16 %v2197
        %v4008 = vunpack.c.h.b16 %v2197
        %v4009 = vunpack.c.l.b16 %v2198
        %v4010 = vunpack.c.h.b16 %v2198
        %v4011 = vunpack.c.l.b16 %v2199
        %v4012 = vunpack.c.l.b16 %v2200
        %v4013 = vunpack.c.h.b16 %v2200
        %v4014 = vunpack.c.l.b16 %v2201
        %v4015 = vunpack.c.h.b16 %v2201
        %v4016 = vunpack.c.l.b16 %v2202
        %v4017 = vunpack.c.l.b16 %v2203
        %v4018 = vunpack.c.h.b16 %v2203
        %v4019 = vunpack.c.l.b16 %v2204
        %v4020 = vunpack.c.h.b16 %v2204
        %v4021 = vunpack.c.l.b16 %v2205
        %v4022 = vunpack.c.l.b16 %v2206
        %v4023 = vunpack.c.h.b16 %v2206
        %v4024 = vunpack.c.l.b16 %v2207
        %v4025 = vunpack.c.h.b16 %v2207
        %v4026 = vunpack.c.l.b16 %v2208
        %v4027 = vunpack.c.l.b16 %v2209
        %v4028 = vunpack.c.h.b16 %v2209
        %v4029 = vunpack.c.l.b16 %v2210
        %v4030 = vunpack.c.h.b16 %v2210
        %v4031 = vunpack.c.l.b16 %v2211
        %v4032 = vunpack.c.l.b16 %v2212
        %v4033 = vunpack.c.h.b16 %v2212
        %v4034 = vunpack.c.l.b16 %v2213
        %v4035 = vunpack.c.h.b16 %v2213
        %v4036 = vunpack.c.l.b16 %v2214
        %v4037 = vunpack.c.l.b16 %v2215
        %v4038 = vunpack.c.h.b16 %v2215
        %v4039 = vunpack.c.l.b16 %v2216
        %v4040 = vunpack.c.h.b16 %v2216
        %v4041 = vunpack.c.l.b16 %v2217
        %v4042 = vunpack.c.l.b16 %v2218
        %v4043 = vunpack.c.h.b16 %v2218
        %v4044 = vunpack.c.l.b16 %v2219
        %v4045 = vunpack.c.h.b16 %v2219
        %v4046 = vunpack.c.l.b16 %v2220
        %v4047 = vunpack.c.l.b16 %v2221
        %v4048 = vunpack.c.h.b16 %v2221
        %v4049 = vunpack.c.l.b16 %v2222
        %v4050 = vunpack.c.h.b16 %v2222
        %v4051 = vunpack.c.l.b16 %v2223
        %v4052 = vunpack.c.l.b16 %v2224
        %v4053 = vunpack.c.h.b16 %v2224
        %v4054 = vunpack.c.l.b16 %v2225
        %v4055 = vunpack.c.h.b16 %v2225
        %v4056 = vunpack.c.l.b16 %v2226
        %v4057 = vunpack.c.l.b16 %v2227
        %v4058 = vunpack.c.h.b16 %v2227
        %v4059 = vunpack.c.l.b16 %v2228
        %v4060 = vunpack.c.h.b16 %v2228
        %v4061 = vunpack.c.l.b16 %v2229
        %v4062 = vunpack.c.l.b16 %v2230
        %v4063 = vunpack.c.h.b16 %v2230
        %v4064 = vunpack.c.l.b16 %v2231
        %v4065 = vunpack.c.h.b16 %v2231
        %v4066 = vunpack.c.l.b16 %v2232
        %v4067 = vunpack.c.l.b16 %v2233
        %v4068 = vunpack.c.h.b16 %v2233
        %v4069 = vunpack.c.l.b16 %v2234
        %v4070 = vunpack.c.h.b16 %v2234
        %v4071 = vunpack.c.l.b16 %v2235
        %v4072 = vunpack.c.l.b16 %v2236
        %v4073 = vunpack.c.h.b16 %v2236
        %v4074 = vunpack.c.l.b16 %v2237
        %v4075 = vunpack.c.h.b16 %v2237
        %v4076 = vunpack.c.l.b16 %v2238
        %v4077 = vunpack.c.l.b16 %v2239
        %v4078 = vunpack.c.h.b16 %v2239
        %v4079 = vunpack.c.l.b16 %v2240
        %v4080 = vunpack.c.h.b16 %v2240
        %v4081 = vunpack.c.l.b16 %v2241
        %v4082 = vunpack.c.l.b16 %v2242
        %v4083 = vunpack.c.h.b16 %v2242
        %v4084 = vunpack.c.l.b16 %v2243
        %v4085 = vunpack.c.h.b16 %v2243
        %v4086 = vunpack.c.l.b16 %v2244
        %v4087 = vunpack.c.l.b16 %v2245
        %v4088 = vunpack.c.h.b16 %v2245
        %v4089 = vunpack.c.l.b16 %v2246
        %v4090 = vunpack.c.h.b16 %v2246
        %v4091 = vunpack.c.l.b16 %v2247
        %v4092 = vunpack.c.l.b16 %v2248
        %v4093 = vunpack.c.h.b16 %v2248
        %v4094 = vunpack.c.l.b16 %v2249
        %v4095 = vunpack.c.h.b16 %v2249
        %v4096 = vunpack.c.l.b16 %v2250
        %v4097 = vunpack.c.l.b16 %v2251
        %v4098 = vunpack.c.h.b16 %v2251
        %v4099 = vunpack.c.l.b16 %v2252
        %v4100 = vunpack.c.h.b16 %v2252
        %v4101 = vunpack.c.l.b16 %v2253
        %v4102 = vunpack.c.l.b16 %v2254
        %v4103 = vunpack.c.h.b16 %v2254
        %v4104 = vunpack.c.l.b16 %v2255
        %v4105 = vunpack.c.h.b16 %v2255
        %v4106 = vunpack.c.l.b16 %v2256
        %v4107 = vunpack.c.l.b16 %v2257
        %v4108 = vunpack.c.h.b16 %v2257
        %v4109 = vunpack.c.l.b16 %v2258
        %v4110 = vunpack.c.h.b16 %v2258
        %v4111 = vunpack.c.l.b16 %v2259
        %v4112 = vunpack.c.l.b16 %v2260
        %v4113 = vunpack.c.h.b16 %v2260
        %v4114 = vunpack.c.l.b16 %v2261
        %v4115 = vunpack.c.h.b16 %v2261
        %v4116 = vunpack.c.l.b16 %v2262
        %v4117 = vunpack.c.l.b16 %v2263
        %v4118 = vunpack.c.h.b16 %v2263
        %v4119 = vunpack.c.l.b16 %v2264
        %v4120 = vunpack.c.h.b16 %v2264
        %v4121 = vunpack.c.l.b16 %v2265
        %v4122 = vunpack.c.l.b16 %v2266
        %v4123 = vunpack.c.h.b16 %v2266
        %v4124 = vunpack.c.l.b16 %v2267
        %v4125 = vunpack.c.h.b16 %v2267
        %v4126 = vunpack.c.l.b16 %v2268
        %v4127 = vunpack.c.l.b16 %v2269
        %v4128 = vunpack.c.h.b16 %v2269
        %v4129 = vunpack.c.l.b16 %v2270
        %v4130 = vunpack.c.h.b16 %v2270
        %v4131 = vunpack.c.l.b16 %v2271
        %v4132 = vunpack.c.l.b16 %v2272
        %v4133 = vunpack.c.h.b16 %v2272
        %v4134 = vunpack.c.l.b16 %v2273
        %v4135 = vunpack.c.h.b16 %v2273
        %v4136 = vunpack.c.l.b16 %v2274
        %v4137 = vunpack.c.l.b16 %v2275
        %v4138 = vunpack.c.h.b16 %v2275
        %v4139 = vunpack.c.l.b16 %v2276
        %v4140 = vunpack.c.h.b16 %v2276
        %v4141 = vunpack.c.l.b16 %v2277
        %v4142 = vunpack.c.l.b16 %v2278
        %v4143 = vunpack.c.h.b16 %v2278
        %v4144 = vunpack.c.l.b16 %v2279
        %v4145 = vunpack.c.h.b16 %v2279
        %v4146 = vunpack.c.l.b16 %v2280
        %v4147 = vunpack.c.l.b16 %v2281
        %v4148 = vunpack.c.h.b16 %v2281
        %v4149 = vunpack.c.l.b16 %v2282
        %v4150 = vunpack.c.h.b16 %v2282
        %v4151 = vunpack.c.l.b16 %v2283
        %v4152 = vunpack.c.l.b16 %v2284
        %v4153 = vunpack.c.h.b16 %v2284
        %v4154 = vunpack.c.l.b16 %v2285
        %v4155 = vunpack.c.h.b16 %v2285
        %v4156 = vunpack.c.l.b16 %v2286
        %v4157 = vunpack.c.l.b16 %v2287
        %v4158 = vunpack.c.h.b16 %v2287
        %v4159 = vunpack.c.l.b16 %v2288
        %v4160 = vunpack.c.h.b16 %v2288
        %v4161 = vunpack.c.l.b16 %v2289
        %v4162 = vunpack.c.l.b16 %v2290
        %v4163 = vunpack.c.h.b16 %v2290
        %v4164 = vunpack.c.l.b16 %v2291
        %v4165 = vunpack.c.h.b16 %v2291
        %v4166 = vunpack.c.l.b16 %v2292
        %v4167 = vunpack.c.l.b16 %v2293
        %v4168 = vunpack.c.h.b16 %v2293
        %v4169 = vunpack.c.l.b16 %v2294
        %v4170 = vunpack.c.h.b16 %v2294
        %v4171 = vunpack.c.l.b16 %v2295
        %v4172 = vunpack.c.l.b16 %v2296
        %v4173 = vunpack.c.h.b16 %v2296
        %v4174 = vunpack.c.l.b16 %v2297
        %v4175 = vunpack.c.h.b16 %v2297
        %v4176 = vunpack.c.l.b16 %v2298
        %v4177 = vunpack.c.l.b16 %v2299
        %v4178 = vunpack.c.h.b16 %v2299
        %v4179 = vunpack.c.l.b16 %v2300
        %v4180 = vunpack.c.h.b16 %v2300
        %v4181 = vunpack.c.l.b16 %v2301
        %v4182 = vunpack.c.l.b16 %v2302
        %v4183 = vunpack.c.h.b16 %v2302
        %v4184 = vunpack.c.l.b16 %v2303
        %v4185 = vunpack.c.h.b16 %v2303
        %v4186 = vunpack.c.l.b16 %v2304
        %v4187 = vunpack.c.l.b16 %v2305
        %v4188 = vunpack.c.h.b16 %v2305
        %v4189 = vunpack.c.l.b16 %v2306
        %v4190 = vunpack.c.h.b16 %v2306
        %v4191 = vunpack.c.l.b16 %v2307
        %v4192 = vunpack.c.l.b16 %v2308
        %v4193 = vunpack.c.h.b16 %v2308
        %v4194 = vunpack.c.l.b16 %v2309
        %v4195 = vunpack.c.h.b16 %v2309
        %v4196 = vunpack.c.l.b16 %v2310
        %v4197 = vunpack.c.l.b16 %v2311
        %v4198 = vunpack.c.h.b16 %v2311
        %v4199 = vunpack.c.l.b16 %v2312
        %v4200 = vunpack.c.h.b16 %v2312
        %v4201 = vunpack.c.l.b16 %v2313
        %v4202 = vunpack.c.l.b16 %v2314
        %v4203 = vunpack.c.h.b16 %v2314
        %v4204 = vunpack.c.l.b16 %v2315
        %v4205 = vunpack.c.h.b16 %v2315
        %v4206 = vunpack.c.l.b16 %v2316
        %v4207 = vunpack.c.l.b16 %v2317
        %v4208 = vunpack.c.h.b16 %v2317
        %v4209 = vunpack.c.l.b16 %v2318
        %v4210 = vunpack.c.h.b16 %v2318
        %v4211 = vunpack.c.l.b16 %v2319
        %v4212 = vunpack.c.l.b16 %v2320
        %v4213 = vunpack.c.h.b16 %v2320
        %v4214 = vunpack.c.l.b16 %v2321
        %v4215 = vunpack.c.h.b16 %v2321
        %v4216 = vunpack.c.l.b16 %v2322
        %v4217 = vunpack.c.l.b16 %v2323
        %v4218 = vunpack.c.h.b16 %v2323
        %v4219 = vunpack.c.l.b16 %v2324
        %v4220 = vunpack.c.h.b16 %v2324
        %v4221 = vunpack.c.l.b16 %v2325
        %v4222 = vunpack.c.l.b16 %v2326
        %v4223 = vunpack.c.h.b16 %v2326
        %v4224 = vunpack.c.l.b16 %v2327
        %v4225 = vunpack.c.h.b16 %v2327
        %v4226 = vunpack.c.l.b16 %v2328
        %v4227 = vunpack.c.l.b16 %v2329
        %v4228 = vunpack.c.h.b16 %v2329
        %v4229 = vunpack.c.l.b16 %v2330
        %v4230 = vunpack.c.h.b16 %v2330
        %v4231 = vunpack.c.l.b16 %v2331
        %v4232 = vunpack.c.l.b16 %v2332
        %v4233 = vunpack.c.h.b16 %v2332
        %v4234 = vunpack.c.l.b16 %v2333
        %v4235 = vunpack.c.h.b16 %v2333
        %v4236 = vunpack.c.l.b16 %v2334
        %v4237 = vunpack.c.l.b16 %v2335
        %v4238 = vunpack.c.h.b16 %v2335
        %v4239 = vunpack.c.l.b16 %v2336
        %v4240 = vunpack.c.h.b16 %v2336
        %v4241 = vunpack.c.l.b16 %v2337
        %v4242 = vunpack.c.l.b16 %v2338
        %v4243 = vunpack.c.h.b16 %v2338
        %v4244 = vunpack.c.l.b16 %v2339
        %v4245 = vunpack.c.h.b16 %v2339
        %v4246 = vunpack.c.l.b16 %v2340
        %v4247 = vunpack.c.l.b16 %v2341
        %v4248 = vunpack.c.h.b16 %v2341
        %v4249 = vunpack.c.l.b16 %v2342
        %v4250 = vunpack.c.h.b16 %v2342
        %v4251 = vunpack.c.l.b16 %v2343
        %v4252 = vunpack.c.l.b16 %v2344
        %v4253 = vunpack.c.h.b16 %v2344
        %v4254 = vunpack.c.l.b16 %v2345
        %v4255 = vunpack.c.h.b16 %v2345
        %v4256 = vunpack.c.l.b16 %v2346
        %v4257 = vunpack.c.l.b16 %v2347
        %v4258 = vunpack.c.h.b16 %v2347
        %v4259 = vunpack.c.l.b16 %v2348
        %v4260 = vunpack.c.h.b16 %v2348
        %v4261 = vunpack.c.l.b16 %v2349
        %v4262 = vunpack.c.l.b16 %v2350
        %v4263 = vunpack.c.h.b16 %v2350
        %v4264 = vunpack.c.l.b16 %v2351
        %v4265 = vunpack.c.h.b16 %v2351
        %v4266 = vunpack.c.l.b16 %v2352
        %v4267 = vunpack.c.l.b16 %v2353
        %v4268 = vunpack.c.h.b16 %v2353
        %v4269 = vunpack.c.l.b16 %v2354
        %v4270 = vunpack.c.h.b16 %v2354
        %v4271 = vunpack.c.l.b16 %v2355
        %v4272 = vunpack.c.l.b16 %v2356
        %v4273 = vunpack.c.h.b16 %v2356
        %v4274 = vunpack.c.l.b16 %v2357
        %v4275 = vunpack.c.h.b16 %v2357
        %v4276 = vunpack.c.l.b16 %v2358
        %v4277 = vunpack.c.l.b16 %v2359
        %v4278 = vunpack.c.h.b16 %v2359
        %v4279 = vunpack.c.l.b16 %v2360
        %v4280 = vunpack.c.h.b16 %v2360
        %v4281 = vunpack.c.l.b16 %v2361
        %v4282 = vunpack.c.l.b16 %v2362
        %v4283 = vunpack.c.h.b16 %v2362
        %v4284 = vunpack.c.l.b16 %v2363
        %v4285 = vunpack.c.h.b16 %v2363
        %v4286 = vunpack.c.l.b16 %v2364
        %v4287 = vunpack.c.l.b16 %v2365
        %v4288 = vunpack.c.h.b16 %v2365
        %v4289 = vunpack.c.l.b16 %v2366
        %v4290 = vunpack.c.h.b16 %v2366
        %v4291 = vunpack.c.l.b16 %v2367
        %v4292 = vunpack.c.l.b16 %v2368
        %v4293 = vunpack.c.h.b16 %v2368
        %v4294 = vunpack.c.l.b16 %v2369
        %v4295 = vunpack.c.h.b16 %v2369
        %v4296 = vunpack.c.l.b16 %v2370
        %v4297 = vunpack.c.l.b16 %v2371
        %v4298 = vunpack.c.h.b16 %v2371
        %v4299 = vunpack.c.l.b16 %v2372
        %v4300 = vunpack.c.h.b16 %v2372
        %v4301 = vunpack.c.l.b16 %v2373
        %v4302 = vunpack.c.l.b16 %v2374
        %v4303 = vunpack.c.h.b16 %v2374
        %v4304 = vunpack.c.l.b16 %v2375
        %v4305 = vunpack.c.h.b16 %v2375
        %v4306 = vunpack.c.l.b16 %v2376
        %v4307 = vunpack.c.l.b16 %v2377
        %v4308 = vunpack.c.h.b16 %v2377
        %v4309 = vunpack.c.l.b16 %v2378
        %v4310 = vunpack.c.h.b16 %v2378
        %v4311 = vunpack.c.l.b16 %v2379
        %v4312 = vunpack.c.l.b16 %v2380
        %v4313 = vunpack.c.h.b16 %v2380
        %v4314 = vunpack.c.l.b16 %v2381
        %v4315 = vunpack.c.h.b16 %v2381
        %v4316 = vunpack.c.l.b16 %v2382
        %v4317 = vunpack.c.l.b16 %v2383
        %v4318 = vunpack.c.h.b16 %v2383
        %v4319 = vunpack.c.l.b16 %v2384
        %v4320 = vunpack.c.h.b16 %v2384
        %v4321 = vunpack.c.l.b16 %v2385
        %v4322 = vunpack.c.l.b16 %v2386
        %v4323 = vunpack.c.h.b16 %v2386
        %v4324 = vunpack.c.l.b16 %v2387
        %v4325 = vunpack.c.h.b16 %v2387
        %v4326 = vunpack.c.l.b16 %v2388
        %v4327 = vunpack.c.l.b16 %v2389
        %v4328 = vunpack.c.h.b16 %v2389
        %v4329 = vunpack.c.l.b16 %v2390
        %v4330 = vunpack.c.h.b16 %v2390
        %v4331 = vunpack.c.l.b16 %v2391
        %v4332 = vunpack.c.l.b16 %v2392
        %v4333 = vunpack.c.h.b16 %v2392
        %v4334 = vunpack.c.l.b16 %v2393
        %v4335 = vunpack.c.h.b16 %v2393
        %v4336 = vunpack.c.l.b16 %v2394
        %v4337 = vunpack.c.l.b16 %v2395
        %v4338 = vunpack.c.h.b16 %v2395
        %v4339 = vunpack.c.l.b16 %v2396
        %v4340 = vunpack.c.h.b16 %v2396
        %v4341 = vunpack.c.l.b16 %v2397
        %v4342 = vunpack.c.l.b16 %v2398
        %v4343 = vunpack.c.h.b16 %v2398
        %v4344 = vunpack.c.l.b16 %v2399
        %v4345 = vunpack.c.h.b16 %v2399
        %v4346 = vunpack.c.l.b16 %v2400
        %v4347 = vunpack.c.l.b16 %v2401
        %v4348 = vunpack.c.h.b16 %v2401
        %v4349 = vunpack.c.l.b16 %v2402
        %v4350 = vunpack.c.h.b16 %v2402
        %v4351 = vunpack.c.l.b16 %v2403
        %v4352 = vunpack.c.l.b16 %v2404
        %v4353 = vunpack.c.h.b16 %v2404
        %v4354 = vunpack.c.l.b16 %v2405
        %v4355 = vunpack.c.h.b16 %v2405
        %v4356 = vunpack.c.l.b16 %v2406
        %v4357 = vunpack.c.l.b16 %v2407
        %v4358 = vunpack.c.h.b16 %v2407
        %v4359 = vunpack.c.l.b16 %v2408
        %v4360 = vunpack.c.h.b16 %v2408
        %v4361 = vunpack.c.l.b16 %v2409
        %v4362 = vunpack.c.l.b16 %v2410
        %v4363 = vunpack.c.h.b16 %v2410
        %v4364 = vunpack.c.l.b16 %v2411
        %v4365 = vunpack.c.h.b16 %v2411
        %v4366 = vunpack.c.l.b16 %v2412
        %v4367 = vunpack.c.l.b16 %v2413
        %v4368 = vunpack.c.h.b16 %v2413
        %v4369 = vunpack.c.l.b16 %v2414
        %v4370 = vunpack.c.h.b16 %v2414
        %v4371 = vunpack.c.l.b16 %v2415
        %v4372 = vunpack.c.l.b16 %v2416
        %v4373 = vunpack.c.h.b16 %v2416
        %v4374 = vunpack.c.l.b16 %v2417
        %v4375 = vunpack.c.h.b16 %v2417
        %v4376 = vunpack.c.l.b16 %v2418
        %v4377 = vunpack.c.l.b16 %v2419
        %v4378 = vunpack.c.h.b16 %v2419
        %v4379 = vunpack.c.l.b16 %v2420
        %v4380 = vunpack.c.h.b16 %v2420
        %v4381 = vunpack.c.l.b16 %v2421
        %v4382 = vunpack.c.l.b16 %v2422
        %v4383 = vunpack.c.h.b16 %v2422
        %v4384 = vunpack.c.l.b16 %v2423
        %v4385 = vunpack.c.h.b16 %v2423
        %v4386 = vunpack.c.l.b16 %v2424
        %v4387 = vunpack.c.l.b16 %v2425
        %v4388 = vunpack.c.h.b16 %v2425
        %v4389 = vunpack.c.l.b16 %v2426
        %v4390 = vunpack.c.h.b16 %v2426
        %v4391 = vunpack.c.l.b16 %v2427
        %v4392 = vunpack.c.l.b16 %v2428
        %v4393 = vunpack.c.h.b16 %v2428
        %v4394 = vunpack.c.l.b16 %v2429
        %v4395 = vunpack.c.h.b16 %v2429
        %v4396 = vunpack.c.l.b16 %v2430
        %v4397 = vunpack.c.l.b16 %v2431
        %v4398 = vunpack.c.h.b16 %v2431
        %v4399 = vunpack.c.l.b16 %v2432
        %v4400 = vunpack.c.h.b16 %v2432
        %v4401 = vunpack.c.l.b16 %v2433
        %v4402 = vunpack.c.l.b16 %v2434
        %v4403 = vunpack.c.h.b16 %v2434
        %v4404 = vunpack.c.l.b16 %v2435
        %v4405 = vunpack.c.h.b16 %v2435
        %v4406 = vunpack.c.l.b16 %v2436
        %v4407 = vunpack.c.l.b16 %v2437
        %v4408 = vunpack.c.h.b16 %v2437
        %v4409 = vunpack.c.l.b16 %v2438
        %v4410 = vunpack.c.h.b16 %v2438
        %v4411 = vunpack.c.l.b16 %v2439
        %v4412 = vunpack.c.l.b16 %v2440
        %v4413 = vunpack.c.h.b16 %v2440
        %v4414 = vunpack.c.l.b16 %v2441
        %v4415 = vunpack.c.h.b16 %v2441
        %v4416 = vunpack.c.l.b16 %v2442
        %v4417 = vunpack.c.l.b16 %v2443
        %v4418 = vunpack.c.h.b16 %v2443
        %v4419 = vunpack.c.l.b16 %v2444
        %v4420 = vunpack.c.h.b16 %v2444
        %v4421 = vunpack.c.l.b16 %v2445
        %v4422 = vunpack.c.l.b16 %v2446
        %v4423 = vunpack.c.h.b16 %v2446
        %v4424 = vunpack.c.l.b16 %v2447
        %v4425 = vunpack.c.h.b16 %v2447
        %v4426 = vunpack.c.l.b16 %v2448
        %v4427 = vunpack.c.l.b16 %v2449
        %v4428 = vunpack.c.h.b16 %v2449
        %v4429 = vunpack.c.l.b16 %v2450
        %v4430 = vunpack.c.h.b16 %v2450
        %v4431 = vunpack.c.l.b16 %v2451
        %v4432 = vunpack.c.l.b16 %v2452
        %v4433 = vunpack.c.h.b16 %v2452
        %v4434 = vunpack.c.l.b16 %v2453
        %v4435 = vunpack.c.h.b16 %v2453
        %v4436 = vunpack.c.l.b16 %v2454
        %v4437 = vunpack.c.l.b16 %v2455
        %v4438 = vunpack.c.h.b16 %v2455
        %v4439 = vunpack.c.l.b16 %v2456
        %v4440 = vunpack.c.h.b16 %v2456
        %v4441 = vunpack.c.l.b16 %v2457
        %v4442 = vunpack.c.l.b16 %v2458
        %v4443 = vunpack.c.h.b16 %v2458
        %v4444 = vunpack.c.l.b16 %v2459
        %v4445 = vunpack.c.h.b16 %v2459
        %v4446 = vunpack.c.l.b16 %v2460
        %v4447 = vunpack.c.l.b16 %v2461
        %v4448 = vunpack.c.h.b16 %v2461
        %v4449 = vunpack.c.l.b16 %v2462
        %v4450 = vunpack.c.h.b16 %v2462
        %v4451 = vunpack.c.l.b16 %v2463
        %v4452 = vunpack.c.l.b16 %v2464
        %v4453 = vunpack.c.h.b16 %v2464
        %v4454 = vunpack.c.l.b16 %v2465
        %v4455 = vunpack.c.h.b16 %v2465
        %v4456 = vunpack.c.l.b16 %v2466
        %v4457 = vunpack.c.l.b16 %v2467
        %v4458 = vunpack.c.h.b16 %v2467
        %v4459 = vunpack.c.l.b16 %v2468
        %v4460 = vunpack.c.h.b16 %v2468
        %v4461 = vunpack.c.l.b16 %v2469
        %v4462 = vunpack.c.l.b16 %v2470
        %v4463 = vunpack.c.h.b16 %v2470
        %v4464 = vunpack.c.l.b16 %v2471
        %v4465 = vunpack.c.h.b16 %v2471
        %v4466 = vunpack.c.l.b16 %v2472
        %v4467 = vunpack.c.l.b16 %v2473
        %v4468 = vunpack.c.h.b16 %v2473
        %v4469 = vunpack.c.l.b16 %v2474
        %v4470 = vunpack.c.h.b16 %v2474
        %v4471 = vunpack.c.l.b16 %v2475
        %v4472 = vunpack.c.l.b16 %v2476
        %v4473 = vunpack.c.h.b16 %v2476
        %v4474 = vunpack.c.l.b16 %v2477
        %v4475 = vunpack.c.h.b16 %v2477
        %v4476 = vunpack.c.l.b16 %v2478
        %v4477 = vunpack.c.l.b16 %v2479
        %v4478 = vunpack.c.h.b16 %v2479
        %v4479 = vunpack.c.l.b16 %v2480
        %v4480 = vunpack.c.h.b16 %v2480
        %v4481 = vunpack.c.l.b16 %v2481
        %v4482 = vunpack.c.l.b16 %v2482
        %v4483 = vunpack.c.h.b16 %v2482
        %v4484 = vunpack.c.l.b16 %v2483
        %v4485 = vunpack.c.h.b16 %v2483
        %v4486 = vunpack.c.l.b16 %v2484
        %v4487 = vunpack.c.l.b16 %v2485
        %v4488 = vunpack.c.h.b16 %v2485
        %v4489 = vunpack.c.l.b16 %v2486
        %v4490 = vunpack.c.h.b16 %v2486
        %v4491 = vunpack.c.l.b16 %v2487
        %v4492 = vunpack.c.l.b16 %v2488
        %v4493 = vunpack.c.h.b16 %v2488
        %v4494 = vunpack.c.l.b16 %v2489
        %v4495 = vunpack.c.h.b16 %v2489
        %v4496 = vunpack.c.l.b16 %v2490
        %v4497 = vunpack.c.l.b16 %v2491
        %v4498 = vunpack.c.h.b16 %v2491
        %v4499 = vunpack.c.l.b16 %v2492
        %v4500 = vunpack.c.h.b16 %v2492
        %v4501 = vunpack.c.l.b16 %v2493
        %v4502 = vunpack.c.l.b16 %v2494
        %v4503 = vunpack.c.h.b16 %v2494
        %v4504 = vunpack.c.l.b16 %v2495
        %v4505 = vunpack.c.h.b16 %v2495
        %v4506 = vunpack.c.l.b16 %v2496
        %v4507 = vunpack.c.l.b16 %v2497
        %v4508 = vunpack.c.h.b16 %v2497
        %v4509 = vunpack.c.l.b16 %v2498
        %v4510 = vunpack.c.h.b16 %v2498
        %v4511 = vunpack.c.l.b16 %v2499
        %v4512 = vunpack.c.l.b16 %v2500
        %v4513 = vunpack.c.h.b16 %v2500
        %v4514 = vunpack.c.l.b16 %v2501
        %v4515 = vunpack.c.h.b16 %v2501
        %v4516 = vunpack.c.l.b16 %v2502
        %v4517 = vunpack.c.l.b16 %v2503
        %v4518 = vunpack.c.h.b16 %v2503
        %v4519 = vunpack.c.l.b16 %v2504
        %v4520 = vunpack.c.h.b16 %v2504
        %v4521 = vunpack.c.l.b16 %v2505
        %v4522 = vunpack.c.l.b16 %v2506
        %v4523 = vunpack.c.h.b16 %v2506
        %v4524 = vunpack.c.l.b16 %v2507
        %v4525 = vunpack.c.h.b16 %v2507
        %v4526 = vunpack.c.l.b16 %v2508
        %v4527 = vunpack.c.l.b16 %v2509
        %v4528 = vunpack.c.h.b16 %v2509
        %v4529 = vunpack.c.l.b16 %v2510
        %v4530 = vunpack.c.h.b16 %v2510
        %v4531 = vunpack.c.l.b16 %v2511
        %v4532 = vunpack.c.l.b16 %v2512
        %v4533 = vunpack.c.h.b16 %v2512
        %v4534 = vunpack.c.l.b16 %v2513
        %v4535 = vunpack.c.h.b16 %v2513
        %v4536 = vunpack.c.l.b16 %v2514
        %v4537 = vunpack.c.l.b16 %v2515
        %v4538 = vunpack.c.h.b16 %v2515
        %v4539 = vunpack.c.l.b16 %v2516
        %v4540 = vunpack.c.h.b16 %v2516
        %v4541 = vunpack.c.l.b16 %v2517
        %v4542 = vunpack.c.l.b16 %v2518
        %v4543 = vunpack.c.h.b16 %v2518
        %v4544 = vunpack.c.l.b16 %v2519
        %v4545 = vunpack.c.h.b16 %v2519
        %v4546 = vunpack.c.l.b16 %v2520
        %v4547 = vunpack.c.l.b16 %v2521
        %v4548 = vunpack.c.h.b16 %v2521
        %v4549 = vunpack.c.l.b16 %v2522
        %v4550 = vunpack.c.h.b16 %v2522
        %v4551 = vunpack.c.l.b16 %v2523
        %v4552 = vunpack.c.l.b16 %v2524
        %v4553 = vunpack.c.h.b16 %v2524
        %v4554 = vunpack.c.l.b16 %v2525
        %v4555 = vunpack.c.h.b16 %v2525
        %v4556 = vunpack.c.l.b16 %v2526
        %v4557 = vunpack.c.l.b16 %v2527
        %v4558 = vunpack.c.h.b16 %v2527
        %v4559 = vunpack.c.l.b16 %v2528
        %v4560 = vunpack.c.h.b16 %v2528
        %v4561 = vunpack.c.l.b16 %v2529
        %v4562 = vunpack.c.l.b16 %v2530
        %v4563 = vunpack.c.h.b16 %v2530
        %v4564 = vunpack.c.l.b16 %v2531
        %v4565 = vunpack.c.h.b16 %v2531
        %v4566 = vunpack.c.l.b16 %v2532
        %v4567 = vunpack.c.l.b16 %v2533
        %v4568 = vunpack.c.h.b16 %v2533
        %v4569 = vunpack.c.l.b16 %v2534
        %v4570 = vunpack.c.h.b16 %v2534
        %v4571 = vunpack.c.l.b16 %v2535
        %v4572 = vunpack.c.l.b16 %v2536
        %v4573 = vunpack.c.h.b16 %v2536
        %v4574 = vunpack.c.l.b16 %v2537
        %v4575 = vunpack.c.h.b16 %v2537
        %v4576 = vunpack.c.l.b16 %v2538
        %v4577 = vunpack.c.l.b16 %v2539
        %v4578 = vunpack.c.h.b16 %v2539
        %v4579 = vunpack.c.l.b16 %v2540
        %v4580 = vunpack.c.h.b16 %v2540
        %v4581 = vunpack.c.l.b16 %v2541
        %v4582 = vunpack.c.l.b16 %v2542
        %v4583 = vunpack.c.h.b16 %v2542
        %v4584 = vunpack.c.l.b16 %v2543
        %v4585 = vunpack.c.h.b16 %v2543
        %v4586 = vunpack.c.l.b16 %v2544
        %v4587 = vunpack.c.l.b16 %v2545
        %v4588 = vunpack.c.h.b16 %v2545
        %v4589 = vunpack.c.l.b16 %v2546
        %v4590 = vunpack.c.h.b16 %v2546
        %v4591 = vunpack.c.l.b16 %v2547
        %v4592 = vunpack.c.l.b16 %v2548
        %v4593 = vunpack.c.h.b16 %v2548
        %v4594 = vunpack.c.l.b16 %v2549
        %v4595 = vunpack.c.h.b16 %v2549
        %v4596 = vunpack.c.l.b16 %v2550
        %v4597 = vunpack.c.l.b16 %v2551
        %v4598 = vunpack.c.h.b16 %v2551
        %v4599 = vunpack.c.l.b16 %v2552
        %v4600 = vunpack.c.h.b16 %v2552
        %v4601 = vunpack.c.l.b16 %v2553
        %v4602 = vunpack.c.l.b16 %v2554
        %v4603 = vunpack.c.h.b16 %v2554
        %v4604 = vunpack.c.l.b16 %v2555
        %v4605 = vunpack.c.h.b16 %v2555
        %v4606 = vunpack.c.l.b16 %v2556
        %v4607 = vunpack.c.l.b16 %v2557
        %v4608 = vunpack.c.h.b16 %v2557
        %v4609 = vunpack.c.l.b16 %v2558
        %v4610 = vunpack.c.h.b16 %v2558
        %v4611 = vunpack.c.l.b16 %v2559
        %v4612 = vunpack.c.l.b16 %v2560
        %v4613 = vunpack.c.h.b16 %v2560
        %v4614 = vunpack.c.l.b16 %v2561
        %v4615 = vunpack.c.h.b16 %v2561
        %v4616 = vunpack.c.l.b16 %v2562
        %v4617 = vunpack.c.l.b16 %v2563
        %v4618 = vunpack.c.h.b16 %v2563
        %v4619 = vunpack.c.l.b16 %v2564
        %v4620 = vunpack.c.h.b16 %v2564
        %v4621 = vunpack.c.l.b16 %v2565
        %v4622 = vunpack.c.l.b16 %v2566
        %v4623 = vunpack.c.h.b16 %v2566
        %v4624 = vunpack.c.l.b16 %v2567
        %v4625 = vunpack.c.h.b16 %v2567
        %v4626 = vunpack.c.l.b16 %v2568
        %v4627 = vunpack.c.l.b16 %v2569
        %v4628 = vunpack.c.h.b16 %v2569
        %v4629 = vunpack.c.l.b16 %v2570
        %v4630 = vunpack.c.h.b16 %v2570
        %v4631 = vunpack.c.l.b16 %v2571
        %v4632 = vunpack.c.l.b16 %v2572
        %v4633 = vunpack.c.h.b16 %v2572
        %v4634 = vunpack.c.l.b16 %v2573
        %v4635 = vunpack.c.h.b16 %v2573
        %v4636 = vunpack.c.l.b16 %v2574
        %v4637 = vunpack.c.l.b16 %v2575
        %v4638 = vunpack.c.h.b16 %v2575
        %v4639 = vunpack.c.l.b16 %v2576
        %v4640 = vunpack.c.h.b16 %v2576
        %v4641 = vunpack.c.l.b16 %v2577
        %v4642 = vunpack.c.l.b16 %v2578
        %v4643 = vunpack.c.h.b16 %v2578
        %v4644 = vunpack.c.l.b16 %v2579
        %v4645 = vunpack.c.h.b16 %v2579
        %v4646 = vunpack.c.l.b16 %v2580
        %v4647 = vunpack.c.l.b16 %v2581
        %v4648 = vunpack.c.h.b16 %v2581
        %v4649 = vunpack.c.l.b16 %v2582
        %v4650 = vunpack.c.h.b16 %v2582
        %v4651 = vunpack.c.l.b16 %v2583
        %v4652 = vunpack.c.l.b16 %v2584
        %v4653 = vunpack.c.h.b16 %v2584
        %v4654 = vunpack.c.l.b16 %v2585
        %v4655 = vunpack.c.h.b16 %v2585
        %v4656 = vunpack.c.l.b16 %v2586
        %v4657 = vunpack.c.l.b16 %v2587
        %v4658 = vunpack.c.h.b16 %v2587
        %v4659 = vunpack.c.l.b16 %v2588
        %v4660 = vunpack.c.h.b16 %v2588
        %v4661 = vunpack.c.l.b16 %v2589
        %v4662 = vunpack.c.l.b16 %v2590
        %v4663 = vunpack.c.h.b16 %v2590
        %v4664 = vunpack.c.l.b16 %v2591
        %v4665 = vunpack.c.h.b16 %v2591
        %v4666 = vunpack.c.l.b16 %v2592
        %v4667 = vunpack.c.l.b16 %v2593
        %v4668 = vunpack.c.h.b16 %v2593
        %v4669 = vunpack.c.l.b16 %v2594
        %v4670 = vunpack.c.h.b16 %v2594
        %v4671 = vunpack.c.l.b16 %v2595
        %v4672 = vunpack.c.l.b16 %v2596
        %v4673 = vunpack.c.h.b16 %v2596
        %v4674 = vunpack.c.l.b16 %v2597
        %v4675 = vunpack.c.h.b16 %v2597
        %v4676 = vunpack.c.l.b16 %v2598
        %v4677 = vunpack.c.l.b16 %v2599
        %v4678 = vunpack.c.h.b16 %v2599
        %v4679 = vunpack.c.l.b16 %v2600
        %v4680 = vunpack.c.h.b16 %v2600
        %v4681 = vunpack.c.l.b16 %v2601
        %v4682 = vunpack.c.l.b16 %v2602
        %v4683 = vunpack.c.h.b16 %v2602
        %v4684 = vunpack.c.l.b16 %v2603
        %v4685 = vunpack.c.h.b16 %v2603
        %v4686 = vunpack.c.l.b16 %v2604
        %v4687 = vunpack.c.l.b16 %v2605
        %v4688 = vunpack.c.h.b16 %v2605
        %v4689 = vunpack.c.l.b16 %v2606
        %v4690 = vunpack.c.h.b16 %v2606
        %v4691 = vunpack.c.l.b16 %v2607
        %v4692 = vunpack.c.l.b16 %v2608
        %v4693 = vunpack.c.h.b16 %v2608
        %v4694 = vunpack.c.l.b16 %v2609
        %v4695 = vunpack.c.h.b16 %v2609
        %v4696 = vunpack.c.l.b16 %v2610
        %v4697 = vunpack.c.l.b16 %v2611
        %v4698 = vunpack.c.h.b16 %v2611
        %v4699 = vunpack.c.l.b16 %v2612
        %v4700 = vunpack.c.h.b16 %v2612
        %v4701 = vunpack.c.l.b16 %v2613
        %v4702 = vunpack.c.l.b16 %v2614
        %v4703 = vunpack.c.h.b16 %v2614
        %v4704 = vunpack.c.l.b16 %v2615
        %v4705 = vunpack.c.h.b16 %v2615
        %v4706 = vunpack.c.l.b16 %v2616
        %v4707 = vunpack.c.l.b16 %v2617
        %v4708 = vunpack.c.h.b16 %v2617
        %v4709 = vunpack.c.l.b16 %v2618
        %v4710 = vunpack.c.h.b16 %v2618
        %v4711 = vunpack.c.l.b16 %v2619
        %v4712 = vunpack.c.l.b16 %v2620
        %v4713 = vunpack.c.h.b16 %v2620
        %v4714 = vunpack.c.l.b16 %v2621
        %v4715 = vunpack.c.h.b16 %v2621
        %v4716 = vunpack.c.l.b16 %v2622
        %v4717 = vunpack.c.l.b16 %v2623
        %v4718 = vunpack.c.h.b16 %v2623
        %v4719 = vunpack.c.l.b16 %v2624
        %v4720 = vunpack.c.h.b16 %v2624
        %v4721 = vunpack.c.l.b16 %v2625
        %v4722 = vunpack.c.l.b16 %v2626
        %v4723 = vunpack.c.h.b16 %v2626
        %v4724 = vunpack.c.l.b16 %v2627
        %v4725 = vunpack.c.h.b16 %v2627
        %v4726 = vunpack.c.l.b16 %v2628
        %v4727 = vunpack.c.l.b16 %v2629
        %v4728 = vunpack.c.h.b16 %v2629
        %v4729 = vunpack.c.l.b16 %v2630
        %v4730 = vunpack.c.h.b16 %v2630
        %v4731 = vunpack.c.l.b16 %v2631
        %v4732 = vunpack.c.l.b16 %v2632
        %v4733 = vunpack.c.h.b16 %v2632
        %v4734 = vunpack.c.l.b16 %v2633
        %v4735 = vunpack.c.h.b16 %v2633
        %v4736 = vunpack.c.l.b16 %v2634
        %v4737 = vunpack.c.l.b16 %v2635
        %v4738 = vunpack.c.h.b16 %v2635
        %v4739 = vunpack.c.l.b16 %v2636
        %v4740 = vunpack.c.h.b16 %v2636
        %v4741 = vunpack.c.l.b16 %v2637
        %v4742 = vpack.c.b16 %v3467, %v3462
        %v4743 = vpack.c.b16 %v3468, %v3463
        %v4744 = vpack.c.b16 %v3469, %v3464
        %v4745 = vpack.c.b16 %v3470, %v3465
        %v4746 = vpack.c.b16 %v3471, %v3466
        %v4747 = vpack.c.b16 %v3477, %v3472
        %v4748 = vpack.c.b16 %v3478, %v3473
        %v4749 = vpack.c.b16 %v3479, %v3474
        %v4750 = vpack.c.b16 %v3480, %v3475
        %v4751 = vpack.c.b16 %v3481, %v3476
        %v4752 = vpack.c.b16 %v3487, %v3482
        %v4753 = vpack.c.b16 %v3488, %v3483
        %v4754 = vpack.c.b16 %v3489, %v3484
        %v4755 = vpack.c.b16 %v3490, %v3485
        %v4756 = vpack.c.b16 %v3491, %v3486
        %v4757 = vpack.c.b16 %v3497, %v3492
        %v4758 = vpack.c.b16 %v3498, %v3493
        %v4759 = vpack.c.b16 %v3499, %v3494
        %v4760 = vpack.c.b16 %v3500, %v3495
        %v4761 = vpack.c.b16 %v3501, %v3496
        %v4762 = vpack.c.b16 %v3507, %v3502
        %v4763 = vpack.c.b16 %v3508, %v3503
        %v4764 = vpack.c.b16 %v3509, %v3504
        %v4765 = vpack.c.b16 %v3510, %v3505
        %v4766 = vpack.c.b16 %v3511, %v3506
        %v4767 = vpack.c.b16 %v3517, %v3512
        %v4768 = vpack.c.b16 %v3518, %v3513
        %v4769 = vpack.c.b16 %v3519, %v3514
        %v4770 = vpack.c.b16 %v3520, %v3515
        %v4771 = vpack.c.b16 %v3521, %v3516
        %v4772 = vpack.c.b16 %v3527, %v3522
        %v4773 = vpack.c.b16 %v3528, %v3523
        %v4774 = vpack.c.b16 %v3529, %v3524
        %v4775 = vpack.c.b16 %v3530, %v3525
        %v4776 = vpack.c.b16 %v3531, %v3526
        %v4777 = vpack.c.b16 %v3537, %v3532
        %v4778 = vpack.c.b16 %v3538, %v3533
        %v4779 = vpack.c.b16 %v3539, %v3534
        %v4780 = vpack.c.b16 %v3540, %v3535
        %v4781 = vpack.c.b16 %v3541, %v3536
        %v4782 = vpack.c.b16 %v3547, %v3542
        %v4783 = vpack.c.b16 %v3548, %v3543
        %v4784 = vpack.c.b16 %v3549, %v3544
        %v4785 = vpack.c.b16 %v3550, %v3545
        %v4786 = vpack.c.b16 %v3551, %v3546
        %v4787 = vpack.c.b16 %v3557, %v3552
        %v4788 = vpack.c.b16 %v3558, %v3553
        %v4789 = vpack.c.b16 %v3559, %v3554
        %v4790 = vpack.c.b16 %v3560, %v3555
        %v4791 = vpack.c.b16 %v3561, %v3556
        %v4792 = vpack.c.b16 %v3567, %v3562
        %v4793 = vpack.c.b16 %v3568, %v3563
        %v4794 = vpack.c.b16 %v3569, %v3564
        %v4795 = vpack.c.b16 %v3570, %v3565
        %v4796 = vpack.c.b16 %v3571, %v3566
        %v4797 = vpack.c.b16 %v3577, %v3572
        %v4798 = vpack.c.b16 %v3578, %v3573
        %v4799 = vpack.c.b16 %v3579, %v3574
        %v4800 = vpack.c.b16 %v3580, %v3575
        %v4801 = vpack.c.b16 %v3581, %v3576
        %v4802 = vpack.c.b16 %v3587, %v3582
        %v4803 = vpack.c.b16 %v3588, %v3583
        %v4804 = vpack.c.b16 %v3589, %v3584
        %v4805 = vpack.c.b16 %v3590, %v3585
        %v4806 = vpack.c.b16 %v3591, %v3586
        %v4807 = vpack.c.b16 %v3597, %v3592
        %v4808 = vpack.c.b16 %v3598, %v3593
        %v4809 = vpack.c.b16 %v3599, %v3594
        %v4810 = vpack.c.b16 %v3600, %v3595
        %v4811 = vpack.c.b16 %v3601, %v3596
        %v4812 = vpack.c.b16 %v3607, %v3602
        %v4813 = vpack.c.b16 %v3608, %v3603
        %v4814 = vpack.c.b16 %v3609, %v3604
        %v4815 = vpack.c.b16 %v3610, %v3605
        %v4816 = vpack.c.b16 %v3611, %v3606
        %v4817 = vpack.c.b16 %v3617, %v3612
        %v4818 = vpack.c.b16 %v3618, %v3613
        %v4819 = vpack.c.b16 %v3619, %v3614
        %v4820 = vpack.c.b16 %v3620, %v3615
        %v4821 = vpack.c.b16 %v3621, %v3616
        %v4822 = vpack.c.b16 %v3627, %v3622
        %v4823 = vpack.c.b16 %v3628, %v3623
        %v4824 = vpack.c.b16 %v3629, %v3624
        %v4825 = vpack.c.b16 %v3630, %v3625
        %v4826 = vpack.c.b16 %v3631, %v3626
        %v4827 = vpack.c.b16 %v3637, %v3632
        %v4828 = vpack.c.b16 %v3638, %v3633
        %v4829 = vpack.c.b16 %v3639, %v3634
        %v4830 = vpack.c.b16 %v3640, %v3635
        %v4831 = vpack.c.b16 %v3641, %v3636
        %v4832 = vpack.c.b16 %v3647, %v3642
        %v4833 = vpack.c.b16 %v3648, %v3643
        %v4834 = vpack.c.b16 %v3649, %v3644
        %v4835 = vpack.c.b16 %v3650, %v3645
        %v4836 = vpack.c.b16 %v3651, %v3646
        %v4837 = vpack.c.b16 %v3657, %v3652
        %v4838 = vpack.c.b16 %v3658, %v3653
        %v4839 = vpack.c.b16 %v3659, %v3654
        %v4840 = vpack.c.b16 %v3660, %v3655
        %v4841 = vpack.c.b16 %v3661, %v3656
        %v4842 = vpack.c.b16 %v3667, %v3662
        %v4843 = vpack.c.b16 %v3668, %v3663
        %v4844 = vpack.c.b16 %v3669, %v3664
        %v4845 = vpack.c.b16 %v3670, %v3665
        %v4846 = vpack.c.b16 %v3671, %v3666
        %v4847 = vpack.c.b16 %v3677, %v3672
        %v4848 = vpack.c.b16 %v3678, %v3673
        %v4849 = vpack.c.b16 %v3679, %v3674
        %v4850 = vpack.c.b16 %v3680, %v3675
        %v4851 = vpack.c.b16 %v3681, %v3676
        %v4852 = vpack.c.b16 %v3687, %v3682
        %v4853 = vpack.c.b16 %v3688, %v3683
        %v4854 = vpack.c.b16 %v3689, %v3684
        %v4855 = vpack.c.b16 %v3690, %v3685
        %v4856 = vpack.c.b16 %v3691, %v3686
        %v4857 = vpack.c.b16 %v3697, %v3692
        %v4858 = vpack.c.b16 %v3698, %v3693
        %v4859 = vpack.c.b16 %v3699, %v3694
        %v4860 = vpack.c.b16 %v3700, %v3695
        %v4861 = vpack.c.b16 %v3701, %v3696
        %v4862 = vpack.c.b16 %v3707, %v3702
        %v4863 = vpack.c.b16 %v3708, %v3703
        %v4864 = vpack.c.b16 %v3709, %v3704
        %v4865 = vpack.c.b16 %v3710, %v3705
        %v4866 = vpack.c.b16 %v3711, %v3706
        %v4867 = vpack.c.b16 %v3717, %v3712
        %v4868 = vpack.c.b16 %v3718, %v3713
        %v4869 = vpack.c.b16 %v3719, %v3714
        %v4870 = vpack.c.b16 %v3720, %v3715
        %v4871 = vpack.c.b16 %v3721, %v3716
        %v4872 = vpack.c.b16 %v3727, %v3722
        %v4873 = vpack.c.b16 %v3728, %v3723
        %v4874 = vpack.c.b16 %v3729, %v3724
        %v4875 = vpack.c.b16 %v3730, %v3725
        %v4876 = vpack.c.b16 %v3731, %v3726
        %v4877 = vpack.c.b16 %v3737, %v3732
        %v4878 = vpack.c.b16 %v3738, %v3733
        %v4879 = vpack.c.b16 %v3739, %v3734
        %v4880 = vpack.c.b16 %v3740, %v3735
        %v4881 = vpack.c.b16 %v3741, %v3736
        %v4882 = vpack.c.b16 %v3747, %v3742
        %v4883 = vpack.c.b16 %v3748, %v3743
        %v4884 = vpack.c.b16 %v3749, %v3744
        %v4885 = vpack.c.b16 %v3750, %v3745
        %v4886 = vpack.c.b16 %v3751, %v3746
        %v4887 = vpack.c.b16 %v3757, %v3752
        %v4888 = vpack.c.b16 %v3758, %v3753
        %v4889 = vpack.c.b16 %v3759, %v3754
        %v4890 = vpack.c.b16 %v3760, %v3755
        %v4891 = vpack.c.b16 %v3761, %v3756
        %v4892 = vpack.c.b16 %v3767, %v3762
        %v4893 = vpack.c.b16 %v3768, %v3763
        %v4894 = vpack.c.b16 %v3769, %v3764
        %v4895 = vpack.c.b16 %v3770, %v3765
        %v4896 = vpack.c.b16 %v3771, %v3766
        %v4897 = vpack.c.b16 %v3777, %v3772
        %v4898 = vpack.c.b16 %v3778, %v3773
        %v4899 = vpack.c.b16 %v3779, %v3774
        %v4900 = vpack.c.b16 %v3780, %v3775
        %v4901 = vpack.c.b16 %v3781, %v3776
        %v4902 = vpack.c.b16 %v3787, %v3782
        %v4903 = vpack.c.b16 %v3788, %v3783
        %v4904 = vpack.c.b16 %v3789, %v3784
        %v4905 = vpack.c.b16 %v3790, %v3785
        %v4906 = vpack.c.b16 %v3791, %v3786
        %v4907 = vpack.c.b16 %v3797, %v3792
        %v4908 = vpack.c.b16 %v3798, %v3793
        %v4909 = vpack.c.b16 %v3799, %v3794
        %v4910 = vpack.c.b16 %v3800, %v3795
        %v4911 = vpack.c.b16 %v3801, %v3796
        %v4912 = vpack.c.b16 %v3807, %v3802
        %v4913 = vpack.c.b16 %v3808, %v3803
        %v4914 = vpack.c.b16 %v3809, %v3804
        %v4915 = vpack.c.b16 %v3810, %v3805
        %v4916 = vpack.c.b16 %v3811, %v3806
        %v4917 = vpack.c.b16 %v3817, %v3812
        %v4918 = vpack.c.b16 %v3818, %v3813
        %v4919 = vpack.c.b16 %v3819, %v3814
        %v4920 = vpack.c.b16 %v3820, %v3815
        %v4921 = vpack.c.b16 %v3821, %v3816
        %v4922 = vpack.c.b16 %v3827, %v3822
        %v4923 = vpack.c.b16 %v3828, %v3823
        %v4924 = vpack.c.b16 %v3829, %v3824
        %v4925 = vpack.c.b16 %v3830, %v3825
        %v4926 = vpack.c.b16 %v3831, %v3826
        %v4927 = vpack.c.b16 %v3837, %v3832
        %v4928 = vpack.c.b16 %v3838, %v3833
        %v4929 = vpack.c.b16 %v3839, %v3834
        %v4930 = vpack.c.b16 %v3840, %v3835
        %v4931 = vpack.c.b16 %v3841, %v3836
        %v4932 = vpack.c.b16 %v3847, %v3842
        %v4933 = vpack.c.b16 %v3848, %v3843
        %v4934 = vpack.c.b16 %v3849, %v3844
        %v4935 = vpack.c.b16 %v3850, %v3845
        %v4936 = vpack.c.b16 %v3851, %v3846
        %v4937 = vpack.c.b16 %v3857, %v3852
        %v4938 = vpack.c.b16 %v3858, %v3853
        %v4939 = vpack.c.b16 %v3859, %v3854
        %v4940 = vpack.c.b16 %v3860, %v3855
        %v4941 = vpack.c.b16 %v3861, %v3856
        %v4942 = vpack.c.b16 %v3867, %v3862
        %v4943 = vpack.c.b16 %v3868, %v3863
        %v4944 = vpack.c.b16 %v3869, %v3864
        %v4945 = vpack.c.b16 %v3870, %v3865
        %v4946 = vpack.c.b16 %v3871, %v3866
        %v4947 = vpack.c.b16 %v3877, %v3872
        %v4948 = vpack.c.b16 %v3878, %v3873
        %v4949 = vpack.c.b16 %v3879, %v3874
        %v4950 = vpack.c.b16 %v3880, %v3875
        %v4951 = vpack.c.b16 %v3881, %v3876
        %v4952 = vpack.c.b16 %v3887, %v3882
        %v4953 = vpack.c.b16 %v3888, %v3883
        %v4954 = vpack.c.b16 %v3889, %v3884
        %v4955 = vpack.c.b16 %v3890, %v3885
        %v4956 = vpack.c.b16 %v3891, %v3886
        %v4957 = vpack.c.b16 %v3897, %v3892
        %v4958 = vpack.c.b16 %v3898, %v3893
        %v4959 = vpack.c.b16 %v3899, %v3894
        %v4960 = vpack.c.b16 %v3900, %v3895
        %v4961 = vpack.c.b16 %v3901, %v3896
        %v4962 = vpack.c.b16 %v3907, %v3902
        %v4963 = vpack.c.b16 %v3908, %v3903
        %v4964 = vpack.c.b16 %v3909, %v3904
        %v4965 = vpack.c.b16 %v3910, %v3905
        %v4966 = vpack.c.b16 %v3911, %v3906
        %v4967 = vpack.c.b16 %v3917, %v3912
        %v4968 = vpack.c.b16 %v3918, %v3913
        %v4969 = vpack.c.b16 %v3919, %v3914
        %v4970 = vpack.c.b16 %v3920, %v3915
        %v4971 = vpack.c.b16 %v3921, %v3916
        %v4972 = vpack.c.b16 %v3927, %v3922
        %v4973 = vpack.c.b16 %v3928, %v3923
        %v4974 = vpack.c.b16 %v3929, %v3924
        %v4975 = vpack.c.b16 %v3930, %v3925
        %v4976 = vpack.c.b16 %v3931, %v3926
        %v4977 = vpack.c.b16 %v3937, %v3932
        %v4978 = vpack.c.b16 %v3938, %v3933
        %v4979 = vpack.c.b16 %v3939, %v3934
        %v4980 = vpack.c.b16 %v3940, %v3935
        %v4981 = vpack.c.b16 %v3941, %v3936
        %v4982 = vpack.c.b16 %v3947, %v3942
        %v4983 = vpack.c.b16 %v3948, %v3943
        %v4984 = vpack.c.b16 %v3949, %v3944
        %v4985 = vpack.c.b16 %v3950, %v3945
        %v4986 = vpack.c.b16 %v3951, %v3946
        %v4987 = vpack.c.b16 %v3957, %v3952
        %v4988 = vpack.c.b16 %v3958, %v3953
        %v4989 = vpack.c.b16 %v3959, %v3954
        %v4990 = vpack.c.b16 %v3960, %v3955
        %v4991 = vpack.c.b16 %v3961, %v3956
        %v4992 = vpack.c.b16 %v3967, %v3962
        %v4993 = vpack.c.b16 %v3968, %v3963
        %v4994 = vpack.c.b16 %v3969, %v3964
        %v4995 = vpack.c.b16 %v3970, %v3965
        %v4996 = vpack.c.b16 %v3971, %v3966
        %v4997 = vpack.c.b16 %v3977, %v3972
        %v4998 = vpack.c.b16 %v3978, %v3973
        %v4999 = vpack.c.b16 %v3979, %v3974
        %v5000 = vpack.c.b16 %v3980, %v3975
        %v5001 = vpack.c.b16 %v3981, %v3976
        %v5002 = vpack.c.b16 %v3987, %v3982
        %v5003 = vpack.c.b16 %v3988, %v3983
        %v5004 = vpack.c.b16 %v3989, %v3984
        %v5005 = vpack.c.b16 %v3990, %v3985
        %v5006 = vpack.c.b16 %v3991, %v3986
        %v5007 = vpack.c.b16 %v3997, %v3992
        %v5008 = vpack.c.b16 %v3998, %v3993
        %v5009 = vpack.c.b16 %v3999, %v3994
        %v5010 = vpack.c.b16 %v4000, %v3995
        %v5011 = vpack.c.b16 %v4001, %v3996
        %v5012 = vpack.c.b16 %v4007, %v4002
        %v5013 = vpack.c.b16 %v4008, %v4003
        %v5014 = vpack.c.b16 %v4009, %v4004
        %v5015 = vpack.c.b16 %v4010, %v4005
        %v5016 = vpack.c.b16 %v4011, %v4006
        %v5017 = vpack.c.b16 %v4017, %v4012
        %v5018 = vpack.c.b16 %v4018, %v4013
        %v5019 = vpack.c.b16 %v4019, %v4014
        %v5020 = vpack.c.b16 %v4020, %v4015
        %v5021 = vpack.c.b16 %v4021, %v4016
        %v5022 = vpack.c.b16 %v4027, %v4022
        %v5023 = vpack.c.b16 %v4028, %v4023
        %v5024 = vpack.c.b16 %v4029, %v4024
        %v5025 = vpack.c.b16 %v4030, %v4025
        %v5026 = vpack.c.b16 %v4031, %v4026
        %v5027 = vpack.c.b16 %v4037, %v4032
        %v5028 = vpack.c.b16 %v4038, %v4033
        %v5029 = vpack.c.b16 %v4039, %v4034
        %v5030 = vpack.c.b16 %v4040, %v4035
        %v5031 = vpack.c.b16 %v4041, %v4036
        %v5032 = vpack.c.b16 %v4047, %v4042
        %v5033 = vpack.c.b16 %v4048, %v4043
        %v5034 = vpack.c.b16 %v4049, %v4044
        %v5035 = vpack.c.b16 %v4050, %v4045
        %v5036 = vpack.c.b16 %v4051, %v4046
        %v5037 = vpack.c.b16 %v4057, %v4052
        %v5038 = vpack.c.b16 %v4058, %v4053
        %v5039 = vpack.c.b16 %v4059, %v4054
        %v5040 = vpack.c.b16 %v4060, %v4055
        %v5041 = vpack.c.b16 %v4061, %v4056
        %v5042 = vpack.c.b16 %v4067, %v4062
        %v5043 = vpack.c.b16 %v4068, %v4063
        %v5044 = vpack.c.b16 %v4069, %v4064
        %v5045 = vpack.c.b16 %v4070, %v4065
        %v5046 = vpack.c.b16 %v4071, %v4066
        %v5047 = vpack.c.b16 %v4077, %v4072
        %v5048 = vpack.c.b16 %v4078, %v4073
        %v5049 = vpack.c.b16 %v4079, %v4074
        %v5050 = vpack.c.b16 %v4080, %v4075
        %v5051 = vpack.c.b16 %v4081, %v4076
        %v5052 = vpack.c.b16 %v4087, %v4082
        %v5053 = vpack.c.b16 %v4088, %v4083
        %v5054 = vpack.c.b16 %v4089, %v4084
        %v5055 = vpack.c.b16 %v4090, %v4085
        %v5056 = vpack.c.b16 %v4091, %v4086
        %v5057 = vpack.c.b16 %v4097, %v4092
        %v5058 = vpack.c.b16 %v4098, %v4093
        %v5059 = vpack.c.b16 %v4099, %v4094
        %v5060 = vpack.c.b16 %v4100, %v4095
        %v5061 = vpack.c.b16 %v4101, %v4096
        %v5062 = vpack.c.b16 %v4107, %v4102
        %v5063 = vpack.c.b16 %v4108, %v4103
        %v5064 = vpack.c.b16 %v4109, %v4104
        %v5065 = vpack.c.b16 %v4110, %v4105
        %v5066 = vpack.c.b16 %v4111, %v4106
        %v5067 = vpack.c.b16 %v4117, %v4112
        %v5068 = vpack.c.b16 %v4118, %v4113
        %v5069 = vpack.c.b16 %v4119, %v4114
        %v5070 = vpack.c.b16 %v4120, %v4115
        %v5071 = vpack.c.b16 %v4121, %v4116
        %v5072 = vpack.c.b16 %v4127, %v4122
        %v5073 = vpack.c.b16 %v4128, %v4123
        %v5074 = vpack.c.b16 %v4129, %v4124
        %v5075 = vpack.c.b16 %v4130, %v4125
        %v5076 = vpack.c.b16 %v4131, %v4126
        %v5077 = vpack.c.b16 %v4137, %v4132
        %v5078 = vpack.c.b16 %v4138, %v4133
        %v5079 = vpack.c.b16 %v4139, %v4134
        %v5080 = vpack.c.b16 %v4140, %v4135
        %v5081 = vpack.c.b16 %v4141, %v4136
        %v5082 = vpack.c.b16 %v4147, %v4142
        %v5083 = vpack.c.b16 %v4148, %v4143
        %v5084 = vpack.c.b16 %v4149, %v4144
        %v5085 = vpack.c.b16 %v4150, %v4145
        %v5086 = vpack.c.b16 %v4151, %v4146
        %v5087 = vpack.c.b16 %v4157, %v4152
        %v5088 = vpack.c.b16 %v4158, %v4153
        %v5089 = vpack.c.b16 %v4159, %v4154
        %v5090 = vpack.c.b16 %v4160, %v4155
        %v5091 = vpack.c.b16 %v4161, %v4156
        %v5092 = vpack.c.b16 %v4167, %v4162
        %v5093 = vpack.c.b16 %v4168, %v4163
        %v5094 = vpack.c.b16 %v4169, %v4164
        %v5095 = vpack.c.b16 %v4170, %v4165
        %v5096 = vpack.c.b16 %v4171, %v4166
        %v5097 = vpack.c.b16 %v4177, %v4172
        %v5098 = vpack.c.b16 %v4178, %v4173
        %v5099 = vpack.c.b16 %v4179, %v4174
        %v5100 = vpack.c.b16 %v4180, %v4175
        %v5101 = vpack.c.b16 %v4181, %v4176
        %v5102 = vpack.c.b16 %v4187, %v4182
        %v5103 = vpack.c.b16 %v4188, %v4183
        %v5104 = vpack.c.b16 %v4189, %v4184
        %v5105 = vpack.c.b16 %v4190, %v4185
        %v5106 = vpack.c.b16 %v4191, %v4186
        %v5107 = vpack.c.b16 %v4197, %v4192
        %v5108 = vpack.c.b16 %v4198, %v4193
        %v5109 = vpack.c.b16 %v4199, %v4194
        %v5110 = vpack.c.b16 %v4200, %v4195
        %v5111 = vpack.c.b16 %v4201, %v4196
        %v5112 = vpack.c.b16 %v4207, %v4202
        %v5113 = vpack.c.b16 %v4208, %v4203
        %v5114 = vpack.c.b16 %v4209, %v4204
        %v5115 = vpack.c.b16 %v4210, %v4205
        %v5116 = vpack.c.b16 %v4211, %v4206
        %v5117 = vpack.c.b16 %v4217, %v4212
        %v5118 = vpack.c.b16 %v4218, %v4213
        %v5119 = vpack.c.b16 %v4219, %v4214
        %v5120 = vpack.c.b16 %v4220, %v4215
        %v5121 = vpack.c.b16 %v4221, %v4216
        %v5122 = vpack.c.b16 %v4227, %v4222
        %v5123 = vpack.c.b16 %v4228, %v4223
        %v5124 = vpack.c.b16 %v4229, %v4224
        %v5125 = vpack.c.b16 %v4230, %v4225
        %v5126 = vpack.c.b16 %v4231, %v4226
        %v5127 = vpack.c.b16 %v4237, %v4232
        %v5128 = vpack.c.b16 %v4238, %v4233
        %v5129 = vpack.c.b16 %v4239, %v4234
        %v5130 = vpack.c.b16 %v4240, %v4235
        %v5131 = vpack.c.b16 %v4241, %v4236
        %v5132 = vpack.c.b16 %v4247, %v4242
        %v5133 = vpack.c.b16 %v4248, %v4243
        %v5134 = vpack.c.b16 %v4249, %v4244
        %v5135 = vpack.c.b16 %v4250, %v4245
        %v5136 = vpack.c.b16 %v4251, %v4246
        %v5137 = vpack.c.b16 %v4257, %v4252
        %v5138 = vpack.c.b16 %v4258, %v4253
        %v5139 = vpack.c.b16 %v4259, %v4254
        %v5140 = vpack.c.b16 %v4260, %v4255
        %v5141 = vpack.c.b16 %v4261, %v4256
        %v5142 = vpack.c.b16 %v4267, %v4262
        %v5143 = vpack.c.b16 %v4268, %v4263
        %v5144 = vpack.c.b16 %v4269, %v4264
        %v5145 = vpack.c.b16 %v4270, %v4265
        %v5146 = vpack.c.b16 %v4271, %v4266
        %v5147 = vpack.c.b16 %v4277, %v4272
        %v5148 = vpack.c.b16 %v4278, %v4273
        %v5149 = vpack.c.b16 %v4279, %v4274
        %v5150 = vpack.c.b16 %v4280, %v4275
        %v5151 = vpack.c.b16 %v4281, %v4276
        %v5152 = vpack.c.b16 %v4287, %v4282
        %v5153 = vpack.c.b16 %v4288, %v4283
        %v5154 = vpack.c.b16 %v4289, %v4284
        %v5155 = vpack.c.b16 %v4290, %v4285
        %v5156 = vpack.c.b16 %v4291, %v4286
        %v5157 = vpack.c.b16 %v4297, %v4292
        %v5158 = vpack.c.b16 %v4298, %v4293
        %v5159 = vpack.c.b16 %v4299, %v4294
        %v5160 = vpack.c.b16 %v4300, %v4295
        %v5161 = vpack.c.b16 %v4301, %v4296
        %v5162 = vpack.c.b16 %v4307, %v4302
        %v5163 = vpack.c.b16 %v4308, %v4303
        %v5164 = vpack.c.b16 %v4309, %v4304
        %v5165 = vpack.c.b16 %v4310, %v4305
        %v5166 = vpack.c.b16 %v4311, %v4306
        %v5167 = vpack.c.b16 %v4317, %v4312
        %v5168 = vpack.c.b16 %v4318, %v4313
        %v5169 = vpack.c.b16 %v4319, %v4314
        %v5170 = vpack.c.b16 %v4320, %v4315
        %v5171 = vpack.c.b16 %v4321, %v4316
        %v5172 = vpack.c.b16 %v4327, %v4322
        %v5173 = vpack.c.b16 %v4328, %v4323
        %v5174 = vpack.c.b16 %v4329, %v4324
        %v5175 = vpack.c.b16 %v4330, %v4325
        %v5176 = vpack.c.b16 %v4331, %v4326
        %v5177 = vpack.c.b16 %v4337, %v4332
        %v5178 = vpack.c.b16 %v4338, %v4333
        %v5179 = vpack.c.b16 %v4339, %v4334
        %v5180 = vpack.c.b16 %v4340, %v4335
        %v5181 = vpack.c.b16 %v4341, %v4336
        %v5182 = vpack.c.b16 %v4347, %v4342
        %v5183 = vpack.c.b16 %v4348, %v4343
        %v5184 = vpack.c.b16 %v4349, %v4344
        %v5185 = vpack.c.b16 %v4350, %v4345
        %v5186 = vpack.c.b16 %v4351, %v4346
        %v5187 = vpack.c.b16 %v4357, %v4352
        %v5188 = vpack.c.b16 %v4358, %v4353
        %v5189 = vpack.c.b16 %v4359, %v4354
        %v5190 = vpack.c.b16 %v4360, %v4355
        %v5191 = vpack.c.b16 %v4361, %v4356
        %v5192 = vpack.c.b16 %v4367, %v4362
        %v5193 = vpack.c.b16 %v4368, %v4363
        %v5194 = vpack.c.b16 %v4369, %v4364
        %v5195 = vpack.c.b16 %v4370, %v4365
        %v5196 = vpack.c.b16 %v4371, %v4366
        %v5197 = vpack.c.b16 %v4377, %v4372
        %v5198 = vpack.c.b16 %v4378, %v4373
        %v5199 = vpack.c.b16 %v4379, %v4374
        %v5200 = vpack.c.b16 %v4380, %v4375
        %v5201 = vpack.c.b16 %v4381, %v4376
        %v5202 = vpack.c.b16 %v4387, %v4382
        %v5203 = vpack.c.b16 %v4388, %v4383
        %v5204 = vpack.c.b16 %v4389, %v4384
        %v5205 = vpack.c.b16 %v4390, %v4385
        %v5206 = vpack.c.b16 %v4391, %v4386
        %v5207 = vpack.c.b16 %v4397, %v4392
        %v5208 = vpack.c.b16 %v4398, %v4393
        %v5209 = vpack.c.b16 %v4399, %v4394
        %v5210 = vpack.c.b16 %v4400, %v4395
        %v5211 = vpack.c.b16 %v4401, %v4396
        %v5212 = vpack.c.b16 %v4407, %v4402
        %v5213 = vpack.c.b16 %v4408, %v4403
        %v5214 = vpack.c.b16 %v4409, %v4404
        %v5215 = vpack.c.b16 %v4410, %v4405
        %v5216 = vpack.c.b16 %v4411, %v4406
        %v5217 = vpack.c.b16 %v4417, %v4412
        %v5218 = vpack.c.b16 %v4418, %v4413
        %v5219 = vpack.c.b16 %v4419, %v4414
        %v5220 = vpack.c.b16 %v4420, %v4415
        %v5221 = vpack.c.b16 %v4421, %v4416
        %v5222 = vpack.c.b16 %v4427, %v4422
        %v5223 = vpack.c.b16 %v4428, %v4423
        %v5224 = vpack.c.b16 %v4429, %v4424
        %v5225 = vpack.c.b16 %v4430, %v4425
        %v5226 = vpack.c.b16 %v4431, %v4426
        %v5227 = vpack.c.b16 %v4437, %v4432
        %v5228 = vpack.c.b16 %v4438, %v4433
        %v5229 = vpack.c.b16 %v4439, %v4434
        %v5230 = vpack.c.b16 %v4440, %v4435
        %v5231 = vpack.c.b16 %v4441, %v4436
        %v5232 = vpack.c.b16 %v4447, %v4442
        %v5233 = vpack.c.b16 %v4448, %v4443
        %v5234 = vpack.c.b16 %v4449, %v4444
        %v5235 = vpack.c.b16 %v4450, %v4445
        %v5236 = vpack.c.b16 %v4451, %v4446
        %v5237 = vpack.c.b16 %v4457, %v4452
        %v5238 = vpack.c.b16 %v4458, %v4453
        %v5239 = vpack.c.b16 %v4459, %v4454
        %v5240 = vpack.c.b16 %v4460, %v4455
        %v5241 = vpack.c.b16 %v4461, %v4456
        %v5242 = vpack.c.b16 %v4467, %v4462
        %v5243 = vpack.c.b16 %v4468, %v4463
        %v5244 = vpack.c.b16 %v4469, %v4464
        %v5245 = vpack.c.b16 %v4470, %v4465
        %v5246 = vpack.c.b16 %v4471, %v4466
        %v5247 = vpack.c.b16 %v4477, %v4472
        %v5248 = vpack.c.b16 %v4478, %v4473
        %v5249 = vpack.c.b16 %v4479, %v4474
        %v5250 = vpack.c.b16 %v4480, %v4475
        %v5251 = vpack.c.b16 %v4481, %v4476
        %v5252 = vpack.c.b16 %v4487, %v4482
        %v5253 = vpack.c.b16 %v4488, %v4483
        %v5254 = vpack.c.b16 %v4489, %v4484
        %v5255 = vpack.c.b16 %v4490, %v4485
        %v5256 = vpack.c.b16 %v4491, %v4486
        %v5257 = vpack.c.b16 %v4497, %v4492
        %v5258 = vpack.c.b16 %v4498, %v4493
        %v5259 = vpack.c.b16 %v4499, %v4494
        %v5260 = vpack.c.b16 %v4500, %v4495
        %v5261 = vpack.c.b16 %v4501, %v4496
        %v5262 = vpack.c.b16 %v4507, %v4502
        %v5263 = vpack.c.b16 %v4508, %v4503
        %v5264 = vpack.c.b16 %v4509, %v4504
        %v5265 = vpack.c.b16 %v4510, %v4505
        %v5266 = vpack.c.b16 %v4511, %v4506
        %v5267 = vpack.c.b16 %v4517, %v4512
        %v5268 = vpack.c.b16 %v4518, %v4513
        %v5269 = vpack.c.b16 %v4519, %v4514
        %v5270 = vpack.c.b16 %v4520, %v4515
        %v5271 = vpack.c.b16 %v4521, %v4516
        %v5272 = vpack.c.b16 %v4527, %v4522
        %v5273 = vpack.c.b16 %v4528, %v4523
        %v5274 = vpack.c.b16 %v4529, %v4524
        %v5275 = vpack.c.b16 %v4530, %v4525
        %v5276 = vpack.c.b16 %v4531, %v4526
        %v5277 = vpack.c.b16 %v4537, %v4532
        %v5278 = vpack.c.b16 %v4538, %v4533
        %v5279 = vpack.c.b16 %v4539, %v4534
        %v5280 = vpack.c.b16 %v4540, %v4535
        %v5281 = vpack.c.b16 %v4541, %v4536
        %v5282 = vpack.c.b16 %v4547, %v4542
        %v5283 = vpack.c.b16 %v4548, %v4543
        %v5284 = vpack.c.b16 %v4549, %v4544
        %v5285 = vpack.c.b16 %v4550, %v4545
        %v5286 = vpack.c.b16 %v4551, %v4546
        %v5287 = vpack.c.b16 %v4557, %v4552
        %v5288 = vpack.c.b16 %v4558, %v4553
        %v5289 = vpack.c.b16 %v4559, %v4554
        %v5290 = vpack.c.b16 %v4560, %v4555
        %v5291 = vpack.c.b16 %v4561, %v4556
        %v5292 = vpack.c.b16 %v4567, %v4562
        %v5293 = vpack.c.b16 %v4568, %v4563
        %v5294 = vpack.c.b16 %v4569, %v4564
        %v5295 = vpack.c.b16 %v4570, %v4565
        %v5296 = vpack.c.b16 %v4571, %v4566
        %v5297 = vpack.c.b16 %v4577, %v4572
        %v5298 = vpack.c.b16 %v4578, %v4573
        %v5299 = vpack.c.b16 %v4579, %v4574
        %v5300 = vpack.c.b16 %v4580, %v4575
        %v5301 = vpack.c.b16 %v4581, %v4576
        %v5302 = vpack.c.b16 %v4587, %v4582
        %v5303 = vpack.c.b16 %v4588, %v4583
        %v5304 = vpack.c.b16 %v4589, %v4584
        %v5305 = vpack.c.b16 %v4590, %v4585
        %v5306 = vpack.c.b16 %v4591, %v4586
        %v5307 = vpack.c.b16 %v4597, %v4592
        %v5308 = vpack.c.b16 %v4598, %v4593
        %v5309 = vpack.c.b16 %v4599, %v4594
        %v5310 = vpack.c.b16 %v4600, %v4595
        %v5311 = vpack.c.b16 %v4601, %v4596
        %v5312 = vpack.c.b16 %v4607, %v4602
        %v5313 = vpack.c.b16 %v4608, %v4603
        %v5314 = vpack.c.b16 %v4609, %v4604
        %v5315 = vpack.c.b16 %v4610, %v4605
        %v5316 = vpack.c.b16 %v4611, %v4606
        %v5317 = vpack.c.b16 %v4617, %v4612
        %v5318 = vpack.c.b16 %v4618, %v4613
        %v5319 = vpack.c.b16 %v4619, %v4614
        %v5320 = vpack.c.b16 %v4620, %v4615
        %v5321 = vpack.c.b16 %v4621, %v4616
        %v5322 = vpack.c.b16 %v4627, %v4622
        %v5323 = vpack.c.b16 %v4628, %v4623
        %v5324 = vpack.c.b16 %v4629, %v4624
        %v5325 = vpack.c.b16 %v4630, %v4625
        %v5326 = vpack.c.b16 %v4631, %v4626
        %v5327 = vpack.c.b16 %v4637, %v4632
        %v5328 = vpack.c.b16 %v4638, %v4633
        %v5329 = vpack.c.b16 %v4639, %v4634
        %v5330 = vpack.c.b16 %v4640, %v4635
        %v5331 = vpack.c.b16 %v4641, %v4636
        %v5332 = vpack.c.b16 %v4647, %v4642
        %v5333 = vpack.c.b16 %v4648, %v4643
        %v5334 = vpack.c.b16 %v4649, %v4644
        %v5335 = vpack.c.b16 %v4650, %v4645
        %v5336 = vpack.c.b16 %v4651, %v4646
        %v5337 = vpack.c.b16 %v4657, %v4652
        %v5338 = vpack.c.b16 %v4658, %v4653
        %v5339 = vpack.c.b16 %v4659, %v4654
        %v5340 = vpack.c.b16 %v4660, %v4655
        %v5341 = vpack.c.b16 %v4661, %v4656
        %v5342 = vpack.c.b16 %v4667, %v4662
        %v5343 = vpack.c.b16 %v4668, %v4663
        %v5344 = vpack.c.b16 %v4669, %v4664
        %v5345 = vpack.c.b16 %v4670, %v4665
        %v5346 = vpack.c.b16 %v4671, %v4666
        %v5347 = vpack.c.b16 %v4677, %v4672
        %v5348 = vpack.c.b16 %v4678, %v4673
        %v5349 = vpack.c.b16 %v4679, %v4674
        %v5350 = vpack.c.b16 %v4680, %v4675
        %v5351 = vpack.c.b16 %v4681, %v4676
        %v5352 = vpack.c.b16 %v4687, %v4682
        %v5353 = vpack.c.b16 %v4688, %v4683
        %v5354 = vpack.c.b16 %v4689, %v4684
        %v5355 = vpack.c.b16 %v4690, %v4685
        %v5356 = vpack.c.b16 %v4691, %v4686
        %v5357 = vpack.c.b16 %v4697, %v4692
        %v5358 = vpack.c.b16 %v4698, %v4693
        %v5359 = vpack.c.b16 %v4699, %v4694
        %v5360 = vpack.c.b16 %v4700, %v4695
        %v5361 = vpack.c.b16 %v4701, %v4696
        %v5362 = vpack.c.b16 %v4707, %v4702
        %v5363 = vpack.c.b16 %v4708, %v4703
        %v5364 = vpack.c.b16 %v4709, %v4704
        %v5365 = vpack.c.b16 %v4710, %v4705
        %v5366 = vpack.c.b16 %v4711, %v4706
        %v5367 = vpack.c.b16 %v4717, %v4712
        %v5368 = vpack.c.b16 %v4718, %v4713
        %v5369 = vpack.c.b16 %v4719, %v4714
        %v5370 = vpack.c.b16 %v4720, %v4715
        %v5371 = vpack.c.b16 %v4721, %v4716
        %v5372 = vpack.c.b16 %v4727, %v4722
        %v5373 = vpack.c.b16 %v4728, %v4723
        %v5374 = vpack.c.b16 %v4729, %v4724
        %v5375 = vpack.c.b16 %v4730, %v4725
        %v5376 = vpack.c.b16 %v4731, %v4726
        %v5377 = vpack.c.b16 %v4737, %v4732
        %v5378 = vpack.c.b16 %v4738, %v4733
        %v5379 = vpack.c.b16 %v4739, %v4734
        %v5380 = vpack.c.b16 %v4740, %v4735
        %v5381 = vpack.c.b16 %v4741, %v4736
        %6022 = vmatprep.subr.bf16.mxu0 %v4743
        %6023 = vmatpush1.bf16.msra.mxu0 %v4742
        %6024 = vmatprep.subr.bf16.mxu0 %v4748
        %6025 = vmatpush1.bf16.msra.mxu0 %v4747
        %6026 = vmatprep.subr.bf16.mxu0 %v4753
        %6027 = vmatpush1.bf16.msra.mxu0 %v4752
        %6028 = vmatprep.subr.bf16.mxu0 %v4758
        %6029 = vmatpush1.bf16.msra.mxu0 %v4757
        %6030 = vmatprep.subr.bf16.mxu0 %v4763
        %6031 = vmatpush1.bf16.msra.mxu0 %v4762
        %6032 = vmatprep.subr.bf16.mxu0 %v4768
        %6033 = vmatpush1.bf16.msra.mxu0 %v4767
        %6034 = vmatprep.subr.bf16.mxu0 %v4773
        %6035 = vmatpush1.bf16.msra.mxu0 %v4772
        %6036 = vmatprep.subr.bf16.mxu0 %v4778
        %6037 = vmatpush1.bf16.msra.mxu0 %v4777
        %6038 = vmatprep.subr.bf16.mxu0 %v4783
        %6039 = vmatpush1.bf16.msra.mxu0 %v4782
        %6040 = vmatprep.subr.bf16.mxu0 %v4788
        %6041 = vmatpush1.bf16.msra.mxu0 %v4787
        %6042 = vmatprep.subr.bf16.mxu0 %v4793
        %6043 = vmatpush1.bf16.msra.mxu0 %v4792
        %6044 = vmatprep.subr.bf16.mxu0 %v4798
        %6045 = vmatpush1.bf16.msra.mxu0 %v4797
        %6046 = vmatprep.subr.bf16.mxu0 %v4803
        %6047 = vmatpush1.bf16.msra.mxu0 %v4802
        %6048 = vmatprep.subr.bf16.mxu0 %v4808
        %6049 = vmatpush1.bf16.msra.mxu0 %v4807
        %6050 = vmatprep.subr.bf16.mxu0 %v4813
        %6051 = vmatpush1.bf16.msra.mxu0 %v4812
        %6052 = vmatprep.subr.bf16.mxu0 %v4818
        %6053 = vmatpush1.bf16.msra.mxu0 %v4817
        %6054 = vmatprep.mubr.bf16.mxu0 %v2663
        %6055 = vmatmul.mubr.bf16.gmra.mrb[0].mxu0 %v2662
        %v6056 = vpop.f32.mrb[0].mxu0
        %v6057 = vadd.f32 0.0, %v6056
        %v6058 = vpop.f32.mrb[0].mxu0
        %v6059 = vadd.f32 0.0, %v6058
        %v6060 = vpop.f32.mrb[0].mxu0
        %v6061 = vpop.f32.mrb[0].mxu0
        %6062 = vdwg.mxu0
        %6063 = vmatprep.subr.bf16.mxu0 %v4823
        %6064 = vmatpush1.bf16.msra.mxu0 %v4822
        %6065 = vmatprep.subr.bf16.mxu0 %v4828
        %6066 = vmatpush1.bf16.msra.mxu0 %v4827
        %6067 = vmatprep.subr.bf16.mxu0 %v4833
        %6068 = vmatpush1.bf16.msra.mxu0 %v4832
        %6069 = vmatprep.subr.bf16.mxu0 %v4838
        %6070 = vmatpush1.bf16.msra.mxu0 %v4837
        %6071 = vmatprep.subr.bf16.mxu0 %v4843
        %6072 = vmatpush1.bf16.msra.mxu0 %v4842
        %6073 = vmatprep.subr.bf16.mxu0 %v4848
        %6074 = vmatpush1.bf16.msra.mxu0 %v4847
        %6075 = vmatprep.subr.bf16.mxu0 %v4853
        %6076 = vmatpush1.bf16.msra.mxu0 %v4852
        %6077 = vmatprep.subr.bf16.mxu0 %v4858
        %6078 = vmatpush1.bf16.msra.mxu0 %v4857
        %6079 = vmatprep.subr.bf16.mxu0 %v4863
        %6080 = vmatpush1.bf16.msra.mxu0 %v4862
        %6081 = vmatprep.subr.bf16.mxu0 %v4868
        %6082 = vmatpush1.bf16.msra.mxu0 %v4867
        %6083 = vmatprep.subr.bf16.mxu0 %v4873
        %6084 = vmatpush1.bf16.msra.mxu0 %v4872
        %6085 = vmatprep.subr.bf16.mxu0 %v4878
        %6086 = vmatpush1.bf16.msra.mxu0 %v4877
        %6087 = vmatprep.subr.bf16.mxu0 %v4883
        %6088 = vmatpush1.bf16.msra.mxu0 %v4882
        %6089 = vmatprep.subr.bf16.mxu0 %v4888
        %6090 = vmatpush1.bf16.msra.mxu0 %v4887
        %6091 = vmatprep.subr.bf16.mxu0 %v4893
        %6092 = vmatpush1.bf16.msra.mxu0 %v4892
        %6093 = vmatprep.subr.bf16.mxu0 %v4898
        %6094 = vmatpush1.bf16.msra.mxu0 %v4897
        %6095 = vmatprep.mubr.bf16.mxu0 %v2665
        %6096 = vmatmul.mubr.bf16.gmra.mrb[0].mxu0 %v2664
        %v6097 = vpop.f32.mrb[0].mxu0
        %v6098 = vadd.f32 %v6057, %v6097
        %v6099 = vpop.f32.mrb[0].mxu0
        %v6100 = vadd.f32 %v6059, %v6099
        %v6101 = vpop.f32.mrb[0].mxu0
        %v6102 = vpop.f32.mrb[0].mxu0
        %6103 = vdwg.mxu0
        %6104 = vmatprep.subr.bf16.mxu0 %v4903
        %6105 = vmatpush1.bf16.msra.mxu0 %v4902
        %6106 = vmatprep.subr.bf16.mxu0 %v4908
        %6107 = vmatpush1.bf16.msra.mxu0 %v4907
        %6108 = vmatprep.subr.bf16.mxu0 %v4913
        %6109 = vmatpush1.bf16.msra.mxu0 %v4912
        %6110 = vmatprep.subr.bf16.mxu0 %v4918
        %6111 = vmatpush1.bf16.msra.mxu0 %v4917
        %6112 = vmatprep.subr.bf16.mxu0 %v4923
        %6113 = vmatpush1.bf16.msra.mxu0 %v4922
        %6114 = vmatprep.subr.bf16.mxu0 %v4928
        %6115 = vmatpush1.bf16.msra.mxu0 %v4927
        %6116 = vmatprep.subr.bf16.mxu0 %v4933
        %6117 = vmatpush1.bf16.msra.mxu0 %v4932
        %6118 = vmatprep.subr.bf16.mxu0 %v4938
        %6119 = vmatpush1.bf16.msra.mxu0 %v4937
        %6120 = vmatprep.subr.bf16.mxu0 %v4943
        %6121 = vmatpush1.bf16.msra.mxu0 %v4942
        %6122 = vmatprep.subr.bf16.mxu0 %v4948
        %6123 = vmatpush1.bf16.msra.mxu0 %v4947
        %6124 = vmatprep.subr.bf16.mxu0 %v4953
        %6125 = vmatpush1.bf16.msra.mxu0 %v4952
        %6126 = vmatprep.subr.bf16.mxu0 %v4958
        %6127 = vmatpush1.bf16.msra.mxu0 %v4957
        %6128 = vmatprep.subr.bf16.mxu0 %v4963
        %6129 = vmatpush1.bf16.msra.mxu0 %v4962
        %6130 = vmatprep.subr.bf16.mxu0 %v4968
        %6131 = vmatpush1.bf16.msra.mxu0 %v4967
        %6132 = vmatprep.subr.bf16.mxu0 %v4973
        %6133 = vmatpush1.bf16.msra.mxu0 %v4972
        %6134 = vmatprep.subr.bf16.mxu0 %v4978
        %6135 = vmatpush1.bf16.msra.mxu0 %v4977
        %6136 = vmatprep.mubr.bf16.mxu0 %v2667
        %6137 = vmatmul.mubr.bf16.gmra.mrb[0].mxu0 %v2666
        %v6138 = vpop.f32.mrb[0].mxu0
        %v6139 = vadd.f32 %v6098, %v6138
        %v6140 = vpop.f32.mrb[0].mxu0
        %v6141 = vadd.f32 %v6100, %v6140
        %v6142 = vpop.f32.mrb[0].mxu0
        %v6143 = vpop.f32.mrb[0].mxu0
        %6144 = vdwg.mxu0
        %6145 = vmatprep.subr.bf16.mxu0 %v4983
        %6146 = vmatpush1.bf16.msra.mxu0 %v4982
        %6147 = vmatprep.subr.bf16.mxu0 %v4988
        %6148 = vmatpush1.bf16.msra.mxu0 %v4987
        %6149 = vmatprep.subr.bf16.mxu0 %v4993
        %6150 = vmatpush1.bf16.msra.mxu0 %v4992
        %6151 = vmatprep.subr.bf16.mxu0 %v4998
        %6152 = vmatpush1.bf16.msra.mxu0 %v4997
        %6153 = vmatprep.subr.bf16.mxu0 %v5003
        %6154 = vmatpush1.bf16.msra.mxu0 %v5002
        %6155 = vmatprep.subr.bf16.mxu0 %v5008
        %6156 = vmatpush1.bf16.msra.mxu0 %v5007
        %6157 = vmatprep.subr.bf16.mxu0 %v5013
        %6158 = vmatpush1.bf16.msra.mxu0 %v5012
        %6159 = vmatprep.subr.bf16.mxu0 %v5018
        %6160 = vmatpush1.bf16.msra.mxu0 %v5017
        %6161 = vmatprep.subr.bf16.mxu0 %v5023
        %6162 = vmatpush1.bf16.msra.mxu0 %v5022
        %6163 = vmatprep.subr.bf16.mxu0 %v5028
        %6164 = vmatpush1.bf16.msra.mxu0 %v5027
        %6165 = vmatprep.subr.bf16.mxu0 %v5033
        %6166 = vmatpush1.bf16.msra.mxu0 %v5032
        %6167 = vmatprep.subr.bf16.mxu0 %v5038
        %6168 = vmatpush1.bf16.msra.mxu0 %v5037
        %6169 = vmatprep.subr.bf16.mxu0 %v5043
        %6170 = vmatpush1.bf16.msra.mxu0 %v5042
        %6171 = vmatprep.subr.bf16.mxu0 %v5048
        %6172 = vmatpush1.bf16.msra.mxu0 %v5047
        %6173 = vmatprep.subr.bf16.mxu0 %v5053
        %6174 = vmatpush1.bf16.msra.mxu0 %v5052
        %6175 = vmatprep.subr.bf16.mxu0 %v5058
        %6176 = vmatpush1.bf16.msra.mxu0 %v5057
        %6177 = vmatprep.mubr.bf16.mxu0 %v2669
        %6178 = vmatmul.mubr.bf16.gmra.mrb[0].mxu0 %v2668
        %v6179 = vpop.f32.mrb[0].mxu0
        %v6180 = vadd.f32 %v6139, %v6179
        %v6181 = vpop.f32.mrb[0].mxu0
        %v6182 = vadd.f32 %v6141, %v6181
        %v6183 = vpop.f32.mrb[0].mxu0
        %v6184 = vpop.f32.mrb[0].mxu0
        %6185 = vdwg.mxu0
        %6186 = vmatprep.subr.bf16.mxu0 %v5063
        %6187 = vmatpush1.bf16.msra.mxu0 %v5062
        %6188 = vmatprep.subr.bf16.mxu0 %v5068
        %6189 = vmatpush1.bf16.msra.mxu0 %v5067
        %6190 = vmatprep.subr.bf16.mxu0 %v5073
        %6191 = vmatpush1.bf16.msra.mxu0 %v5072
        %6192 = vmatprep.subr.bf16.mxu0 %v5078
        %6193 = vmatpush1.bf16.msra.mxu0 %v5077
        %6194 = vmatprep.subr.bf16.mxu0 %v5083
        %6195 = vmatpush1.bf16.msra.mxu0 %v5082
        %6196 = vmatprep.subr.bf16.mxu0 %v5088
        %6197 = vmatpush1.bf16.msra.mxu0 %v5087
        %6198 = vmatprep.subr.bf16.mxu0 %v5093
        %6199 = vmatpush1.bf16.msra.mxu0 %v5092
        %6200 = vmatprep.subr.bf16.mxu0 %v5098
        %6201 = vmatpush1.bf16.msra.mxu0 %v5097
        %6202 = vmatprep.subr.bf16.mxu0 %v5103
        %6203 = vmatpush1.bf16.msra.mxu0 %v5102
        %6204 = vmatprep.subr.bf16.mxu0 %v5108
        %6205 = vmatpush1.bf16.msra.mxu0 %v5107
        %6206 = vmatprep.subr.bf16.mxu0 %v5113
        %6207 = vmatpush1.bf16.msra.mxu0 %v5112
        %6208 = vmatprep.subr.bf16.mxu0 %v5118
        %6209 = vmatpush1.bf16.msra.mxu0 %v5117
        %6210 = vmatprep.subr.bf16.mxu0 %v5123
        %6211 = vmatpush1.bf16.msra.mxu0 %v5122
        %6212 = vmatprep.subr.bf16.mxu0 %v5128
        %6213 = vmatpush1.bf16.msra.mxu0 %v5127
        %6214 = vmatprep.subr.bf16.mxu0 %v5133
        %6215 = vmatpush1.bf16.msra.mxu0 %v5132
        %6216 = vmatprep.subr.bf16.mxu0 %v5138
        %6217 = vmatpush1.bf16.msra.mxu0 %v5137
        %6218 = vmatprep.mubr.bf16.mxu0 %v2671
        %6219 = vmatmul.mubr.bf16.gmra.mrb[0].mxu0 %v2670
        %v6220 = vpop.f32.mrb[0].mxu0
        %v6221 = vadd.f32 %v6180, %v6220
        %v6222 = vpop.f32.mrb[0].mxu0
        %v6223 = vadd.f32 %v6182, %v6222
        %v6224 = vpop.f32.mrb[0].mxu0
        %v6225 = vpop.f32.mrb[0].mxu0
        %6226 = vdwg.mxu0
        %6227 = vmatprep.subr.bf16.mxu0 %v5143
        %6228 = vmatpush1.bf16.msra.mxu0 %v5142
        %6229 = vmatprep.subr.bf16.mxu0 %v5148
        %6230 = vmatpush1.bf16.msra.mxu0 %v5147
        %6231 = vmatprep.subr.bf16.mxu0 %v5153
        %6232 = vmatpush1.bf16.msra.mxu0 %v5152
        %6233 = vmatprep.subr.bf16.mxu0 %v5158
        %6234 = vmatpush1.bf16.msra.mxu0 %v5157
        %6235 = vmatprep.subr.bf16.mxu0 %v5163
        %6236 = vmatpush1.bf16.msra.mxu0 %v5162
        %6237 = vmatprep.subr.bf16.mxu0 %v5168
        %6238 = vmatpush1.bf16.msra.mxu0 %v5167
        %6239 = vmatprep.subr.bf16.mxu0 %v5173
        %6240 = vmatpush1.bf16.msra.mxu0 %v5172
        %6241 = vmatprep.subr.bf16.mxu0 %v5178
        %6242 = vmatpush1.bf16.msra.mxu0 %v5177
        %6243 = vmatprep.subr.bf16.mxu0 %v5183
        %6244 = vmatpush1.bf16.msra.mxu0 %v5182
        %6245 = vmatprep.subr.bf16.mxu0 %v5188
        %6246 = vmatpush1.bf16.msra.mxu0 %v5187
        %6247 = vmatprep.subr.bf16.mxu0 %v5193
        %6248 = vmatpush1.bf16.msra.mxu0 %v5192
        %6249 = vmatprep.subr.bf16.mxu0 %v5198
        %6250 = vmatpush1.bf16.msra.mxu0 %v5197
        %6251 = vmatprep.subr.bf16.mxu0 %v5203
        %6252 = vmatpush1.bf16.msra.mxu0 %v5202
        %6253 = vmatprep.subr.bf16.mxu0 %v5208
        %6254 = vmatpush1.bf16.msra.mxu0 %v5207
        %6255 = vmatprep.subr.bf16.mxu0 %v5213
        %6256 = vmatpush1.bf16.msra.mxu0 %v5212
        %6257 = vmatprep.subr.bf16.mxu0 %v5218
        %6258 = vmatpush1.bf16.msra.mxu0 %v5217
        %6259 = vmatprep.mubr.bf16.mxu0 %v2673
        %6260 = vmatmul.mubr.bf16.gmra.mrb[0].mxu0 %v2672
        %v6261 = vpop.f32.mrb[0].mxu0
        %v6262 = vadd.f32 %v6221, %v6261
        %v6263 = vpop.f32.mrb[0].mxu0
        %v6264 = vadd.f32 %v6223, %v6263
        %v6265 = vpop.f32.mrb[0].mxu0
        %v6266 = vpop.f32.mrb[0].mxu0
        %6267 = vdwg.mxu0
        %6268 = vmatprep.subr.bf16.mxu0 %v5223
        %6269 = vmatpush1.bf16.msra.mxu0 %v5222
        %6270 = vmatprep.subr.bf16.mxu0 %v5228
        %6271 = vmatpush1.bf16.msra.mxu0 %v5227
        %6272 = vmatprep.subr.bf16.mxu0 %v5233
        %6273 = vmatpush1.bf16.msra.mxu0 %v5232
        %6274 = vmatprep.subr.bf16.mxu0 %v5238
        %6275 = vmatpush1.bf16.msra.mxu0 %v5237
        %6276 = vmatprep.subr.bf16.mxu0 %v5243
        %6277 = vmatpush1.bf16.msra.mxu0 %v5242
        %6278 = vmatprep.subr.bf16.mxu0 %v5248
        %6279 = vmatpush1.bf16.msra.mxu0 %v5247
        %6280 = vmatprep.subr.bf16.mxu0 %v5253
        %6281 = vmatpush1.bf16.msra.mxu0 %v5252
        %6282 = vmatprep.subr.bf16.mxu0 %v5258
        %6283 = vmatpush1.bf16.msra.mxu0 %v5257
        %6284 = vmatprep.subr.bf16.mxu0 %v5263
        %6285 = vmatpush1.bf16.msra.mxu0 %v5262
        %6286 = vmatprep.subr.bf16.mxu0 %v5268
        %6287 = vmatpush1.bf16.msra.mxu0 %v5267
        %6288 = vmatprep.subr.bf16.mxu0 %v5273
        %6289 = vmatpush1.bf16.msra.mxu0 %v5272
        %6290 = vmatprep.subr.bf16.mxu0 %v5278
        %6291 = vmatpush1.bf16.msra.mxu0 %v5277
        %6292 = vmatprep.subr.bf16.mxu0 %v5283
        %6293 = vmatpush1.bf16.msra.mxu0 %v5282
        %6294 = vmatprep.subr.bf16.mxu0 %v5288
        %6295 = vmatpush1.bf16.msra.mxu0 %v5287
        %6296 = vmatprep.subr.bf16.mxu0 %v5293
        %6297 = vmatpush1.bf16.msra.mxu0 %v5292
        %6298 = vmatprep.subr.bf16.mxu0 %v5298
        %6299 = vmatpush1.bf16.msra.mxu0 %v5297
        %6300 = vmatprep.mubr.bf16.mxu0 %v2675
        %6301 = vmatmul.mubr.bf16.gmra.mrb[0].mxu0 %v2674
        %v6302 = vpop.f32.mrb[0].mxu0
        %v6303 = vadd.f32 %v6262, %v6302
        %v6304 = vpop.f32.mrb[0].mxu0
        %v6305 = vadd.f32 %v6264, %v6304
        %v6306 = vpop.f32.mrb[0].mxu0
        %v6307 = vpop.f32.mrb[0].mxu0
        %6308 = vdwg.mxu0
        %6309 = vmatprep.subr.bf16.mxu0 %v5303
        %6310 = vmatpush1.bf16.msra.mxu0 %v5302
        %6311 = vmatprep.subr.bf16.mxu0 %v5308
        %6312 = vmatpush1.bf16.msra.mxu0 %v5307
        %6313 = vmatprep.subr.bf16.mxu0 %v5313
        %6314 = vmatpush1.bf16.msra.mxu0 %v5312
        %6315 = vmatprep.subr.bf16.mxu0 %v5318
        %6316 = vmatpush1.bf16.msra.mxu0 %v5317
        %6317 = vmatprep.subr.bf16.mxu0 %v5323
        %6318 = vmatpush1.bf16.msra.mxu0 %v5322
        %6319 = vmatprep.subr.bf16.mxu0 %v5328
        %6320 = vmatpush1.bf16.msra.mxu0 %v5327
        %6321 = vmatprep.subr.bf16.mxu0 %v5333
        %6322 = vmatpush1.bf16.msra.mxu0 %v5332
        %6323 = vmatprep.subr.bf16.mxu0 %v5338
        %6324 = vmatpush1.bf16.msra.mxu0 %v5337
        %6325 = vmatprep.subr.bf16.mxu0 %v5343
        %6326 = vmatpush1.bf16.msra.mxu0 %v5342
        %6327 = vmatprep.subr.bf16.mxu0 %v5348
        %6328 = vmatpush1.bf16.msra.mxu0 %v5347
        %6329 = vmatprep.subr.bf16.mxu0 %v5353
        %6330 = vmatpush1.bf16.msra.mxu0 %v5352
        %6331 = vmatprep.subr.bf16.mxu0 %v5358
        %6332 = vmatpush1.bf16.msra.mxu0 %v5357
        %6333 = vmatprep.subr.bf16.mxu0 %v5363
        %6334 = vmatpush1.bf16.msra.mxu0 %v5362
        %6335 = vmatprep.subr.bf16.mxu0 %v5368
        %6336 = vmatpush1.bf16.msra.mxu0 %v5367
        %6337 = vmatprep.subr.bf16.mxu0 %v5373
        %6338 = vmatpush1.bf16.msra.mxu0 %v5372
        %6339 = vmatprep.subr.bf16.mxu0 %v5378
        %6340 = vmatpush1.bf16.msra.mxu0 %v5377
        %6341 = vmatprep.mubr.bf16.mxu0 %v2677
        %6342 = vmatmul.mubr.bf16.gmra.mrb[0].mxu0 %v2676
        %v6343 = vpop.f32.mrb[0].mxu0
        %v6344 = vadd.f32 %v6303, %v6343
        %v6345 = vpop.f32.mrb[0].mxu0
        %v6346 = vadd.f32 %v6305, %v6345
        %v6347 = vpop.f32.mrb[0].mxu0
        %v6348 = vpop.f32.mrb[0].mxu0
        %6349 = vdwg.mxu0
        %6350 = vmatprep.subr.bf16.mxu0 %v4745
        %6351 = vmatpush1.bf16.msra.mxu0 %v4744
        %6352 = vmatprep.subr.bf16.mxu0 %v4750
        %6353 = vmatpush1.bf16.msra.mxu0 %v4749
        %6354 = vmatprep.subr.bf16.mxu0 %v4755
        %6355 = vmatpush1.bf16.msra.mxu0 %v4754
        %6356 = vmatprep.subr.bf16.mxu0 %v4760
        %6357 = vmatpush1.bf16.msra.mxu0 %v4759
        %6358 = vmatprep.subr.bf16.mxu0 %v4765
        %6359 = vmatpush1.bf16.msra.mxu0 %v4764
        %6360 = vmatprep.subr.bf16.mxu0 %v4770
        %6361 = vmatpush1.bf16.msra.mxu0 %v4769
        %6362 = vmatprep.subr.bf16.mxu0 %v4775
        %6363 = vmatpush1.bf16.msra.mxu0 %v4774
        %6364 = vmatprep.subr.bf16.mxu0 %v4780
        %6365 = vmatpush1.bf16.msra.mxu0 %v4779
        %6366 = vmatprep.subr.bf16.mxu0 %v4785
        %6367 = vmatpush1.bf16.msra.mxu0 %v4784
        %6368 = vmatprep.subr.bf16.mxu0 %v4790
        %6369 = vmatpush1.bf16.msra.mxu0 %v4789
        %6370 = vmatprep.subr.bf16.mxu0 %v4795
        %6371 = vmatpush1.bf16.msra.mxu0 %v4794
        %6372 = vmatprep.subr.bf16.mxu0 %v4800
        %6373 = vmatpush1.bf16.msra.mxu0 %v4799
        %6374 = vmatprep.subr.bf16.mxu0 %v4805
        %6375 = vmatpush1.bf16.msra.mxu0 %v4804
        %6376 = vmatprep.subr.bf16.mxu0 %v4810
        %6377 = vmatpush1.bf16.msra.mxu0 %v4809
        %6378 = vmatprep.subr.bf16.mxu0 %v4815
        %6379 = vmatpush1.bf16.msra.mxu0 %v4814
        %6380 = vmatprep.subr.bf16.mxu0 %v4820
        %6381 = vmatpush1.bf16.msra.mxu0 %v4819
        %6382 = vmatprep.mubr.bf16.mxu0 %v2663
        %6383 = vmatmul.mubr.bf16.gmra.mrb[0].mxu0 %v2662
        %v6384 = vpop.f32.mrb[0].mxu0
        %v6385 = vadd.f32 0.0, %v6384
        %v6386 = vpop.f32.mrb[0].mxu0
        %v6387 = vadd.f32 0.0, %v6386
        %v6388 = vpop.f32.mrb[0].mxu0
        %v6389 = vpop.f32.mrb[0].mxu0
        %6390 = vdwg.mxu0
        %6391 = vmatprep.subr.bf16.mxu0 %v4825
        %6392 = vmatpush1.bf16.msra.mxu0 %v4824
        %6393 = vmatprep.subr.bf16.mxu0 %v4830
        %6394 = vmatpush1.bf16.msra.mxu0 %v4829
        %6395 = vmatprep.subr.bf16.mxu0 %v4835
        %6396 = vmatpush1.bf16.msra.mxu0 %v4834
        %6397 = vmatprep.subr.bf16.mxu0 %v4840
        %6398 = vmatpush1.bf16.msra.mxu0 %v4839
        %6399 = vmatprep.subr.bf16.mxu0 %v4845
        %6400 = vmatpush1.bf16.msra.mxu0 %v4844
        %6401 = vmatprep.subr.bf16.mxu0 %v4850
        %6402 = vmatpush1.bf16.msra.mxu0 %v4849
        %6403 = vmatprep.subr.bf16.mxu0 %v4855
        %6404 = vmatpush1.bf16.msra.mxu0 %v4854
        %6405 = vmatprep.subr.bf16.mxu0 %v4860
        %6406 = vmatpush1.bf16.msra.mxu0 %v4859
        %6407 = vmatprep.subr.bf16.mxu0 %v4865
        %6408 = vmatpush1.bf16.msra.mxu0 %v4864
        %6409 = vmatprep.subr.bf16.mxu0 %v4870
        %6410 = vmatpush1.bf16.msra.mxu0 %v4869
        %6411 = vmatprep.subr.bf16.mxu0 %v4875
        %6412 = vmatpush1.bf16.msra.mxu0 %v4874
        %6413 = vmatprep.subr.bf16.mxu0 %v4880
        %6414 = vmatpush1.bf16.msra.mxu0 %v4879
        %6415 = vmatprep.subr.bf16.mxu0 %v4885
        %6416 = vmatpush1.bf16.msra.mxu0 %v4884
        %6417 = vmatprep.subr.bf16.mxu0 %v4890
        %6418 = vmatpush1.bf16.msra.mxu0 %v4889
        %6419 = vmatprep.subr.bf16.mxu0 %v4895
        %6420 = vmatpush1.bf16.msra.mxu0 %v4894
        %6421 = vmatprep.subr.bf16.mxu0 %v4900
        %6422 = vmatpush1.bf16.msra.mxu0 %v4899
        %6423 = vmatprep.mubr.bf16.mxu0 %v2665
        %6424 = vmatmul.mubr.bf16.gmra.mrb[0].mxu0 %v2664
        %v6425 = vpop.f32.mrb[0].mxu0
        %v6426 = vadd.f32 %v6385, %v6425
        %v6427 = vpop.f32.mrb[0].mxu0
        %v6428 = vadd.f32 %v6387, %v6427
        %v6429 = vpop.f32.mrb[0].mxu0
        %v6430 = vpop.f32.mrb[0].mxu0
        %6431 = vdwg.mxu0
        %6432 = vmatprep.subr.bf16.mxu0 %v4905
        %6433 = vmatpush1.bf16.msra.mxu0 %v4904
        %6434 = vmatprep.subr.bf16.mxu0 %v4910
        %6435 = vmatpush1.bf16.msra.mxu0 %v4909
        %6436 = vmatprep.subr.bf16.mxu0 %v4915
        %6437 = vmatpush1.bf16.msra.mxu0 %v4914
        %6438 = vmatprep.subr.bf16.mxu0 %v4920
        %6439 = vmatpush1.bf16.msra.mxu0 %v4919
        %6440 = vmatprep.subr.bf16.mxu0 %v4925
        %6441 = vmatpush1.bf16.msra.mxu0 %v4924
        %6442 = vmatprep.subr.bf16.mxu0 %v4930
        %6443 = vmatpush1.bf16.msra.mxu0 %v4929
        %6444 = vmatprep.subr.bf16.mxu0 %v4935
        %6445 = vmatpush1.bf16.msra.mxu0 %v4934
        %6446 = vmatprep.subr.bf16.mxu0 %v4940
        %6447 = vmatpush1.bf16.msra.mxu0 %v4939
        %6448 = vmatprep.subr.bf16.mxu0 %v4945
        %6449 = vmatpush1.bf16.msra.mxu0 %v4944
        %6450 = vmatprep.subr.bf16.mxu0 %v4950
        %6451 = vmatpush1.bf16.msra.mxu0 %v4949
        %6452 = vmatprep.subr.bf16.mxu0 %v4955
        %6453 = vmatpush1.bf16.msra.mxu0 %v4954
        %6454 = vmatprep.subr.bf16.mxu0 %v4960
        %6455 = vmatpush1.bf16.msra.mxu0 %v4959
        %6456 = vmatprep.subr.bf16.mxu0 %v4965
        %6457 = vmatpush1.bf16.msra.mxu0 %v4964
        %6458 = vmatprep.subr.bf16.mxu0 %v4970
        %6459 = vmatpush1.bf16.msra.mxu0 %v4969
        %6460 = vmatprep.subr.bf16.mxu0 %v4975
        %6461 = vmatpush1.bf16.msra.mxu0 %v4974
        %6462 = vmatprep.subr.bf16.mxu0 %v4980
        %6463 = vmatpush1.bf16.msra.mxu0 %v4979
        %6464 = vmatprep.mubr.bf16.mxu0 %v2667
        %6465 = vmatmul.mubr.bf16.gmra.mrb[0].mxu0 %v2666
        %v6466 = vpop.f32.mrb[0].mxu0
        %v6467 = vadd.f32 %v6426, %v6466
        %v6468 = vpop.f32.mrb[0].mxu0
        %v6469 = vadd.f32 %v6428, %v6468
        %v6470 = vpop.f32.mrb[0].mxu0
        %v6471 = vpop.f32.mrb[0].mxu0
        %6472 = vdwg.mxu0
        %6473 = vmatprep.subr.bf16.mxu0 %v4985
        %6474 = vmatpush1.bf16.msra.mxu0 %v4984
        %6475 = vmatprep.subr.bf16.mxu0 %v4990
        %6476 = vmatpush1.bf16.msra.mxu0 %v4989
        %6477 = vmatprep.subr.bf16.mxu0 %v4995
        %6478 = vmatpush1.bf16.msra.mxu0 %v4994
        %6479 = vmatprep.subr.bf16.mxu0 %v5000
        %6480 = vmatpush1.bf16.msra.mxu0 %v4999
        %6481 = vmatprep.subr.bf16.mxu0 %v5005
        %6482 = vmatpush1.bf16.msra.mxu0 %v5004
        %6483 = vmatprep.subr.bf16.mxu0 %v5010
        %6484 = vmatpush1.bf16.msra.mxu0 %v5009
        %6485 = vmatprep.subr.bf16.mxu0 %v5015
        %6486 = vmatpush1.bf16.msra.mxu0 %v5014
        %6487 = vmatprep.subr.bf16.mxu0 %v5020
        %6488 = vmatpush1.bf16.msra.mxu0 %v5019
        %6489 = vmatprep.subr.bf16.mxu0 %v5025
        %6490 = vmatpush1.bf16.msra.mxu0 %v5024
        %6491 = vmatprep.subr.bf16.mxu0 %v5030
        %6492 = vmatpush1.bf16.msra.mxu0 %v5029
        %6493 = vmatprep.subr.bf16.mxu0 %v5035
        %6494 = vmatpush1.bf16.msra.mxu0 %v5034
        %6495 = vmatprep.subr.bf16.mxu0 %v5040
        %6496 = vmatpush1.bf16.msra.mxu0 %v5039
        %6497 = vmatprep.subr.bf16.mxu0 %v5045
        %6498 = vmatpush1.bf16.msra.mxu0 %v5044
        %6499 = vmatprep.subr.bf16.mxu0 %v5050
        %6500 = vmatpush1.bf16.msra.mxu0 %v5049
        %6501 = vmatprep.subr.bf16.mxu0 %v5055
        %6502 = vmatpush1.bf16.msra.mxu0 %v5054
        %6503 = vmatprep.subr.bf16.mxu0 %v5060
        %6504 = vmatpush1.bf16.msra.mxu0 %v5059
        %6505 = vmatprep.mubr.bf16.mxu0 %v2669
        %6506 = vmatmul.mubr.bf16.gmra.mrb[0].mxu0 %v2668
        %v6507 = vpop.f32.mrb[0].mxu0
        %v6508 = vadd.f32 %v6467, %v6507
        %v6509 = vpop.f32.mrb[0].mxu0
        %v6510 = vadd.f32 %v6469, %v6509
        %v6511 = vpop.f32.mrb[0].mxu0
        %v6512 = vpop.f32.mrb[0].mxu0
        %6513 = vdwg.mxu0
        %6514 = vmatprep.subr.bf16.mxu0 %v5065
        %6515 = vmatpush1.bf16.msra.mxu0 %v5064
        %6516 = vmatprep.subr.bf16.mxu0 %v5070
        %6517 = vmatpush1.bf16.msra.mxu0 %v5069
        %6518 = vmatprep.subr.bf16.mxu0 %v5075
        %6519 = vmatpush1.bf16.msra.mxu0 %v5074
        %6520 = vmatprep.subr.bf16.mxu0 %v5080
        %6521 = vmatpush1.bf16.msra.mxu0 %v5079
        %6522 = vmatprep.subr.bf16.mxu0 %v5085
        %6523 = vmatpush1.bf16.msra.mxu0 %v5084
        %6524 = vmatprep.subr.bf16.mxu0 %v5090
        %6525 = vmatpush1.bf16.msra.mxu0 %v5089
        %6526 = vmatprep.subr.bf16.mxu0 %v5095
        %6527 = vmatpush1.bf16.msra.mxu0 %v5094
        %6528 = vmatprep.subr.bf16.mxu0 %v5100
        %6529 = vmatpush1.bf16.msra.mxu0 %v5099
        %6530 = vmatprep.subr.bf16.mxu0 %v5105
        %6531 = vmatpush1.bf16.msra.mxu0 %v5104
        %6532 = vmatprep.subr.bf16.mxu0 %v5110
        %6533 = vmatpush1.bf16.msra.mxu0 %v5109
        %6534 = vmatprep.subr.bf16.mxu0 %v5115
        %6535 = vmatpush1.bf16.msra.mxu0 %v5114
        %6536 = vmatprep.subr.bf16.mxu0 %v5120
        %6537 = vmatpush1.bf16.msra.mxu0 %v5119
        %6538 = vmatprep.subr.bf16.mxu0 %v5125
        %6539 = vmatpush1.bf16.msra.mxu0 %v5124
        %6540 = vmatprep.subr.bf16.mxu0 %v5130
        %6541 = vmatpush1.bf16.msra.mxu0 %v5129
        %6542 = vmatprep.subr.bf16.mxu0 %v5135
        %6543 = vmatpush1.bf16.msra.mxu0 %v5134
        %6544 = vmatprep.subr.bf16.mxu0 %v5140
        %6545 = vmatpush1.bf16.msra.mxu0 %v5139
        %6546 = vmatprep.mubr.bf16.mxu0 %v2671
        %6547 = vmatmul.mubr.bf16.gmra.mrb[0].mxu0 %v2670
        %v6548 = vpop.f32.mrb[0].mxu0
        %v6549 = vadd.f32 %v6508, %v6548
        %v6550 = vpop.f32.mrb[0].mxu0
        %v6551 = vadd.f32 %v6510, %v6550
        %v6552 = vpop.f32.mrb[0].mxu0
        %v6553 = vpop.f32.mrb[0].mxu0
        %6554 = vdwg.mxu0
        %6555 = vmatprep.subr.bf16.mxu0 %v5145
        %6556 = vmatpush1.bf16.msra.mxu0 %v5144
        %6557 = vmatprep.subr.bf16.mxu0 %v5150
        %6558 = vmatpush1.bf16.msra.mxu0 %v5149
        %6559 = vmatprep.subr.bf16.mxu0 %v5155
        %6560 = vmatpush1.bf16.msra.mxu0 %v5154
        %6561 = vmatprep.subr.bf16.mxu0 %v5160
        %6562 = vmatpush1.bf16.msra.mxu0 %v5159
        %6563 = vmatprep.subr.bf16.mxu0 %v5165
        %6564 = vmatpush1.bf16.msra.mxu0 %v5164
        %6565 = vmatprep.subr.bf16.mxu0 %v5170
        %6566 = vmatpush1.bf16.msra.mxu0 %v5169
        %6567 = vmatprep.subr.bf16.mxu0 %v5175
        %6568 = vmatpush1.bf16.msra.mxu0 %v5174
        %6569 = vmatprep.subr.bf16.mxu0 %v5180
        %6570 = vmatpush1.bf16.msra.mxu0 %v5179
        %6571 = vmatprep.subr.bf16.mxu0 %v5185
        %6572 = vmatpush1.bf16.msra.mxu0 %v5184
        %6573 = vmatprep.subr.bf16.mxu0 %v5190
        %6574 = vmatpush1.bf16.msra.mxu0 %v5189
        %6575 = vmatprep.subr.bf16.mxu0 %v5195
        %6576 = vmatpush1.bf16.msra.mxu0 %v5194
        %6577 = vmatprep.subr.bf16.mxu0 %v5200
        %6578 = vmatpush1.bf16.msra.mxu0 %v5199
        %6579 = vmatprep.subr.bf16.mxu0 %v5205
        %6580 = vmatpush1.bf16.msra.mxu0 %v5204
        %6581 = vmatprep.subr.bf16.mxu0 %v5210
        %6582 = vmatpush1.bf16.msra.mxu0 %v5209
        %6583 = vmatprep.subr.bf16.mxu0 %v5215
        %6584 = vmatpush1.bf16.msra.mxu0 %v5214
        %6585 = vmatprep.subr.bf16.mxu0 %v5220
        %6586 = vmatpush1.bf16.msra.mxu0 %v5219
        %6587 = vmatprep.mubr.bf16.mxu0 %v2673
        %6588 = vmatmul.mubr.bf16.gmra.mrb[0].mxu0 %v2672
        %v6589 = vpop.f32.mrb[0].mxu0
        %v6590 = vadd.f32 %v6549, %v6589
        %v6591 = vpop.f32.mrb[0].mxu0
        %v6592 = vadd.f32 %v6551, %v6591
        %v6593 = vpop.f32.mrb[0].mxu0
        %v6594 = vpop.f32.mrb[0].mxu0
        %6595 = vdwg.mxu0
        %6596 = vmatprep.subr.bf16.mxu0 %v5225
        %6597 = vmatpush1.bf16.msra.mxu0 %v5224
        %6598 = vmatprep.subr.bf16.mxu0 %v5230
        %6599 = vmatpush1.bf16.msra.mxu0 %v5229
        %6600 = vmatprep.subr.bf16.mxu0 %v5235
        %6601 = vmatpush1.bf16.msra.mxu0 %v5234
        %6602 = vmatprep.subr.bf16.mxu0 %v5240
        %6603 = vmatpush1.bf16.msra.mxu0 %v5239
        %6604 = vmatprep.subr.bf16.mxu0 %v5245
        %6605 = vmatpush1.bf16.msra.mxu0 %v5244
        %6606 = vmatprep.subr.bf16.mxu0 %v5250
        %6607 = vmatpush1.bf16.msra.mxu0 %v5249
        %6608 = vmatprep.subr.bf16.mxu0 %v5255
        %6609 = vmatpush1.bf16.msra.mxu0 %v5254
        %6610 = vmatprep.subr.bf16.mxu0 %v5260
        %6611 = vmatpush1.bf16.msra.mxu0 %v5259
        %6612 = vmatprep.subr.bf16.mxu0 %v5265
        %6613 = vmatpush1.bf16.msra.mxu0 %v5264
        %6614 = vmatprep.subr.bf16.mxu0 %v5270
        %6615 = vmatpush1.bf16.msra.mxu0 %v5269
        %6616 = vmatprep.subr.bf16.mxu0 %v5275
        %6617 = vmatpush1.bf16.msra.mxu0 %v5274
        %6618 = vmatprep.subr.bf16.mxu0 %v5280
        %6619 = vmatpush1.bf16.msra.mxu0 %v5279
        %6620 = vmatprep.subr.bf16.mxu0 %v5285
        %6621 = vmatpush1.bf16.msra.mxu0 %v5284
        %6622 = vmatprep.subr.bf16.mxu0 %v5290
        %6623 = vmatpush1.bf16.msra.mxu0 %v5289
        %6624 = vmatprep.subr.bf16.mxu0 %v5295
        %6625 = vmatpush1.bf16.msra.mxu0 %v5294
        %6626 = vmatprep.subr.bf16.mxu0 %v5300
        %6627 = vmatpush1.bf16.msra.mxu0 %v5299
        %6628 = vmatprep.mubr.bf16.mxu0 %v2675
        %6629 = vmatmul.mubr.bf16.gmra.mrb[0].mxu0 %v2674
        %v6630 = vpop.f32.mrb[0].mxu0
        %v6631 = vadd.f32 %v6590, %v6630
        %v6632 = vpop.f32.mrb[0].mxu0
        %v6633 = vadd.f32 %v6592, %v6632
        %v6634 = vpop.f32.mrb[0].mxu0
        %v6635 = vpop.f32.mrb[0].mxu0
        %6636 = vdwg.mxu0
        %6637 = vmatprep.subr.bf16.mxu0 %v5305
        %6638 = vmatpush1.bf16.msra.mxu0 %v5304
        %6639 = vmatprep.subr.bf16.mxu0 %v5310
        %6640 = vmatpush1.bf16.msra.mxu0 %v5309
        %6641 = vmatprep.subr.bf16.mxu0 %v5315
        %6642 = vmatpush1.bf16.msra.mxu0 %v5314
        %6643 = vmatprep.subr.bf16.mxu0 %v5320
        %6644 = vmatpush1.bf16.msra.mxu0 %v5319
        %6645 = vmatprep.subr.bf16.mxu0 %v5325
        %6646 = vmatpush1.bf16.msra.mxu0 %v5324
        %6647 = vmatprep.subr.bf16.mxu0 %v5330
        %6648 = vmatpush1.bf16.msra.mxu0 %v5329
        %6649 = vmatprep.subr.bf16.mxu0 %v5335
        %6650 = vmatpush1.bf16.msra.mxu0 %v5334
        %6651 = vmatprep.subr.bf16.mxu0 %v5340
        %6652 = vmatpush1.bf16.msra.mxu0 %v5339
        %6653 = vmatprep.subr.bf16.mxu0 %v5345
        %6654 = vmatpush1.bf16.msra.mxu0 %v5344
        %6655 = vmatprep.subr.bf16.mxu0 %v5350
        %6656 = vmatpush1.bf16.msra.mxu0 %v5349
        %6657 = vmatprep.subr.bf16.mxu0 %v5355
        %6658 = vmatpush1.bf16.msra.mxu0 %v5354
        %6659 = vmatprep.subr.bf16.mxu0 %v5360
        %6660 = vmatpush1.bf16.msra.mxu0 %v5359
        %6661 = vmatprep.subr.bf16.mxu0 %v5365
        %6662 = vmatpush1.bf16.msra.mxu0 %v5364
        %6663 = vmatprep.subr.bf16.mxu0 %v5370
        %6664 = vmatpush1.bf16.msra.mxu0 %v5369
        %6665 = vmatprep.subr.bf16.mxu0 %v5375
        %6666 = vmatpush1.bf16.msra.mxu0 %v5374
        %6667 = vmatprep.subr.bf16.mxu0 %v5380
        %6668 = vmatpush1.bf16.msra.mxu0 %v5379
        %6669 = vmatprep.mubr.bf16.mxu0 %v2677
        %6670 = vmatmul.mubr.bf16.gmra.mrb[0].mxu0 %v2676
        %v6671 = vpop.f32.mrb[0].mxu0
        %v6672 = vadd.f32 %v6631, %v6671
        %v6673 = vpop.f32.mrb[0].mxu0
        %v6674 = vadd.f32 %v6633, %v6673
        %v6675 = vpop.f32.mrb[0].mxu0
        %v6676 = vpop.f32.mrb[0].mxu0
        %6677 = vdwg.mxu0
        %6678 = vmatprep.subr.bf16.mxu0 0
        %6679 = vmatpush1.bf16.msra.mxu0 %v4746
        %6680 = vmatprep.subr.bf16.mxu0 0
        %6681 = vmatpush1.bf16.msra.mxu0 %v4751
        %6682 = vmatprep.subr.bf16.mxu0 0
        %6683 = vmatpush1.bf16.msra.mxu0 %v4756
        %6684 = vmatprep.subr.bf16.mxu0 0
        %6685 = vmatpush1.bf16.msra.mxu0 %v4761
        %6686 = vmatprep.subr.bf16.mxu0 0
        %6687 = vmatpush1.bf16.msra.mxu0 %v4766
        %6688 = vmatprep.subr.bf16.mxu0 0
        %6689 = vmatpush1.bf16.msra.mxu0 %v4771
        %6690 = vmatprep.subr.bf16.mxu0 0
        %6691 = vmatpush1.bf16.msra.mxu0 %v4776
        %6692 = vmatprep.subr.bf16.mxu0 0
        %6693 = vmatpush1.bf16.msra.mxu0 %v4781
        %6694 = vmatprep.subr.bf16.mxu0 0
        %6695 = vmatpush1.bf16.msra.mxu0 %v4786
        %6696 = vmatprep.subr.bf16.mxu0 0
        %6697 = vmatpush1.bf16.msra.mxu0 %v4791
        %6698 = vmatprep.subr.bf16.mxu0 0
        %6699 = vmatpush1.bf16.msra.mxu0 %v4796
        %6700 = vmatprep.subr.bf16.mxu0 0
        %6701 = vmatpush1.bf16.msra.mxu0 %v4801
        %6702 = vmatprep.subr.bf16.mxu0 0
        %6703 = vmatpush1.bf16.msra.mxu0 %v4806
        %6704 = vmatprep.subr.bf16.mxu0 0
        %6705 = vmatpush1.bf16.msra.mxu0 %v4811
        %6706 = vmatprep.subr.bf16.mxu0 0
        %6707 = vmatpush1.bf16.msra.mxu0 %v4816
        %6708 = vmatprep.subr.bf16.mxu0 0
        %6709 = vmatpush1.bf16.msra.mxu0 %v4821
        %6710 = vmatprep.mubr.bf16.mxu0 %v2663
        %6711 = vmatmul.mubr.bf16.gmra.mrb[0].mxu0 %v2662
        %v6712 = vpop.f32.mrb[0].mxu0
        %v6713 = vadd.f32 0.0, %v6712
        %v6714 = vpop.f32.mrb[0].mxu0
        %v6715 = vpop.f32.mrb[0].mxu0
        %v6716 = vpop.f32.mrb[0].mxu0
        %6717 = vdwg.mxu0
        %6718 = vmatprep.subr.bf16.mxu0 0
        %6719 = vmatpush1.bf16.msra.mxu0 %v4826
        %6720 = vmatprep.subr.bf16.mxu0 0
        %6721 = vmatpush1.bf16.msra.mxu0 %v4831
        %6722 = vmatprep.subr.bf16.mxu0 0
        %6723 = vmatpush1.bf16.msra.mxu0 %v4836
        %6724 = vmatprep.subr.bf16.mxu0 0
        %6725 = vmatpush1.bf16.msra.mxu0 %v4841
        %6726 = vmatprep.subr.bf16.mxu0 0
        %6727 = vmatpush1.bf16.msra.mxu0 %v4846
        %6728 = vmatprep.subr.bf16.mxu0 0
        %6729 = vmatpush1.bf16.msra.mxu0 %v4851
        %6730 = vmatprep.subr.bf16.mxu0 0
        %6731 = vmatpush1.bf16.msra.mxu0 %v4856
        %6732 = vmatprep.subr.bf16.mxu0 0
        %6733 = vmatpush1.bf16.msra.mxu0 %v4861
        %6734 = vmatprep.subr.bf16.mxu0 0
        %6735 = vmatpush1.bf16.msra.mxu0 %v4866
        %6736 = vmatprep.subr.bf16.mxu0 0
        %6737 = vmatpush1.bf16.msra.mxu0 %v4871
        %6738 = vmatprep.subr.bf16.mxu0 0
        %6739 = vmatpush1.bf16.msra.mxu0 %v4876
        %6740 = vmatprep.subr.bf16.mxu0 0
        %6741 = vmatpush1.bf16.msra.mxu0 %v4881
        %6742 = vmatprep.subr.bf16.mxu0 0
        %6743 = vmatpush1.bf16.msra.mxu0 %v4886
        %6744 = vmatprep.subr.bf16.mxu0 0
        %6745 = vmatpush1.bf16.msra.mxu0 %v4891
        %6746 = vmatprep.subr.bf16.mxu0 0
        %6747 = vmatpush1.bf16.msra.mxu0 %v4896
        %6748 = vmatprep.subr.bf16.mxu0 0
        %6749 = vmatpush1.bf16.msra.mxu0 %v4901
        %6750 = vmatprep.mubr.bf16.mxu0 %v2665
        %6751 = vmatmul.mubr.bf16.gmra.mrb[0].mxu0 %v2664
        %v6752 = vpop.f32.mrb[0].mxu0
        %v6753 = vadd.f32 %v6713, %v6752
        %v6754 = vpop.f32.mrb[0].mxu0
        %v6755 = vpop.f32.mrb[0].mxu0
        %v6756 = vpop.f32.mrb[0].mxu0
        %6757 = vdwg.mxu0
        %6758 = vmatprep.subr.bf16.mxu0 0
        %6759 = vmatpush1.bf16.msra.mxu0 %v4906
        %6760 = vmatprep.subr.bf16.mxu0 0
        %6761 = vmatpush1.bf16.msra.mxu0 %v4911
        %6762 = vmatprep.subr.bf16.mxu0 0
        %6763 = vmatpush1.bf16.msra.mxu0 %v4916
        %6764 = vmatprep.subr.bf16.mxu0 0
        %6765 = vmatpush1.bf16.msra.mxu0 %v4921
        %6766 = vmatprep.subr.bf16.mxu0 0
        %6767 = vmatpush1.bf16.msra.mxu0 %v4926
        %6768 = vmatprep.subr.bf16.mxu0 0
        %6769 = vmatpush1.bf16.msra.mxu0 %v4931
        %6770 = vmatprep.subr.bf16.mxu0 0
        %6771 = vmatpush1.bf16.msra.mxu0 %v4936
        %6772 = vmatprep.subr.bf16.mxu0 0
        %6773 = vmatpush1.bf16.msra.mxu0 %v4941
        %6774 = vmatprep.subr.bf16.mxu0 0
        %6775 = vmatpush1.bf16.msra.mxu0 %v4946
        %6776 = vmatprep.subr.bf16.mxu0 0
        %6777 = vmatpush1.bf16.msra.mxu0 %v4951
        %6778 = vmatprep.subr.bf16.mxu0 0
        %6779 = vmatpush1.bf16.msra.mxu0 %v4956
        %6780 = vmatprep.subr.bf16.mxu0 0
        %6781 = vmatpush1.bf16.msra.mxu0 %v4961
        %6782 = vmatprep.subr.bf16.mxu0 0
        %6783 = vmatpush1.bf16.msra.mxu0 %v4966
        %6784 = vmatprep.subr.bf16.mxu0 0
        %6785 = vmatpush1.bf16.msra.mxu0 %v4971
        %6786 = vmatprep.subr.bf16.mxu0 0
        %6787 = vmatpush1.bf16.msra.mxu0 %v4976
        %6788 = vmatprep.subr.bf16.mxu0 0
        %6789 = vmatpush1.bf16.msra.mxu0 %v4981
        %6790 = vmatprep.mubr.bf16.mxu0 %v2667
        %6791 = vmatmul.mubr.bf16.gmra.mrb[0].mxu0 %v2666
        %v6792 = vpop.f32.mrb[0].mxu0
        %v6793 = vadd.f32 %v6753, %v6792
        %v6794 = vpop.f32.mrb[0].mxu0
        %v6795 = vpop.f32.mrb[0].mxu0
        %v6796 = vpop.f32.mrb[0].mxu0
        %6797 = vdwg.mxu0
        %6798 = vmatprep.subr.bf16.mxu0 0
        %6799 = vmatpush1.bf16.msra.mxu0 %v4986
        %6800 = vmatprep.subr.bf16.mxu0 0
        %6801 = vmatpush1.bf16.msra.mxu0 %v4991
        %6802 = vmatprep.subr.bf16.mxu0 0
        %6803 = vmatpush1.bf16.msra.mxu0 %v4996
        %6804 = vmatprep.subr.bf16.mxu0 0
        %6805 = vmatpush1.bf16.msra.mxu0 %v5001
        %6806 = vmatprep.subr.bf16.mxu0 0
        %6807 = vmatpush1.bf16.msra.mxu0 %v5006
        %6808 = vmatprep.subr.bf16.mxu0 0
        %6809 = vmatpush1.bf16.msra.mxu0 %v5011
        %6810 = vmatprep.subr.bf16.mxu0 0
        %6811 = vmatpush1.bf16.msra.mxu0 %v5016
        %6812 = vmatprep.subr.bf16.mxu0 0
        %6813 = vmatpush1.bf16.msra.mxu0 %v5021
        %6814 = vmatprep.subr.bf16.mxu0 0
        %6815 = vmatpush1.bf16.msra.mxu0 %v5026
        %6816 = vmatprep.subr.bf16.mxu0 0
        %6817 = vmatpush1.bf16.msra.mxu0 %v5031
        %6818 = vmatprep.subr.bf16.mxu0 0
        %6819 = vmatpush1.bf16.msra.mxu0 %v5036
        %6820 = vmatprep.subr.bf16.mxu0 0
        %6821 = vmatpush1.bf16.msra.mxu0 %v5041
        %6822 = vmatprep.subr.bf16.mxu0 0
        %6823 = vmatpush1.bf16.msra.mxu0 %v5046
        %6824 = vmatprep.subr.bf16.mxu0 0
        %6825 = vmatpush1.bf16.msra.mxu0 %v5051
        %6826 = vmatprep.subr.bf16.mxu0 0
        %6827 = vmatpush1.bf16.msra.mxu0 %v5056
        %6828 = vmatprep.subr.bf16.mxu0 0
        %6829 = vmatpush1.bf16.msra.mxu0 %v5061
        %6830 = vmatprep.mubr.bf16.mxu0 %v2669
        %6831 = vmatmul.mubr.bf16.gmra.mrb[0].mxu0 %v2668
        %v6832 = vpop.f32.mrb[0].mxu0
        %v6833 = vadd.f32 %v6793, %v6832
        %v6834 = vpop.f32.mrb[0].mxu0
        %v6835 = vpop.f32.mrb[0].mxu0
        %v6836 = vpop.f32.mrb[0].mxu0
        %6837 = vdwg.mxu0
        %6838 = vmatprep.subr.bf16.mxu0 0
        %6839 = vmatpush1.bf16.msra.mxu0 %v5066
        %6840 = vmatprep.subr.bf16.mxu0 0
        %6841 = vmatpush1.bf16.msra.mxu0 %v5071
        %6842 = vmatprep.subr.bf16.mxu0 0
        %6843 = vmatpush1.bf16.msra.mxu0 %v5076
        %6844 = vmatprep.subr.bf16.mxu0 0
        %6845 = vmatpush1.bf16.msra.mxu0 %v5081
        %6846 = vmatprep.subr.bf16.mxu0 0
        %6847 = vmatpush1.bf16.msra.mxu0 %v5086
        %6848 = vmatprep.subr.bf16.mxu0 0
        %6849 = vmatpush1.bf16.msra.mxu0 %v5091
        %6850 = vmatprep.subr.bf16.mxu0 0
        %6851 = vmatpush1.bf16.msra.mxu0 %v5096
        %6852 = vmatprep.subr.bf16.mxu0 0
        %6853 = vmatpush1.bf16.msra.mxu0 %v5101
        %6854 = vmatprep.subr.bf16.mxu0 0
        %6855 = vmatpush1.bf16.msra.mxu0 %v5106
        %6856 = vmatprep.subr.bf16.mxu0 0
        %6857 = vmatpush1.bf16.msra.mxu0 %v5111
        %6858 = vmatprep.subr.bf16.mxu0 0
        %6859 = vmatpush1.bf16.msra.mxu0 %v5116
        %6860 = vmatprep.subr.bf16.mxu0 0
        %6861 = vmatpush1.bf16.msra.mxu0 %v5121
        %6862 = vmatprep.subr.bf16.mxu0 0
        %6863 = vmatpush1.bf16.msra.mxu0 %v5126
        %6864 = vmatprep.subr.bf16.mxu0 0
        %6865 = vmatpush1.bf16.msra.mxu0 %v5131
        %6866 = vmatprep.subr.bf16.mxu0 0
        %6867 = vmatpush1.bf16.msra.mxu0 %v5136
        %6868 = vmatprep.subr.bf16.mxu0 0
        %6869 = vmatpush1.bf16.msra.mxu0 %v5141
        %6870 = vmatprep.mubr.bf16.mxu0 %v2671
        %6871 = vmatmul.mubr.bf16.gmra.mrb[0].mxu0 %v2670
        %v6872 = vpop.f32.mrb[0].mxu0
        %v6873 = vadd.f32 %v6833, %v6872
        %v6874 = vpop.f32.mrb[0].mxu0
        %v6875 = vpop.f32.mrb[0].mxu0
        %v6876 = vpop.f32.mrb[0].mxu0
        %6877 = vdwg.mxu0
        %6878 = vmatprep.subr.bf16.mxu0 0
        %6879 = vmatpush1.bf16.msra.mxu0 %v5146
        %6880 = vmatprep.subr.bf16.mxu0 0
        %6881 = vmatpush1.bf16.msra.mxu0 %v5151
        %6882 = vmatprep.subr.bf16.mxu0 0
        %6883 = vmatpush1.bf16.msra.mxu0 %v5156
        %6884 = vmatprep.subr.bf16.mxu0 0
        %6885 = vmatpush1.bf16.msra.mxu0 %v5161
        %6886 = vmatprep.subr.bf16.mxu0 0
        %6887 = vmatpush1.bf16.msra.mxu0 %v5166
        %6888 = vmatprep.subr.bf16.mxu0 0
        %6889 = vmatpush1.bf16.msra.mxu0 %v5171
        %6890 = vmatprep.subr.bf16.mxu0 0
        %6891 = vmatpush1.bf16.msra.mxu0 %v5176
        %6892 = vmatprep.subr.bf16.mxu0 0
        %6893 = vmatpush1.bf16.msra.mxu0 %v5181
        %6894 = vmatprep.subr.bf16.mxu0 0
        %6895 = vmatpush1.bf16.msra.mxu0 %v5186
        %6896 = vmatprep.subr.bf16.mxu0 0
        %6897 = vmatpush1.bf16.msra.mxu0 %v5191
        %6898 = vmatprep.subr.bf16.mxu0 0
        %6899 = vmatpush1.bf16.msra.mxu0 %v5196
        %6900 = vmatprep.subr.bf16.mxu0 0
        %6901 = vmatpush1.bf16.msra.mxu0 %v5201
        %6902 = vmatprep.subr.bf16.mxu0 0
        %6903 = vmatpush1.bf16.msra.mxu0 %v5206
        %6904 = vmatprep.subr.bf16.mxu0 0
        %6905 = vmatpush1.bf16.msra.mxu0 %v5211
        %6906 = vmatprep.subr.bf16.mxu0 0
        %6907 = vmatpush1.bf16.msra.mxu0 %v5216
        %6908 = vmatprep.subr.bf16.mxu0 0
        %6909 = vmatpush1.bf16.msra.mxu0 %v5221
        %6910 = vmatprep.mubr.bf16.mxu0 %v2673
        %6911 = vmatmul.mubr.bf16.gmra.mrb[0].mxu0 %v2672
        %v6912 = vpop.f32.mrb[0].mxu0
        %v6913 = vadd.f32 %v6873, %v6912
        %v6914 = vpop.f32.mrb[0].mxu0
        %v6915 = vpop.f32.mrb[0].mxu0
        %v6916 = vpop.f32.mrb[0].mxu0
        %6917 = vdwg.mxu0
        %6918 = vmatprep.subr.bf16.mxu0 0
        %6919 = vmatpush1.bf16.msra.mxu0 %v5226
        %6920 = vmatprep.subr.bf16.mxu0 0
        %6921 = vmatpush1.bf16.msra.mxu0 %v5231
        %6922 = vmatprep.subr.bf16.mxu0 0
        %6923 = vmatpush1.bf16.msra.mxu0 %v5236
        %6924 = vmatprep.subr.bf16.mxu0 0
        %6925 = vmatpush1.bf16.msra.mxu0 %v5241
        %6926 = vmatprep.subr.bf16.mxu0 0
        %6927 = vmatpush1.bf16.msra.mxu0 %v5246
        %6928 = vmatprep.subr.bf16.mxu0 0
        %6929 = vmatpush1.bf16.msra.mxu0 %v5251
        %6930 = vmatprep.subr.bf16.mxu0 0
        %6931 = vmatpush1.bf16.msra.mxu0 %v5256
        %6932 = vmatprep.subr.bf16.mxu0 0
        %6933 = vmatpush1.bf16.msra.mxu0 %v5261
        %6934 = vmatprep.subr.bf16.mxu0 0
        %6935 = vmatpush1.bf16.msra.mxu0 %v5266
        %6936 = vmatprep.subr.bf16.mxu0 0
        %6937 = vmatpush1.bf16.msra.mxu0 %v5271
        %6938 = vmatprep.subr.bf16.mxu0 0
        %6939 = vmatpush1.bf16.msra.mxu0 %v5276
        %6940 = vmatprep.subr.bf16.mxu0 0
        %6941 = vmatpush1.bf16.msra.mxu0 %v5281
        %6942 = vmatprep.subr.bf16.mxu0 0
        %6943 = vmatpush1.bf16.msra.mxu0 %v5286
        %6944 = vmatprep.subr.bf16.mxu0 0
        %6945 = vmatpush1.bf16.msra.mxu0 %v5291
        %6946 = vmatprep.subr.bf16.mxu0 0
        %6947 = vmatpush1.bf16.msra.mxu0 %v5296
        %6948 = vmatprep.subr.bf16.mxu0 0
        %6949 = vmatpush1.bf16.msra.mxu0 %v5301
        %6950 = vmatprep.mubr.bf16.mxu0 %v2675
        %6951 = vmatmul.mubr.bf16.gmra.mrb[0].mxu0 %v2674
        %v6952 = vpop.f32.mrb[0].mxu0
        %v6953 = vadd.f32 %v6913, %v6952
        %v6954 = vpop.f32.mrb[0].mxu0
        %v6955 = vpop.f32.mrb[0].mxu0
        %v6956 = vpop.f32.mrb[0].mxu0
        %6957 = vdwg.mxu0
        %6958 = vmatprep.subr.bf16.mxu0 0
        %6959 = vmatpush1.bf16.msra.mxu0 %v5306
        %6960 = vmatprep.subr.bf16.mxu0 0
        %6961 = vmatpush1.bf16.msra.mxu0 %v5311
        %6962 = vmatprep.subr.bf16.mxu0 0
        %6963 = vmatpush1.bf16.msra.mxu0 %v5316
        %6964 = vmatprep.subr.bf16.mxu0 0
        %6965 = vmatpush1.bf16.msra.mxu0 %v5321
        %6966 = vmatprep.subr.bf16.mxu0 0
        %6967 = vmatpush1.bf16.msra.mxu0 %v5326
        %6968 = vmatprep.subr.bf16.mxu0 0
        %6969 = vmatpush1.bf16.msra.mxu0 %v5331
        %6970 = vmatprep.subr.bf16.mxu0 0
        %6971 = vmatpush1.bf16.msra.mxu0 %v5336
        %6972 = vmatprep.subr.bf16.mxu0 0
        %6973 = vmatpush1.bf16.msra.mxu0 %v5341
        %6974 = vmatprep.subr.bf16.mxu0 0
        %6975 = vmatpush1.bf16.msra.mxu0 %v5346
        %6976 = vmatprep.subr.bf16.mxu0 0
        %6977 = vmatpush1.bf16.msra.mxu0 %v5351
        %6978 = vmatprep.subr.bf16.mxu0 0
        %6979 = vmatpush1.bf16.msra.mxu0 %v5356
        %6980 = vmatprep.subr.bf16.mxu0 0
        %6981 = vmatpush1.bf16.msra.mxu0 %v5361
        %6982 = vmatprep.subr.bf16.mxu0 0
        %6983 = vmatpush1.bf16.msra.mxu0 %v5366
        %6984 = vmatprep.subr.bf16.mxu0 0
        %6985 = vmatpush1.bf16.msra.mxu0 %v5371
        %6986 = vmatprep.subr.bf16.mxu0 0
        %6987 = vmatpush1.bf16.msra.mxu0 %v5376
        %6988 = vmatprep.subr.bf16.mxu0 0
        %6989 = vmatpush1.bf16.msra.mxu0 %v5381
        %6990 = vmatprep.mubr.bf16.mxu0 %v2677
        %6991 = vmatmul.mubr.bf16.gmra.mrb[0].mxu0 %v2676
        %v6992 = vpop.f32.mrb[0].mxu0
        %v6993 = vadd.f32 %v6953, %v6992
        %v6994 = vpop.f32.mrb[0].mxu0
        %v6995 = vpop.f32.mrb[0].mxu0
        %v6996 = vpop.f32.mrb[0].mxu0
        %6997 = vdwg.mxu0
        %v6998 = vadd.f32 %v1857, %v6344
        %v6999 = vadd.f32 %v1858, %v6346
        %v7000 = vadd.f32 %v1859, %v6672
        %v7001 = vadd.f32 %v1860, %v6674
        %v7002 = vadd.f32 %v1861, %v6993
        %7003 = vst [vmem:[#allocation2] sm:$0xff] %v6998
        %7004 = vst [vmem:[#allocation2 + $0x8] sm:$0xff] %v6999
        %7005 = vst [vmem:[#allocation2 + $0x10] sm:$0xff] %v7000
        %7006 = vst [vmem:[#allocation2 + $0x18] sm:$0xff] %v7001
        %7007 = vst [vmem:[#allocation2 + $0x20] sm:$0xff] %v7002
        %p7008 = scmp.eq.s32.totalorder %s20, 1
        // Predicated region
        $region67: #{agent_forward.6} parent=57 // pred_check
          %p7009 = pneg %p7008
        $region68: #{agent_forward.6} parent=57 // pred_check_branch
          %7011 = sbr.rel (%p7009) target = $region70
        $region69: #{agent_forward.6} parent=57 // pred_region
          %v7012 = vld [vmem:[#allocation2] sm:$0xff]
          %v7013 = vld [vmem:[#allocation2 + $0x8] sm:$0xff]
          %v7014 = vld [vmem:[#allocation2 + $0x10] sm:$0xff]
          %v7015 = vld [vmem:[#allocation2 + $0x18] sm:$0xff]
          %v7016 = vld [vmem:[#allocation2 + $0x20] sm:$0xff]
          %v7017 = vld [vmem:[%s1832] sm:$0x1f]
          %v7019 = vlaneseq
          %v7020 = vshrl.u32 %v7019, 7
          %v7021 = vsub.s32 0, %v7020
          %v7022 = vrot.slane %v7017, %v7021
          %v7023 = vlaneseq
          %v7024 = vshrl.u32 %v7023, 7
          %v7025 = vsub.s32 1, %v7024
          %v7026 = vrot.slane %v7017, %v7025
          %v7027 = vlaneseq
          %v7028 = vshrl.u32 %v7027, 7
          %v7029 = vsub.s32 2, %v7028
          %v7030 = vrot.slane %v7017, %v7029
          %v7031 = vlaneseq
          %v7032 = vshrl.u32 %v7031, 7
          %v7033 = vsub.s32 3, %v7032
          %v7034 = vrot.slane %v7017, %v7033
          %v7035 = vlaneseq
          %v7036 = vshrl.u32 %v7035, 7
          %v7037 = vsub.s32 4, %v7036
          %v7038 = vrot.slane %v7017, %v7037
          %v7044 = vadd.f32 %v7012, %v7022
          %v7045 = vadd.f32 %v7013, %v7026
          %v7046 = vadd.f32 %v7014, %v7030
          %v7047 = vadd.f32 %v7015, %v7034
          %v7048 = vadd.f32 %v7016, %v7038
          %v7049 = vmax.f32 %v7044, 0.0
          %v7050 = vmax.f32 %v7045, 0.0
          %v7051 = vmax.f32 %v7046, 0.0
          %v7052 = vmax.f32 %v7047, 0.0
          %v7053 = vmax.f32 %v7048, 0.0
          %v7054 = vpack.c.bf16 %v7049, %v7049
          %v7055 = vpack.c.bf16 %v7050, %v7050
          %v7056 = vpack.c.bf16 %v7051, %v7051
          %v7057 = vpack.c.bf16 %v7052, %v7052
          %v7058 = vpack.c.bf16 %v7053, %v7053
          %v7059 = vld [vmem:[%s1839] sm:$0xff]
          %v7060 = vld [vmem:[%s1839 + $0x8] sm:$0xff]
          %v7061 = vld [vmem:[%s1839 + $0x10] sm:$0xff]
          %v7062 = vld [vmem:[%s1839 + $0x18] sm:$0xff]
          %v7063 = vld [vmem:[%s1839 + $0x20] sm:$0xff]
          %v7064 = vld [vmem:[%s1839 + $0x28] sm:$0xff]
          %v7065 = vld [vmem:[%s1839 + $0x30] sm:$0xff]
          %v7066 = vld [vmem:[%s1839 + $0x38] sm:$0xff]
          %v7067 = vld [vmem:[%s1839 + $0x40] sm:$0xff]
          %v7068 = vld [vmem:[%s1839 + $0x48] sm:$0xff]
          %v7069 = vld [vmem:[%s1839 + $0x50] sm:$0xff]
          %v7070 = vld [vmem:[%s1839 + $0x58] sm:$0xff]
          %v7071 = vld [vmem:[%s1839 + $0x60] sm:$0xff]
          %v7072 = vld [vmem:[%s1839 + $0x68] sm:$0xff]
          %v7073 = vld [vmem:[%s1839 + $0x70] sm:$0xff]
          %v7074 = vld [vmem:[%s1839 + $0x78] sm:$0xff]
          %v7075 = vld [vmem:[%s1839 + $0x80] sm:$0xff]
          %v7076 = vld [vmem:[%s1839 + $0x88] sm:$0xff]
          %v7077 = vld [vmem:[%s1839 + $0x90] sm:$0xff]
          %v7078 = vld [vmem:[%s1839 + $0x98] sm:$0xff]
          %v7079 = vld [vmem:[%s1839 + $0xa0] sm:$0xff]
          %v7080 = vld [vmem:[%s1839 + $0xa8] sm:$0xff]
          %v7081 = vld [vmem:[%s1839 + $0xb0] sm:$0xff]
          %v7082 = vld [vmem:[%s1839 + $0xb8] sm:$0xff]
          %v7083 = vld [vmem:[%s1839 + $0xc0] sm:$0xff]
          %v7084 = vld [vmem:[%s1839 + $0xc8] sm:$0xff]
          %v7085 = vld [vmem:[%s1839 + $0xd0] sm:$0xff]
          %v7086 = vld [vmem:[%s1839 + $0xd8] sm:$0xff]
          %v7087 = vld [vmem:[%s1839 + $0xe0] sm:$0xff]
          %v7088 = vld [vmem:[%s1839 + $0xe8] sm:$0xff]
          %v7089 = vld [vmem:[%s1839 + $0xf0] sm:$0xff]
          %v7090 = vld [vmem:[%s1839 + $0xf8] sm:$0xff]
          %v7091 = vld [vmem:[%s1839 + $0x100] sm:$0xff]
          %v7092 = vld [vmem:[%s1839 + $0x108] sm:$0xff]
          %v7093 = vld [vmem:[%s1839 + $0x110] sm:$0xff]
          %v7094 = vld [vmem:[%s1839 + $0x118] sm:$0xff]
          %v7095 = vld [vmem:[%s1839 + $0x120] sm:$0xff]
          %v7096 = vld [vmem:[%s1839 + $0x128] sm:$0xff]
          %v7097 = vld [vmem:[%s1839 + $0x130] sm:$0xff]
          %v7098 = vld [vmem:[%s1839 + $0x138] sm:$0xff]
          %v7099 = vld [vmem:[%s1839 + $0x140] sm:$0xff]
          %v7100 = vld [vmem:[%s1839 + $0x148] sm:$0xff]
          %v7101 = vld [vmem:[%s1839 + $0x150] sm:$0xff]
          %v7102 = vld [vmem:[%s1839 + $0x158] sm:$0xff]
          %v7103 = vld [vmem:[%s1839 + $0x160] sm:$0xff]
          %v7104 = vld [vmem:[%s1839 + $0x168] sm:$0xff]
          %v7105 = vld [vmem:[%s1839 + $0x170] sm:$0xff]
          %v7106 = vld [vmem:[%s1839 + $0x178] sm:$0xff]
          %v7107 = vld [vmem:[%s1839 + $0x180] sm:$0xff]
          %v7108 = vld [vmem:[%s1839 + $0x188] sm:$0xff]
          %v7109 = vld [vmem:[%s1839 + $0x190] sm:$0xff]
          %v7110 = vld [vmem:[%s1839 + $0x198] sm:$0xff]
          %v7111 = vld [vmem:[%s1839 + $0x1a0] sm:$0xff]
          %v7112 = vld [vmem:[%s1839 + $0x1a8] sm:$0xff]
          %v7113 = vld [vmem:[%s1839 + $0x1b0] sm:$0xff]
          %v7114 = vld [vmem:[%s1839 + $0x1b8] sm:$0xff]
          %v7115 = vld [vmem:[%s1839 + $0x1c0] sm:$0xff]
          %v7116 = vld [vmem:[%s1839 + $0x1c8] sm:$0xff]
          %v7117 = vld [vmem:[%s1839 + $0x1d0] sm:$0xff]
          %v7118 = vld [vmem:[%s1839 + $0x1d8] sm:$0xff]
          %v7119 = vld [vmem:[%s1839 + $0x1e0] sm:$0xff]
          %v7120 = vld [vmem:[%s1839 + $0x1e8] sm:$0xff]
          %v7121 = vld [vmem:[%s1839 + $0x1f0] sm:$0xff]
          %v7122 = vld [vmem:[%s1839 + $0x1f8] sm:$0xff]
          %v7123 = vld [vmem:[%s1839 + $0x200] sm:$0xff]
          %v7124 = vld [vmem:[%s1839 + $0x208] sm:$0xff]
          %v7125 = vld [vmem:[%s1839 + $0x210] sm:$0xff]
          %v7126 = vld [vmem:[%s1839 + $0x218] sm:$0xff]
          %v7127 = vld [vmem:[%s1839 + $0x220] sm:$0xff]
          %v7128 = vld [vmem:[%s1839 + $0x228] sm:$0xff]
          %v7129 = vld [vmem:[%s1839 + $0x230] sm:$0xff]
          %v7130 = vld [vmem:[%s1839 + $0x238] sm:$0xff]
          %v7131 = vld [vmem:[%s1839 + $0x240] sm:$0xff]
          %v7132 = vld [vmem:[%s1839 + $0x248] sm:$0xff]
          %v7133 = vld [vmem:[%s1839 + $0x250] sm:$0xff]
          %v7134 = vld [vmem:[%s1839 + $0x258] sm:$0xff]
          %v7135 = vld [vmem:[%s1839 + $0x260] sm:$0xff]
          %v7136 = vld [vmem:[%s1839 + $0x268] sm:$0xff]
          %v7137 = vld [vmem:[%s1839 + $0x270] sm:$0xff]
          %v7138 = vld [vmem:[%s1839 + $0x278] sm:$0xff]
          %v7139 = vld [vmem:[%s1839 + $0x280] sm:$0xff]
          %v7140 = vld [vmem:[%s1839 + $0x288] sm:$0xff]
          %v7141 = vld [vmem:[%s1839 + $0x290] sm:$0xff]
          %v7142 = vld [vmem:[%s1839 + $0x298] sm:$0xff]
          %v7143 = vld [vmem:[%s1839 + $0x2a0] sm:$0xff]
          %v7144 = vld [vmem:[%s1839 + $0x2a8] sm:$0xff]
          %v7145 = vld [vmem:[%s1839 + $0x2b0] sm:$0xff]
          %v7146 = vld [vmem:[%s1839 + $0x2b8] sm:$0xff]
          %v7147 = vld [vmem:[%s1839 + $0x2c0] sm:$0xff]
          %v7148 = vld [vmem:[%s1839 + $0x2c8] sm:$0xff]
          %v7149 = vld [vmem:[%s1839 + $0x2d0] sm:$0xff]
          %v7150 = vld [vmem:[%s1839 + $0x2d8] sm:$0xff]
          %v7151 = vld [vmem:[%s1839 + $0x2e0] sm:$0xff]
          %v7152 = vld [vmem:[%s1839 + $0x2e8] sm:$0xff]
          %v7153 = vld [vmem:[%s1839 + $0x2f0] sm:$0xff]
          %v7154 = vld [vmem:[%s1839 + $0x2f8] sm:$0xff]
          %v7155 = vld [vmem:[%s1839 + $0x300] sm:$0xff]
          %v7156 = vld [vmem:[%s1839 + $0x308] sm:$0xff]
          %v7157 = vld [vmem:[%s1839 + $0x310] sm:$0xff]
          %v7158 = vld [vmem:[%s1839 + $0x318] sm:$0xff]
          %v7159 = vld [vmem:[%s1839 + $0x320] sm:$0xff]
          %v7160 = vld [vmem:[%s1839 + $0x328] sm:$0xff]
          %v7161 = vld [vmem:[%s1839 + $0x330] sm:$0xff]
          %v7162 = vld [vmem:[%s1839 + $0x338] sm:$0xff]
          %v7163 = vld [vmem:[%s1839 + $0x340] sm:$0xff]
          %v7164 = vld [vmem:[%s1839 + $0x348] sm:$0xff]
          %v7165 = vld [vmem:[%s1839 + $0x350] sm:$0xff]
          %v7166 = vld [vmem:[%s1839 + $0x358] sm:$0xff]
          %v7167 = vld [vmem:[%s1839 + $0x360] sm:$0xff]
          %v7168 = vld [vmem:[%s1839 + $0x368] sm:$0xff]
          %v7169 = vld [vmem:[%s1839 + $0x370] sm:$0xff]
          %v7170 = vld [vmem:[%s1839 + $0x378] sm:$0xff]
          %v7171 = vld [vmem:[%s1839 + $0x380] sm:$0xff]
          %v7172 = vld [vmem:[%s1839 + $0x388] sm:$0xff]
          %v7173 = vld [vmem:[%s1839 + $0x390] sm:$0xff]
          %v7174 = vld [vmem:[%s1839 + $0x398] sm:$0xff]
          %v7175 = vld [vmem:[%s1839 + $0x3a0] sm:$0xff]
          %v7176 = vld [vmem:[%s1839 + $0x3a8] sm:$0xff]
          %v7177 = vld [vmem:[%s1839 + $0x3b0] sm:$0xff]
          %v7178 = vld [vmem:[%s1839 + $0x3b8] sm:$0xff]
          %v7179 = vld [vmem:[%s1839 + $0x3c0] sm:$0xff]
          %v7180 = vld [vmem:[%s1839 + $0x3c8] sm:$0xff]
          %v7181 = vld [vmem:[%s1839 + $0x3d0] sm:$0xff]
          %v7182 = vld [vmem:[%s1839 + $0x3d8] sm:$0xff]
          %v7183 = vld [vmem:[%s1839 + $0x3e0] sm:$0xff]
          %v7184 = vld [vmem:[%s1839 + $0x3e8] sm:$0xff]
          %v7185 = vld [vmem:[%s1839 + $0x3f0] sm:$0xff]
          %v7186 = vld [vmem:[%s1839 + $0x3f8] sm:$0xff]
          %v7187 = vld [vmem:[%s1839 + $0x400] sm:$0xff]
          %v7188 = vld [vmem:[%s1839 + $0x408] sm:$0xff]
          %v7189 = vld [vmem:[%s1839 + $0x410] sm:$0xff]
          %v7190 = vld [vmem:[%s1839 + $0x418] sm:$0xff]
          %v7191 = vld [vmem:[%s1839 + $0x420] sm:$0xff]
          %v7192 = vld [vmem:[%s1839 + $0x428] sm:$0xff]
          %v7193 = vld [vmem:[%s1839 + $0x430] sm:$0xff]
          %v7194 = vld [vmem:[%s1839 + $0x438] sm:$0xff]
          %v7195 = vld [vmem:[%s1839 + $0x440] sm:$0xff]
          %v7196 = vld [vmem:[%s1839 + $0x448] sm:$0xff]
          %v7197 = vld [vmem:[%s1839 + $0x450] sm:$0xff]
          %v7198 = vld [vmem:[%s1839 + $0x458] sm:$0xff]
          %v7199 = vld [vmem:[%s1839 + $0x460] sm:$0xff]
          %v7200 = vld [vmem:[%s1839 + $0x468] sm:$0xff]
          %v7201 = vld [vmem:[%s1839 + $0x470] sm:$0xff]
          %v7202 = vld [vmem:[%s1839 + $0x478] sm:$0xff]
          %v7203 = vld [vmem:[%s1839 + $0x480] sm:$0xff]
          %v7204 = vld [vmem:[%s1839 + $0x488] sm:$0xff]
          %v7205 = vld [vmem:[%s1839 + $0x490] sm:$0xff]
          %v7206 = vld [vmem:[%s1839 + $0x498] sm:$0xff]
          %v7207 = vld [vmem:[%s1839 + $0x4a0] sm:$0xff]
          %v7208 = vld [vmem:[%s1839 + $0x4a8] sm:$0xff]
          %v7209 = vld [vmem:[%s1839 + $0x4b0] sm:$0xff]
          %v7210 = vld [vmem:[%s1839 + $0x4b8] sm:$0xff]
          %v7211 = vld [vmem:[%s1839 + $0x4c0] sm:$0xff]
          %v7212 = vld [vmem:[%s1839 + $0x4c8] sm:$0xff]
          %v7213 = vld [vmem:[%s1839 + $0x4d0] sm:$0xff]
          %v7214 = vld [vmem:[%s1839 + $0x4d8] sm:$0xff]
          %v7215 = vld [vmem:[%s1839 + $0x4e0] sm:$0xff]
          %v7216 = vld [vmem:[%s1839 + $0x4e8] sm:$0xff]
          %v7217 = vld [vmem:[%s1839 + $0x4f0] sm:$0xff]
          %v7218 = vld [vmem:[%s1839 + $0x4f8] sm:$0xff]
          %v7379 = vunpack.c.l.b16 %v7059
          %v7380 = vunpack.c.h.b16 %v7059
          %v7381 = vunpack.c.l.b16 %v7060
          %v7382 = vunpack.c.h.b16 %v7060
          %v7383 = vunpack.c.l.b16 %v7061
          %v7384 = vunpack.c.h.b16 %v7061
          %v7385 = vunpack.c.l.b16 %v7062
          %v7386 = vunpack.c.h.b16 %v7062
          %v7387 = vunpack.c.l.b16 %v7063
          %v7388 = vunpack.c.h.b16 %v7063
          %v7389 = vunpack.c.l.b16 %v7064
          %v7390 = vunpack.c.h.b16 %v7064
          %v7391 = vunpack.c.l.b16 %v7065
          %v7392 = vunpack.c.h.b16 %v7065
          %v7393 = vunpack.c.l.b16 %v7066
          %v7394 = vunpack.c.h.b16 %v7066
          %v7395 = vunpack.c.l.b16 %v7067
          %v7396 = vunpack.c.h.b16 %v7067
          %v7397 = vunpack.c.l.b16 %v7068
          %v7398 = vunpack.c.h.b16 %v7068
          %v7399 = vunpack.c.l.b16 %v7069
          %v7400 = vunpack.c.h.b16 %v7069
          %v7401 = vunpack.c.l.b16 %v7070
          %v7402 = vunpack.c.h.b16 %v7070
          %v7403 = vunpack.c.l.b16 %v7071
          %v7404 = vunpack.c.h.b16 %v7071
          %v7405 = vunpack.c.l.b16 %v7072
          %v7406 = vunpack.c.h.b16 %v7072
          %v7407 = vunpack.c.l.b16 %v7073
          %v7408 = vunpack.c.h.b16 %v7073
          %v7409 = vunpack.c.l.b16 %v7074
          %v7410 = vunpack.c.h.b16 %v7074
          %v7411 = vunpack.c.l.b16 %v7075
          %v7412 = vunpack.c.h.b16 %v7075
          %v7413 = vunpack.c.l.b16 %v7076
          %v7414 = vunpack.c.h.b16 %v7076
          %v7415 = vunpack.c.l.b16 %v7077
          %v7416 = vunpack.c.h.b16 %v7077
          %v7417 = vunpack.c.l.b16 %v7078
          %v7418 = vunpack.c.h.b16 %v7078
          %v7419 = vunpack.c.l.b16 %v7079
          %v7420 = vunpack.c.h.b16 %v7079
          %v7421 = vunpack.c.l.b16 %v7080
          %v7422 = vunpack.c.h.b16 %v7080
          %v7423 = vunpack.c.l.b16 %v7081
          %v7424 = vunpack.c.h.b16 %v7081
          %v7425 = vunpack.c.l.b16 %v7082
          %v7426 = vunpack.c.h.b16 %v7082
          %v7427 = vunpack.c.l.b16 %v7083
          %v7428 = vunpack.c.h.b16 %v7083
          %v7429 = vunpack.c.l.b16 %v7084
          %v7430 = vunpack.c.h.b16 %v7084
          %v7431 = vunpack.c.l.b16 %v7085
          %v7432 = vunpack.c.h.b16 %v7085
          %v7433 = vunpack.c.l.b16 %v7086
          %v7434 = vunpack.c.h.b16 %v7086
          %v7435 = vunpack.c.l.b16 %v7087
          %v7436 = vunpack.c.h.b16 %v7087
          %v7437 = vunpack.c.l.b16 %v7088
          %v7438 = vunpack.c.h.b16 %v7088
          %v7439 = vunpack.c.l.b16 %v7089
          %v7440 = vunpack.c.h.b16 %v7089
          %v7441 = vunpack.c.l.b16 %v7090
          %v7442 = vunpack.c.h.b16 %v7090
          %v7443 = vunpack.c.l.b16 %v7091
          %v7444 = vunpack.c.h.b16 %v7091
          %v7445 = vunpack.c.l.b16 %v7092
          %v7446 = vunpack.c.h.b16 %v7092
          %v7447 = vunpack.c.l.b16 %v7093
          %v7448 = vunpack.c.h.b16 %v7093
          %v7449 = vunpack.c.l.b16 %v7094
          %v7450 = vunpack.c.h.b16 %v7094
          %v7451 = vunpack.c.l.b16 %v7095
          %v7452 = vunpack.c.h.b16 %v7095
          %v7453 = vunpack.c.l.b16 %v7096
          %v7454 = vunpack.c.h.b16 %v7096
          %v7455 = vunpack.c.l.b16 %v7097
          %v7456 = vunpack.c.h.b16 %v7097
          %v7457 = vunpack.c.l.b16 %v7098
          %v7458 = vunpack.c.h.b16 %v7098
          %v7459 = vunpack.c.l.b16 %v7099
          %v7460 = vunpack.c.h.b16 %v7099
          %v7461 = vunpack.c.l.b16 %v7100
          %v7462 = vunpack.c.h.b16 %v7100
          %v7463 = vunpack.c.l.b16 %v7101
          %v7464 = vunpack.c.h.b16 %v7101
          %v7465 = vunpack.c.l.b16 %v7102
          %v7466 = vunpack.c.h.b16 %v7102
          %v7467 = vunpack.c.l.b16 %v7103
          %v7468 = vunpack.c.h.b16 %v7103
          %v7469 = vunpack.c.l.b16 %v7104
          %v7470 = vunpack.c.h.b16 %v7104
          %v7471 = vunpack.c.l.b16 %v7105
          %v7472 = vunpack.c.h.b16 %v7105
          %v7473 = vunpack.c.l.b16 %v7106
          %v7474 = vunpack.c.h.b16 %v7106
          %v7475 = vunpack.c.l.b16 %v7107
          %v7476 = vunpack.c.h.b16 %v7107
          %v7477 = vunpack.c.l.b16 %v7108
          %v7478 = vunpack.c.h.b16 %v7108
          %v7479 = vunpack.c.l.b16 %v7109
          %v7480 = vunpack.c.h.b16 %v7109
          %v7481 = vunpack.c.l.b16 %v7110
          %v7482 = vunpack.c.h.b16 %v7110
          %v7483 = vunpack.c.l.b16 %v7111
          %v7484 = vunpack.c.h.b16 %v7111
          %v7485 = vunpack.c.l.b16 %v7112
          %v7486 = vunpack.c.h.b16 %v7112
          %v7487 = vunpack.c.l.b16 %v7113
          %v7488 = vunpack.c.h.b16 %v7113
          %v7489 = vunpack.c.l.b16 %v7114
          %v7490 = vunpack.c.h.b16 %v7114
          %v7491 = vunpack.c.l.b16 %v7115
          %v7492 = vunpack.c.h.b16 %v7115
          %v7493 = vunpack.c.l.b16 %v7116
          %v7494 = vunpack.c.h.b16 %v7116
          %v7495 = vunpack.c.l.b16 %v7117
          %v7496 = vunpack.c.h.b16 %v7117
          %v7497 = vunpack.c.l.b16 %v7118
          %v7498 = vunpack.c.h.b16 %v7118
          %v7499 = vunpack.c.l.b16 %v7119
          %v7500 = vunpack.c.h.b16 %v7119
          %v7501 = vunpack.c.l.b16 %v7120
          %v7502 = vunpack.c.h.b16 %v7120
          %v7503 = vunpack.c.l.b16 %v7121
          %v7504 = vunpack.c.h.b16 %v7121
          %v7505 = vunpack.c.l.b16 %v7122
          %v7506 = vunpack.c.h.b16 %v7122
          %v7507 = vunpack.c.l.b16 %v7123
          %v7508 = vunpack.c.h.b16 %v7123
          %v7509 = vunpack.c.l.b16 %v7124
          %v7510 = vunpack.c.h.b16 %v7124
          %v7511 = vunpack.c.l.b16 %v7125
          %v7512 = vunpack.c.h.b16 %v7125
          %v7513 = vunpack.c.l.b16 %v7126
          %v7514 = vunpack.c.h.b16 %v7126
          %v7515 = vunpack.c.l.b16 %v7127
          %v7516 = vunpack.c.h.b16 %v7127
          %v7517 = vunpack.c.l.b16 %v7128
          %v7518 = vunpack.c.h.b16 %v7128
          %v7519 = vunpack.c.l.b16 %v7129
          %v7520 = vunpack.c.h.b16 %v7129
          %v7521 = vunpack.c.l.b16 %v7130
          %v7522 = vunpack.c.h.b16 %v7130
          %v7523 = vunpack.c.l.b16 %v7131
          %v7524 = vunpack.c.h.b16 %v7131
          %v7525 = vunpack.c.l.b16 %v7132
          %v7526 = vunpack.c.h.b16 %v7132
          %v7527 = vunpack.c.l.b16 %v7133
          %v7528 = vunpack.c.h.b16 %v7133
          %v7529 = vunpack.c.l.b16 %v7134
          %v7530 = vunpack.c.h.b16 %v7134
          %v7531 = vunpack.c.l.b16 %v7135
          %v7532 = vunpack.c.h.b16 %v7135
          %v7533 = vunpack.c.l.b16 %v7136
          %v7534 = vunpack.c.h.b16 %v7136
          %v7535 = vunpack.c.l.b16 %v7137
          %v7536 = vunpack.c.h.b16 %v7137
          %v7537 = vunpack.c.l.b16 %v7138
          %v7538 = vunpack.c.h.b16 %v7138
          %v7539 = vunpack.c.l.b16 %v7139
          %v7540 = vunpack.c.h.b16 %v7139
          %v7541 = vunpack.c.l.b16 %v7140
          %v7542 = vunpack.c.h.b16 %v7140
          %v7543 = vunpack.c.l.b16 %v7141
          %v7544 = vunpack.c.h.b16 %v7141
          %v7545 = vunpack.c.l.b16 %v7142
          %v7546 = vunpack.c.h.b16 %v7142
          %v7547 = vunpack.c.l.b16 %v7143
          %v7548 = vunpack.c.h.b16 %v7143
          %v7549 = vunpack.c.l.b16 %v7144
          %v7550 = vunpack.c.h.b16 %v7144
          %v7551 = vunpack.c.l.b16 %v7145
          %v7552 = vunpack.c.h.b16 %v7145
          %v7553 = vunpack.c.l.b16 %v7146
          %v7554 = vunpack.c.h.b16 %v7146
          %v7555 = vunpack.c.l.b16 %v7147
          %v7556 = vunpack.c.h.b16 %v7147
          %v7557 = vunpack.c.l.b16 %v7148
          %v7558 = vunpack.c.h.b16 %v7148
          %v7559 = vunpack.c.l.b16 %v7149
          %v7560 = vunpack.c.h.b16 %v7149
          %v7561 = vunpack.c.l.b16 %v7150
          %v7562 = vunpack.c.h.b16 %v7150
          %v7563 = vunpack.c.l.b16 %v7151
          %v7564 = vunpack.c.h.b16 %v7151
          %v7565 = vunpack.c.l.b16 %v7152
          %v7566 = vunpack.c.h.b16 %v7152
          %v7567 = vunpack.c.l.b16 %v7153
          %v7568 = vunpack.c.h.b16 %v7153
          %v7569 = vunpack.c.l.b16 %v7154
          %v7570 = vunpack.c.h.b16 %v7154
          %v7571 = vunpack.c.l.b16 %v7155
          %v7572 = vunpack.c.h.b16 %v7155
          %v7573 = vunpack.c.l.b16 %v7156
          %v7574 = vunpack.c.h.b16 %v7156
          %v7575 = vunpack.c.l.b16 %v7157
          %v7576 = vunpack.c.h.b16 %v7157
          %v7577 = vunpack.c.l.b16 %v7158
          %v7578 = vunpack.c.h.b16 %v7158
          %v7579 = vunpack.c.l.b16 %v7159
          %v7580 = vunpack.c.h.b16 %v7159
          %v7581 = vunpack.c.l.b16 %v7160
          %v7582 = vunpack.c.h.b16 %v7160
          %v7583 = vunpack.c.l.b16 %v7161
          %v7584 = vunpack.c.h.b16 %v7161
          %v7585 = vunpack.c.l.b16 %v7162
          %v7586 = vunpack.c.h.b16 %v7162
          %v7587 = vunpack.c.l.b16 %v7163
          %v7588 = vunpack.c.h.b16 %v7163
          %v7589 = vunpack.c.l.b16 %v7164
          %v7590 = vunpack.c.h.b16 %v7164
          %v7591 = vunpack.c.l.b16 %v7165
          %v7592 = vunpack.c.h.b16 %v7165
          %v7593 = vunpack.c.l.b16 %v7166
          %v7594 = vunpack.c.h.b16 %v7166
          %v7595 = vunpack.c.l.b16 %v7167
          %v7596 = vunpack.c.h.b16 %v7167
          %v7597 = vunpack.c.l.b16 %v7168
          %v7598 = vunpack.c.h.b16 %v7168
          %v7599 = vunpack.c.l.b16 %v7169
          %v7600 = vunpack.c.h.b16 %v7169
          %v7601 = vunpack.c.l.b16 %v7170
          %v7602 = vunpack.c.h.b16 %v7170
          %v7603 = vunpack.c.l.b16 %v7171
          %v7604 = vunpack.c.h.b16 %v7171
          %v7605 = vunpack.c.l.b16 %v7172
          %v7606 = vunpack.c.h.b16 %v7172
          %v7607 = vunpack.c.l.b16 %v7173
          %v7608 = vunpack.c.h.b16 %v7173
          %v7609 = vunpack.c.l.b16 %v7174
          %v7610 = vunpack.c.h.b16 %v7174
          %v7611 = vunpack.c.l.b16 %v7175
          %v7612 = vunpack.c.h.b16 %v7175
          %v7613 = vunpack.c.l.b16 %v7176
          %v7614 = vunpack.c.h.b16 %v7176
          %v7615 = vunpack.c.l.b16 %v7177
          %v7616 = vunpack.c.h.b16 %v7177
          %v7617 = vunpack.c.l.b16 %v7178
          %v7618 = vunpack.c.h.b16 %v7178
          %v7619 = vunpack.c.l.b16 %v7179
          %v7620 = vunpack.c.h.b16 %v7179
          %v7621 = vunpack.c.l.b16 %v7180
          %v7622 = vunpack.c.h.b16 %v7180
          %v7623 = vunpack.c.l.b16 %v7181
          %v7624 = vunpack.c.h.b16 %v7181
          %v7625 = vunpack.c.l.b16 %v7182
          %v7626 = vunpack.c.h.b16 %v7182
          %v7627 = vunpack.c.l.b16 %v7183
          %v7628 = vunpack.c.h.b16 %v7183
          %v7629 = vunpack.c.l.b16 %v7184
          %v7630 = vunpack.c.h.b16 %v7184
          %v7631 = vunpack.c.l.b16 %v7185
          %v7632 = vunpack.c.h.b16 %v7185
          %v7633 = vunpack.c.l.b16 %v7186
          %v7634 = vunpack.c.h.b16 %v7186
          %v7635 = vunpack.c.l.b16 %v7187
          %v7636 = vunpack.c.h.b16 %v7187
          %v7637 = vunpack.c.l.b16 %v7188
          %v7638 = vunpack.c.h.b16 %v7188
          %v7639 = vunpack.c.l.b16 %v7189
          %v7640 = vunpack.c.h.b16 %v7189
          %v7641 = vunpack.c.l.b16 %v7190
          %v7642 = vunpack.c.h.b16 %v7190
          %v7643 = vunpack.c.l.b16 %v7191
          %v7644 = vunpack.c.h.b16 %v7191
          %v7645 = vunpack.c.l.b16 %v7192
          %v7646 = vunpack.c.h.b16 %v7192
          %v7647 = vunpack.c.l.b16 %v7193
          %v7648 = vunpack.c.h.b16 %v7193
          %v7649 = vunpack.c.l.b16 %v7194
          %v7650 = vunpack.c.h.b16 %v7194
          %v7651 = vunpack.c.l.b16 %v7195
          %v7652 = vunpack.c.h.b16 %v7195
          %v7653 = vunpack.c.l.b16 %v7196
          %v7654 = vunpack.c.h.b16 %v7196
          %v7655 = vunpack.c.l.b16 %v7197
          %v7656 = vunpack.c.h.b16 %v7197
          %v7657 = vunpack.c.l.b16 %v7198
          %v7658 = vunpack.c.h.b16 %v7198
          %v7659 = vunpack.c.l.b16 %v7199
          %v7660 = vunpack.c.h.b16 %v7199
          %v7661 = vunpack.c.l.b16 %v7200
          %v7662 = vunpack.c.h.b16 %v7200
          %v7663 = vunpack.c.l.b16 %v7201
          %v7664 = vunpack.c.h.b16 %v7201
          %v7665 = vunpack.c.l.b16 %v7202
          %v7666 = vunpack.c.h.b16 %v7202
          %v7667 = vunpack.c.l.b16 %v7203
          %v7668 = vunpack.c.h.b16 %v7203
          %v7669 = vunpack.c.l.b16 %v7204
          %v7670 = vunpack.c.h.b16 %v7204
          %v7671 = vunpack.c.l.b16 %v7205
          %v7672 = vunpack.c.h.b16 %v7205
          %v7673 = vunpack.c.l.b16 %v7206
          %v7674 = vunpack.c.h.b16 %v7206
          %v7675 = vunpack.c.l.b16 %v7207
          %v7676 = vunpack.c.h.b16 %v7207
          %v7677 = vunpack.c.l.b16 %v7208
          %v7678 = vunpack.c.h.b16 %v7208
          %v7679 = vunpack.c.l.b16 %v7209
          %v7680 = vunpack.c.h.b16 %v7209
          %v7681 = vunpack.c.l.b16 %v7210
          %v7682 = vunpack.c.h.b16 %v7210
          %v7683 = vunpack.c.l.b16 %v7211
          %v7684 = vunpack.c.h.b16 %v7211
          %v7685 = vunpack.c.l.b16 %v7212
          %v7686 = vunpack.c.h.b16 %v7212
          %v7687 = vunpack.c.l.b16 %v7213
          %v7688 = vunpack.c.h.b16 %v7213
          %v7689 = vunpack.c.l.b16 %v7214
          %v7690 = vunpack.c.h.b16 %v7214
          %v7691 = vunpack.c.l.b16 %v7215
          %v7692 = vunpack.c.h.b16 %v7215
          %v7693 = vunpack.c.l.b16 %v7216
          %v7694 = vunpack.c.h.b16 %v7216
          %v7695 = vunpack.c.l.b16 %v7217
          %v7696 = vunpack.c.h.b16 %v7217
          %v7697 = vunpack.c.l.b16 %v7218
          %v7698 = vunpack.c.h.b16 %v7218
          %v7699 = vpack.c.b16 %v7383, %v7379
          %v7700 = vpack.c.b16 %v7384, %v7380
          %v7701 = vpack.c.b16 %v7385, %v7381
          %v7702 = vpack.c.b16 %v7386, %v7382
          %v7703 = vpack.c.b16 %v7391, %v7387
          %v7704 = vpack.c.b16 %v7392, %v7388
          %v7705 = vpack.c.b16 %v7393, %v7389
          %v7706 = vpack.c.b16 %v7394, %v7390
          %v7707 = vpack.c.b16 %v7399, %v7395
          %v7708 = vpack.c.b16 %v7400, %v7396
          %v7709 = vpack.c.b16 %v7401, %v7397
          %v7710 = vpack.c.b16 %v7402, %v7398
          %v7711 = vpack.c.b16 %v7407, %v7403
          %v7712 = vpack.c.b16 %v7408, %v7404
          %v7713 = vpack.c.b16 %v7409, %v7405
          %v7714 = vpack.c.b16 %v7410, %v7406
          %v7715 = vpack.c.b16 %v7415, %v7411
          %v7716 = vpack.c.b16 %v7416, %v7412
          %v7717 = vpack.c.b16 %v7417, %v7413
          %v7718 = vpack.c.b16 %v7418, %v7414
          %v7719 = vpack.c.b16 %v7423, %v7419
          %v7720 = vpack.c.b16 %v7424, %v7420
          %v7721 = vpack.c.b16 %v7425, %v7421
          %v7722 = vpack.c.b16 %v7426, %v7422
          %v7723 = vpack.c.b16 %v7431, %v7427
          %v7724 = vpack.c.b16 %v7432, %v7428
          %v7725 = vpack.c.b16 %v7433, %v7429
          %v7726 = vpack.c.b16 %v7434, %v7430
          %v7727 = vpack.c.b16 %v7439, %v7435
          %v7728 = vpack.c.b16 %v7440, %v7436
          %v7729 = vpack.c.b16 %v7441, %v7437
          %v7730 = vpack.c.b16 %v7442, %v7438
          %v7731 = vpack.c.b16 %v7447, %v7443
          %v7732 = vpack.c.b16 %v7448, %v7444
          %v7733 = vpack.c.b16 %v7449, %v7445
          %v7734 = vpack.c.b16 %v7450, %v7446
          %v7735 = vpack.c.b16 %v7455, %v7451
          %v7736 = vpack.c.b16 %v7456, %v7452
          %v7737 = vpack.c.b16 %v7457, %v7453
          %v7738 = vpack.c.b16 %v7458, %v7454
          %v7739 = vpack.c.b16 %v7463, %v7459
          %v7740 = vpack.c.b16 %v7464, %v7460
          %v7741 = vpack.c.b16 %v7465, %v7461
          %v7742 = vpack.c.b16 %v7466, %v7462
          %v7743 = vpack.c.b16 %v7471, %v7467
          %v7744 = vpack.c.b16 %v7472, %v7468
          %v7745 = vpack.c.b16 %v7473, %v7469
          %v7746 = vpack.c.b16 %v7474, %v7470
          %v7747 = vpack.c.b16 %v7479, %v7475
          %v7748 = vpack.c.b16 %v7480, %v7476
          %v7749 = vpack.c.b16 %v7481, %v7477
          %v7750 = vpack.c.b16 %v7482, %v7478
          %v7751 = vpack.c.b16 %v7487, %v7483
          %v7752 = vpack.c.b16 %v7488, %v7484
          %v7753 = vpack.c.b16 %v7489, %v7485
          %v7754 = vpack.c.b16 %v7490, %v7486
          %v7755 = vpack.c.b16 %v7495, %v7491
          %v7756 = vpack.c.b16 %v7496, %v7492
          %v7757 = vpack.c.b16 %v7497, %v7493
          %v7758 = vpack.c.b16 %v7498, %v7494
          %v7759 = vpack.c.b16 %v7503, %v7499
          %v7760 = vpack.c.b16 %v7504, %v7500
          %v7761 = vpack.c.b16 %v7505, %v7501
          %v7762 = vpack.c.b16 %v7506, %v7502
          %v7763 = vpack.c.b16 %v7511, %v7507
          %v7764 = vpack.c.b16 %v7512, %v7508
          %v7765 = vpack.c.b16 %v7513, %v7509
          %v7766 = vpack.c.b16 %v7514, %v7510
          %v7767 = vpack.c.b16 %v7519, %v7515
          %v7768 = vpack.c.b16 %v7520, %v7516
          %v7769 = vpack.c.b16 %v7521, %v7517
          %v7770 = vpack.c.b16 %v7522, %v7518
          %v7771 = vpack.c.b16 %v7527, %v7523
          %v7772 = vpack.c.b16 %v7528, %v7524
          %v7773 = vpack.c.b16 %v7529, %v7525
          %v7774 = vpack.c.b16 %v7530, %v7526
          %v7775 = vpack.c.b16 %v7535, %v7531
          %v7776 = vpack.c.b16 %v7536, %v7532
          %v7777 = vpack.c.b16 %v7537, %v7533
          %v7778 = vpack.c.b16 %v7538, %v7534
          %v7779 = vpack.c.b16 %v7543, %v7539
          %v7780 = vpack.c.b16 %v7544, %v7540
          %v7781 = vpack.c.b16 %v7545, %v7541
          %v7782 = vpack.c.b16 %v7546, %v7542
          %v7783 = vpack.c.b16 %v7551, %v7547
          %v7784 = vpack.c.b16 %v7552, %v7548
          %v7785 = vpack.c.b16 %v7553, %v7549
          %v7786 = vpack.c.b16 %v7554, %v7550
          %v7787 = vpack.c.b16 %v7559, %v7555
          %v7788 = vpack.c.b16 %v7560, %v7556
          %v7789 = vpack.c.b16 %v7561, %v7557
          %v7790 = vpack.c.b16 %v7562, %v7558
          %v7791 = vpack.c.b16 %v7567, %v7563
          %v7792 = vpack.c.b16 %v7568, %v7564
          %v7793 = vpack.c.b16 %v7569, %v7565
          %v7794 = vpack.c.b16 %v7570, %v7566
          %v7795 = vpack.c.b16 %v7575, %v7571
          %v7796 = vpack.c.b16 %v7576, %v7572
          %v7797 = vpack.c.b16 %v7577, %v7573
          %v7798 = vpack.c.b16 %v7578, %v7574
          %v7799 = vpack.c.b16 %v7583, %v7579
          %v7800 = vpack.c.b16 %v7584, %v7580
          %v7801 = vpack.c.b16 %v7585, %v7581
          %v7802 = vpack.c.b16 %v7586, %v7582
          %v7803 = vpack.c.b16 %v7591, %v7587
          %v7804 = vpack.c.b16 %v7592, %v7588
          %v7805 = vpack.c.b16 %v7593, %v7589
          %v7806 = vpack.c.b16 %v7594, %v7590
          %v7807 = vpack.c.b16 %v7599, %v7595
          %v7808 = vpack.c.b16 %v7600, %v7596
          %v7809 = vpack.c.b16 %v7601, %v7597
          %v7810 = vpack.c.b16 %v7602, %v7598
          %v7811 = vpack.c.b16 %v7607, %v7603
          %v7812 = vpack.c.b16 %v7608, %v7604
          %v7813 = vpack.c.b16 %v7609, %v7605
          %v7814 = vpack.c.b16 %v7610, %v7606
          %v7815 = vpack.c.b16 %v7615, %v7611
          %v7816 = vpack.c.b16 %v7616, %v7612
          %v7817 = vpack.c.b16 %v7617, %v7613
          %v7818 = vpack.c.b16 %v7618, %v7614
          %v7819 = vpack.c.b16 %v7623, %v7619
          %v7820 = vpack.c.b16 %v7624, %v7620
          %v7821 = vpack.c.b16 %v7625, %v7621
          %v7822 = vpack.c.b16 %v7626, %v7622
          %v7823 = vpack.c.b16 %v7631, %v7627
          %v7824 = vpack.c.b16 %v7632, %v7628
          %v7825 = vpack.c.b16 %v7633, %v7629
          %v7826 = vpack.c.b16 %v7634, %v7630
          %v7827 = vpack.c.b16 %v7639, %v7635
          %v7828 = vpack.c.b16 %v7640, %v7636
          %v7829 = vpack.c.b16 %v7641, %v7637
          %v7830 = vpack.c.b16 %v7642, %v7638
          %v7831 = vpack.c.b16 %v7647, %v7643
          %v7832 = vpack.c.b16 %v7648, %v7644
          %v7833 = vpack.c.b16 %v7649, %v7645
          %v7834 = vpack.c.b16 %v7650, %v7646
          %v7835 = vpack.c.b16 %v7655, %v7651
          %v7836 = vpack.c.b16 %v7656, %v7652
          %v7837 = vpack.c.b16 %v7657, %v7653
          %v7838 = vpack.c.b16 %v7658, %v7654
          %v7839 = vpack.c.b16 %v7663, %v7659
          %v7840 = vpack.c.b16 %v7664, %v7660
          %v7841 = vpack.c.b16 %v7665, %v7661
          %v7842 = vpack.c.b16 %v7666, %v7662
          %v7843 = vpack.c.b16 %v7671, %v7667
          %v7844 = vpack.c.b16 %v7672, %v7668
          %v7845 = vpack.c.b16 %v7673, %v7669
          %v7846 = vpack.c.b16 %v7674, %v7670
          %v7847 = vpack.c.b16 %v7679, %v7675
          %v7848 = vpack.c.b16 %v7680, %v7676
          %v7849 = vpack.c.b16 %v7681, %v7677
          %v7850 = vpack.c.b16 %v7682, %v7678
          %v7851 = vpack.c.b16 %v7687, %v7683
          %v7852 = vpack.c.b16 %v7688, %v7684
          %v7853 = vpack.c.b16 %v7689, %v7685
          %v7854 = vpack.c.b16 %v7690, %v7686
          %v7855 = vpack.c.b16 %v7695, %v7691
          %v7856 = vpack.c.b16 %v7696, %v7692
          %v7857 = vpack.c.b16 %v7697, %v7693
          %v7858 = vpack.c.b16 %v7698, %v7694
          %8019 = vmatprep.subr.bf16.mxu0 %v7700
          %8020 = vmatpush1.bf16.msra.mxu0 %v7699
          %8021 = vmatprep.subr.bf16.mxu0 %v7704
          %8022 = vmatpush1.bf16.msra.mxu0 %v7703
          %8023 = vmatprep.subr.bf16.mxu0 %v7708
          %8024 = vmatpush1.bf16.msra.mxu0 %v7707
          %8025 = vmatprep.subr.bf16.mxu0 %v7712
          %8026 = vmatpush1.bf16.msra.mxu0 %v7711
          %8027 = vmatprep.subr.bf16.mxu0 %v7716
          %8028 = vmatpush1.bf16.msra.mxu0 %v7715
          %8029 = vmatprep.subr.bf16.mxu0 %v7720
          %8030 = vmatpush1.bf16.msra.mxu0 %v7719
          %8031 = vmatprep.subr.bf16.mxu0 %v7724
          %8032 = vmatpush1.bf16.msra.mxu0 %v7723
          %8033 = vmatprep.subr.bf16.mxu0 %v7728
          %8034 = vmatpush1.bf16.msra.mxu0 %v7727
          %8035 = vmatprep.subr.bf16.mxu0 %v7732
          %8036 = vmatpush1.bf16.msra.mxu0 %v7731
          %8037 = vmatprep.subr.bf16.mxu0 %v7736
          %8038 = vmatpush1.bf16.msra.mxu0 %v7735
          %8039 = vmatprep.subr.bf16.mxu0 %v7740
          %8040 = vmatpush1.bf16.msra.mxu0 %v7739
          %8041 = vmatprep.subr.bf16.mxu0 %v7744
          %8042 = vmatpush1.bf16.msra.mxu0 %v7743
          %8043 = vmatprep.subr.bf16.mxu0 %v7748
          %8044 = vmatpush1.bf16.msra.mxu0 %v7747
          %8045 = vmatprep.subr.bf16.mxu0 %v7752
          %8046 = vmatpush1.bf16.msra.mxu0 %v7751
          %8047 = vmatprep.subr.bf16.mxu0 %v7756
          %8048 = vmatpush1.bf16.msra.mxu0 %v7755
          %8049 = vmatprep.subr.bf16.mxu0 %v7760
          %8050 = vmatpush1.bf16.msra.mxu0 %v7759
          %8051 = vmatprep.mubr.bf16.mxu0 %v7055
          %8052 = vmatmul.mubr.bf16.gmra.mrb[0].mxu0 %v7054
          %v8053 = vpop.f32.mrb[0].mxu0
          %v8054 = vadd.f32 0.0, %v8053
          %v8055 = vpop.f32.mrb[0].mxu0
          %v8056 = vadd.f32 0.0, %v8055
          %v8057 = vpop.f32.mrb[0].mxu0
          %v8058 = vpop.f32.mrb[0].mxu0
          %8059 = vdwg.mxu0
          %8060 = vmatprep.subr.bf16.mxu0 %v7764
          %8061 = vmatpush1.bf16.msra.mxu0 %v7763
          %8062 = vmatprep.subr.bf16.mxu0 %v7768
          %8063 = vmatpush1.bf16.msra.mxu0 %v7767
          %8064 = vmatprep.subr.bf16.mxu0 %v7772
          %8065 = vmatpush1.bf16.msra.mxu0 %v7771
          %8066 = vmatprep.subr.bf16.mxu0 %v7776
          %8067 = vmatpush1.bf16.msra.mxu0 %v7775
          %8068 = vmatprep.subr.bf16.mxu0 %v7780
          %8069 = vmatpush1.bf16.msra.mxu0 %v7779
          %8070 = vmatprep.subr.bf16.mxu0 %v7784
          %8071 = vmatpush1.bf16.msra.mxu0 %v7783
          %8072 = vmatprep.subr.bf16.mxu0 %v7788
          %8073 = vmatpush1.bf16.msra.mxu0 %v7787
          %8074 = vmatprep.subr.bf16.mxu0 %v7792
          %8075 = vmatpush1.bf16.msra.mxu0 %v7791
          %8076 = vmatprep.subr.bf16.mxu0 %v7796
          %8077 = vmatpush1.bf16.msra.mxu0 %v7795
          %8078 = vmatprep.subr.bf16.mxu0 %v7800
          %8079 = vmatpush1.bf16.msra.mxu0 %v7799
          %8080 = vmatprep.subr.bf16.mxu0 %v7804
          %8081 = vmatpush1.bf16.msra.mxu0 %v7803
          %8082 = vmatprep.subr.bf16.mxu0 %v7808
          %8083 = vmatpush1.bf16.msra.mxu0 %v7807
          %8084 = vmatprep.subr.bf16.mxu0 %v7812
          %8085 = vmatpush1.bf16.msra.mxu0 %v7811
          %8086 = vmatprep.subr.bf16.mxu0 %v7816
          %8087 = vmatpush1.bf16.msra.mxu0 %v7815
          %8088 = vmatprep.subr.bf16.mxu0 %v7820
          %8089 = vmatpush1.bf16.msra.mxu0 %v7819
          %8090 = vmatprep.subr.bf16.mxu0 %v7824
          %8091 = vmatpush1.bf16.msra.mxu0 %v7823
          %8092 = vmatprep.mubr.bf16.mxu0 %v7057
          %8093 = vmatmul.mubr.bf16.gmra.mrb[0].mxu0 %v7056
          %v8094 = vpop.f32.mrb[0].mxu0
          %v8095 = vadd.f32 %v8054, %v8094
          %v8096 = vpop.f32.mrb[0].mxu0
          %v8097 = vadd.f32 %v8056, %v8096
          %v8098 = vpop.f32.mrb[0].mxu0
          %v8099 = vpop.f32.mrb[0].mxu0
          %8100 = vdwg.mxu0
          %8101 = vmatprep.subr.bf16.mxu0 %v7828
          %8102 = vmatpush1.bf16.msra.mxu0 %v7827
          %8103 = vmatprep.subr.bf16.mxu0 %v7832
          %8104 = vmatpush1.bf16.msra.mxu0 %v7831
          %8105 = vmatprep.subr.bf16.mxu0 %v7836
          %8106 = vmatpush1.bf16.msra.mxu0 %v7835
          %8107 = vmatprep.subr.bf16.mxu0 %v7840
          %8108 = vmatpush1.bf16.msra.mxu0 %v7839
          %8109 = vmatprep.subr.bf16.mxu0 %v7844
          %8110 = vmatpush1.bf16.msra.mxu0 %v7843
          %8111 = vmatprep.subr.bf16.mxu0 %v7848
          %8112 = vmatpush1.bf16.msra.mxu0 %v7847
          %8113 = vmatprep.subr.bf16.mxu0 %v7852
          %8114 = vmatpush1.bf16.msra.mxu0 %v7851
          %8115 = vmatprep.subr.bf16.mxu0 %v7856
          %8116 = vmatpush1.bf16.msra.mxu0 %v7855
          %8117 = vmatprep.subr.bf16.mxu0 0
          %8118 = vmatpush1.bf16.msra.mxu0 0
          %8119 = vmatprep.subr.bf16.mxu0 0
          %8120 = vmatpush1.bf16.msra.mxu0 0
          %8121 = vmatprep.subr.bf16.mxu0 0
          %8122 = vmatpush1.bf16.msra.mxu0 0
          %8123 = vmatprep.subr.bf16.mxu0 0
          %8124 = vmatpush1.bf16.msra.mxu0 0
          %8125 = vmatprep.subr.bf16.mxu0 0
          %8126 = vmatpush1.bf16.msra.mxu0 0
          %8127 = vmatprep.subr.bf16.mxu0 0
          %8128 = vmatpush1.bf16.msra.mxu0 0
          %8129 = vmatprep.subr.bf16.mxu0 0
          %8130 = vmatpush1.bf16.msra.mxu0 0
          %8131 = vmatprep.subr.bf16.mxu0 0
          %8132 = vmatpush1.bf16.msra.mxu0 0
          %8133 = vmatprep.mubr.bf16.mxu0 0
          %8134 = vmatmul.mubr.bf16.gmra.mrb[0].mxu0 %v7058
          %v8135 = vpop.f32.mrb[0].mxu0
          %v8136 = vadd.f32 %v8095, %v8135
          %v8137 = vpop.f32.mrb[0].mxu0
          %v8138 = vadd.f32 %v8097, %v8137
          %v8139 = vpop.f32.mrb[0].mxu0
          %v8140 = vpop.f32.mrb[0].mxu0
          %8141 = vdwg.mxu0
          %8142 = vmatprep.subr.bf16.mxu0 %v7702
          %8143 = vmatpush1.bf16.msra.mxu0 %v7701
          %8144 = vmatprep.subr.bf16.mxu0 %v7706
          %8145 = vmatpush1.bf16.msra.mxu0 %v7705
          %8146 = vmatprep.subr.bf16.mxu0 %v7710
          %8147 = vmatpush1.bf16.msra.mxu0 %v7709
          %8148 = vmatprep.subr.bf16.mxu0 %v7714
          %8149 = vmatpush1.bf16.msra.mxu0 %v7713
          %8150 = vmatprep.subr.bf16.mxu0 %v7718
          %8151 = vmatpush1.bf16.msra.mxu0 %v7717
          %8152 = vmatprep.subr.bf16.mxu0 %v7722
          %8153 = vmatpush1.bf16.msra.mxu0 %v7721
          %8154 = vmatprep.subr.bf16.mxu0 %v7726
          %8155 = vmatpush1.bf16.msra.mxu0 %v7725
          %8156 = vmatprep.subr.bf16.mxu0 %v7730
          %8157 = vmatpush1.bf16.msra.mxu0 %v7729
          %8158 = vmatprep.subr.bf16.mxu0 %v7734
          %8159 = vmatpush1.bf16.msra.mxu0 %v7733
          %8160 = vmatprep.subr.bf16.mxu0 %v7738
          %8161 = vmatpush1.bf16.msra.mxu0 %v7737
          %8162 = vmatprep.subr.bf16.mxu0 %v7742
          %8163 = vmatpush1.bf16.msra.mxu0 %v7741
          %8164 = vmatprep.subr.bf16.mxu0 %v7746
          %8165 = vmatpush1.bf16.msra.mxu0 %v7745
          %8166 = vmatprep.subr.bf16.mxu0 %v7750
          %8167 = vmatpush1.bf16.msra.mxu0 %v7749
          %8168 = vmatprep.subr.bf16.mxu0 %v7754
          %8169 = vmatpush1.bf16.msra.mxu0 %v7753
          %8170 = vmatprep.subr.bf16.mxu0 %v7758
          %8171 = vmatpush1.bf16.msra.mxu0 %v7757
          %8172 = vmatprep.subr.bf16.mxu0 %v7762
          %8173 = vmatpush1.bf16.msra.mxu0 %v7761
          %8174 = vmatprep.mubr.bf16.mxu0 %v7055
          %8175 = vmatmul.mubr.bf16.gmra.mrb[0].mxu0 %v7054
          %v8176 = vpop.f32.mrb[0].mxu0
          %v8177 = vadd.f32 0.0, %v8176
          %v8178 = vpop.f32.mrb[0].mxu0
          %v8179 = vadd.f32 0.0, %v8178
          %v8180 = vpop.f32.mrb[0].mxu0
          %v8181 = vpop.f32.mrb[0].mxu0
          %8182 = vdwg.mxu0
          %8183 = vmatprep.subr.bf16.mxu0 %v7766
          %8184 = vmatpush1.bf16.msra.mxu0 %v7765
          %8185 = vmatprep.subr.bf16.mxu0 %v7770
          %8186 = vmatpush1.bf16.msra.mxu0 %v7769
          %8187 = vmatprep.subr.bf16.mxu0 %v7774
          %8188 = vmatpush1.bf16.msra.mxu0 %v7773
          %8189 = vmatprep.subr.bf16.mxu0 %v7778
          %8190 = vmatpush1.bf16.msra.mxu0 %v7777
          %8191 = vmatprep.subr.bf16.mxu0 %v7782
          %8192 = vmatpush1.bf16.msra.mxu0 %v7781
          %8193 = vmatprep.subr.bf16.mxu0 %v7786
          %8194 = vmatpush1.bf16.msra.mxu0 %v7785
          %8195 = vmatprep.subr.bf16.mxu0 %v7790
          %8196 = vmatpush1.bf16.msra.mxu0 %v7789
          %8197 = vmatprep.subr.bf16.mxu0 %v7794
          %8198 = vmatpush1.bf16.msra.mxu0 %v7793
          %8199 = vmatprep.subr.bf16.mxu0 %v7798
          %8200 = vmatpush1.bf16.msra.mxu0 %v7797
          %8201 = vmatprep.subr.bf16.mxu0 %v7802
          %8202 = vmatpush1.bf16.msra.mxu0 %v7801
          %8203 = vmatprep.subr.bf16.mxu0 %v7806
          %8204 = vmatpush1.bf16.msra.mxu0 %v7805
          %8205 = vmatprep.subr.bf16.mxu0 %v7810
          %8206 = vmatpush1.bf16.msra.mxu0 %v7809
          %8207 = vmatprep.subr.bf16.mxu0 %v7814
          %8208 = vmatpush1.bf16.msra.mxu0 %v7813
          %8209 = vmatprep.subr.bf16.mxu0 %v7818
          %8210 = vmatpush1.bf16.msra.mxu0 %v7817
          %8211 = vmatprep.subr.bf16.mxu0 %v7822
          %8212 = vmatpush1.bf16.msra.mxu0 %v7821
          %8213 = vmatprep.subr.bf16.mxu0 %v7826
          %8214 = vmatpush1.bf16.msra.mxu0 %v7825
          %8215 = vmatprep.mubr.bf16.mxu0 %v7057
          %8216 = vmatmul.mubr.bf16.gmra.mrb[0].mxu0 %v7056
          %v8217 = vpop.f32.mrb[0].mxu0
          %v8218 = vadd.f32 %v8177, %v8217
          %v8219 = vpop.f32.mrb[0].mxu0
          %v8220 = vadd.f32 %v8179, %v8219
          %v8221 = vpop.f32.mrb[0].mxu0
          %v8222 = vpop.f32.mrb[0].mxu0
          %8223 = vdwg.mxu0
          %8224 = vmatprep.subr.bf16.mxu0 %v7830
          %8225 = vmatpush1.bf16.msra.mxu0 %v7829
          %8226 = vmatprep.subr.bf16.mxu0 %v7834
          %8227 = vmatpush1.bf16.msra.mxu0 %v7833
          %8228 = vmatprep.subr.bf16.mxu0 %v7838
          %8229 = vmatpush1.bf16.msra.mxu0 %v7837
          %8230 = vmatprep.subr.bf16.mxu0 %v7842
          %8231 = vmatpush1.bf16.msra.mxu0 %v7841
          %8232 = vmatprep.subr.bf16.mxu0 %v7846
          %8233 = vmatpush1.bf16.msra.mxu0 %v7845
          %8234 = vmatprep.subr.bf16.mxu0 %v7850
          %8235 = vmatpush1.bf16.msra.mxu0 %v7849
          %8236 = vmatprep.subr.bf16.mxu0 %v7854
          %8237 = vmatpush1.bf16.msra.mxu0 %v7853
          %8238 = vmatprep.subr.bf16.mxu0 %v7858
          %8239 = vmatpush1.bf16.msra.mxu0 %v7857
          %8240 = vmatprep.subr.bf16.mxu0 0
          %8241 = vmatpush1.bf16.msra.mxu0 0
          %8242 = vmatprep.subr.bf16.mxu0 0
          %8243 = vmatpush1.bf16.msra.mxu0 0
          %8244 = vmatprep.subr.bf16.mxu0 0
          %8245 = vmatpush1.bf16.msra.mxu0 0
          %8246 = vmatprep.subr.bf16.mxu0 0
          %8247 = vmatpush1.bf16.msra.mxu0 0
          %8248 = vmatprep.subr.bf16.mxu0 0
          %8249 = vmatpush1.bf16.msra.mxu0 0
          %8250 = vmatprep.subr.bf16.mxu0 0
          %8251 = vmatpush1.bf16.msra.mxu0 0
          %8252 = vmatprep.subr.bf16.mxu0 0
          %8253 = vmatpush1.bf16.msra.mxu0 0
          %8254 = vmatprep.subr.bf16.mxu0 0
          %8255 = vmatpush1.bf16.msra.mxu0 0
          %8256 = vmatprep.mubr.bf16.mxu0 0
          %8257 = vmatmul.mubr.bf16.gmra.mrb[0].mxu0 %v7058
          %v8258 = vpop.f32.mrb[0].mxu0
          %v8259 = vadd.f32 %v8218, %v8258
          %v8260 = vpop.f32.mrb[0].mxu0
          %v8261 = vadd.f32 %v8220, %v8260
          %v8262 = vpop.f32.mrb[0].mxu0
          %v8263 = vpop.f32.mrb[0].mxu0
          %8264 = vdwg.mxu0
          %8265 = vst [vmem:[%s1845] sm:$0xff] %v8136
          %8266 = vst [vmem:[%s1845 + $0x8] sm:$0xff] %v8138
          %8267 = vst [vmem:[%s1845 + $0x10] sm:$0xff] %v8259
          %8268 = vst [vmem:[%s1845 + $0x18] sm:$0xff] %v8261
        $region70: #{agent_forward.6} parent=57 // pred_fallthru
          _
        %s8269 = smul.u32 4, %s19
        %p8270 = scmp.lt.s32.totalorder %s8269, 7
        %s8271 = scalar_select %p8270, %s8269, 7
        %s8272 = smul.addr %s8271, 8
        %s8273 = scalar_lea.vmem %s4, %s8272
        // Predicated region
        $region71: #{agent_forward.6} parent=57 // pred_check
          %p8274 = pneg %p151
        $region72: #{agent_forward.6} parent=57 // pred_check_branch
          %8276 = sbr.rel (%p8274) target = $region74
        $region73: #{agent_forward.6} parent=57 // pred_region
          %s8277 = smul.u32 4, %s19
        $region74: #{agent_forward.6} parent=57 // pred_fallthru
          _
      $region58: #{agent_forward.6} parent=5 // pred_fallthru
        _
      %p8278 = scmp.le.s32.totalorder 2, %s10
      // Predicated region
      $region75: #{agent_forward.6} parent=5 // pred_check
        %p8279 = pneg %p8278
      $region76: #{agent_forward.6} parent=5 // pred_check_branch
        %8281 = sbr.rel (%p8279) target = $region78
      $region77: #{agent_forward.6} parent=5 // pred_region
        %s8282 = ssub.s32 %s10, 2
        // Predicated region
        $region79: #{agent_forward.6} parent=77 // pred_check
          %p8283 = pneg %p157
        $region80: #{agent_forward.6} parent=77 // pred_check_branch
          %8285 = sbr.rel (%p8283) target = $region82
        $region81: #{agent_forward.6} parent=77 // pred_region
          %s8286 = smul.u32 4, %s21
          %p8287 = scmp.lt.s32.totalorder %s8286, 7
          %s8288 = scalar_select %p8287, %s8286, 7
          %s8289 = smul.addr %s8288, 8
          %s8290 = scalar_lea.vmem %s4, %s8289
        $region82: #{agent_forward.6} parent=77 // pred_fallthru
          _
      $region78: #{agent_forward.6} parent=5 // pred_fallthru
        _
    $region6: #{agent_forward.6} parent=1 // loop_footer
      %s14 = sadd.s32 1, %s10
    $region7: #{agent_forward.6} parent=1 // loop_footer_branch
      %9 = sbr.rel target = $region3
    $region8: #{agent_forward.6} parent=1 // loop_exit
      _

</llo_original>
